<compile_context>
chip_gen: v5e
topology: v5e:2x2
jax: 0.10.0
libtpu: 0.0.40
codegen_flags: <defaults>
</compile_context>

<pallas_src>
import functools

import numpy as np
import jax
import jax.numpy as jnp
from jax import lax
from jax.experimental import pallas as pl
from jax.experimental.pallas import tpu as pltpu

KH = KW = 5  # conv kernel size fixed by the module


# ----------------------------------------------------------------------------
# One-time host-side parameter preparation (block-Toeplitz conv matrices,
# pool-candidate column grouping, fc weight layout).
# ----------------------------------------------------------------------------
def _conv1_toeplitz(w, img_w):
    """Conv1 as a GEMM: rows index the folded input window of one pooled
    output row, columns are (pool-candidate, pooled-col, cout)."""
    w = np.asarray(w, np.float32)
    cout, cin, kh, kw = w.shape
    ow = img_w - kw + 1                 # 60
    pw = ow // 2                        # 30 (pooled width)
    nd = (kh + 1) // 2                  # 3 folded-row pieces per channel
    K = cin * nd * 2 * img_w            # 1152
    N = 4 * pw * cout                   # 720 (4 pool candidates x 30 x 6)
    B = np.zeros((K, N), np.float32)
    for c in range(cin):
        for i in range(kh):
            for jw in range(kw):
                for ha in range(2):                     # row inside pool window
                    d, p = divmod(ha + i, 2)            # folded row piece / parity
                    for wb in range(2):                 # col inside pool window
                        for n in range(pw):             # pooled output column
                            ww = 2 * n + wb + jw
                            row = (c * nd + d) * (2 * img_w) + p * img_w + ww
                            col = ((ha * 2 + wb) * pw + n) * cout
                            B[row, col:col + cout] = w[:, c, i, jw]
    return B


def _conv2_toeplitz(w, in_w):
    """Conv2 as a GEMM: rows index the conv1-pooled map in (kh, w, c) order,
    columns are (W-pool candidate, pooled-col, cout)."""
    w = np.asarray(w, np.float32)
    cout, cin, kh, kw = w.shape
    ow = in_w - kw + 1                  # 26
    pw = ow // 2                        # 13
    K = kh * in_w * cin                 # 900
    N = 2 * pw * cout                   # 416
    B = np.zeros((K, N), np.float32)
    for o_in in range(cin):
        for i in range(kh):
            for jw in range(kw):
                for wf in range(2):
                    for t in range(pw):
                        n = 2 * t + wf + jw
                        row = (i * in_w + n) * cin + o_in
                        col = (wf * pw + t) * cout
                        B[row, col:col + cout] = w[:, o_in, i, jw]
    return B


def prepare_params(params, image_hw=(64, 64)):
    """Hoisted, one-time conversion of PyTorch-style weights to kernel layout."""
    H, W = image_hw
    c1w = np.asarray(params["conv1_w"], np.float32)    # (6, 3, 5, 5)
    c2w = np.asarray(params["conv2_w"], np.float32)    # (16, 6, 5, 5)
    c1b = np.asarray(params["conv1_b"], np.float32)
    c2b = np.asarray(params["conv2_b"], np.float32)
    f1w = np.asarray(params["fc1_w"], np.float32)      # (60, 16*13*13)
    f1b = np.asarray(params["fc1_b"], np.float32)
    f2w = np.asarray(params["fc2_w"], np.float32)      # (nc, 60)
    f2b = np.asarray(params["fc2_b"], np.float32)

    cout1, cout2 = c1w.shape[0], c2w.shape[0]
    pw1 = (W - KW + 1) // 2             # 30 (conv2 input width)
    ow2 = pw1 - KW + 1                  # 26
    pw2 = ow2 // 2                      # 13
    ph2 = ((H - KH + 1) // 2 - KH + 1) // 2   # 13

    B1 = _conv1_toeplitz(c1w, W)                         # (1152, 720)
    B2 = _conv2_toeplitz(c2w, pw1)                       # (900, 416)
    b1row = np.tile(c1b, B1.shape[1] // cout1)[None]     # (1, 720)
    b2row = np.tile(c2b, B2.shape[1] // cout2)[None]     # (1, 416)

    # fc1: permute columns from torch (c, h, w) flatten order to the kernel's
    # (h, w, c) feature layout, then transpose for an `x @ W` GEMM.
    W1 = f1w.reshape(-1, cout2, ph2, pw2).transpose(0, 2, 3, 1)
    W1 = W1.reshape(f1w.shape[0], -1).T                  # (2704, 60)
    W2 = f2w.T                                           # (60, nc)

    j = lambda a: jnp.asarray(a, jnp.float32)
    return {
        "cw1": j(B1), "cb1": j(b1row),
        "cw2": j(B2), "cb2": j(b2row),
        "fw1": j(W1), "fb1": j(f1b[None]),
        "fw2": j(W2), "fb2": j(f2b[None]),
    }


# ----------------------------------------------------------------------------
# Fused whole-network kernel (one batch element per grid step).
# ----------------------------------------------------------------------------
def _net_kernel(x_ref, cw1_ref, cb1_ref, cw2_ref, cb2_ref,
                fw1_ref, fb1_ref, fw2_ref, fb2_ref, o_ref,
                *, cin, kh, m1, blk1, m2, blk2, ph2):
    f32 = jnp.float32
    nd = (kh + 1) // 2

    # ------- conv1 + bias + relu + 2x2 maxpool : one MXU GEMM -------
    # x: input with row pairs folded into lanes, shape (Cin, H/2, 2*W).
    x = x_ref[0]
    l1 = jnp.concatenate(
        [x[c, d:d + m1, :] for c in range(cin) for d in range(nd)], axis=1)
    g1 = jnp.dot(l1, cw1_ref[...], preferred_element_type=f32)      # (30, 720)
    g1 = jnp.maximum(g1 + cb1_ref[...], 0.0)
    # columns are grouped into 4 pool-candidate blocks of width blk1
    p1 = jnp.maximum(
        jnp.maximum(g1[:, 0 * blk1:1 * blk1], g1[:, 1 * blk1:2 * blk1]),
        jnp.maximum(g1[:, 2 * blk1:3 * blk1], g1[:, 3 * blk1:4 * blk1]))
    # p1: (30, 180) == pooled1 in (h, w*C1 + c) layout

    # ------- conv2 + bias + relu + W-pool : one MXU GEMM -------
    l2 = jnp.concatenate([p1[d:d + m2, :] for d in range(kh)], axis=1)
    g2 = jnp.dot(l2, cw2_ref[...], preferred_element_type=f32)      # (26, 416)
    g2 = jnp.maximum(g2 + cb2_ref[...], 0.0)
    wp2 = jnp.maximum(g2[:, :blk2], g2[:, blk2:])                   # (26, 208)

    # ------- H-pool 26 -> 13 via 0/1 selection matmuls (no strided reads) ---
    ri = lax.broadcasted_iota(jnp.int32, (ph2, m2), 0)
    ci = lax.broadcasted_iota(jnp.int32, (ph2, m2), 1)
    sel_e = (ci == 2 * ri).astype(f32)
    sel_o = (ci == 2 * ri + 1).astype(f32)
    fmap = jnp.maximum(jnp.dot(sel_e, wp2, preferred_element_type=f32),
                       jnp.dot(sel_o, wp2, preferred_element_type=f32))
    # fmap: (13, 208) == pooled2 in (h, w*C2 + c) layout

    # ------- flatten (torch order folded into fc1 weights) + fc1 + fc2 -------
    xf = jnp.concatenate([fmap[i:i + 1, :] for i in range(ph2)], axis=1)
    h = jnp.dot(xf, fw1_ref[...], preferred_element_type=f32) + fb1_ref[...]
    h = jnp.maximum(h, 0.0)
    y = jnp.dot(h, fw2_ref[...], preferred_element_type=f32) + fb2_ref[...]
    o_ref[0] = y.astype(o_ref.dtype)


@jax.jit
def net_forward(x_nchw, prepped):
    N, cin, H, W = x_nchw.shape
    # Free row-major reshape: fold input row pairs into the lane dimension.
    x2 = x_nchw.reshape(N, cin, H // 2, 2 * W)

    m1 = (H - KH + 1) // 2                 # 30 : pooled conv1 height (GEMM-1 M)
    blk1 = prepped["cw1"].shape[1] // 4    # 180
    m2 = m1 - KH + 1                       # 26 : conv2 output height (GEMM-2 M)
    blk2 = prepped["cw2"].shape[1] // 2    # 208
    ph2 = m2 // 2                          # 13
    num_class = prepped["fw2"].shape[1]

    kernel = functools.partial(_net_kernel, cin=cin, kh=KH, m1=m1, blk1=blk1,
                               m2=m2, blk2=blk2, ph2=ph2)
    const = lambda n: (0, 0)
    out = pl.pallas_call(
        kernel,
        out_shape=jax.ShapeDtypeStruct((N, 1, num_class), jnp.float32),
        grid=(N,),
        in_specs=[
            pl.BlockSpec((1, cin, H // 2, 2 * W), lambda n: (n, 0, 0, 0)),
            pl.BlockSpec(prepped["cw1"].shape, const),
            pl.BlockSpec(prepped["cb1"].shape, const),
            pl.BlockSpec(prepped["cw2"].shape, const),
            pl.BlockSpec(prepped["cb2"].shape, const),
            pl.BlockSpec(prepped["fw1"].shape, const),
            pl.BlockSpec(prepped["fb1"].shape, const),
            pl.BlockSpec(prepped["fw2"].shape, const),
            pl.BlockSpec(prepped["fb2"].shape, const),
        ],
        out_specs=pl.BlockSpec((1, 1, num_class), lambda n: (n, 0, 0)),
        # batch is the parallel axis (feeds both v7x TensorCores at batch>=2)
        compiler_params=pltpu.CompilerParams(
            dimension_semantics=("parallel",),
            vmem_limit_bytes=32 * 1024 * 1024),
    )(x2, prepped["cw1"], prepped["cb1"], prepped["cw2"], prepped["cb2"],
      prepped["fw1"], prepped["fb1"], prepped["fw2"], prepped["fb2"])
    return out.reshape(N, num_class)


# ----------------------------------------------------------------------------
# Pure-JAX reference (sanity check against the Pallas kernel).
# ----------------------------------------------------------------------------
def reference_forward(x, params):
    dn = ("NCHW", "OIHW", "NCHW")
    y = lax.conv_general_dilated(x, params["conv1_w"], (1, 1), "VALID",
                                 dimension_numbers=dn)
    y = jnp.maximum(y + params["conv1_b"][None, :, None, None], 0.0)
    y = lax.reduce_window(y, -jnp.inf, lax.max, (1, 1, 2, 2), (1, 1, 2, 2), "VALID")
    y = lax.conv_general_dilated(y, params["conv2_w"], (1, 1), "VALID",
                                 dimension_numbers=dn)
    y = jnp.maximum(y + params["conv2_b"][None, :, None, None], 0.0)
    y = lax.reduce_window(y, -jnp.inf, lax.max, (1, 1, 2, 2), (1, 1, 2, 2), "VALID")
    f = y.reshape(x.shape[0], -1)
    f = jnp.maximum(f @ params["fc1_w"].T + params["fc1_b"], 0.0)
    return f @ params["fc2_w"].T + params["fc2_b"]


if __name__ == "__main__":
    num_class = 10
    batch = 2
    # fc1 expects 16*13*13 features => input spatial size must be 64x64.
    key = jax.random.PRNGKey(0)
    ks = jax.random.split(key, 9)
    params = {
        "conv1_w": 0.10 * jax.random.normal(ks[0], (6, 3, 5, 5), jnp.float32),
        "conv1_b": 0.10 * jax.random.normal(ks[1], (6,), jnp.float32),
        "conv2_w": 0.05 * jax.random.normal(ks[2], (16, 6, 5, 5), jnp.float32),
        "conv2_b": 0.05 * jax.random.normal(ks[3], (16,), jnp.float32),
        "fc1_w": 0.02 * jax.random.normal(ks[4], (60, 16 * 13 * 13), jnp.float32),
        "fc1_b": 0.02 * jax.random.normal(ks[5], (60,), jnp.float32),
        "fc2_w": 0.10 * jax.random.normal(ks[6], (num_class, 60), jnp.float32),
        "fc2_b": 0.10 * jax.random.normal(ks[7], (num_class,), jnp.float32),
    }
    x = jax.random.normal(ks[8], (batch, 3, 64, 64), jnp.float32)

    prepped = prepare_params(params, image_hw=(64, 64))  # one-time weight prep
    out = jax.block_until_ready(net_forward(x, prepped))
    assert out.shape == (batch, num_class), out.shape

    ref = jax.block_until_ready(reference_forward(x, params))
    assert jnp.allclose(out, ref, rtol=1e-2, atol=1e-2), (
        f"max abs diff {jnp.max(jnp.abs(out - ref))}")

    print("KERNEL_OK")
</pallas_src>

<mosaic_0001>
module attributes {stable_mosaic.version = 11 : i64} {
  func.func @_net_kernel(%arg0: i32, %arg1: memref<1x3x32x128xf32, #tpu.memory_space<vmem>>, %arg2: memref<1152x720xf32, #tpu.memory_space<vmem>>, %arg3: memref<1x720xf32, #tpu.memory_space<vmem>>, %arg4: memref<900x416xf32, #tpu.memory_space<vmem>>, %arg5: memref<1x416xf32, #tpu.memory_space<vmem>>, %arg6: memref<2704x60xf32, #tpu.memory_space<vmem>>, %arg7: memref<1x60xf32, #tpu.memory_space<vmem>>, %arg8: memref<60x10xf32, #tpu.memory_space<vmem>>, %arg9: memref<1x10xf32, #tpu.memory_space<vmem>>, %arg10: memref<1x1x10xf32, #tpu.memory_space<vmem>>) attributes {dimension_semantics = [#tpu.dimension_semantics<parallel>], iteration_bounds = array<i64: 2>, scalar_prefetch = 0 : i64, scratch_operands = 0 : i64, tpu.core_type = #tpu.core_type<tc>, window_params = [{transform_indices = @transform_0, window_bounds = array<i64: 1, 3, 32, 128>}, {pipeline_mode = #tpu.pipeline_mode<synchronous>, transform_indices = @transform_1, window_bounds = array<i64: 1152, 720>}, {pipeline_mode = #tpu.pipeline_mode<synchronous>, transform_indices = @transform_2, window_bounds = array<i64: 1, 720>}, {pipeline_mode = #tpu.pipeline_mode<synchronous>, transform_indices = @transform_3, window_bounds = array<i64: 900, 416>}, {pipeline_mode = #tpu.pipeline_mode<synchronous>, transform_indices = @transform_4, window_bounds = array<i64: 1, 416>}, {pipeline_mode = #tpu.pipeline_mode<synchronous>, transform_indices = @transform_5, window_bounds = array<i64: 2704, 60>}, {pipeline_mode = #tpu.pipeline_mode<synchronous>, transform_indices = @transform_6, window_bounds = array<i64: 1, 60>}, {pipeline_mode = #tpu.pipeline_mode<synchronous>, transform_indices = @transform_7, window_bounds = array<i64: 60, 10>}, {pipeline_mode = #tpu.pipeline_mode<synchronous>, transform_indices = @transform_8, window_bounds = array<i64: 1, 10>}, {transform_indices = @transform_9, window_bounds = array<i64: 1, 1, 10>}]} {
    %c0 = arith.constant 0 : index
    %c0_0 = arith.constant 0 : index
    %c0_1 = arith.constant 0 : index
    %c0_2 = arith.constant 0 : index
    %0 = vector.load %arg1[%c0, %c0_0, %c0_1, %c0_2] : memref<1x3x32x128xf32, #tpu.memory_space<vmem>>, vector<1x3x32x128xf32>
    %1 = vector.shape_cast %0 : vector<1x3x32x128xf32> to vector<3x32x128xf32>
    %2 = vector.extract_strided_slice %1 {offsets = [0, 0, 0], sizes = [1, 30, 128], strides = [1, 1, 1]} : vector<3x32x128xf32> to vector<1x30x128xf32>
    %3 = vector.shape_cast %2 : vector<1x30x128xf32> to vector<30x128xf32>
    %4 = vector.extract_strided_slice %1 {offsets = [0, 1, 0], sizes = [1, 30, 128], strides = [1, 1, 1]} : vector<3x32x128xf32> to vector<1x30x128xf32>
    %5 = vector.shape_cast %4 : vector<1x30x128xf32> to vector<30x128xf32>
    %6 = vector.extract_strided_slice %1 {offsets = [0, 2, 0], sizes = [1, 30, 128], strides = [1, 1, 1]} : vector<3x32x128xf32> to vector<1x30x128xf32>
    %7 = vector.shape_cast %6 : vector<1x30x128xf32> to vector<30x128xf32>
    %8 = vector.extract_strided_slice %1 {offsets = [1, 0, 0], sizes = [1, 30, 128], strides = [1, 1, 1]} : vector<3x32x128xf32> to vector<1x30x128xf32>
    %9 = vector.shape_cast %8 : vector<1x30x128xf32> to vector<30x128xf32>
    %10 = vector.extract_strided_slice %1 {offsets = [1, 1, 0], sizes = [1, 30, 128], strides = [1, 1, 1]} : vector<3x32x128xf32> to vector<1x30x128xf32>
    %11 = vector.shape_cast %10 : vector<1x30x128xf32> to vector<30x128xf32>
    %12 = vector.extract_strided_slice %1 {offsets = [1, 2, 0], sizes = [1, 30, 128], strides = [1, 1, 1]} : vector<3x32x128xf32> to vector<1x30x128xf32>
    %13 = vector.shape_cast %12 : vector<1x30x128xf32> to vector<30x128xf32>
    %14 = vector.extract_strided_slice %1 {offsets = [2, 0, 0], sizes = [1, 30, 128], strides = [1, 1, 1]} : vector<3x32x128xf32> to vector<1x30x128xf32>
    %15 = vector.shape_cast %14 : vector<1x30x128xf32> to vector<30x128xf32>
    %16 = vector.extract_strided_slice %1 {offsets = [2, 1, 0], sizes = [1, 30, 128], strides = [1, 1, 1]} : vector<3x32x128xf32> to vector<1x30x128xf32>
    %17 = vector.shape_cast %16 : vector<1x30x128xf32> to vector<30x128xf32>
    %18 = vector.extract_strided_slice %1 {offsets = [2, 2, 0], sizes = [1, 30, 128], strides = [1, 1, 1]} : vector<3x32x128xf32> to vector<1x30x128xf32>
    %19 = vector.shape_cast %18 : vector<1x30x128xf32> to vector<30x128xf32>
    %20 = tpu.concatenate %3, %5, %7, %9, %11, %13, %15, %17, %19 in 1 : vector<30x128xf32>, vector<30x128xf32>, vector<30x128xf32>, vector<30x128xf32>, vector<30x128xf32>, vector<30x128xf32>, vector<30x128xf32>, vector<30x128xf32>, vector<30x128xf32> -> vector<30x1152xf32>
    %c0_3 = arith.constant 0 : index
    %c0_4 = arith.constant 0 : index
    %21 = vector.load %arg2[%c0_3, %c0_4] : memref<1152x720xf32, #tpu.memory_space<vmem>>, vector<1152x720xf32>
    %cst = arith.constant dense<0.000000e+00> : vector<30x720xf32>
    %22 = tpu.matmul %20, %21, %cst {dimension_numbers = #tpu.dot_dimension_numbers<[1], [0], [0], [1], [0, 0, 1, 1], [], []>} : vector<30x1152xf32>, vector<1152x720xf32>, vector<30x720xf32> -> vector<30x720xf32>
    %c0_5 = arith.constant 0 : index
    %c0_6 = arith.constant 0 : index
    %23 = vector.load %arg3[%c0_5, %c0_6] : memref<1x720xf32, #tpu.memory_space<vmem>>, vector<1x720xf32>
    %24 = vector.broadcast %23 : vector<1x720xf32> to vector<30x720xf32>
    %25 = arith.addf %22, %24 : vector<30x720xf32>
    %cst_7 = arith.constant 0.000000e+00 : f32
    %26 = vector.broadcast %cst_7 : f32 to vector<30x720xf32>
    %27 = arith.maximumf %25, %26 : vector<30x720xf32>
    %28 = vector.extract_strided_slice %27 {offsets = [0, 0], sizes = [30, 180], strides = [1, 1]} : vector<30x720xf32> to vector<30x180xf32>
    %29 = vector.extract_strided_slice %27 {offsets = [0, 180], sizes = [30, 180], strides = [1, 1]} : vector<30x720xf32> to vector<30x180xf32>
    %30 = arith.maximumf %28, %29 : vector<30x180xf32>
    %31 = vector.extract_strided_slice %27 {offsets = [0, 360], sizes = [30, 180], strides = [1, 1]} : vector<30x720xf32> to vector<30x180xf32>
    %32 = vector.extract_strided_slice %27 {offsets = [0, 540], sizes = [30, 180], strides = [1, 1]} : vector<30x720xf32> to vector<30x180xf32>
    %33 = arith.maximumf %31, %32 : vector<30x180xf32>
    %34 = arith.maximumf %30, %33 : vector<30x180xf32>
    %35 = vector.extract_strided_slice %34 {offsets = [0, 0], sizes = [26, 180], strides = [1, 1]} : vector<30x180xf32> to vector<26x180xf32>
    %36 = vector.extract_strided_slice %34 {offsets = [1, 0], sizes = [26, 180], strides = [1, 1]} : vector<30x180xf32> to vector<26x180xf32>
    %37 = vector.extract_strided_slice %34 {offsets = [2, 0], sizes = [26, 180], strides = [1, 1]} : vector<30x180xf32> to vector<26x180xf32>
    %38 = vector.extract_strided_slice %34 {offsets = [3, 0], sizes = [26, 180], strides = [1, 1]} : vector<30x180xf32> to vector<26x180xf32>
    %39 = vector.extract_strided_slice %34 {offsets = [4, 0], sizes = [26, 180], strides = [1, 1]} : vector<30x180xf32> to vector<26x180xf32>
    %40 = tpu.concatenate %35, %36, %37, %38, %39 in 1 : vector<26x180xf32>, vector<26x180xf32>, vector<26x180xf32>, vector<26x180xf32>, vector<26x180xf32> -> vector<26x900xf32>
    %c0_8 = arith.constant 0 : index
    %c0_9 = arith.constant 0 : index
    %41 = vector.load %arg4[%c0_8, %c0_9] : memref<900x416xf32, #tpu.memory_space<vmem>>, vector<900x416xf32>
    %cst_10 = arith.constant dense<0.000000e+00> : vector<26x416xf32>
    %42 = tpu.matmul %40, %41, %cst_10 {dimension_numbers = #tpu.dot_dimension_numbers<[1], [0], [0], [1], [0, 0, 1, 1], [], []>} : vector<26x900xf32>, vector<900x416xf32>, vector<26x416xf32> -> vector<26x416xf32>
    %c0_11 = arith.constant 0 : index
    %c0_12 = arith.constant 0 : index
    %43 = vector.load %arg5[%c0_11, %c0_12] : memref<1x416xf32, #tpu.memory_space<vmem>>, vector<1x416xf32>
    %44 = vector.broadcast %43 : vector<1x416xf32> to vector<26x416xf32>
    %45 = arith.addf %42, %44 : vector<26x416xf32>
    %cst_13 = arith.constant 0.000000e+00 : f32
    %46 = vector.broadcast %cst_13 : f32 to vector<26x416xf32>
    %47 = arith.maximumf %45, %46 : vector<26x416xf32>
    %48 = vector.extract_strided_slice %47 {offsets = [0, 0], sizes = [26, 208], strides = [1, 1]} : vector<26x416xf32> to vector<26x208xf32>
    %49 = vector.extract_strided_slice %47 {offsets = [0, 208], sizes = [26, 208], strides = [1, 1]} : vector<26x416xf32> to vector<26x208xf32>
    %50 = arith.maximumf %48, %49 : vector<26x208xf32>
    %51 = tpu.iota {dimensions = array<i32: 0>} : vector<13x26xi32>
    %52 = tpu.iota {dimensions = array<i32: 1>} : vector<13x26xi32>
    %c2_i32 = arith.constant 2 : i32
    %53 = vector.broadcast %c2_i32 : i32 to vector<13x26xi32>
    %54 = arith.muli %53, %51 : vector<13x26xi32>
    %55 = arith.cmpi eq, %52, %54 : vector<13x26xi32>
    %56 = arith.extui %55 : vector<13x26xi1> to vector<13x26xi32>
    %57 = arith.sitofp %56 : vector<13x26xi32> to vector<13x26xf32>
    %c2_i32_14 = arith.constant 2 : i32
    %58 = vector.broadcast %c2_i32_14 : i32 to vector<13x26xi32>
    %59 = arith.muli %58, %51 : vector<13x26xi32>
    %c1_i32 = arith.constant 1 : i32
    %60 = vector.broadcast %c1_i32 : i32 to vector<13x26xi32>
    %61 = arith.addi %59, %60 : vector<13x26xi32>
    %62 = arith.cmpi eq, %52, %61 : vector<13x26xi32>
    %63 = arith.extui %62 : vector<13x26xi1> to vector<13x26xi32>
    %64 = arith.sitofp %63 : vector<13x26xi32> to vector<13x26xf32>
    %cst_15 = arith.constant dense<0.000000e+00> : vector<13x208xf32>
    %65 = tpu.matmul %57, %50, %cst_15 {dimension_numbers = #tpu.dot_dimension_numbers<[1], [0], [0], [1], [0, 0, 1, 1], [], []>} : vector<13x26xf32>, vector<26x208xf32>, vector<13x208xf32> -> vector<13x208xf32>
    %cst_16 = arith.constant dense<0.000000e+00> : vector<13x208xf32>
    %66 = tpu.matmul %64, %50, %cst_16 {dimension_numbers = #tpu.dot_dimension_numbers<[1], [0], [0], [1], [0, 0, 1, 1], [], []>} : vector<13x26xf32>, vector<26x208xf32>, vector<13x208xf32> -> vector<13x208xf32>
    %67 = arith.maximumf %65, %66 : vector<13x208xf32>
    %68 = vector.extract_strided_slice %67 {offsets = [0, 0], sizes = [1, 208], strides = [1, 1]} : vector<13x208xf32> to vector<1x208xf32>
    %69 = vector.extract_strided_slice %67 {offsets = [1, 0], sizes = [1, 208], strides = [1, 1]} : vector<13x208xf32> to vector<1x208xf32>
    %70 = vector.extract_strided_slice %67 {offsets = [2, 0], sizes = [1, 208], strides = [1, 1]} : vector<13x208xf32> to vector<1x208xf32>
    %71 = vector.extract_strided_slice %67 {offsets = [3, 0], sizes = [1, 208], strides = [1, 1]} : vector<13x208xf32> to vector<1x208xf32>
    %72 = vector.extract_strided_slice %67 {offsets = [4, 0], sizes = [1, 208], strides = [1, 1]} : vector<13x208xf32> to vector<1x208xf32>
    %73 = vector.extract_strided_slice %67 {offsets = [5, 0], sizes = [1, 208], strides = [1, 1]} : vector<13x208xf32> to vector<1x208xf32>
    %74 = vector.extract_strided_slice %67 {offsets = [6, 0], sizes = [1, 208], strides = [1, 1]} : vector<13x208xf32> to vector<1x208xf32>
    %75 = vector.extract_strided_slice %67 {offsets = [7, 0], sizes = [1, 208], strides = [1, 1]} : vector<13x208xf32> to vector<1x208xf32>
    %76 = vector.extract_strided_slice %67 {offsets = [8, 0], sizes = [1, 208], strides = [1, 1]} : vector<13x208xf32> to vector<1x208xf32>
    %77 = vector.extract_strided_slice %67 {offsets = [9, 0], sizes = [1, 208], strides = [1, 1]} : vector<13x208xf32> to vector<1x208xf32>
    %78 = vector.extract_strided_slice %67 {offsets = [10, 0], sizes = [1, 208], strides = [1, 1]} : vector<13x208xf32> to vector<1x208xf32>
    %79 = vector.extract_strided_slice %67 {offsets = [11, 0], sizes = [1, 208], strides = [1, 1]} : vector<13x208xf32> to vector<1x208xf32>
    %80 = vector.extract_strided_slice %67 {offsets = [12, 0], sizes = [1, 208], strides = [1, 1]} : vector<13x208xf32> to vector<1x208xf32>
    %81 = tpu.concatenate %68, %69, %70, %71, %72, %73, %74, %75, %76, %77, %78, %79, %80 in 1 : vector<1x208xf32>, vector<1x208xf32>, vector<1x208xf32>, vector<1x208xf32>, vector<1x208xf32>, vector<1x208xf32>, vector<1x208xf32>, vector<1x208xf32>, vector<1x208xf32>, vector<1x208xf32>, vector<1x208xf32>, vector<1x208xf32>, vector<1x208xf32> -> vector<1x2704xf32>
    %c0_17 = arith.constant 0 : index
    %c0_18 = arith.constant 0 : index
    %82 = vector.load %arg6[%c0_17, %c0_18] : memref<2704x60xf32, #tpu.memory_space<vmem>>, vector<2704x60xf32>
    %cst_19 = arith.constant dense<0.000000e+00> : vector<1x60xf32>
    %83 = tpu.matmul %81, %82, %cst_19 {dimension_numbers = #tpu.dot_dimension_numbers<[1], [0], [0], [1], [0, 0, 1, 1], [], []>} : vector<1x2704xf32>, vector<2704x60xf32>, vector<1x60xf32> -> vector<1x60xf32>
    %c0_20 = arith.constant 0 : index
    %c0_21 = arith.constant 0 : index
    %84 = vector.load %arg7[%c0_20, %c0_21] : memref<1x60xf32, #tpu.memory_space<vmem>>, vector<1x60xf32>
    %85 = arith.addf %83, %84 : vector<1x60xf32>
    %cst_22 = arith.constant 0.000000e+00 : f32
    %86 = vector.broadcast %cst_22 : f32 to vector<1x60xf32>
    %87 = arith.maximumf %85, %86 : vector<1x60xf32>
    %c0_23 = arith.constant 0 : index
    %c0_24 = arith.constant 0 : index
    %88 = vector.load %arg8[%c0_23, %c0_24] : memref<60x10xf32, #tpu.memory_space<vmem>>, vector<60x10xf32>
    %cst_25 = arith.constant dense<0.000000e+00> : vector<1x10xf32>
    %89 = tpu.matmul %87, %88, %cst_25 {dimension_numbers = #tpu.dot_dimension_numbers<[1], [0], [0], [1], [0, 0, 1, 1], [], []>} : vector<1x60xf32>, vector<60x10xf32>, vector<1x10xf32> -> vector<1x10xf32>
    %c0_26 = arith.constant 0 : index
    %c0_27 = arith.constant 0 : index
    %90 = vector.load %arg9[%c0_26, %c0_27] : memref<1x10xf32, #tpu.memory_space<vmem>>, vector<1x10xf32>
    %91 = arith.addf %89, %90 : vector<1x10xf32>
    %c0_28 = arith.constant 0 : index
    %c0_29 = arith.constant 0 : index
    %c0_30 = arith.constant 0 : index
    %92 = vector.load %arg10[%c0_28, %c0_29, %c0_30] : memref<1x1x10xf32, #tpu.memory_space<vmem>>, vector<1x1x10xf32>
    %93 = vector.shape_cast %92 : vector<1x1x10xf32> to vector<1x10xf32>
    %94 = vector.shape_cast %91 : vector<1x10xf32> to vector<1x1x10xf32>
    tpu.vector_store %arg10[%c0_28, %c0_29, %c0_30], %94 {strides = array<i32>} : memref<1x1x10xf32, #tpu.memory_space<vmem>>, vector<1x1x10xf32>,
    return
  }
  func.func @transform_0(%arg0: i32) -> (i32, i32, i32, i32) {
    %c0_i32 = arith.constant 0 : i32
    %c0_i32_0 = arith.constant 0 : i32
    %c0_i32_1 = arith.constant 0 : i32
    %c0_i32_2 = arith.constant 0 : i32
    return %arg0, %c0_i32, %c0_i32_0, %c0_i32_1 : i32, i32, i32, i32
  }
  func.func @transform_1(%arg0: i32) -> (i32, i32) {
    %c0_i32 = arith.constant 0 : i32
    %c0_i32_0 = arith.constant 0 : i32
    %c0_i32_1 = arith.constant 0 : i32
    return %c0_i32, %c0_i32_0 : i32, i32
  }
  func.func @transform_2(%arg0: i32) -> (i32, i32) {
    %c0_i32 = arith.constant 0 : i32
    %c0_i32_0 = arith.constant 0 : i32
    %c0_i32_1 = arith.constant 0 : i32
    return %c0_i32, %c0_i32_0 : i32, i32
  }
  func.func @transform_3(%arg0: i32) -> (i32, i32) {
    %c0_i32 = arith.constant 0 : i32
    %c0_i32_0 = arith.constant 0 : i32
    %c0_i32_1 = arith.constant 0 : i32
    return %c0_i32, %c0_i32_0 : i32, i32
  }
  func.func @transform_4(%arg0: i32) -> (i32, i32) {
    %c0_i32 = arith.constant 0 : i32
    %c0_i32_0 = arith.constant 0 : i32
    %c0_i32_1 = arith.constant 0 : i32
    return %c0_i32, %c0_i32_0 : i32, i32
  }
  func.func @transform_5(%arg0: i32) -> (i32, i32) {
    %c0_i32 = arith.constant 0 : i32
    %c0_i32_0 = arith.constant 0 : i32
    %c0_i32_1 = arith.constant 0 : i32
    return %c0_i32, %c0_i32_0 : i32, i32
  }
  func.func @transform_6(%arg0: i32) -> (i32, i32) {
    %c0_i32 = arith.constant 0 : i32
    %c0_i32_0 = arith.constant 0 : i32
    %c0_i32_1 = arith.constant 0 : i32
    return %c0_i32, %c0_i32_0 : i32, i32
  }
  func.func @transform_7(%arg0: i32) -> (i32, i32) {
    %c0_i32 = arith.constant 0 : i32
    %c0_i32_0 = arith.constant 0 : i32
    %c0_i32_1 = arith.constant 0 : i32
    return %c0_i32, %c0_i32_0 : i32, i32
  }
  func.func @transform_8(%arg0: i32) -> (i32, i32) {
    %c0_i32 = arith.constant 0 : i32
    %c0_i32_0 = arith.constant 0 : i32
    %c0_i32_1 = arith.constant 0 : i32
    return %c0_i32, %c0_i32_0 : i32, i32
  }
  func.func @transform_9(%arg0: i32) -> (i32, i32, i32) {
    %c0_i32 = arith.constant 0 : i32
    %c0_i32_0 = arith.constant 0 : i32
    %c0_i32_1 = arith.constant 0 : i32
    return %arg0, %c0_i32, %c0_i32_0 : i32, i32, i32
  }
}

</mosaic_0001>

<llo_original>
// kernel: net_forward.1
$region0: #{net_forward.1}
  #allocation0 [shape = 'u32[]', space=smem, size = 0x4, offset = 0x4, fixed_abs, tag = 'smem constant byte address 0x4 - core index']
  #allocation1 [shape = 'u32[72,128]{1,0:T(1,128)}', space=vmem, size = 0x9000, scoped, tag = 'internal scratch']
  %s0 = inlined_call_operand.vmem [shape: f32[2,3,32,128], index: 0, kind: input, shape index: {}]
  %s1 = inlined_call_operand.vmem [shape: f32[1152,720], index: 1, kind: input, shape index: {}]
  %s2 = inlined_call_operand.vmem [shape: f32[1,720], index: 2, kind: input, shape index: {}]
  %s3 = inlined_call_operand.vmem [shape: f32[900,416], index: 3, kind: input, shape index: {}]
  %s4 = inlined_call_operand.vmem [shape: f32[1,416], index: 4, kind: input, shape index: {}]
  %s5 = inlined_call_operand.vmem [shape: f32[2704,60], index: 5, kind: input, shape index: {}]
  %s6 = inlined_call_operand.vmem [shape: f32[1,60], index: 6, kind: input, shape index: {}]
  %s7 = inlined_call_operand.vmem [shape: f32[60,10], index: 7, kind: input, shape index: {}]
  %s8 = inlined_call_operand.vmem [shape: f32[1,10], index: 8, kind: input, shape index: {}]
  %s9 = inlined_call_operand.hbm [shape: f32[2,1,10], index: 9, kind: output, shape index: {}]
  %s10 = sld [smem:[#allocation0]]
  $region69: #{net_forward.1} parent=0
    _
  %s12 = ssub.s32 1, %s10
  %s13 = scalar_select 0, %s12, %s10
  $region1: #{net_forward.1} parent=0
    #allocation2 [shape = 'u8[1024]{0}', space=vmem, size = 0x400, scoped, tag = 'output window, operand 0']
    #allocation3 [shape = 's32[2]{0}', space=sflag, size = 0x8, scoped, tag = 'scoped memory for net_forward.1']
    %14 = vsyncpa [#allocation3], 0
    %s15 = scalar_lea.sflag [#allocation3], 1
    %16 = vsyncpa %s15, 0
    loop: start=0, step=1, limit=4
    $region2: #{net_forward.1} parent=1 // loop_pre_header
      _
    $region3: #{net_forward.1} parent=1 // loop_header
      %s18 = sphi 0, %s22
      %p19 = scmp.ge.s32.totalorder %s18, 4
      %s28 = sphi 0, %s30
      %s31 = sphi 0, %s28
      %s32 = sphi 0, %s31
      %s48 = sphi 0, %s32
      %s52 = sphi 0, %s52
      %s54 = sphi 0, %s52
      %s55 = sphi 0, %s54
      %s69 = sphi 0, %s55
      %s73 = sphi 0, %s73
      %s75 = sphi 0, %s73
      %s76 = sphi 0, %s75
      %s90 = sphi 0, %s76
      %s94 = sphi 0, %s94
      %s96 = sphi 0, %s94
      %s97 = sphi 0, %s96
      %s111 = sphi 0, %s97
      %s115 = sphi 0, %s115
      %s117 = sphi 0, %s115
      %s118 = sphi 0, %s117
      %s132 = sphi 0, %s118
      %s136 = sphi 0, %s136
      %s138 = sphi 0, %s136
      %s139 = sphi 0, %s138
      %s153 = sphi 0, %s139
      %s157 = sphi 0, %s157
      %s159 = sphi 0, %s157
      %s160 = sphi 0, %s159
      %s174 = sphi 0, %s160
      %s178 = sphi 0, %s178
      %s180 = sphi 0, %s178
      %s181 = sphi 0, %s180
      %s195 = sphi 0, %s181
      %s199 = sphi 0, %s199
      %s201 = sphi 0, %s199
      %s202 = sphi 0, %s201
      %s216 = sphi 0, %s202
      %s222 = sphi 0, %s224
      %s225 = sphi 0, %s222
      %s226 = sphi 0, %s225
      %s242 = sphi 0, %s226
    $region4: #{net_forward.1} parent=1 // loop_header_branch
      %21 = sbr.rel (%p19) target = $region8
    $region5: #{net_forward.1} parent=1 // loop_body
      %s23 = ssub.s32 %s18, 1
      %s24 = ssub.s32 %s18, 2
      %s25 = sadd.s32 %s18, 1
      %s26 = ssub.s32 %s18, %s25
      %p27 = scmp.eq.s32.totalorder %s26, 0
      %s29 = sadd.s32 %s28, 1
      %s30 = scalar_select %p27, %s28, %s29
      %p33 = pneg %p27
      %p34 = scmp.eq.s32.totalorder %s18, 1
      %p35 = por %p33, %p34
      %p36 = scmp.ne.s32.totalorder %s28, %s31
      %p37 = scmp.eq.s32.totalorder %s18, 0
      %p38 = por %p36, %p37
      %p39 = scmp.ne.s32.totalorder %s28, %s31
      %p40 = scmp.eq.s32.totalorder %s23, 1
      %p41 = por %p39, %p40
      %p42 = scmp.ne.s32.totalorder %s31, %s32
      %p43 = scmp.eq.s32.totalorder %s23, 0
      %p44 = por %p42, %p43
      %p45 = scmp.ne.s32.totalorder %s31, %s32
      %p46 = scmp.eq.s32.totalorder %s24, 1
      %p47 = por %p45, %p46
      %p49 = scmp.ne.s32.totalorder %s32, %s48
      %p50 = scmp.eq.s32.totalorder %s24, 0
      %p51 = por %p49, %p50
      %s53 = sadd.s32 %s52, 1
      %p56 = scmp.eq.s32.totalorder %s18, 1
      %p57 = scmp.ne.s32.totalorder %s52, %s54
      %p58 = scmp.eq.s32.totalorder %s18, 0
      %p59 = por %p57, %p58
      %p60 = scmp.ne.s32.totalorder %s52, %s54
      %p61 = scmp.eq.s32.totalorder %s23, 1
      %p62 = por %p60, %p61
      %p63 = scmp.ne.s32.totalorder %s54, %s55
      %p64 = scmp.eq.s32.totalorder %s23, 0
      %p65 = por %p63, %p64
      %p66 = scmp.ne.s32.totalorder %s54, %s55
      %p67 = scmp.eq.s32.totalorder %s24, 1
      %p68 = por %p66, %p67
      %p70 = scmp.ne.s32.totalorder %s55, %s69
      %p71 = scmp.eq.s32.totalorder %s24, 0
      %p72 = por %p70, %p71
      %s74 = sadd.s32 %s73, 1
      %p77 = scmp.eq.s32.totalorder %s18, 1
      %p78 = scmp.ne.s32.totalorder %s73, %s75
      %p79 = scmp.eq.s32.totalorder %s18, 0
      %p80 = por %p78, %p79
      %p81 = scmp.ne.s32.totalorder %s73, %s75
      %p82 = scmp.eq.s32.totalorder %s23, 1
      %p83 = por %p81, %p82
      %p84 = scmp.ne.s32.totalorder %s75, %s76
      %p85 = scmp.eq.s32.totalorder %s23, 0
      %p86 = por %p84, %p85
      %p87 = scmp.ne.s32.totalorder %s75, %s76
      %p88 = scmp.eq.s32.totalorder %s24, 1
      %p89 = por %p87, %p88
      %p91 = scmp.ne.s32.totalorder %s76, %s90
      %p92 = scmp.eq.s32.totalorder %s24, 0
      %p93 = por %p91, %p92
      %s95 = sadd.s32 %s94, 1
      %p98 = scmp.eq.s32.totalorder %s18, 1
      %p99 = scmp.ne.s32.totalorder %s94, %s96
      %p100 = scmp.eq.s32.totalorder %s18, 0
      %p101 = por %p99, %p100
      %p102 = scmp.ne.s32.totalorder %s94, %s96
      %p103 = scmp.eq.s32.totalorder %s23, 1
      %p104 = por %p102, %p103
      %p105 = scmp.ne.s32.totalorder %s96, %s97
      %p106 = scmp.eq.s32.totalorder %s23, 0
      %p107 = por %p105, %p106
      %p108 = scmp.ne.s32.totalorder %s96, %s97
      %p109 = scmp.eq.s32.totalorder %s24, 1
      %p110 = por %p108, %p109
      %p112 = scmp.ne.s32.totalorder %s97, %s111
      %p113 = scmp.eq.s32.totalorder %s24, 0
      %p114 = por %p112, %p113
      %s116 = sadd.s32 %s115, 1
      %p119 = scmp.eq.s32.totalorder %s18, 1
      %p120 = scmp.ne.s32.totalorder %s115, %s117
      %p121 = scmp.eq.s32.totalorder %s18, 0
      %p122 = por %p120, %p121
      %p123 = scmp.ne.s32.totalorder %s115, %s117
      %p124 = scmp.eq.s32.totalorder %s23, 1
      %p125 = por %p123, %p124
      %p126 = scmp.ne.s32.totalorder %s117, %s118
      %p127 = scmp.eq.s32.totalorder %s23, 0
      %p128 = por %p126, %p127
      %p129 = scmp.ne.s32.totalorder %s117, %s118
      %p130 = scmp.eq.s32.totalorder %s24, 1
      %p131 = por %p129, %p130
      %p133 = scmp.ne.s32.totalorder %s118, %s132
      %p134 = scmp.eq.s32.totalorder %s24, 0
      %p135 = por %p133, %p134
      %s137 = sadd.s32 %s136, 1
      %p140 = scmp.eq.s32.totalorder %s18, 1
      %p141 = scmp.ne.s32.totalorder %s136, %s138
      %p142 = scmp.eq.s32.totalorder %s18, 0
      %p143 = por %p141, %p142
      %p144 = scmp.ne.s32.totalorder %s136, %s138
      %p145 = scmp.eq.s32.totalorder %s23, 1
      %p146 = por %p144, %p145
      %p147 = scmp.ne.s32.totalorder %s138, %s139
      %p148 = scmp.eq.s32.totalorder %s23, 0
      %p149 = por %p147, %p148
      %p150 = scmp.ne.s32.totalorder %s138, %s139
      %p151 = scmp.eq.s32.totalorder %s24, 1
      %p152 = por %p150, %p151
      %p154 = scmp.ne.s32.totalorder %s139, %s153
      %p155 = scmp.eq.s32.totalorder %s24, 0
      %p156 = por %p154, %p155
      %s158 = sadd.s32 %s157, 1
      %p161 = scmp.eq.s32.totalorder %s18, 1
      %p162 = scmp.ne.s32.totalorder %s157, %s159
      %p163 = scmp.eq.s32.totalorder %s18, 0
      %p164 = por %p162, %p163
      %p165 = scmp.ne.s32.totalorder %s157, %s159
      %p166 = scmp.eq.s32.totalorder %s23, 1
      %p167 = por %p165, %p166
      %p168 = scmp.ne.s32.totalorder %s159, %s160
      %p169 = scmp.eq.s32.totalorder %s23, 0
      %p170 = por %p168, %p169
      %p171 = scmp.ne.s32.totalorder %s159, %s160
      %p172 = scmp.eq.s32.totalorder %s24, 1
      %p173 = por %p171, %p172
      %p175 = scmp.ne.s32.totalorder %s160, %s174
      %p176 = scmp.eq.s32.totalorder %s24, 0
      %p177 = por %p175, %p176
      %s179 = sadd.s32 %s178, 1
      %p182 = scmp.eq.s32.totalorder %s18, 1
      %p183 = scmp.ne.s32.totalorder %s178, %s180
      %p184 = scmp.eq.s32.totalorder %s18, 0
      %p185 = por %p183, %p184
      %p186 = scmp.ne.s32.totalorder %s178, %s180
      %p187 = scmp.eq.s32.totalorder %s23, 1
      %p188 = por %p186, %p187
      %p189 = scmp.ne.s32.totalorder %s180, %s181
      %p190 = scmp.eq.s32.totalorder %s23, 0
      %p191 = por %p189, %p190
      %p192 = scmp.ne.s32.totalorder %s180, %s181
      %p193 = scmp.eq.s32.totalorder %s24, 1
      %p194 = por %p192, %p193
      %p196 = scmp.ne.s32.totalorder %s181, %s195
      %p197 = scmp.eq.s32.totalorder %s24, 0
      %p198 = por %p196, %p197
      %s200 = sadd.s32 %s199, 1
      %p203 = scmp.eq.s32.totalorder %s18, 1
      %p204 = scmp.ne.s32.totalorder %s199, %s201
      %p205 = scmp.eq.s32.totalorder %s18, 0
      %p206 = por %p204, %p205
      %p207 = scmp.ne.s32.totalorder %s199, %s201
      %p208 = scmp.eq.s32.totalorder %s23, 1
      %p209 = por %p207, %p208
      %p210 = scmp.ne.s32.totalorder %s201, %s202
      %p211 = scmp.eq.s32.totalorder %s23, 0
      %p212 = por %p210, %p211
      %p213 = scmp.ne.s32.totalorder %s201, %s202
      %p214 = scmp.eq.s32.totalorder %s24, 1
      %p215 = por %p213, %p214
      %p217 = scmp.ne.s32.totalorder %s202, %s216
      %p218 = scmp.eq.s32.totalorder %s24, 0
      %p219 = por %p217, %p218
      %s220 = ssub.s32 %s18, %s25
      %p221 = scmp.eq.s32.totalorder %s220, 0
      %s223 = sadd.s32 %s222, 1
      %s224 = scalar_select %p221, %s222, %s223
      %p227 = pneg %p221
      %p228 = scmp.eq.s32.totalorder %s18, 1
      %p229 = por %p227, %p228
      %p230 = scmp.ne.s32.totalorder %s222, %s225
      %p231 = scmp.eq.s32.totalorder %s18, 0
      %p232 = por %p230, %p231
      %p233 = scmp.ne.s32.totalorder %s222, %s225
      %p234 = scmp.eq.s32.totalorder %s23, 1
      %p235 = por %p233, %p234
      %p236 = scmp.ne.s32.totalorder %s225, %s226
      %p237 = scmp.eq.s32.totalorder %s23, 0
      %p238 = por %p236, %p237
      %p239 = scmp.ne.s32.totalorder %s225, %s226
      %p240 = scmp.eq.s32.totalorder %s24, 1
      %p241 = por %p239, %p240
      %p243 = scmp.ne.s32.totalorder %s226, %s242
      %p244 = scmp.eq.s32.totalorder %s24, 0
      %p245 = por %p243, %p244
      %p246 = scmp.le.s32.totalorder 1, %s18
      %p247 = scmp.lt.s32.totalorder %s18, 3
      %p248 = pnand %p246, %p247
      %p249 = pneg %p248
      // Predicated region
      $region9: #{net_forward.1} parent=5 // pred_check
        _
      $region10: #{net_forward.1} parent=5 // pred_check_branch
        %251 = sbr.rel (%p248) target = $region12
      $region11: #{net_forward.1} parent=5 // pred_region
        %s252 = ssub.s32 %s18, 1
        // Predicated region
        $region13: #{net_forward.1} parent=11 // pred_check
          %p253 = pneg %p65
        $region14: #{net_forward.1} parent=11 // pred_check_branch
          %255 = sbr.rel (%p253) target = $region16
        $region15: #{net_forward.1} parent=11 // pred_region
          _
        $region16: #{net_forward.1} parent=11 // pred_fallthru
          _
        // Predicated region
        $region17: #{net_forward.1} parent=11 // pred_check
          %p256 = pneg %p86
        $region18: #{net_forward.1} parent=11 // pred_check_branch
          %258 = sbr.rel (%p256) target = $region20
        $region19: #{net_forward.1} parent=11 // pred_region
          _
        $region20: #{net_forward.1} parent=11 // pred_fallthru
          _
        // Predicated region
        $region21: #{net_forward.1} parent=11 // pred_check
          %p259 = pneg %p107
        $region22: #{net_forward.1} parent=11 // pred_check_branch
          %261 = sbr.rel (%p259) target = $region24
        $region23: #{net_forward.1} parent=11 // pred_region
          _
        $region24: #{net_forward.1} parent=11 // pred_fallthru
          _
        // Predicated region
        $region25: #{net_forward.1} parent=11 // pred_check
          %p262 = pneg %p128
        $region26: #{net_forward.1} parent=11 // pred_check_branch
          %264 = sbr.rel (%p262) target = $region28
        $region27: #{net_forward.1} parent=11 // pred_region
          _
        $region28: #{net_forward.1} parent=11 // pred_fallthru
          _
        // Predicated region
        $region29: #{net_forward.1} parent=11 // pred_check
          %p265 = pneg %p149
        $region30: #{net_forward.1} parent=11 // pred_check_branch
          %267 = sbr.rel (%p265) target = $region32
        $region31: #{net_forward.1} parent=11 // pred_region
          _
        $region32: #{net_forward.1} parent=11 // pred_fallthru
          _
        // Predicated region
        $region33: #{net_forward.1} parent=11 // pred_check
          %p268 = pneg %p170
        $region34: #{net_forward.1} parent=11 // pred_check_branch
          %270 = sbr.rel (%p268) target = $region36
        $region35: #{net_forward.1} parent=11 // pred_region
          _
        $region36: #{net_forward.1} parent=11 // pred_fallthru
          _
        // Predicated region
        $region37: #{net_forward.1} parent=11 // pred_check
          %p271 = pneg %p191
        $region38: #{net_forward.1} parent=11 // pred_check_branch
          %273 = sbr.rel (%p271) target = $region40
        $region39: #{net_forward.1} parent=11 // pred_region
          _
        $region40: #{net_forward.1} parent=11 // pred_fallthru
          _
        // Predicated region
        $region41: #{net_forward.1} parent=11 // pred_check
          %p274 = pneg %p212
        $region42: #{net_forward.1} parent=11 // pred_check_branch
          %276 = sbr.rel (%p274) target = $region44
        $region43: #{net_forward.1} parent=11 // pred_region
          _
        $region44: #{net_forward.1} parent=11 // pred_fallthru
          _
      $region12: #{net_forward.1} parent=5 // pred_fallthru
        _
      %p277 = scmp.lt.s32.totalorder %s18, 2
      // Predicated region
      $region45: #{net_forward.1} parent=5 // pred_check
        %p278 = pneg %p277
      $region46: #{net_forward.1} parent=5 // pred_check_branch
        %280 = sbr.rel (%p278) target = $region48
      $region47: #{net_forward.1} parent=5 // pred_region
        // Predicated region
        $region49: #{net_forward.1} parent=47 // pred_check
          %p281 = pneg %p38
        $region50: #{net_forward.1} parent=47 // pred_check_branch
          %283 = sbr.rel (%p281) target = $region52
        $region51: #{net_forward.1} parent=47 // pred_region
          %p284 = scmp.lt.s32.totalorder %s18, 1
          %s285 = scalar_select %p284, %s18, 1
          %s286 = smul.addr %s285, 12
          %s287 = smul.addr %s286, 8
          %s288 = scalar_lea.vmem %s0, %s287
        $region52: #{net_forward.1} parent=47 // pred_fallthru
          _
      $region48: #{net_forward.1} parent=5 // pred_fallthru
        _
      %p289 = scmp.le.s32.totalorder 1, %s18
      %p290 = scmp.lt.s32.totalorder %s18, 3
      %p291 = pnand %p289, %p290
      %p292 = pneg %p291
      // Predicated region
      $region53: #{net_forward.1} parent=5 // pred_check
        _
      $region54: #{net_forward.1} parent=5 // pred_check_branch
        %294 = sbr.rel (%p291) target = $region56
      $region55: #{net_forward.1} parent=5 // pred_region
        %s295 = ssub.s32 %s18, 1
        %p296 = scmp.lt.s32.totalorder %s23, 1
        %s297 = scalar_select %p296, %s23, 1
        %s298 = smul.addr %s297, 12
        %s299 = smul.addr %s298, 8
        %s300 = scalar_lea.vmem %s0, %s299
        %p301 = pneg %p44
        %p302 = pneg %p41
        %p303 = pneg %p65
        %p304 = pneg %p62
        %p305 = pneg %p86
        %p306 = pneg %p83
        %p307 = pneg %p107
        %p308 = pneg %p104
        %p309 = pneg %p128
        %p310 = pneg %p125
        %p311 = pneg %p149
        %p312 = pneg %p146
        %p313 = pneg %p170
        %p314 = pneg %p167
        %p315 = pneg %p191
        %p316 = pneg %p188
        %p317 = pneg %p212
        %p318 = pneg %p209
        %p319 = pneg %p238
        %p320 = pneg %p235
        %s321 = sand.u32 %s225, 1
        %s322 = scalar_lea.sflag [#allocation3], %s321
        %s323 = sand.u32 %s225, 1
        %s324 = scalar_lea.vmem [#allocation2], %s323
        %p325 = scmp.lt.s32.totalorder %s23, 1
        %s326 = scalar_select %p325, %s23, 1
        %s327 = smul.addr %s326, 12
        %s328 = smul.addr %s327, 8
        %s329 = scalar_lea.vmem %s0, %s328
        %v330 = vld [vmem:[%s329] sm:$0xff]
        %v331 = vld [vmem:[%s329 + $0x8] sm:$0xff]
        %v332 = vld [vmem:[%s329 + $0x10] sm:$0xff]
        %v333 = vld [vmem:[%s329 + $0x18] sm:$0xff]
        %v334 = vld [vmem:[%s329 + $0x20] sm:$0xff]
        %v335 = vld [vmem:[%s329 + $0x28] sm:$0xff]
        %v336 = vld [vmem:[%s329 + $0x30] sm:$0xff]
        %v337 = vld [vmem:[%s329 + $0x38] sm:$0xff]
        %v338 = vld [vmem:[%s329 + $0x40] sm:$0xff]
        %v339 = vld [vmem:[%s329 + $0x48] sm:$0xff]
        %v340 = vld [vmem:[%s329 + $0x50] sm:$0xff]
        %v341 = vld [vmem:[%s329 + $0x58] sm:$0xff]
        %vm346 = vcmask 1046528
        %v347 = vrot.slane %v330, 1
        %v348 = vrot.slane %v331, 1
        %v349 = vsel %vm346, %v347, %v348
        %v350 = vrot.slane %v332, 1
        %v351 = vsel %vm346, %v348, %v350
        %v352 = vrot.slane %v333, 1
        %v353 = vsel %vm346, %v350, %v352
        %vm358 = vcmask 1045504
        %v359 = vrot.slane %v330, 2
        %v360 = vrot.slane %v331, 2
        %v361 = vsel %vm358, %v359, %v360
        %v362 = vrot.slane %v332, 2
        %v363 = vsel %vm358, %v360, %v362
        %v364 = vrot.slane %v333, 2
        %v365 = vsel %vm358, %v362, %v364
        %v374 = vrot.slane %v334, 1
        %v375 = vrot.slane %v335, 1
        %v376 = vsel %vm346, %v374, %v375
        %v377 = vrot.slane %v336, 1
        %v378 = vsel %vm346, %v375, %v377
        %v379 = vrot.slane %v337, 1
        %v380 = vsel %vm346, %v377, %v379
        %v385 = vrot.slane %v334, 2
        %v386 = vrot.slane %v335, 2
        %v387 = vsel %vm358, %v385, %v386
        %v388 = vrot.slane %v336, 2
        %v389 = vsel %vm358, %v386, %v388
        %v390 = vrot.slane %v337, 2
        %v391 = vsel %vm358, %v388, %v390
        %v400 = vrot.slane %v338, 1
        %v401 = vrot.slane %v339, 1
        %v402 = vsel %vm346, %v400, %v401
        %v403 = vrot.slane %v340, 1
        %v404 = vsel %vm346, %v401, %v403
        %v405 = vrot.slane %v341, 1
        %v406 = vsel %vm346, %v403, %v405
        %v411 = vrot.slane %v338, 2
        %v412 = vrot.slane %v339, 2
        %v413 = vsel %vm358, %v411, %v412
        %v414 = vrot.slane %v340, 2
        %v415 = vsel %vm358, %v412, %v414
        %v416 = vrot.slane %v341, 2
        %v417 = vsel %vm358, %v414, %v416
        %v422 = vld [vmem:[%s1] sm:$0xff]
        %v423 = vld [vmem:[%s1 + $0x8] sm:$0xff]
        %v424 = vld [vmem:[%s1 + $0x10] sm:$0xff]
        %v425 = vld [vmem:[%s1 + $0x18] sm:$0xff]
        %v426 = vld [vmem:[%s1 + $0x20] sm:$0xff]
        %v427 = vld [vmem:[%s1 + $0x28] sm:$0xff]
        %v428 = vld [vmem:[%s1 + $0x30] sm:$0xff]
        %v429 = vld [vmem:[%s1 + $0x38] sm:$0xff]
        %v430 = vld [vmem:[%s1 + $0x40] sm:$0xff]
        %v431 = vld [vmem:[%s1 + $0x48] sm:$0xff]
        %v432 = vld [vmem:[%s1 + $0x50] sm:$0xff]
        %v433 = vld [vmem:[%s1 + $0x58] sm:$0xff]
        %v434 = vld [vmem:[%s1 + $0x60] sm:$0xff]
        %v435 = vld [vmem:[%s1 + $0x68] sm:$0xff]
        %v436 = vld [vmem:[%s1 + $0x70] sm:$0xff]
        %v437 = vld [vmem:[%s1 + $0x78] sm:$0xff]
        %v438 = vld [vmem:[%s1 + $0x80] sm:$0xff]
        %v439 = vld [vmem:[%s1 + $0x88] sm:$0xff]
        %v440 = vld [vmem:[%s1 + $0x90] sm:$0xff]
        %v441 = vld [vmem:[%s1 + $0x98] sm:$0xff]
        %v442 = vld [vmem:[%s1 + $0xa0] sm:$0xff]
        %v443 = vld [vmem:[%s1 + $0xa8] sm:$0xff]
        %v444 = vld [vmem:[%s1 + $0xb0] sm:$0xff]
        %v445 = vld [vmem:[%s1 + $0xb8] sm:$0xff]
        %v446 = vld [vmem:[%s1 + $0xc0] sm:$0xff]
        %v447 = vld [vmem:[%s1 + $0xc8] sm:$0xff]
        %v448 = vld [vmem:[%s1 + $0xd0] sm:$0xff]
        %v449 = vld [vmem:[%s1 + $0xd8] sm:$0xff]
        %v450 = vld [vmem:[%s1 + $0xe0] sm:$0xff]
        %v451 = vld [vmem:[%s1 + $0xe8] sm:$0xff]
        %v452 = vld [vmem:[%s1 + $0xf0] sm:$0xff]
        %v453 = vld [vmem:[%s1 + $0xf8] sm:$0xff]
        %v454 = vld [vmem:[%s1 + $0x100] sm:$0xff]
        %v455 = vld [vmem:[%s1 + $0x108] sm:$0xff]
        %v456 = vld [vmem:[%s1 + $0x110] sm:$0xff]
        %v457 = vld [vmem:[%s1 + $0x118] sm:$0xff]
        %v458 = vld [vmem:[%s1 + $0x120] sm:$0xff]
        %v459 = vld [vmem:[%s1 + $0x128] sm:$0xff]
        %v460 = vld [vmem:[%s1 + $0x130] sm:$0xff]
        %v461 = vld [vmem:[%s1 + $0x138] sm:$0xff]
        %v462 = vld [vmem:[%s1 + $0x140] sm:$0xff]
        %v463 = vld [vmem:[%s1 + $0x148] sm:$0xff]
        %v464 = vld [vmem:[%s1 + $0x150] sm:$0xff]
        %v465 = vld [vmem:[%s1 + $0x158] sm:$0xff]
        %v466 = vld [vmem:[%s1 + $0x160] sm:$0xff]
        %v467 = vld [vmem:[%s1 + $0x168] sm:$0xff]
        %v468 = vld [vmem:[%s1 + $0x170] sm:$0xff]
        %v469 = vld [vmem:[%s1 + $0x178] sm:$0xff]
        %v470 = vld [vmem:[%s1 + $0x180] sm:$0xff]
        %v471 = vld [vmem:[%s1 + $0x188] sm:$0xff]
        %v472 = vld [vmem:[%s1 + $0x190] sm:$0xff]
        %v473 = vld [vmem:[%s1 + $0x198] sm:$0xff]
        %v474 = vld [vmem:[%s1 + $0x1a0] sm:$0xff]
        %v475 = vld [vmem:[%s1 + $0x1a8] sm:$0xff]
        %v476 = vld [vmem:[%s1 + $0x1b0] sm:$0xff]
        %v477 = vld [vmem:[%s1 + $0x1b8] sm:$0xff]
        %v478 = vld [vmem:[%s1 + $0x1c0] sm:$0xff]
        %v479 = vld [vmem:[%s1 + $0x1c8] sm:$0xff]
        %v480 = vld [vmem:[%s1 + $0x1d0] sm:$0xff]
        %v481 = vld [vmem:[%s1 + $0x1d8] sm:$0xff]
        %v482 = vld [vmem:[%s1 + $0x1e0] sm:$0xff]
        %v483 = vld [vmem:[%s1 + $0x1e8] sm:$0xff]
        %v484 = vld [vmem:[%s1 + $0x1f0] sm:$0xff]
        %v485 = vld [vmem:[%s1 + $0x1f8] sm:$0xff]
        %v486 = vld [vmem:[%s1 + $0x200] sm:$0xff]
        %v487 = vld [vmem:[%s1 + $0x208] sm:$0xff]
        %v488 = vld [vmem:[%s1 + $0x210] sm:$0xff]
        %v489 = vld [vmem:[%s1 + $0x218] sm:$0xff]
        %v490 = vld [vmem:[%s1 + $0x220] sm:$0xff]
        %v491 = vld [vmem:[%s1 + $0x228] sm:$0xff]
        %v492 = vld [vmem:[%s1 + $0x230] sm:$0xff]
        %v493 = vld [vmem:[%s1 + $0x238] sm:$0xff]
        %v494 = vld [vmem:[%s1 + $0x240] sm:$0xff]
        %v495 = vld [vmem:[%s1 + $0x248] sm:$0xff]
        %v496 = vld [vmem:[%s1 + $0x250] sm:$0xff]
        %v497 = vld [vmem:[%s1 + $0x258] sm:$0xff]
        %v498 = vld [vmem:[%s1 + $0x260] sm:$0xff]
        %v499 = vld [vmem:[%s1 + $0x268] sm:$0xff]
        %v500 = vld [vmem:[%s1 + $0x270] sm:$0xff]
        %v501 = vld [vmem:[%s1 + $0x278] sm:$0xff]
        %v502 = vld [vmem:[%s1 + $0x280] sm:$0xff]
        %v503 = vld [vmem:[%s1 + $0x288] sm:$0xff]
        %v504 = vld [vmem:[%s1 + $0x290] sm:$0xff]
        %v505 = vld [vmem:[%s1 + $0x298] sm:$0xff]
        %v506 = vld [vmem:[%s1 + $0x2a0] sm:$0xff]
        %v507 = vld [vmem:[%s1 + $0x2a8] sm:$0xff]
        %v508 = vld [vmem:[%s1 + $0x2b0] sm:$0xff]
        %v509 = vld [vmem:[%s1 + $0x2b8] sm:$0xff]
        %v510 = vld [vmem:[%s1 + $0x2c0] sm:$0xff]
        %v511 = vld [vmem:[%s1 + $0x2c8] sm:$0xff]
        %v512 = vld [vmem:[%s1 + $0x2d0] sm:$0xff]
        %v513 = vld [vmem:[%s1 + $0x2d8] sm:$0xff]
        %v514 = vld [vmem:[%s1 + $0x2e0] sm:$0xff]
        %v515 = vld [vmem:[%s1 + $0x2e8] sm:$0xff]
        %v516 = vld [vmem:[%s1 + $0x2f0] sm:$0xff]
        %v517 = vld [vmem:[%s1 + $0x2f8] sm:$0xff]
        %v518 = vld [vmem:[%s1 + $0x300] sm:$0xff]
        %v519 = vld [vmem:[%s1 + $0x308] sm:$0xff]
        %v520 = vld [vmem:[%s1 + $0x310] sm:$0xff]
        %v521 = vld [vmem:[%s1 + $0x318] sm:$0xff]
        %v522 = vld [vmem:[%s1 + $0x320] sm:$0xff]
        %v523 = vld [vmem:[%s1 + $0x328] sm:$0xff]
        %v524 = vld [vmem:[%s1 + $0x330] sm:$0xff]
        %v525 = vld [vmem:[%s1 + $0x338] sm:$0xff]
        %v526 = vld [vmem:[%s1 + $0x340] sm:$0xff]
        %v527 = vld [vmem:[%s1 + $0x348] sm:$0xff]
        %v528 = vld [vmem:[%s1 + $0x350] sm:$0xff]
        %v529 = vld [vmem:[%s1 + $0x358] sm:$0xff]
        %v530 = vld [vmem:[%s1 + $0x360] sm:$0xff]
        %v531 = vld [vmem:[%s1 + $0x368] sm:$0xff]
        %v532 = vld [vmem:[%s1 + $0x370] sm:$0xff]
        %v533 = vld [vmem:[%s1 + $0x378] sm:$0xff]
        %v534 = vld [vmem:[%s1 + $0x380] sm:$0xff]
        %v535 = vld [vmem:[%s1 + $0x388] sm:$0xff]
        %v536 = vld [vmem:[%s1 + $0x390] sm:$0xff]
        %v537 = vld [vmem:[%s1 + $0x398] sm:$0xff]
        %v538 = vld [vmem:[%s1 + $0x3a0] sm:$0xff]
        %v539 = vld [vmem:[%s1 + $0x3a8] sm:$0xff]
        %v540 = vld [vmem:[%s1 + $0x3b0] sm:$0xff]
        %v541 = vld [vmem:[%s1 + $0x3b8] sm:$0xff]
        %v542 = vld [vmem:[%s1 + $0x3c0] sm:$0xff]
        %v543 = vld [vmem:[%s1 + $0x3c8] sm:$0xff]
        %v544 = vld [vmem:[%s1 + $0x3d0] sm:$0xff]
        %v545 = vld [vmem:[%s1 + $0x3d8] sm:$0xff]
        %v546 = vld [vmem:[%s1 + $0x3e0] sm:$0xff]
        %v547 = vld [vmem:[%s1 + $0x3e8] sm:$0xff]
        %v548 = vld [vmem:[%s1 + $0x3f0] sm:$0xff]
        %v549 = vld [vmem:[%s1 + $0x3f8] sm:$0xff]
        %v550 = vld [vmem:[%s1 + $0x400] sm:$0xff]
        %v551 = vld [vmem:[%s1 + $0x408] sm:$0xff]
        %v552 = vld [vmem:[%s1 + $0x410] sm:$0xff]
        %v553 = vld [vmem:[%s1 + $0x418] sm:$0xff]
        %v554 = vld [vmem:[%s1 + $0x420] sm:$0xff]
        %v555 = vld [vmem:[%s1 + $0x428] sm:$0xff]
        %v556 = vld [vmem:[%s1 + $0x430] sm:$0xff]
        %v557 = vld [vmem:[%s1 + $0x438] sm:$0xff]
        %v558 = vld [vmem:[%s1 + $0x440] sm:$0xff]
        %v559 = vld [vmem:[%s1 + $0x448] sm:$0xff]
        %v560 = vld [vmem:[%s1 + $0x450] sm:$0xff]
        %v561 = vld [vmem:[%s1 + $0x458] sm:$0xff]
        %v562 = vld [vmem:[%s1 + $0x460] sm:$0xff]
        %v563 = vld [vmem:[%s1 + $0x468] sm:$0xff]
        %v564 = vld [vmem:[%s1 + $0x470] sm:$0xff]
        %v565 = vld [vmem:[%s1 + $0x478] sm:$0xff]
        %v566 = vld [vmem:[%s1 + $0x480] sm:$0xff]
        %v567 = vld [vmem:[%s1 + $0x488] sm:$0xff]
        %v568 = vld [vmem:[%s1 + $0x490] sm:$0xff]
        %v569 = vld [vmem:[%s1 + $0x498] sm:$0xff]
        %v570 = vld [vmem:[%s1 + $0x4a0] sm:$0xff]
        %v571 = vld [vmem:[%s1 + $0x4a8] sm:$0xff]
        %v572 = vld [vmem:[%s1 + $0x4b0] sm:$0xff]
        %v573 = vld [vmem:[%s1 + $0x4b8] sm:$0xff]
        %v574 = vld [vmem:[%s1 + $0x4c0] sm:$0xff]
        %v575 = vld [vmem:[%s1 + $0x4c8] sm:$0xff]
        %v576 = vld [vmem:[%s1 + $0x4d0] sm:$0xff]
        %v577 = vld [vmem:[%s1 + $0x4d8] sm:$0xff]
        %v578 = vld [vmem:[%s1 + $0x4e0] sm:$0xff]
        %v579 = vld [vmem:[%s1 + $0x4e8] sm:$0xff]
        %v580 = vld [vmem:[%s1 + $0x4f0] sm:$0xff]
        %v581 = vld [vmem:[%s1 + $0x4f8] sm:$0xff]
        %v582 = vld [vmem:[%s1 + $0x500] sm:$0xff]
        %v583 = vld [vmem:[%s1 + $0x508] sm:$0xff]
        %v584 = vld [vmem:[%s1 + $0x510] sm:$0xff]
        %v585 = vld [vmem:[%s1 + $0x518] sm:$0xff]
        %v586 = vld [vmem:[%s1 + $0x520] sm:$0xff]
        %v587 = vld [vmem:[%s1 + $0x528] sm:$0xff]
        %v588 = vld [vmem:[%s1 + $0x530] sm:$0xff]
        %v589 = vld [vmem:[%s1 + $0x538] sm:$0xff]
        %v590 = vld [vmem:[%s1 + $0x540] sm:$0xff]
        %v591 = vld [vmem:[%s1 + $0x548] sm:$0xff]
        %v592 = vld [vmem:[%s1 + $0x550] sm:$0xff]
        %v593 = vld [vmem:[%s1 + $0x558] sm:$0xff]
        %v594 = vld [vmem:[%s1 + $0x560] sm:$0xff]
        %v595 = vld [vmem:[%s1 + $0x568] sm:$0xff]
        %v596 = vld [vmem:[%s1 + $0x570] sm:$0xff]
        %v597 = vld [vmem:[%s1 + $0x578] sm:$0xff]
        %v598 = vld [vmem:[%s1 + $0x580] sm:$0xff]
        %v599 = vld [vmem:[%s1 + $0x588] sm:$0xff]
        %v600 = vld [vmem:[%s1 + $0x590] sm:$0xff]
        %v601 = vld [vmem:[%s1 + $0x598] sm:$0xff]
        %v602 = vld [vmem:[%s1 + $0x5a0] sm:$0xff]
        %v603 = vld [vmem:[%s1 + $0x5a8] sm:$0xff]
        %v604 = vld [vmem:[%s1 + $0x5b0] sm:$0xff]
        %v605 = vld [vmem:[%s1 + $0x5b8] sm:$0xff]
        %v606 = vld [vmem:[%s1 + $0x5c0] sm:$0xff]
        %v607 = vld [vmem:[%s1 + $0x5c8] sm:$0xff]
        %v608 = vld [vmem:[%s1 + $0x5d0] sm:$0xff]
        %v609 = vld [vmem:[%s1 + $0x5d8] sm:$0xff]
        %v610 = vld [vmem:[%s1 + $0x5e0] sm:$0xff]
        %v611 = vld [vmem:[%s1 + $0x5e8] sm:$0xff]
        %v612 = vld [vmem:[%s1 + $0x5f0] sm:$0xff]
        %v613 = vld [vmem:[%s1 + $0x5f8] sm:$0xff]
        %v614 = vld [vmem:[%s1 + $0x600] sm:$0xff]
        %v615 = vld [vmem:[%s1 + $0x608] sm:$0xff]
        %v616 = vld [vmem:[%s1 + $0x610] sm:$0xff]
        %v617 = vld [vmem:[%s1 + $0x618] sm:$0xff]
        %v618 = vld [vmem:[%s1 + $0x620] sm:$0xff]
        %v619 = vld [vmem:[%s1 + $0x628] sm:$0xff]
        %v620 = vld [vmem:[%s1 + $0x630] sm:$0xff]
        %v621 = vld [vmem:[%s1 + $0x638] sm:$0xff]
        %v622 = vld [vmem:[%s1 + $0x640] sm:$0xff]
        %v623 = vld [vmem:[%s1 + $0x648] sm:$0xff]
        %v624 = vld [vmem:[%s1 + $0x650] sm:$0xff]
        %v625 = vld [vmem:[%s1 + $0x658] sm:$0xff]
        %v626 = vld [vmem:[%s1 + $0x660] sm:$0xff]
        %v627 = vld [vmem:[%s1 + $0x668] sm:$0xff]
        %v628 = vld [vmem:[%s1 + $0x670] sm:$0xff]
        %v629 = vld [vmem:[%s1 + $0x678] sm:$0xff]
        %v630 = vld [vmem:[%s1 + $0x680] sm:$0xff]
        %v631 = vld [vmem:[%s1 + $0x688] sm:$0xff]
        %v632 = vld [vmem:[%s1 + $0x690] sm:$0xff]
        %v633 = vld [vmem:[%s1 + $0x698] sm:$0xff]
        %v634 = vld [vmem:[%s1 + $0x6a0] sm:$0xff]
        %v635 = vld [vmem:[%s1 + $0x6a8] sm:$0xff]
        %v636 = vld [vmem:[%s1 + $0x6b0] sm:$0xff]
        %v637 = vld [vmem:[%s1 + $0x6b8] sm:$0xff]
        %v638 = vld [vmem:[%s1 + $0x6c0] sm:$0xff]
        %v639 = vld [vmem:[%s1 + $0x6c8] sm:$0xff]
        %v640 = vld [vmem:[%s1 + $0x6d0] sm:$0xff]
        %v641 = vld [vmem:[%s1 + $0x6d8] sm:$0xff]
        %v642 = vld [vmem:[%s1 + $0x6e0] sm:$0xff]
        %v643 = vld [vmem:[%s1 + $0x6e8] sm:$0xff]
        %v644 = vld [vmem:[%s1 + $0x6f0] sm:$0xff]
        %v645 = vld [vmem:[%s1 + $0x6f8] sm:$0xff]
        %v646 = vld [vmem:[%s1 + $0x700] sm:$0xff]
        %v647 = vld [vmem:[%s1 + $0x708] sm:$0xff]
        %v648 = vld [vmem:[%s1 + $0x710] sm:$0xff]
        %v649 = vld [vmem:[%s1 + $0x718] sm:$0xff]
        %v650 = vld [vmem:[%s1 + $0x720] sm:$0xff]
        %v651 = vld [vmem:[%s1 + $0x728] sm:$0xff]
        %v652 = vld [vmem:[%s1 + $0x730] sm:$0xff]
        %v653 = vld [vmem:[%s1 + $0x738] sm:$0xff]
        %v654 = vld [vmem:[%s1 + $0x740] sm:$0xff]
        %v655 = vld [vmem:[%s1 + $0x748] sm:$0xff]
        %v656 = vld [vmem:[%s1 + $0x750] sm:$0xff]
        %v657 = vld [vmem:[%s1 + $0x758] sm:$0xff]
        %v658 = vld [vmem:[%s1 + $0x760] sm:$0xff]
        %v659 = vld [vmem:[%s1 + $0x768] sm:$0xff]
        %v660 = vld [vmem:[%s1 + $0x770] sm:$0xff]
        %v661 = vld [vmem:[%s1 + $0x778] sm:$0xff]
        %v662 = vld [vmem:[%s1 + $0x780] sm:$0xff]
        %v663 = vld [vmem:[%s1 + $0x788] sm:$0xff]
        %v664 = vld [vmem:[%s1 + $0x790] sm:$0xff]
        %v665 = vld [vmem:[%s1 + $0x798] sm:$0xff]
        %v666 = vld [vmem:[%s1 + $0x7a0] sm:$0xff]
        %v667 = vld [vmem:[%s1 + $0x7a8] sm:$0xff]
        %v668 = vld [vmem:[%s1 + $0x7b0] sm:$0xff]
        %v669 = vld [vmem:[%s1 + $0x7b8] sm:$0xff]
        %v670 = vld [vmem:[%s1 + $0x7c0] sm:$0xff]
        %v671 = vld [vmem:[%s1 + $0x7c8] sm:$0xff]
        %v672 = vld [vmem:[%s1 + $0x7d0] sm:$0xff]
        %v673 = vld [vmem:[%s1 + $0x7d8] sm:$0xff]
        %v674 = vld [vmem:[%s1 + $0x7e0] sm:$0xff]
        %v675 = vld [vmem:[%s1 + $0x7e8] sm:$0xff]
        %v676 = vld [vmem:[%s1 + $0x7f0] sm:$0xff]
        %v677 = vld [vmem:[%s1 + $0x7f8] sm:$0xff]
        %v678 = vld [vmem:[%s1 + $0x800] sm:$0xff]
        %v679 = vld [vmem:[%s1 + $0x808] sm:$0xff]
        %v680 = vld [vmem:[%s1 + $0x810] sm:$0xff]
        %v681 = vld [vmem:[%s1 + $0x818] sm:$0xff]
        %v682 = vld [vmem:[%s1 + $0x820] sm:$0xff]
        %v683 = vld [vmem:[%s1 + $0x828] sm:$0xff]
        %v684 = vld [vmem:[%s1 + $0x830] sm:$0xff]
        %v685 = vld [vmem:[%s1 + $0x838] sm:$0xff]
        %v686 = vld [vmem:[%s1 + $0x840] sm:$0xff]
        %v687 = vld [vmem:[%s1 + $0x848] sm:$0xff]
        %v688 = vld [vmem:[%s1 + $0x850] sm:$0xff]
        %v689 = vld [vmem:[%s1 + $0x858] sm:$0xff]
        %v690 = vld [vmem:[%s1 + $0x860] sm:$0xff]
        %v691 = vld [vmem:[%s1 + $0x868] sm:$0xff]
        %v692 = vld [vmem:[%s1 + $0x870] sm:$0xff]
        %v693 = vld [vmem:[%s1 + $0x878] sm:$0xff]
        %v694 = vld [vmem:[%s1 + $0x880] sm:$0xff]
        %v695 = vld [vmem:[%s1 + $0x888] sm:$0xff]
        %v696 = vld [vmem:[%s1 + $0x890] sm:$0xff]
        %v697 = vld [vmem:[%s1 + $0x898] sm:$0xff]
        %v698 = vld [vmem:[%s1 + $0x8a0] sm:$0xff]
        %v699 = vld [vmem:[%s1 + $0x8a8] sm:$0xff]
        %v700 = vld [vmem:[%s1 + $0x8b0] sm:$0xff]
        %v701 = vld [vmem:[%s1 + $0x8b8] sm:$0xff]
        %v702 = vld [vmem:[%s1 + $0x8c0] sm:$0xff]
        %v703 = vld [vmem:[%s1 + $0x8c8] sm:$0xff]
        %v704 = vld [vmem:[%s1 + $0x8d0] sm:$0xff]
        %v705 = vld [vmem:[%s1 + $0x8d8] sm:$0xff]
        %v706 = vld [vmem:[%s1 + $0x8e0] sm:$0xff]
        %v707 = vld [vmem:[%s1 + $0x8e8] sm:$0xff]
        %v708 = vld [vmem:[%s1 + $0x8f0] sm:$0xff]
        %v709 = vld [vmem:[%s1 + $0x8f8] sm:$0xff]
        %v710 = vld [vmem:[%s1 + $0x900] sm:$0xff]
        %v711 = vld [vmem:[%s1 + $0x908] sm:$0xff]
        %v712 = vld [vmem:[%s1 + $0x910] sm:$0xff]
        %v713 = vld [vmem:[%s1 + $0x918] sm:$0xff]
        %v714 = vld [vmem:[%s1 + $0x920] sm:$0xff]
        %v715 = vld [vmem:[%s1 + $0x928] sm:$0xff]
        %v716 = vld [vmem:[%s1 + $0x930] sm:$0xff]
        %v717 = vld [vmem:[%s1 + $0x938] sm:$0xff]
        %v718 = vld [vmem:[%s1 + $0x940] sm:$0xff]
        %v719 = vld [vmem:[%s1 + $0x948] sm:$0xff]
        %v720 = vld [vmem:[%s1 + $0x950] sm:$0xff]
        %v721 = vld [vmem:[%s1 + $0x958] sm:$0xff]
        %v722 = vld [vmem:[%s1 + $0x960] sm:$0xff]
        %v723 = vld [vmem:[%s1 + $0x968] sm:$0xff]
        %v724 = vld [vmem:[%s1 + $0x970] sm:$0xff]
        %v725 = vld [vmem:[%s1 + $0x978] sm:$0xff]
        %v726 = vld [vmem:[%s1 + $0x980] sm:$0xff]
        %v727 = vld [vmem:[%s1 + $0x988] sm:$0xff]
        %v728 = vld [vmem:[%s1 + $0x990] sm:$0xff]
        %v729 = vld [vmem:[%s1 + $0x998] sm:$0xff]
        %v730 = vld [vmem:[%s1 + $0x9a0] sm:$0xff]
        %v731 = vld [vmem:[%s1 + $0x9a8] sm:$0xff]
        %v732 = vld [vmem:[%s1 + $0x9b0] sm:$0xff]
        %v733 = vld [vmem:[%s1 + $0x9b8] sm:$0xff]
        %v734 = vld [vmem:[%s1 + $0x9c0] sm:$0xff]
        %v735 = vld [vmem:[%s1 + $0x9c8] sm:$0xff]
        %v736 = vld [vmem:[%s1 + $0x9d0] sm:$0xff]
        %v737 = vld [vmem:[%s1 + $0x9d8] sm:$0xff]
        %v738 = vld [vmem:[%s1 + $0x9e0] sm:$0xff]
        %v739 = vld [vmem:[%s1 + $0x9e8] sm:$0xff]
        %v740 = vld [vmem:[%s1 + $0x9f0] sm:$0xff]
        %v741 = vld [vmem:[%s1 + $0x9f8] sm:$0xff]
        %v742 = vld [vmem:[%s1 + $0xa00] sm:$0xff]
        %v743 = vld [vmem:[%s1 + $0xa08] sm:$0xff]
        %v744 = vld [vmem:[%s1 + $0xa10] sm:$0xff]
        %v745 = vld [vmem:[%s1 + $0xa18] sm:$0xff]
        %v746 = vld [vmem:[%s1 + $0xa20] sm:$0xff]
        %v747 = vld [vmem:[%s1 + $0xa28] sm:$0xff]
        %v748 = vld [vmem:[%s1 + $0xa30] sm:$0xff]
        %v749 = vld [vmem:[%s1 + $0xa38] sm:$0xff]
        %v750 = vld [vmem:[%s1 + $0xa40] sm:$0xff]
        %v751 = vld [vmem:[%s1 + $0xa48] sm:$0xff]
        %v752 = vld [vmem:[%s1 + $0xa50] sm:$0xff]
        %v753 = vld [vmem:[%s1 + $0xa58] sm:$0xff]
        %v754 = vld [vmem:[%s1 + $0xa60] sm:$0xff]
        %v755 = vld [vmem:[%s1 + $0xa68] sm:$0xff]
        %v756 = vld [vmem:[%s1 + $0xa70] sm:$0xff]
        %v757 = vld [vmem:[%s1 + $0xa78] sm:$0xff]
        %v758 = vld [vmem:[%s1 + $0xa80] sm:$0xff]
        %v759 = vld [vmem:[%s1 + $0xa88] sm:$0xff]
        %v760 = vld [vmem:[%s1 + $0xa90] sm:$0xff]
        %v761 = vld [vmem:[%s1 + $0xa98] sm:$0xff]
        %v762 = vld [vmem:[%s1 + $0xaa0] sm:$0xff]
        %v763 = vld [vmem:[%s1 + $0xaa8] sm:$0xff]
        %v764 = vld [vmem:[%s1 + $0xab0] sm:$0xff]
        %v765 = vld [vmem:[%s1 + $0xab8] sm:$0xff]
        %v766 = vld [vmem:[%s1 + $0xac0] sm:$0xff]
        %v767 = vld [vmem:[%s1 + $0xac8] sm:$0xff]
        %v768 = vld [vmem:[%s1 + $0xad0] sm:$0xff]
        %v769 = vld [vmem:[%s1 + $0xad8] sm:$0xff]
        %v770 = vld [vmem:[%s1 + $0xae0] sm:$0xff]
        %v771 = vld [vmem:[%s1 + $0xae8] sm:$0xff]
        %v772 = vld [vmem:[%s1 + $0xaf0] sm:$0xff]
        %v773 = vld [vmem:[%s1 + $0xaf8] sm:$0xff]
        %v774 = vld [vmem:[%s1 + $0xb00] sm:$0xff]
        %v775 = vld [vmem:[%s1 + $0xb08] sm:$0xff]
        %v776 = vld [vmem:[%s1 + $0xb10] sm:$0xff]
        %v777 = vld [vmem:[%s1 + $0xb18] sm:$0xff]
        %v778 = vld [vmem:[%s1 + $0xb20] sm:$0xff]
        %v779 = vld [vmem:[%s1 + $0xb28] sm:$0xff]
        %v780 = vld [vmem:[%s1 + $0xb30] sm:$0xff]
        %v781 = vld [vmem:[%s1 + $0xb38] sm:$0xff]
        %v782 = vld [vmem:[%s1 + $0xb40] sm:$0xff]
        %v783 = vld [vmem:[%s1 + $0xb48] sm:$0xff]
        %v784 = vld [vmem:[%s1 + $0xb50] sm:$0xff]
        %v785 = vld [vmem:[%s1 + $0xb58] sm:$0xff]
        %v786 = vld [vmem:[%s1 + $0xb60] sm:$0xff]
        %v787 = vld [vmem:[%s1 + $0xb68] sm:$0xff]
        %v788 = vld [vmem:[%s1 + $0xb70] sm:$0xff]
        %v789 = vld [vmem:[%s1 + $0xb78] sm:$0xff]
        %v790 = vld [vmem:[%s1 + $0xb80] sm:$0xff]
        %v791 = vld [vmem:[%s1 + $0xb88] sm:$0xff]
        %v792 = vld [vmem:[%s1 + $0xb90] sm:$0xff]
        %v793 = vld [vmem:[%s1 + $0xb98] sm:$0xff]
        %v794 = vld [vmem:[%s1 + $0xba0] sm:$0xff]
        %v795 = vld [vmem:[%s1 + $0xba8] sm:$0xff]
        %v796 = vld [vmem:[%s1 + $0xbb0] sm:$0xff]
        %v797 = vld [vmem:[%s1 + $0xbb8] sm:$0xff]
        %v798 = vld [vmem:[%s1 + $0xbc0] sm:$0xff]
        %v799 = vld [vmem:[%s1 + $0xbc8] sm:$0xff]
        %v800 = vld [vmem:[%s1 + $0xbd0] sm:$0xff]
        %v801 = vld [vmem:[%s1 + $0xbd8] sm:$0xff]
        %v802 = vld [vmem:[%s1 + $0xbe0] sm:$0xff]
        %v803 = vld [vmem:[%s1 + $0xbe8] sm:$0xff]
        %v804 = vld [vmem:[%s1 + $0xbf0] sm:$0xff]
        %v805 = vld [vmem:[%s1 + $0xbf8] sm:$0xff]
        %v806 = vld [vmem:[%s1 + $0xc00] sm:$0xff]
        %v807 = vld [vmem:[%s1 + $0xc08] sm:$0xff]
        %v808 = vld [vmem:[%s1 + $0xc10] sm:$0xff]
        %v809 = vld [vmem:[%s1 + $0xc18] sm:$0xff]
        %v810 = vld [vmem:[%s1 + $0xc20] sm:$0xff]
        %v811 = vld [vmem:[%s1 + $0xc28] sm:$0xff]
        %v812 = vld [vmem:[%s1 + $0xc30] sm:$0xff]
        %v813 = vld [vmem:[%s1 + $0xc38] sm:$0xff]
        %v814 = vld [vmem:[%s1 + $0xc40] sm:$0xff]
        %v815 = vld [vmem:[%s1 + $0xc48] sm:$0xff]
        %v816 = vld [vmem:[%s1 + $0xc50] sm:$0xff]
        %v817 = vld [vmem:[%s1 + $0xc58] sm:$0xff]
        %v818 = vld [vmem:[%s1 + $0xc60] sm:$0xff]
        %v819 = vld [vmem:[%s1 + $0xc68] sm:$0xff]
        %v820 = vld [vmem:[%s1 + $0xc70] sm:$0xff]
        %v821 = vld [vmem:[%s1 + $0xc78] sm:$0xff]
        %v822 = vld [vmem:[%s1 + $0xc80] sm:$0xff]
        %v823 = vld [vmem:[%s1 + $0xc88] sm:$0xff]
        %v824 = vld [vmem:[%s1 + $0xc90] sm:$0xff]
        %v825 = vld [vmem:[%s1 + $0xc98] sm:$0xff]
        %v826 = vld [vmem:[%s1 + $0xca0] sm:$0xff]
        %v827 = vld [vmem:[%s1 + $0xca8] sm:$0xff]
        %v828 = vld [vmem:[%s1 + $0xcb0] sm:$0xff]
        %v829 = vld [vmem:[%s1 + $0xcb8] sm:$0xff]
        %v830 = vld [vmem:[%s1 + $0xcc0] sm:$0xff]
        %v831 = vld [vmem:[%s1 + $0xcc8] sm:$0xff]
        %v832 = vld [vmem:[%s1 + $0xcd0] sm:$0xff]
        %v833 = vld [vmem:[%s1 + $0xcd8] sm:$0xff]
        %v834 = vld [vmem:[%s1 + $0xce0] sm:$0xff]
        %v835 = vld [vmem:[%s1 + $0xce8] sm:$0xff]
        %v836 = vld [vmem:[%s1 + $0xcf0] sm:$0xff]
        %v837 = vld [vmem:[%s1 + $0xcf8] sm:$0xff]
        %v838 = vld [vmem:[%s1 + $0xd00] sm:$0xff]
        %v839 = vld [vmem:[%s1 + $0xd08] sm:$0xff]
        %v840 = vld [vmem:[%s1 + $0xd10] sm:$0xff]
        %v841 = vld [vmem:[%s1 + $0xd18] sm:$0xff]
        %v842 = vld [vmem:[%s1 + $0xd20] sm:$0xff]
        %v843 = vld [vmem:[%s1 + $0xd28] sm:$0xff]
        %v844 = vld [vmem:[%s1 + $0xd30] sm:$0xff]
        %v845 = vld [vmem:[%s1 + $0xd38] sm:$0xff]
        %v846 = vld [vmem:[%s1 + $0xd40] sm:$0xff]
        %v847 = vld [vmem:[%s1 + $0xd48] sm:$0xff]
        %v848 = vld [vmem:[%s1 + $0xd50] sm:$0xff]
        %v849 = vld [vmem:[%s1 + $0xd58] sm:$0xff]
        %v850 = vld [vmem:[%s1 + $0xd60] sm:$0xff]
        %v851 = vld [vmem:[%s1 + $0xd68] sm:$0xff]
        %v852 = vld [vmem:[%s1 + $0xd70] sm:$0xff]
        %v853 = vld [vmem:[%s1 + $0xd78] sm:$0xff]
        %v854 = vld [vmem:[%s1 + $0xd80] sm:$0xff]
        %v855 = vld [vmem:[%s1 + $0xd88] sm:$0xff]
        %v856 = vld [vmem:[%s1 + $0xd90] sm:$0xff]
        %v857 = vld [vmem:[%s1 + $0xd98] sm:$0xff]
        %v858 = vld [vmem:[%s1 + $0xda0] sm:$0xff]
        %v859 = vld [vmem:[%s1 + $0xda8] sm:$0xff]
        %v860 = vld [vmem:[%s1 + $0xdb0] sm:$0xff]
        %v861 = vld [vmem:[%s1 + $0xdb8] sm:$0xff]
        %v862 = vld [vmem:[%s1 + $0xdc0] sm:$0xff]
        %v863 = vld [vmem:[%s1 + $0xdc8] sm:$0xff]
        %v864 = vld [vmem:[%s1 + $0xdd0] sm:$0xff]
        %v865 = vld [vmem:[%s1 + $0xdd8] sm:$0xff]
        %v866 = vld [vmem:[%s1 + $0xde0] sm:$0xff]
        %v867 = vld [vmem:[%s1 + $0xde8] sm:$0xff]
        %v868 = vld [vmem:[%s1 + $0xdf0] sm:$0xff]
        %v869 = vld [vmem:[%s1 + $0xdf8] sm:$0xff]
        %v870 = vld [vmem:[%s1 + $0xe00] sm:$0xff]
        %v871 = vld [vmem:[%s1 + $0xe08] sm:$0xff]
        %v872 = vld [vmem:[%s1 + $0xe10] sm:$0xff]
        %v873 = vld [vmem:[%s1 + $0xe18] sm:$0xff]
        %v874 = vld [vmem:[%s1 + $0xe20] sm:$0xff]
        %v875 = vld [vmem:[%s1 + $0xe28] sm:$0xff]
        %v876 = vld [vmem:[%s1 + $0xe30] sm:$0xff]
        %v877 = vld [vmem:[%s1 + $0xe38] sm:$0xff]
        %v878 = vld [vmem:[%s1 + $0xe40] sm:$0xff]
        %v879 = vld [vmem:[%s1 + $0xe48] sm:$0xff]
        %v880 = vld [vmem:[%s1 + $0xe50] sm:$0xff]
        %v881 = vld [vmem:[%s1 + $0xe58] sm:$0xff]
        %v882 = vld [vmem:[%s1 + $0xe60] sm:$0xff]
        %v883 = vld [vmem:[%s1 + $0xe68] sm:$0xff]
        %v884 = vld [vmem:[%s1 + $0xe70] sm:$0xff]
        %v885 = vld [vmem:[%s1 + $0xe78] sm:$0xff]
        %v886 = vld [vmem:[%s1 + $0xe80] sm:$0xff]
        %v887 = vld [vmem:[%s1 + $0xe88] sm:$0xff]
        %v888 = vld [vmem:[%s1 + $0xe90] sm:$0xff]
        %v889 = vld [vmem:[%s1 + $0xe98] sm:$0xff]
        %v890 = vld [vmem:[%s1 + $0xea0] sm:$0xff]
        %v891 = vld [vmem:[%s1 + $0xea8] sm:$0xff]
        %v892 = vld [vmem:[%s1 + $0xeb0] sm:$0xff]
        %v893 = vld [vmem:[%s1 + $0xeb8] sm:$0xff]
        %v894 = vld [vmem:[%s1 + $0xec0] sm:$0xff]
        %v895 = vld [vmem:[%s1 + $0xec8] sm:$0xff]
        %v896 = vld [vmem:[%s1 + $0xed0] sm:$0xff]
        %v897 = vld [vmem:[%s1 + $0xed8] sm:$0xff]
        %v898 = vld [vmem:[%s1 + $0xee0] sm:$0xff]
        %v899 = vld [vmem:[%s1 + $0xee8] sm:$0xff]
        %v900 = vld [vmem:[%s1 + $0xef0] sm:$0xff]
        %v901 = vld [vmem:[%s1 + $0xef8] sm:$0xff]
        %v902 = vld [vmem:[%s1 + $0xf00] sm:$0xff]
        %v903 = vld [vmem:[%s1 + $0xf08] sm:$0xff]
        %v904 = vld [vmem:[%s1 + $0xf10] sm:$0xff]
        %v905 = vld [vmem:[%s1 + $0xf18] sm:$0xff]
        %v906 = vld [vmem:[%s1 + $0xf20] sm:$0xff]
        %v907 = vld [vmem:[%s1 + $0xf28] sm:$0xff]
        %v908 = vld [vmem:[%s1 + $0xf30] sm:$0xff]
        %v909 = vld [vmem:[%s1 + $0xf38] sm:$0xff]
        %v910 = vld [vmem:[%s1 + $0xf40] sm:$0xff]
        %v911 = vld [vmem:[%s1 + $0xf48] sm:$0xff]
        %v912 = vld [vmem:[%s1 + $0xf50] sm:$0xff]
        %v913 = vld [vmem:[%s1 + $0xf58] sm:$0xff]
        %v914 = vld [vmem:[%s1 + $0xf60] sm:$0xff]
        %v915 = vld [vmem:[%s1 + $0xf68] sm:$0xff]
        %v916 = vld [vmem:[%s1 + $0xf70] sm:$0xff]
        %v917 = vld [vmem:[%s1 + $0xf78] sm:$0xff]
        %v918 = vld [vmem:[%s1 + $0xf80] sm:$0xff]
        %v919 = vld [vmem:[%s1 + $0xf88] sm:$0xff]
        %v920 = vld [vmem:[%s1 + $0xf90] sm:$0xff]
        %v921 = vld [vmem:[%s1 + $0xf98] sm:$0xff]
        %v922 = vld [vmem:[%s1 + $0xfa0] sm:$0xff]
        %v923 = vld [vmem:[%s1 + $0xfa8] sm:$0xff]
        %v924 = vld [vmem:[%s1 + $0xfb0] sm:$0xff]
        %v925 = vld [vmem:[%s1 + $0xfb8] sm:$0xff]
        %v926 = vld [vmem:[%s1 + $0xfc0] sm:$0xff]
        %v927 = vld [vmem:[%s1 + $0xfc8] sm:$0xff]
        %v928 = vld [vmem:[%s1 + $0xfd0] sm:$0xff]
        %v929 = vld [vmem:[%s1 + $0xfd8] sm:$0xff]
        %v930 = vld [vmem:[%s1 + $0xfe0] sm:$0xff]
        %v931 = vld [vmem:[%s1 + $0xfe8] sm:$0xff]
        %v932 = vld [vmem:[%s1 + $0xff0] sm:$0xff]
        %v933 = vld [vmem:[%s1 + $0xff8] sm:$0xff]
        %v934 = vld [vmem:[%s1 + $0x1000] sm:$0xff]
        %v935 = vld [vmem:[%s1 + $0x1008] sm:$0xff]
        %v936 = vld [vmem:[%s1 + $0x1010] sm:$0xff]
        %v937 = vld [vmem:[%s1 + $0x1018] sm:$0xff]
        %v938 = vld [vmem:[%s1 + $0x1020] sm:$0xff]
        %v939 = vld [vmem:[%s1 + $0x1028] sm:$0xff]
        %v940 = vld [vmem:[%s1 + $0x1030] sm:$0xff]
        %v941 = vld [vmem:[%s1 + $0x1038] sm:$0xff]
        %v942 = vld [vmem:[%s1 + $0x1040] sm:$0xff]
        %v943 = vld [vmem:[%s1 + $0x1048] sm:$0xff]
        %v944 = vld [vmem:[%s1 + $0x1050] sm:$0xff]
        %v945 = vld [vmem:[%s1 + $0x1058] sm:$0xff]
        %v946 = vld [vmem:[%s1 + $0x1060] sm:$0xff]
        %v947 = vld [vmem:[%s1 + $0x1068] sm:$0xff]
        %v948 = vld [vmem:[%s1 + $0x1070] sm:$0xff]
        %v949 = vld [vmem:[%s1 + $0x1078] sm:$0xff]
        %v950 = vld [vmem:[%s1 + $0x1080] sm:$0xff]
        %v951 = vld [vmem:[%s1 + $0x1088] sm:$0xff]
        %v952 = vld [vmem:[%s1 + $0x1090] sm:$0xff]
        %v953 = vld [vmem:[%s1 + $0x1098] sm:$0xff]
        %v954 = vld [vmem:[%s1 + $0x10a0] sm:$0xff]
        %v955 = vld [vmem:[%s1 + $0x10a8] sm:$0xff]
        %v956 = vld [vmem:[%s1 + $0x10b0] sm:$0xff]
        %v957 = vld [vmem:[%s1 + $0x10b8] sm:$0xff]
        %v958 = vld [vmem:[%s1 + $0x10c0] sm:$0xff]
        %v959 = vld [vmem:[%s1 + $0x10c8] sm:$0xff]
        %v960 = vld [vmem:[%s1 + $0x10d0] sm:$0xff]
        %v961 = vld [vmem:[%s1 + $0x10d8] sm:$0xff]
        %v962 = vld [vmem:[%s1 + $0x10e0] sm:$0xff]
        %v963 = vld [vmem:[%s1 + $0x10e8] sm:$0xff]
        %v964 = vld [vmem:[%s1 + $0x10f0] sm:$0xff]
        %v965 = vld [vmem:[%s1 + $0x10f8] sm:$0xff]
        %v966 = vld [vmem:[%s1 + $0x1100] sm:$0xff]
        %v967 = vld [vmem:[%s1 + $0x1108] sm:$0xff]
        %v968 = vld [vmem:[%s1 + $0x1110] sm:$0xff]
        %v969 = vld [vmem:[%s1 + $0x1118] sm:$0xff]
        %v970 = vld [vmem:[%s1 + $0x1120] sm:$0xff]
        %v971 = vld [vmem:[%s1 + $0x1128] sm:$0xff]
        %v972 = vld [vmem:[%s1 + $0x1130] sm:$0xff]
        %v973 = vld [vmem:[%s1 + $0x1138] sm:$0xff]
        %v974 = vld [vmem:[%s1 + $0x1140] sm:$0xff]
        %v975 = vld [vmem:[%s1 + $0x1148] sm:$0xff]
        %v976 = vld [vmem:[%s1 + $0x1150] sm:$0xff]
        %v977 = vld [vmem:[%s1 + $0x1158] sm:$0xff]
        %v978 = vld [vmem:[%s1 + $0x1160] sm:$0xff]
        %v979 = vld [vmem:[%s1 + $0x1168] sm:$0xff]
        %v980 = vld [vmem:[%s1 + $0x1170] sm:$0xff]
        %v981 = vld [vmem:[%s1 + $0x1178] sm:$0xff]
        %v982 = vld [vmem:[%s1 + $0x1180] sm:$0xff]
        %v983 = vld [vmem:[%s1 + $0x1188] sm:$0xff]
        %v984 = vld [vmem:[%s1 + $0x1190] sm:$0xff]
        %v985 = vld [vmem:[%s1 + $0x1198] sm:$0xff]
        %v986 = vld [vmem:[%s1 + $0x11a0] sm:$0xff]
        %v987 = vld [vmem:[%s1 + $0x11a8] sm:$0xff]
        %v988 = vld [vmem:[%s1 + $0x11b0] sm:$0xff]
        %v989 = vld [vmem:[%s1 + $0x11b8] sm:$0xff]
        %v990 = vld [vmem:[%s1 + $0x11c0] sm:$0xff]
        %v991 = vld [vmem:[%s1 + $0x11c8] sm:$0xff]
        %v992 = vld [vmem:[%s1 + $0x11d0] sm:$0xff]
        %v993 = vld [vmem:[%s1 + $0x11d8] sm:$0xff]
        %v994 = vld [vmem:[%s1 + $0x11e0] sm:$0xff]
        %v995 = vld [vmem:[%s1 + $0x11e8] sm:$0xff]
        %v996 = vld [vmem:[%s1 + $0x11f0] sm:$0xff]
        %v997 = vld [vmem:[%s1 + $0x11f8] sm:$0xff]
        %v998 = vld [vmem:[%s1 + $0x1200] sm:$0xff]
        %v999 = vld [vmem:[%s1 + $0x1208] sm:$0xff]
        %v1000 = vld [vmem:[%s1 + $0x1210] sm:$0xff]
        %v1001 = vld [vmem:[%s1 + $0x1218] sm:$0xff]
        %v1002 = vld [vmem:[%s1 + $0x1220] sm:$0xff]
        %v1003 = vld [vmem:[%s1 + $0x1228] sm:$0xff]
        %v1004 = vld [vmem:[%s1 + $0x1230] sm:$0xff]
        %v1005 = vld [vmem:[%s1 + $0x1238] sm:$0xff]
        %v1006 = vld [vmem:[%s1 + $0x1240] sm:$0xff]
        %v1007 = vld [vmem:[%s1 + $0x1248] sm:$0xff]
        %v1008 = vld [vmem:[%s1 + $0x1250] sm:$0xff]
        %v1009 = vld [vmem:[%s1 + $0x1258] sm:$0xff]
        %v1010 = vld [vmem:[%s1 + $0x1260] sm:$0xff]
        %v1011 = vld [vmem:[%s1 + $0x1268] sm:$0xff]
        %v1012 = vld [vmem:[%s1 + $0x1270] sm:$0xff]
        %v1013 = vld [vmem:[%s1 + $0x1278] sm:$0xff]
        %v1014 = vld [vmem:[%s1 + $0x1280] sm:$0xff]
        %v1015 = vld [vmem:[%s1 + $0x1288] sm:$0xff]
        %v1016 = vld [vmem:[%s1 + $0x1290] sm:$0xff]
        %v1017 = vld [vmem:[%s1 + $0x1298] sm:$0xff]
        %v1018 = vld [vmem:[%s1 + $0x12a0] sm:$0xff]
        %v1019 = vld [vmem:[%s1 + $0x12a8] sm:$0xff]
        %v1020 = vld [vmem:[%s1 + $0x12b0] sm:$0xff]
        %v1021 = vld [vmem:[%s1 + $0x12b8] sm:$0xff]
        %v1022 = vld [vmem:[%s1 + $0x12c0] sm:$0xff]
        %v1023 = vld [vmem:[%s1 + $0x12c8] sm:$0xff]
        %v1024 = vld [vmem:[%s1 + $0x12d0] sm:$0xff]
        %v1025 = vld [vmem:[%s1 + $0x12d8] sm:$0xff]
        %v1026 = vld [vmem:[%s1 + $0x12e0] sm:$0xff]
        %v1027 = vld [vmem:[%s1 + $0x12e8] sm:$0xff]
        %v1028 = vld [vmem:[%s1 + $0x12f0] sm:$0xff]
        %v1029 = vld [vmem:[%s1 + $0x12f8] sm:$0xff]
        %v1030 = vld [vmem:[%s1 + $0x1300] sm:$0xff]
        %v1031 = vld [vmem:[%s1 + $0x1308] sm:$0xff]
        %v1032 = vld [vmem:[%s1 + $0x1310] sm:$0xff]
        %v1033 = vld [vmem:[%s1 + $0x1318] sm:$0xff]
        %v1034 = vld [vmem:[%s1 + $0x1320] sm:$0xff]
        %v1035 = vld [vmem:[%s1 + $0x1328] sm:$0xff]
        %v1036 = vld [vmem:[%s1 + $0x1330] sm:$0xff]
        %v1037 = vld [vmem:[%s1 + $0x1338] sm:$0xff]
        %v1038 = vld [vmem:[%s1 + $0x1340] sm:$0xff]
        %v1039 = vld [vmem:[%s1 + $0x1348] sm:$0xff]
        %v1040 = vld [vmem:[%s1 + $0x1350] sm:$0xff]
        %v1041 = vld [vmem:[%s1 + $0x1358] sm:$0xff]
        %v1042 = vld [vmem:[%s1 + $0x1360] sm:$0xff]
        %v1043 = vld [vmem:[%s1 + $0x1368] sm:$0xff]
        %v1044 = vld [vmem:[%s1 + $0x1370] sm:$0xff]
        %v1045 = vld [vmem:[%s1 + $0x1378] sm:$0xff]
        %v1046 = vld [vmem:[%s1 + $0x1380] sm:$0xff]
        %v1047 = vld [vmem:[%s1 + $0x1388] sm:$0xff]
        %v1048 = vld [vmem:[%s1 + $0x1390] sm:$0xff]
        %v1049 = vld [vmem:[%s1 + $0x1398] sm:$0xff]
        %v1050 = vld [vmem:[%s1 + $0x13a0] sm:$0xff]
        %v1051 = vld [vmem:[%s1 + $0x13a8] sm:$0xff]
        %v1052 = vld [vmem:[%s1 + $0x13b0] sm:$0xff]
        %v1053 = vld [vmem:[%s1 + $0x13b8] sm:$0xff]
        %v1054 = vld [vmem:[%s1 + $0x13c0] sm:$0xff]
        %v1055 = vld [vmem:[%s1 + $0x13c8] sm:$0xff]
        %v1056 = vld [vmem:[%s1 + $0x13d0] sm:$0xff]
        %v1057 = vld [vmem:[%s1 + $0x13d8] sm:$0xff]
        %v1058 = vld [vmem:[%s1 + $0x13e0] sm:$0xff]
        %v1059 = vld [vmem:[%s1 + $0x13e8] sm:$0xff]
        %v1060 = vld [vmem:[%s1 + $0x13f0] sm:$0xff]
        %v1061 = vld [vmem:[%s1 + $0x13f8] sm:$0xff]
        %v1062 = vld [vmem:[%s1 + $0x1400] sm:$0xff]
        %v1063 = vld [vmem:[%s1 + $0x1408] sm:$0xff]
        %v1064 = vld [vmem:[%s1 + $0x1410] sm:$0xff]
        %v1065 = vld [vmem:[%s1 + $0x1418] sm:$0xff]
        %v1066 = vld [vmem:[%s1 + $0x1420] sm:$0xff]
        %v1067 = vld [vmem:[%s1 + $0x1428] sm:$0xff]
        %v1068 = vld [vmem:[%s1 + $0x1430] sm:$0xff]
        %v1069 = vld [vmem:[%s1 + $0x1438] sm:$0xff]
        %v1070 = vld [vmem:[%s1 + $0x1440] sm:$0xff]
        %v1071 = vld [vmem:[%s1 + $0x1448] sm:$0xff]
        %v1072 = vld [vmem:[%s1 + $0x1450] sm:$0xff]
        %v1073 = vld [vmem:[%s1 + $0x1458] sm:$0xff]
        %v1074 = vld [vmem:[%s1 + $0x1460] sm:$0xff]
        %v1075 = vld [vmem:[%s1 + $0x1468] sm:$0xff]
        %v1076 = vld [vmem:[%s1 + $0x1470] sm:$0xff]
        %v1077 = vld [vmem:[%s1 + $0x1478] sm:$0xff]
        %v1078 = vld [vmem:[%s1 + $0x1480] sm:$0xff]
        %v1079 = vld [vmem:[%s1 + $0x1488] sm:$0xff]
        %v1080 = vld [vmem:[%s1 + $0x1490] sm:$0xff]
        %v1081 = vld [vmem:[%s1 + $0x1498] sm:$0xff]
        %v1082 = vld [vmem:[%s1 + $0x14a0] sm:$0xff]
        %v1083 = vld [vmem:[%s1 + $0x14a8] sm:$0xff]
        %v1084 = vld [vmem:[%s1 + $0x14b0] sm:$0xff]
        %v1085 = vld [vmem:[%s1 + $0x14b8] sm:$0xff]
        %v1086 = vld [vmem:[%s1 + $0x14c0] sm:$0xff]
        %v1087 = vld [vmem:[%s1 + $0x14c8] sm:$0xff]
        %v1088 = vld [vmem:[%s1 + $0x14d0] sm:$0xff]
        %v1089 = vld [vmem:[%s1 + $0x14d8] sm:$0xff]
        %v1090 = vld [vmem:[%s1 + $0x14e0] sm:$0xff]
        %v1091 = vld [vmem:[%s1 + $0x14e8] sm:$0xff]
        %v1092 = vld [vmem:[%s1 + $0x14f0] sm:$0xff]
        %v1093 = vld [vmem:[%s1 + $0x14f8] sm:$0xff]
        %v1094 = vld [vmem:[%s1 + $0x1500] sm:$0xff]
        %v1095 = vld [vmem:[%s1 + $0x1508] sm:$0xff]
        %v1096 = vld [vmem:[%s1 + $0x1510] sm:$0xff]
        %v1097 = vld [vmem:[%s1 + $0x1518] sm:$0xff]
        %v1098 = vld [vmem:[%s1 + $0x1520] sm:$0xff]
        %v1099 = vld [vmem:[%s1 + $0x1528] sm:$0xff]
        %v1100 = vld [vmem:[%s1 + $0x1530] sm:$0xff]
        %v1101 = vld [vmem:[%s1 + $0x1538] sm:$0xff]
        %v1102 = vld [vmem:[%s1 + $0x1540] sm:$0xff]
        %v1103 = vld [vmem:[%s1 + $0x1548] sm:$0xff]
        %v1104 = vld [vmem:[%s1 + $0x1550] sm:$0xff]
        %v1105 = vld [vmem:[%s1 + $0x1558] sm:$0xff]
        %v1106 = vld [vmem:[%s1 + $0x1560] sm:$0xff]
        %v1107 = vld [vmem:[%s1 + $0x1568] sm:$0xff]
        %v1108 = vld [vmem:[%s1 + $0x1570] sm:$0xff]
        %v1109 = vld [vmem:[%s1 + $0x1578] sm:$0xff]
        %v1110 = vld [vmem:[%s1 + $0x1580] sm:$0xff]
        %v1111 = vld [vmem:[%s1 + $0x1588] sm:$0xff]
        %v1112 = vld [vmem:[%s1 + $0x1590] sm:$0xff]
        %v1113 = vld [vmem:[%s1 + $0x1598] sm:$0xff]
        %v1114 = vld [vmem:[%s1 + $0x15a0] sm:$0xff]
        %v1115 = vld [vmem:[%s1 + $0x15a8] sm:$0xff]
        %v1116 = vld [vmem:[%s1 + $0x15b0] sm:$0xff]
        %v1117 = vld [vmem:[%s1 + $0x15b8] sm:$0xff]
        %v1118 = vld [vmem:[%s1 + $0x15c0] sm:$0xff]
        %v1119 = vld [vmem:[%s1 + $0x15c8] sm:$0xff]
        %v1120 = vld [vmem:[%s1 + $0x15d0] sm:$0xff]
        %v1121 = vld [vmem:[%s1 + $0x15d8] sm:$0xff]
        %v1122 = vld [vmem:[%s1 + $0x15e0] sm:$0xff]
        %v1123 = vld [vmem:[%s1 + $0x15e8] sm:$0xff]
        %v1124 = vld [vmem:[%s1 + $0x15f0] sm:$0xff]
        %v1125 = vld [vmem:[%s1 + $0x15f8] sm:$0xff]
        %v1126 = vld [vmem:[%s1 + $0x1600] sm:$0xff]
        %v1127 = vld [vmem:[%s1 + $0x1608] sm:$0xff]
        %v1128 = vld [vmem:[%s1 + $0x1610] sm:$0xff]
        %v1129 = vld [vmem:[%s1 + $0x1618] sm:$0xff]
        %v1130 = vld [vmem:[%s1 + $0x1620] sm:$0xff]
        %v1131 = vld [vmem:[%s1 + $0x1628] sm:$0xff]
        %v1132 = vld [vmem:[%s1 + $0x1630] sm:$0xff]
        %v1133 = vld [vmem:[%s1 + $0x1638] sm:$0xff]
        %v1134 = vld [vmem:[%s1 + $0x1640] sm:$0xff]
        %v1135 = vld [vmem:[%s1 + $0x1648] sm:$0xff]
        %v1136 = vld [vmem:[%s1 + $0x1650] sm:$0xff]
        %v1137 = vld [vmem:[%s1 + $0x1658] sm:$0xff]
        %v1138 = vld [vmem:[%s1 + $0x1660] sm:$0xff]
        %v1139 = vld [vmem:[%s1 + $0x1668] sm:$0xff]
        %v1140 = vld [vmem:[%s1 + $0x1670] sm:$0xff]
        %v1141 = vld [vmem:[%s1 + $0x1678] sm:$0xff]
        %v1142 = vld [vmem:[%s1 + $0x1680] sm:$0xff]
        %v1143 = vld [vmem:[%s1 + $0x1688] sm:$0xff]
        %v1144 = vld [vmem:[%s1 + $0x1690] sm:$0xff]
        %v1145 = vld [vmem:[%s1 + $0x1698] sm:$0xff]
        %v1146 = vld [vmem:[%s1 + $0x16a0] sm:$0xff]
        %v1147 = vld [vmem:[%s1 + $0x16a8] sm:$0xff]
        %v1148 = vld [vmem:[%s1 + $0x16b0] sm:$0xff]
        %v1149 = vld [vmem:[%s1 + $0x16b8] sm:$0xff]
        %v1150 = vld [vmem:[%s1 + $0x16c0] sm:$0xff]
        %v1151 = vld [vmem:[%s1 + $0x16c8] sm:$0xff]
        %v1152 = vld [vmem:[%s1 + $0x16d0] sm:$0xff]
        %v1153 = vld [vmem:[%s1 + $0x16d8] sm:$0xff]
        %v1154 = vld [vmem:[%s1 + $0x16e0] sm:$0xff]
        %v1155 = vld [vmem:[%s1 + $0x16e8] sm:$0xff]
        %v1156 = vld [vmem:[%s1 + $0x16f0] sm:$0xff]
        %v1157 = vld [vmem:[%s1 + $0x16f8] sm:$0xff]
        %v1158 = vld [vmem:[%s1 + $0x1700] sm:$0xff]
        %v1159 = vld [vmem:[%s1 + $0x1708] sm:$0xff]
        %v1160 = vld [vmem:[%s1 + $0x1710] sm:$0xff]
        %v1161 = vld [vmem:[%s1 + $0x1718] sm:$0xff]
        %v1162 = vld [vmem:[%s1 + $0x1720] sm:$0xff]
        %v1163 = vld [vmem:[%s1 + $0x1728] sm:$0xff]
        %v1164 = vld [vmem:[%s1 + $0x1730] sm:$0xff]
        %v1165 = vld [vmem:[%s1 + $0x1738] sm:$0xff]
        %v1166 = vld [vmem:[%s1 + $0x1740] sm:$0xff]
        %v1167 = vld [vmem:[%s1 + $0x1748] sm:$0xff]
        %v1168 = vld [vmem:[%s1 + $0x1750] sm:$0xff]
        %v1169 = vld [vmem:[%s1 + $0x1758] sm:$0xff]
        %v1170 = vld [vmem:[%s1 + $0x1760] sm:$0xff]
        %v1171 = vld [vmem:[%s1 + $0x1768] sm:$0xff]
        %v1172 = vld [vmem:[%s1 + $0x1770] sm:$0xff]
        %v1173 = vld [vmem:[%s1 + $0x1778] sm:$0xff]
        %v1174 = vld [vmem:[%s1 + $0x1780] sm:$0xff]
        %v1175 = vld [vmem:[%s1 + $0x1788] sm:$0xff]
        %v1176 = vld [vmem:[%s1 + $0x1790] sm:$0xff]
        %v1177 = vld [vmem:[%s1 + $0x1798] sm:$0xff]
        %v1178 = vld [vmem:[%s1 + $0x17a0] sm:$0xff]
        %v1179 = vld [vmem:[%s1 + $0x17a8] sm:$0xff]
        %v1180 = vld [vmem:[%s1 + $0x17b0] sm:$0xff]
        %v1181 = vld [vmem:[%s1 + $0x17b8] sm:$0xff]
        %v1182 = vld [vmem:[%s1 + $0x17c0] sm:$0xff]
        %v1183 = vld [vmem:[%s1 + $0x17c8] sm:$0xff]
        %v1184 = vld [vmem:[%s1 + $0x17d0] sm:$0xff]
        %v1185 = vld [vmem:[%s1 + $0x17d8] sm:$0xff]
        %v1186 = vld [vmem:[%s1 + $0x17e0] sm:$0xff]
        %v1187 = vld [vmem:[%s1 + $0x17e8] sm:$0xff]
        %v1188 = vld [vmem:[%s1 + $0x17f0] sm:$0xff]
        %v1189 = vld [vmem:[%s1 + $0x17f8] sm:$0xff]
        %v1190 = vld [vmem:[%s1 + $0x1800] sm:$0xff]
        %v1191 = vld [vmem:[%s1 + $0x1808] sm:$0xff]
        %v1192 = vld [vmem:[%s1 + $0x1810] sm:$0xff]
        %v1193 = vld [vmem:[%s1 + $0x1818] sm:$0xff]
        %v1194 = vld [vmem:[%s1 + $0x1820] sm:$0xff]
        %v1195 = vld [vmem:[%s1 + $0x1828] sm:$0xff]
        %v1196 = vld [vmem:[%s1 + $0x1830] sm:$0xff]
        %v1197 = vld [vmem:[%s1 + $0x1838] sm:$0xff]
        %v1198 = vld [vmem:[%s1 + $0x1840] sm:$0xff]
        %v1199 = vld [vmem:[%s1 + $0x1848] sm:$0xff]
        %v1200 = vld [vmem:[%s1 + $0x1850] sm:$0xff]
        %v1201 = vld [vmem:[%s1 + $0x1858] sm:$0xff]
        %v1202 = vld [vmem:[%s1 + $0x1860] sm:$0xff]
        %v1203 = vld [vmem:[%s1 + $0x1868] sm:$0xff]
        %v1204 = vld [vmem:[%s1 + $0x1870] sm:$0xff]
        %v1205 = vld [vmem:[%s1 + $0x1878] sm:$0xff]
        %v1206 = vld [vmem:[%s1 + $0x1880] sm:$0xff]
        %v1207 = vld [vmem:[%s1 + $0x1888] sm:$0xff]
        %v1208 = vld [vmem:[%s1 + $0x1890] sm:$0xff]
        %v1209 = vld [vmem:[%s1 + $0x1898] sm:$0xff]
        %v1210 = vld [vmem:[%s1 + $0x18a0] sm:$0xff]
        %v1211 = vld [vmem:[%s1 + $0x18a8] sm:$0xff]
        %v1212 = vld [vmem:[%s1 + $0x18b0] sm:$0xff]
        %v1213 = vld [vmem:[%s1 + $0x18b8] sm:$0xff]
        %v1214 = vld [vmem:[%s1 + $0x18c0] sm:$0xff]
        %v1215 = vld [vmem:[%s1 + $0x18c8] sm:$0xff]
        %v1216 = vld [vmem:[%s1 + $0x18d0] sm:$0xff]
        %v1217 = vld [vmem:[%s1 + $0x18d8] sm:$0xff]
        %v1218 = vld [vmem:[%s1 + $0x18e0] sm:$0xff]
        %v1219 = vld [vmem:[%s1 + $0x18e8] sm:$0xff]
        %v1220 = vld [vmem:[%s1 + $0x18f0] sm:$0xff]
        %v1221 = vld [vmem:[%s1 + $0x18f8] sm:$0xff]
        %v1222 = vld [vmem:[%s1 + $0x1900] sm:$0xff]
        %v1223 = vld [vmem:[%s1 + $0x1908] sm:$0xff]
        %v1224 = vld [vmem:[%s1 + $0x1910] sm:$0xff]
        %v1225 = vld [vmem:[%s1 + $0x1918] sm:$0xff]
        %v1226 = vld [vmem:[%s1 + $0x1920] sm:$0xff]
        %v1227 = vld [vmem:[%s1 + $0x1928] sm:$0xff]
        %v1228 = vld [vmem:[%s1 + $0x1930] sm:$0xff]
        %v1229 = vld [vmem:[%s1 + $0x1938] sm:$0xff]
        %v1230 = vld [vmem:[%s1 + $0x1940] sm:$0xff]
        %v1231 = vld [vmem:[%s1 + $0x1948] sm:$0xff]
        %v1232 = vld [vmem:[%s1 + $0x1950] sm:$0xff]
        %v1233 = vld [vmem:[%s1 + $0x1958] sm:$0xff]
        %v1234 = vld [vmem:[%s1 + $0x1960] sm:$0xff]
        %v1235 = vld [vmem:[%s1 + $0x1968] sm:$0xff]
        %v1236 = vld [vmem:[%s1 + $0x1970] sm:$0xff]
        %v1237 = vld [vmem:[%s1 + $0x1978] sm:$0xff]
        %v1238 = vld [vmem:[%s1 + $0x1980] sm:$0xff]
        %v1239 = vld [vmem:[%s1 + $0x1988] sm:$0xff]
        %v1240 = vld [vmem:[%s1 + $0x1990] sm:$0xff]
        %v1241 = vld [vmem:[%s1 + $0x1998] sm:$0xff]
        %v1242 = vld [vmem:[%s1 + $0x19a0] sm:$0xff]
        %v1243 = vld [vmem:[%s1 + $0x19a8] sm:$0xff]
        %v1244 = vld [vmem:[%s1 + $0x19b0] sm:$0xff]
        %v1245 = vld [vmem:[%s1 + $0x19b8] sm:$0xff]
        %v1246 = vld [vmem:[%s1 + $0x19c0] sm:$0xff]
        %v1247 = vld [vmem:[%s1 + $0x19c8] sm:$0xff]
        %v1248 = vld [vmem:[%s1 + $0x19d0] sm:$0xff]
        %v1249 = vld [vmem:[%s1 + $0x19d8] sm:$0xff]
        %v1250 = vld [vmem:[%s1 + $0x19e0] sm:$0xff]
        %v1251 = vld [vmem:[%s1 + $0x19e8] sm:$0xff]
        %v1252 = vld [vmem:[%s1 + $0x19f0] sm:$0xff]
        %v1253 = vld [vmem:[%s1 + $0x19f8] sm:$0xff]
        %v1254 = vld [vmem:[%s1 + $0x1a00] sm:$0xff]
        %v1255 = vld [vmem:[%s1 + $0x1a08] sm:$0xff]
        %v1256 = vld [vmem:[%s1 + $0x1a10] sm:$0xff]
        %v1257 = vld [vmem:[%s1 + $0x1a18] sm:$0xff]
        %v1258 = vld [vmem:[%s1 + $0x1a20] sm:$0xff]
        %v1259 = vld [vmem:[%s1 + $0x1a28] sm:$0xff]
        %v1260 = vld [vmem:[%s1 + $0x1a30] sm:$0xff]
        %v1261 = vld [vmem:[%s1 + $0x1a38] sm:$0xff]
        %v1262 = vld [vmem:[%s1 + $0x1a40] sm:$0xff]
        %v1263 = vld [vmem:[%s1 + $0x1a48] sm:$0xff]
        %v1264 = vld [vmem:[%s1 + $0x1a50] sm:$0xff]
        %v1265 = vld [vmem:[%s1 + $0x1a58] sm:$0xff]
        %v1266 = vld [vmem:[%s1 + $0x1a60] sm:$0xff]
        %v1267 = vld [vmem:[%s1 + $0x1a68] sm:$0xff]
        %v1268 = vld [vmem:[%s1 + $0x1a70] sm:$0xff]
        %v1269 = vld [vmem:[%s1 + $0x1a78] sm:$0xff]
        %v1270 = vld [vmem:[%s1 + $0x1a80] sm:$0xff]
        %v1271 = vld [vmem:[%s1 + $0x1a88] sm:$0xff]
        %v1272 = vld [vmem:[%s1 + $0x1a90] sm:$0xff]
        %v1273 = vld [vmem:[%s1 + $0x1a98] sm:$0xff]
        %v1274 = vld [vmem:[%s1 + $0x1aa0] sm:$0xff]
        %v1275 = vld [vmem:[%s1 + $0x1aa8] sm:$0xff]
        %v1276 = vld [vmem:[%s1 + $0x1ab0] sm:$0xff]
        %v1277 = vld [vmem:[%s1 + $0x1ab8] sm:$0xff]
        %v1278 = vld [vmem:[%s1 + $0x1ac0] sm:$0xff]
        %v1279 = vld [vmem:[%s1 + $0x1ac8] sm:$0xff]
        %v1280 = vld [vmem:[%s1 + $0x1ad0] sm:$0xff]
        %v1281 = vld [vmem:[%s1 + $0x1ad8] sm:$0xff]
        %v1282 = vld [vmem:[%s1 + $0x1ae0] sm:$0xff]
        %v1283 = vld [vmem:[%s1 + $0x1ae8] sm:$0xff]
        %v1284 = vld [vmem:[%s1 + $0x1af0] sm:$0xff]
        %v1285 = vld [vmem:[%s1 + $0x1af8] sm:$0xff]
        %v1286 = vld [vmem:[%s2] sm:$0x3f]
        %v1288 = vperm.slane %v1286, 0
        %v1289 = vperm.slane %v1286, 1
        %v1290 = vperm.slane %v1286, 2
        %v1291 = vperm.slane %v1286, 3
        %v1292 = vperm.slane %v1286, 4
        %v1293 = vperm.slane %v1286, 5
        %1300 = vmatpush.msra.mxu0 %v512
        %1301 = vmatpush.msra.mxu0 %v506
        %1302 = vmatpush.msra.mxu0 %v500
        %1303 = vmatpush.msra.mxu0 %v494
        %1304 = vmatpush.msra.mxu0 %v488
        %1305 = vmatpush.msra.mxu0 %v482
        %1306 = vmatpush.msra.mxu0 %v476
        %1307 = vmatpush.msra.mxu0 %v470
        %1308 = vmatpush.msra.mxu0 %v464
        %1309 = vmatpush.msra.mxu0 %v458
        %1310 = vmatpush.msra.mxu0 %v452
        %1311 = vmatpush.msra.mxu0 %v446
        %1312 = vmatpush.msra.mxu0 %v440
        %1313 = vmatpush.msra.mxu0 %v434
        %1314 = vmatpush.msra.mxu0 %v428
        %1315 = vmatpush.msra.mxu0 %v422
        %1316 = vmatmul.f32.gmra.mxu0 %v330
        %v1317 = vpop.f32.mrf.mxu0
        %v1318 = vadd.f32 %v1288, %v1317
        %1319 = vmatmul.f32.gmra.mxu0 %v331
        %v1320 = vpop.f32.mrf.mxu0
        %v1321 = vadd.f32 %v1288, %v1320
        %1322 = vmatmul.f32.gmra.mxu0 %v332
        %v1323 = vpop.f32.mrf.mxu0
        %v1324 = vadd.f32 %v1288, %v1323
        %1325 = vmatmul.f32.gmra.mxu0 %v333
        %v1326 = vpop.f32.mrf.mxu0
        %v1327 = vadd.f32 %v1288, %v1326
        %1328 = vdwg.mxu0
        %1329 = vmatpush.msra.mxu0 %v608
        %1330 = vmatpush.msra.mxu0 %v602
        %1331 = vmatpush.msra.mxu0 %v596
        %1332 = vmatpush.msra.mxu0 %v590
        %1333 = vmatpush.msra.mxu0 %v584
        %1334 = vmatpush.msra.mxu0 %v578
        %1335 = vmatpush.msra.mxu0 %v572
        %1336 = vmatpush.msra.mxu0 %v566
        %1337 = vmatpush.msra.mxu0 %v560
        %1338 = vmatpush.msra.mxu0 %v554
        %1339 = vmatpush.msra.mxu0 %v548
        %1340 = vmatpush.msra.mxu0 %v542
        %1341 = vmatpush.msra.mxu0 %v536
        %1342 = vmatpush.msra.mxu0 %v530
        %1343 = vmatpush.msra.mxu0 %v524
        %1344 = vmatpush.msra.mxu0 %v518
        %1345 = vmatmul.f32.gmra.mxu0 %v349
        %v1346 = vpop.f32.mrf.mxu0
        %v1347 = vadd.f32 %v1318, %v1346
        %1348 = vmatmul.f32.gmra.mxu0 %v351
        %v1349 = vpop.f32.mrf.mxu0
        %v1350 = vadd.f32 %v1321, %v1349
        %1351 = vmatmul.f32.gmra.mxu0 %v353
        %v1352 = vpop.f32.mrf.mxu0
        %v1353 = vadd.f32 %v1324, %v1352
        %1354 = vmatmul.f32.gmra.mxu0 %v352
        %v1355 = vpop.f32.mrf.mxu0
        %v1356 = vadd.f32 %v1327, %v1355
        %1357 = vdwg.mxu0
        %1358 = vmatpush.msra.mxu0 %v704
        %1359 = vmatpush.msra.mxu0 %v698
        %1360 = vmatpush.msra.mxu0 %v692
        %1361 = vmatpush.msra.mxu0 %v686
        %1362 = vmatpush.msra.mxu0 %v680
        %1363 = vmatpush.msra.mxu0 %v674
        %1364 = vmatpush.msra.mxu0 %v668
        %1365 = vmatpush.msra.mxu0 %v662
        %1366 = vmatpush.msra.mxu0 %v656
        %1367 = vmatpush.msra.mxu0 %v650
        %1368 = vmatpush.msra.mxu0 %v644
        %1369 = vmatpush.msra.mxu0 %v638
        %1370 = vmatpush.msra.mxu0 %v632
        %1371 = vmatpush.msra.mxu0 %v626
        %1372 = vmatpush.msra.mxu0 %v620
        %1373 = vmatpush.msra.mxu0 %v614
        %1374 = vmatmul.f32.gmra.mxu0 %v361
        %v1375 = vpop.f32.mrf.mxu0
        %v1376 = vadd.f32 %v1347, %v1375
        %1377 = vmatmul.f32.gmra.mxu0 %v363
        %v1378 = vpop.f32.mrf.mxu0
        %v1379 = vadd.f32 %v1350, %v1378
        %1380 = vmatmul.f32.gmra.mxu0 %v365
        %v1381 = vpop.f32.mrf.mxu0
        %v1382 = vadd.f32 %v1353, %v1381
        %1383 = vmatmul.f32.gmra.mxu0 %v364
        %v1384 = vpop.f32.mrf.mxu0
        %v1385 = vadd.f32 %v1356, %v1384
        %1386 = vdwg.mxu0
        %1387 = vmatpush.msra.mxu0 %v800
        %1388 = vmatpush.msra.mxu0 %v794
        %1389 = vmatpush.msra.mxu0 %v788
        %1390 = vmatpush.msra.mxu0 %v782
        %1391 = vmatpush.msra.mxu0 %v776
        %1392 = vmatpush.msra.mxu0 %v770
        %1393 = vmatpush.msra.mxu0 %v764
        %1394 = vmatpush.msra.mxu0 %v758
        %1395 = vmatpush.msra.mxu0 %v752
        %1396 = vmatpush.msra.mxu0 %v746
        %1397 = vmatpush.msra.mxu0 %v740
        %1398 = vmatpush.msra.mxu0 %v734
        %1399 = vmatpush.msra.mxu0 %v728
        %1400 = vmatpush.msra.mxu0 %v722
        %1401 = vmatpush.msra.mxu0 %v716
        %1402 = vmatpush.msra.mxu0 %v710
        %1403 = vmatmul.f32.gmra.mxu0 %v334
        %v1404 = vpop.f32.mrf.mxu0
        %v1405 = vadd.f32 %v1376, %v1404
        %1406 = vmatmul.f32.gmra.mxu0 %v335
        %v1407 = vpop.f32.mrf.mxu0
        %v1408 = vadd.f32 %v1379, %v1407
        %1409 = vmatmul.f32.gmra.mxu0 %v336
        %v1410 = vpop.f32.mrf.mxu0
        %v1411 = vadd.f32 %v1382, %v1410
        %1412 = vmatmul.f32.gmra.mxu0 %v337
        %v1413 = vpop.f32.mrf.mxu0
        %v1414 = vadd.f32 %v1385, %v1413
        %1415 = vdwg.mxu0
        %1416 = vmatpush.msra.mxu0 %v896
        %1417 = vmatpush.msra.mxu0 %v890
        %1418 = vmatpush.msra.mxu0 %v884
        %1419 = vmatpush.msra.mxu0 %v878
        %1420 = vmatpush.msra.mxu0 %v872
        %1421 = vmatpush.msra.mxu0 %v866
        %1422 = vmatpush.msra.mxu0 %v860
        %1423 = vmatpush.msra.mxu0 %v854
        %1424 = vmatpush.msra.mxu0 %v848
        %1425 = vmatpush.msra.mxu0 %v842
        %1426 = vmatpush.msra.mxu0 %v836
        %1427 = vmatpush.msra.mxu0 %v830
        %1428 = vmatpush.msra.mxu0 %v824
        %1429 = vmatpush.msra.mxu0 %v818
        %1430 = vmatpush.msra.mxu0 %v812
        %1431 = vmatpush.msra.mxu0 %v806
        %1432 = vmatmul.f32.gmra.mxu0 %v376
        %v1433 = vpop.f32.mrf.mxu0
        %v1434 = vadd.f32 %v1405, %v1433
        %1435 = vmatmul.f32.gmra.mxu0 %v378
        %v1436 = vpop.f32.mrf.mxu0
        %v1437 = vadd.f32 %v1408, %v1436
        %1438 = vmatmul.f32.gmra.mxu0 %v380
        %v1439 = vpop.f32.mrf.mxu0
        %v1440 = vadd.f32 %v1411, %v1439
        %1441 = vmatmul.f32.gmra.mxu0 %v379
        %v1442 = vpop.f32.mrf.mxu0
        %v1443 = vadd.f32 %v1414, %v1442
        %1444 = vdwg.mxu0
        %1445 = vmatpush.msra.mxu0 %v992
        %1446 = vmatpush.msra.mxu0 %v986
        %1447 = vmatpush.msra.mxu0 %v980
        %1448 = vmatpush.msra.mxu0 %v974
        %1449 = vmatpush.msra.mxu0 %v968
        %1450 = vmatpush.msra.mxu0 %v962
        %1451 = vmatpush.msra.mxu0 %v956
        %1452 = vmatpush.msra.mxu0 %v950
        %1453 = vmatpush.msra.mxu0 %v944
        %1454 = vmatpush.msra.mxu0 %v938
        %1455 = vmatpush.msra.mxu0 %v932
        %1456 = vmatpush.msra.mxu0 %v926
        %1457 = vmatpush.msra.mxu0 %v920
        %1458 = vmatpush.msra.mxu0 %v914
        %1459 = vmatpush.msra.mxu0 %v908
        %1460 = vmatpush.msra.mxu0 %v902
        %1461 = vmatmul.f32.gmra.mxu0 %v387
        %v1462 = vpop.f32.mrf.mxu0
        %v1463 = vadd.f32 %v1434, %v1462
        %1464 = vmatmul.f32.gmra.mxu0 %v389
        %v1465 = vpop.f32.mrf.mxu0
        %v1466 = vadd.f32 %v1437, %v1465
        %1467 = vmatmul.f32.gmra.mxu0 %v391
        %v1468 = vpop.f32.mrf.mxu0
        %v1469 = vadd.f32 %v1440, %v1468
        %1470 = vmatmul.f32.gmra.mxu0 %v390
        %v1471 = vpop.f32.mrf.mxu0
        %v1472 = vadd.f32 %v1443, %v1471
        %1473 = vdwg.mxu0
        %1474 = vmatpush.msra.mxu0 %v1088
        %1475 = vmatpush.msra.mxu0 %v1082
        %1476 = vmatpush.msra.mxu0 %v1076
        %1477 = vmatpush.msra.mxu0 %v1070
        %1478 = vmatpush.msra.mxu0 %v1064
        %1479 = vmatpush.msra.mxu0 %v1058
        %1480 = vmatpush.msra.mxu0 %v1052
        %1481 = vmatpush.msra.mxu0 %v1046
        %1482 = vmatpush.msra.mxu0 %v1040
        %1483 = vmatpush.msra.mxu0 %v1034
        %1484 = vmatpush.msra.mxu0 %v1028
        %1485 = vmatpush.msra.mxu0 %v1022
        %1486 = vmatpush.msra.mxu0 %v1016
        %1487 = vmatpush.msra.mxu0 %v1010
        %1488 = vmatpush.msra.mxu0 %v1004
        %1489 = vmatpush.msra.mxu0 %v998
        %1490 = vmatmul.f32.gmra.mxu0 %v338
        %v1491 = vpop.f32.mrf.mxu0
        %v1492 = vadd.f32 %v1463, %v1491
        %1493 = vmatmul.f32.gmra.mxu0 %v339
        %v1494 = vpop.f32.mrf.mxu0
        %v1495 = vadd.f32 %v1466, %v1494
        %1496 = vmatmul.f32.gmra.mxu0 %v340
        %v1497 = vpop.f32.mrf.mxu0
        %v1498 = vadd.f32 %v1469, %v1497
        %1499 = vmatmul.f32.gmra.mxu0 %v341
        %v1500 = vpop.f32.mrf.mxu0
        %v1501 = vadd.f32 %v1472, %v1500
        %1502 = vdwg.mxu0
        %1503 = vmatpush.msra.mxu0 %v1184
        %1504 = vmatpush.msra.mxu0 %v1178
        %1505 = vmatpush.msra.mxu0 %v1172
        %1506 = vmatpush.msra.mxu0 %v1166
        %1507 = vmatpush.msra.mxu0 %v1160
        %1508 = vmatpush.msra.mxu0 %v1154
        %1509 = vmatpush.msra.mxu0 %v1148
        %1510 = vmatpush.msra.mxu0 %v1142
        %1511 = vmatpush.msra.mxu0 %v1136
        %1512 = vmatpush.msra.mxu0 %v1130
        %1513 = vmatpush.msra.mxu0 %v1124
        %1514 = vmatpush.msra.mxu0 %v1118
        %1515 = vmatpush.msra.mxu0 %v1112
        %1516 = vmatpush.msra.mxu0 %v1106
        %1517 = vmatpush.msra.mxu0 %v1100
        %1518 = vmatpush.msra.mxu0 %v1094
        %1519 = vmatmul.f32.gmra.mxu0 %v402
        %v1520 = vpop.f32.mrf.mxu0
        %v1521 = vadd.f32 %v1492, %v1520
        %1522 = vmatmul.f32.gmra.mxu0 %v404
        %v1523 = vpop.f32.mrf.mxu0
        %v1524 = vadd.f32 %v1495, %v1523
        %1525 = vmatmul.f32.gmra.mxu0 %v406
        %v1526 = vpop.f32.mrf.mxu0
        %v1527 = vadd.f32 %v1498, %v1526
        %1528 = vmatmul.f32.gmra.mxu0 %v405
        %v1529 = vpop.f32.mrf.mxu0
        %v1530 = vadd.f32 %v1501, %v1529
        %1531 = vdwg.mxu0
        %1532 = vmatpush.msra.mxu0 %v1280
        %1533 = vmatpush.msra.mxu0 %v1274
        %1534 = vmatpush.msra.mxu0 %v1268
        %1535 = vmatpush.msra.mxu0 %v1262
        %1536 = vmatpush.msra.mxu0 %v1256
        %1537 = vmatpush.msra.mxu0 %v1250
        %1538 = vmatpush.msra.mxu0 %v1244
        %1539 = vmatpush.msra.mxu0 %v1238
        %1540 = vmatpush.msra.mxu0 %v1232
        %1541 = vmatpush.msra.mxu0 %v1226
        %1542 = vmatpush.msra.mxu0 %v1220
        %1543 = vmatpush.msra.mxu0 %v1214
        %1544 = vmatpush.msra.mxu0 %v1208
        %1545 = vmatpush.msra.mxu0 %v1202
        %1546 = vmatpush.msra.mxu0 %v1196
        %1547 = vmatpush.msra.mxu0 %v1190
        %1548 = vmatmul.f32.gmra.mxu0 %v413
        %v1549 = vpop.f32.mrf.mxu0
        %v1550 = vadd.f32 %v1521, %v1549
        %1551 = vmatmul.f32.gmra.mxu0 %v415
        %v1552 = vpop.f32.mrf.mxu0
        %v1553 = vadd.f32 %v1524, %v1552
        %1554 = vmatmul.f32.gmra.mxu0 %v417
        %v1555 = vpop.f32.mrf.mxu0
        %v1556 = vadd.f32 %v1527, %v1555
        %1557 = vmatmul.f32.gmra.mxu0 %v416
        %v1558 = vpop.f32.mrf.mxu0
        %v1559 = vadd.f32 %v1530, %v1558
        %1560 = vdwg.mxu0
        %1561 = vmatpush.msra.mxu0 %v513
        %1562 = vmatpush.msra.mxu0 %v507
        %1563 = vmatpush.msra.mxu0 %v501
        %1564 = vmatpush.msra.mxu0 %v495
        %1565 = vmatpush.msra.mxu0 %v489
        %1566 = vmatpush.msra.mxu0 %v483
        %1567 = vmatpush.msra.mxu0 %v477
        %1568 = vmatpush.msra.mxu0 %v471
        %1569 = vmatpush.msra.mxu0 %v465
        %1570 = vmatpush.msra.mxu0 %v459
        %1571 = vmatpush.msra.mxu0 %v453
        %1572 = vmatpush.msra.mxu0 %v447
        %1573 = vmatpush.msra.mxu0 %v441
        %1574 = vmatpush.msra.mxu0 %v435
        %1575 = vmatpush.msra.mxu0 %v429
        %1576 = vmatpush.msra.mxu0 %v423
        %1577 = vmatmul.f32.gmra.mxu0 %v330
        %v1578 = vpop.f32.mrf.mxu0
        %v1579 = vadd.f32 %v1289, %v1578
        %1580 = vmatmul.f32.gmra.mxu0 %v331
        %v1581 = vpop.f32.mrf.mxu0
        %v1582 = vadd.f32 %v1289, %v1581
        %1583 = vmatmul.f32.gmra.mxu0 %v332
        %v1584 = vpop.f32.mrf.mxu0
        %v1585 = vadd.f32 %v1289, %v1584
        %1586 = vmatmul.f32.gmra.mxu0 %v333
        %v1587 = vpop.f32.mrf.mxu0
        %v1588 = vadd.f32 %v1289, %v1587
        %1589 = vdwg.mxu0
        %1590 = vmatpush.msra.mxu0 %v609
        %1591 = vmatpush.msra.mxu0 %v603
        %1592 = vmatpush.msra.mxu0 %v597
        %1593 = vmatpush.msra.mxu0 %v591
        %1594 = vmatpush.msra.mxu0 %v585
        %1595 = vmatpush.msra.mxu0 %v579
        %1596 = vmatpush.msra.mxu0 %v573
        %1597 = vmatpush.msra.mxu0 %v567
        %1598 = vmatpush.msra.mxu0 %v561
        %1599 = vmatpush.msra.mxu0 %v555
        %1600 = vmatpush.msra.mxu0 %v549
        %1601 = vmatpush.msra.mxu0 %v543
        %1602 = vmatpush.msra.mxu0 %v537
        %1603 = vmatpush.msra.mxu0 %v531
        %1604 = vmatpush.msra.mxu0 %v525
        %1605 = vmatpush.msra.mxu0 %v519
        %1606 = vmatmul.f32.gmra.mxu0 %v349
        %v1607 = vpop.f32.mrf.mxu0
        %v1608 = vadd.f32 %v1579, %v1607
        %1609 = vmatmul.f32.gmra.mxu0 %v351
        %v1610 = vpop.f32.mrf.mxu0
        %v1611 = vadd.f32 %v1582, %v1610
        %1612 = vmatmul.f32.gmra.mxu0 %v353
        %v1613 = vpop.f32.mrf.mxu0
        %v1614 = vadd.f32 %v1585, %v1613
        %1615 = vmatmul.f32.gmra.mxu0 %v352
        %v1616 = vpop.f32.mrf.mxu0
        %v1617 = vadd.f32 %v1588, %v1616
        %1618 = vdwg.mxu0
        %1619 = vmatpush.msra.mxu0 %v705
        %1620 = vmatpush.msra.mxu0 %v699
        %1621 = vmatpush.msra.mxu0 %v693
        %1622 = vmatpush.msra.mxu0 %v687
        %1623 = vmatpush.msra.mxu0 %v681
        %1624 = vmatpush.msra.mxu0 %v675
        %1625 = vmatpush.msra.mxu0 %v669
        %1626 = vmatpush.msra.mxu0 %v663
        %1627 = vmatpush.msra.mxu0 %v657
        %1628 = vmatpush.msra.mxu0 %v651
        %1629 = vmatpush.msra.mxu0 %v645
        %1630 = vmatpush.msra.mxu0 %v639
        %1631 = vmatpush.msra.mxu0 %v633
        %1632 = vmatpush.msra.mxu0 %v627
        %1633 = vmatpush.msra.mxu0 %v621
        %1634 = vmatpush.msra.mxu0 %v615
        %1635 = vmatmul.f32.gmra.mxu0 %v361
        %v1636 = vpop.f32.mrf.mxu0
        %v1637 = vadd.f32 %v1608, %v1636
        %1638 = vmatmul.f32.gmra.mxu0 %v363
        %v1639 = vpop.f32.mrf.mxu0
        %v1640 = vadd.f32 %v1611, %v1639
        %1641 = vmatmul.f32.gmra.mxu0 %v365
        %v1642 = vpop.f32.mrf.mxu0
        %v1643 = vadd.f32 %v1614, %v1642
        %1644 = vmatmul.f32.gmra.mxu0 %v364
        %v1645 = vpop.f32.mrf.mxu0
        %v1646 = vadd.f32 %v1617, %v1645
        %1647 = vdwg.mxu0
        %1648 = vmatpush.msra.mxu0 %v801
        %1649 = vmatpush.msra.mxu0 %v795
        %1650 = vmatpush.msra.mxu0 %v789
        %1651 = vmatpush.msra.mxu0 %v783
        %1652 = vmatpush.msra.mxu0 %v777
        %1653 = vmatpush.msra.mxu0 %v771
        %1654 = vmatpush.msra.mxu0 %v765
        %1655 = vmatpush.msra.mxu0 %v759
        %1656 = vmatpush.msra.mxu0 %v753
        %1657 = vmatpush.msra.mxu0 %v747
        %1658 = vmatpush.msra.mxu0 %v741
        %1659 = vmatpush.msra.mxu0 %v735
        %1660 = vmatpush.msra.mxu0 %v729
        %1661 = vmatpush.msra.mxu0 %v723
        %1662 = vmatpush.msra.mxu0 %v717
        %1663 = vmatpush.msra.mxu0 %v711
        %1664 = vmatmul.f32.gmra.mxu0 %v334
        %v1665 = vpop.f32.mrf.mxu0
        %v1666 = vadd.f32 %v1637, %v1665
        %1667 = vmatmul.f32.gmra.mxu0 %v335
        %v1668 = vpop.f32.mrf.mxu0
        %v1669 = vadd.f32 %v1640, %v1668
        %1670 = vmatmul.f32.gmra.mxu0 %v336
        %v1671 = vpop.f32.mrf.mxu0
        %v1672 = vadd.f32 %v1643, %v1671
        %1673 = vmatmul.f32.gmra.mxu0 %v337
        %v1674 = vpop.f32.mrf.mxu0
        %v1675 = vadd.f32 %v1646, %v1674
        %1676 = vdwg.mxu0
        %1677 = vmatpush.msra.mxu0 %v897
        %1678 = vmatpush.msra.mxu0 %v891
        %1679 = vmatpush.msra.mxu0 %v885
        %1680 = vmatpush.msra.mxu0 %v879
        %1681 = vmatpush.msra.mxu0 %v873
        %1682 = vmatpush.msra.mxu0 %v867
        %1683 = vmatpush.msra.mxu0 %v861
        %1684 = vmatpush.msra.mxu0 %v855
        %1685 = vmatpush.msra.mxu0 %v849
        %1686 = vmatpush.msra.mxu0 %v843
        %1687 = vmatpush.msra.mxu0 %v837
        %1688 = vmatpush.msra.mxu0 %v831
        %1689 = vmatpush.msra.mxu0 %v825
        %1690 = vmatpush.msra.mxu0 %v819
        %1691 = vmatpush.msra.mxu0 %v813
        %1692 = vmatpush.msra.mxu0 %v807
        %1693 = vmatmul.f32.gmra.mxu0 %v376
        %v1694 = vpop.f32.mrf.mxu0
        %v1695 = vadd.f32 %v1666, %v1694
        %1696 = vmatmul.f32.gmra.mxu0 %v378
        %v1697 = vpop.f32.mrf.mxu0
        %v1698 = vadd.f32 %v1669, %v1697
        %1699 = vmatmul.f32.gmra.mxu0 %v380
        %v1700 = vpop.f32.mrf.mxu0
        %v1701 = vadd.f32 %v1672, %v1700
        %1702 = vmatmul.f32.gmra.mxu0 %v379
        %v1703 = vpop.f32.mrf.mxu0
        %v1704 = vadd.f32 %v1675, %v1703
        %1705 = vdwg.mxu0
        %1706 = vmatpush.msra.mxu0 %v993
        %1707 = vmatpush.msra.mxu0 %v987
        %1708 = vmatpush.msra.mxu0 %v981
        %1709 = vmatpush.msra.mxu0 %v975
        %1710 = vmatpush.msra.mxu0 %v969
        %1711 = vmatpush.msra.mxu0 %v963
        %1712 = vmatpush.msra.mxu0 %v957
        %1713 = vmatpush.msra.mxu0 %v951
        %1714 = vmatpush.msra.mxu0 %v945
        %1715 = vmatpush.msra.mxu0 %v939
        %1716 = vmatpush.msra.mxu0 %v933
        %1717 = vmatpush.msra.mxu0 %v927
        %1718 = vmatpush.msra.mxu0 %v921
        %1719 = vmatpush.msra.mxu0 %v915
        %1720 = vmatpush.msra.mxu0 %v909
        %1721 = vmatpush.msra.mxu0 %v903
        %1722 = vmatmul.f32.gmra.mxu0 %v387
        %v1723 = vpop.f32.mrf.mxu0
        %v1724 = vadd.f32 %v1695, %v1723
        %1725 = vmatmul.f32.gmra.mxu0 %v389
        %v1726 = vpop.f32.mrf.mxu0
        %v1727 = vadd.f32 %v1698, %v1726
        %1728 = vmatmul.f32.gmra.mxu0 %v391
        %v1729 = vpop.f32.mrf.mxu0
        %v1730 = vadd.f32 %v1701, %v1729
        %1731 = vmatmul.f32.gmra.mxu0 %v390
        %v1732 = vpop.f32.mrf.mxu0
        %v1733 = vadd.f32 %v1704, %v1732
        %1734 = vdwg.mxu0
        %1735 = vmatpush.msra.mxu0 %v1089
        %1736 = vmatpush.msra.mxu0 %v1083
        %1737 = vmatpush.msra.mxu0 %v1077
        %1738 = vmatpush.msra.mxu0 %v1071
        %1739 = vmatpush.msra.mxu0 %v1065
        %1740 = vmatpush.msra.mxu0 %v1059
        %1741 = vmatpush.msra.mxu0 %v1053
        %1742 = vmatpush.msra.mxu0 %v1047
        %1743 = vmatpush.msra.mxu0 %v1041
        %1744 = vmatpush.msra.mxu0 %v1035
        %1745 = vmatpush.msra.mxu0 %v1029
        %1746 = vmatpush.msra.mxu0 %v1023
        %1747 = vmatpush.msra.mxu0 %v1017
        %1748 = vmatpush.msra.mxu0 %v1011
        %1749 = vmatpush.msra.mxu0 %v1005
        %1750 = vmatpush.msra.mxu0 %v999
        %1751 = vmatmul.f32.gmra.mxu0 %v338
        %v1752 = vpop.f32.mrf.mxu0
        %v1753 = vadd.f32 %v1724, %v1752
        %1754 = vmatmul.f32.gmra.mxu0 %v339
        %v1755 = vpop.f32.mrf.mxu0
        %v1756 = vadd.f32 %v1727, %v1755
        %1757 = vmatmul.f32.gmra.mxu0 %v340
        %v1758 = vpop.f32.mrf.mxu0
        %v1759 = vadd.f32 %v1730, %v1758
        %1760 = vmatmul.f32.gmra.mxu0 %v341
        %v1761 = vpop.f32.mrf.mxu0
        %v1762 = vadd.f32 %v1733, %v1761
        %1763 = vdwg.mxu0
        %1764 = vmatpush.msra.mxu0 %v1185
        %1765 = vmatpush.msra.mxu0 %v1179
        %1766 = vmatpush.msra.mxu0 %v1173
        %1767 = vmatpush.msra.mxu0 %v1167
        %1768 = vmatpush.msra.mxu0 %v1161
        %1769 = vmatpush.msra.mxu0 %v1155
        %1770 = vmatpush.msra.mxu0 %v1149
        %1771 = vmatpush.msra.mxu0 %v1143
        %1772 = vmatpush.msra.mxu0 %v1137
        %1773 = vmatpush.msra.mxu0 %v1131
        %1774 = vmatpush.msra.mxu0 %v1125
        %1775 = vmatpush.msra.mxu0 %v1119
        %1776 = vmatpush.msra.mxu0 %v1113
        %1777 = vmatpush.msra.mxu0 %v1107
        %1778 = vmatpush.msra.mxu0 %v1101
        %1779 = vmatpush.msra.mxu0 %v1095
        %1780 = vmatmul.f32.gmra.mxu0 %v402
        %v1781 = vpop.f32.mrf.mxu0
        %v1782 = vadd.f32 %v1753, %v1781
        %1783 = vmatmul.f32.gmra.mxu0 %v404
        %v1784 = vpop.f32.mrf.mxu0
        %v1785 = vadd.f32 %v1756, %v1784
        %1786 = vmatmul.f32.gmra.mxu0 %v406
        %v1787 = vpop.f32.mrf.mxu0
        %v1788 = vadd.f32 %v1759, %v1787
        %1789 = vmatmul.f32.gmra.mxu0 %v405
        %v1790 = vpop.f32.mrf.mxu0
        %v1791 = vadd.f32 %v1762, %v1790
        %1792 = vdwg.mxu0
        %1793 = vmatpush.msra.mxu0 %v1281
        %1794 = vmatpush.msra.mxu0 %v1275
        %1795 = vmatpush.msra.mxu0 %v1269
        %1796 = vmatpush.msra.mxu0 %v1263
        %1797 = vmatpush.msra.mxu0 %v1257
        %1798 = vmatpush.msra.mxu0 %v1251
        %1799 = vmatpush.msra.mxu0 %v1245
        %1800 = vmatpush.msra.mxu0 %v1239
        %1801 = vmatpush.msra.mxu0 %v1233
        %1802 = vmatpush.msra.mxu0 %v1227
        %1803 = vmatpush.msra.mxu0 %v1221
        %1804 = vmatpush.msra.mxu0 %v1215
        %1805 = vmatpush.msra.mxu0 %v1209
        %1806 = vmatpush.msra.mxu0 %v1203
        %1807 = vmatpush.msra.mxu0 %v1197
        %1808 = vmatpush.msra.mxu0 %v1191
        %1809 = vmatmul.f32.gmra.mxu0 %v413
        %v1810 = vpop.f32.mrf.mxu0
        %v1811 = vadd.f32 %v1782, %v1810
        %1812 = vmatmul.f32.gmra.mxu0 %v415
        %v1813 = vpop.f32.mrf.mxu0
        %v1814 = vadd.f32 %v1785, %v1813
        %1815 = vmatmul.f32.gmra.mxu0 %v417
        %v1816 = vpop.f32.mrf.mxu0
        %v1817 = vadd.f32 %v1788, %v1816
        %1818 = vmatmul.f32.gmra.mxu0 %v416
        %v1819 = vpop.f32.mrf.mxu0
        %v1820 = vadd.f32 %v1791, %v1819
        %1821 = vdwg.mxu0
        %1822 = vmatpush.msra.mxu0 %v514
        %1823 = vmatpush.msra.mxu0 %v508
        %1824 = vmatpush.msra.mxu0 %v502
        %1825 = vmatpush.msra.mxu0 %v496
        %1826 = vmatpush.msra.mxu0 %v490
        %1827 = vmatpush.msra.mxu0 %v484
        %1828 = vmatpush.msra.mxu0 %v478
        %1829 = vmatpush.msra.mxu0 %v472
        %1830 = vmatpush.msra.mxu0 %v466
        %1831 = vmatpush.msra.mxu0 %v460
        %1832 = vmatpush.msra.mxu0 %v454
        %1833 = vmatpush.msra.mxu0 %v448
        %1834 = vmatpush.msra.mxu0 %v442
        %1835 = vmatpush.msra.mxu0 %v436
        %1836 = vmatpush.msra.mxu0 %v430
        %1837 = vmatpush.msra.mxu0 %v424
        %1838 = vmatmul.f32.gmra.mxu0 %v330
        %v1839 = vpop.f32.mrf.mxu0
        %v1840 = vadd.f32 %v1290, %v1839
        %1841 = vmatmul.f32.gmra.mxu0 %v331
        %v1842 = vpop.f32.mrf.mxu0
        %v1843 = vadd.f32 %v1290, %v1842
        %1844 = vmatmul.f32.gmra.mxu0 %v332
        %v1845 = vpop.f32.mrf.mxu0
        %v1846 = vadd.f32 %v1290, %v1845
        %1847 = vmatmul.f32.gmra.mxu0 %v333
        %v1848 = vpop.f32.mrf.mxu0
        %v1849 = vadd.f32 %v1290, %v1848
        %1850 = vdwg.mxu0
        %1851 = vmatpush.msra.mxu0 %v610
        %1852 = vmatpush.msra.mxu0 %v604
        %1853 = vmatpush.msra.mxu0 %v598
        %1854 = vmatpush.msra.mxu0 %v592
        %1855 = vmatpush.msra.mxu0 %v586
        %1856 = vmatpush.msra.mxu0 %v580
        %1857 = vmatpush.msra.mxu0 %v574
        %1858 = vmatpush.msra.mxu0 %v568
        %1859 = vmatpush.msra.mxu0 %v562
        %1860 = vmatpush.msra.mxu0 %v556
        %1861 = vmatpush.msra.mxu0 %v550
        %1862 = vmatpush.msra.mxu0 %v544
        %1863 = vmatpush.msra.mxu0 %v538
        %1864 = vmatpush.msra.mxu0 %v532
        %1865 = vmatpush.msra.mxu0 %v526
        %1866 = vmatpush.msra.mxu0 %v520
        %1867 = vmatmul.f32.gmra.mxu0 %v349
        %v1868 = vpop.f32.mrf.mxu0
        %v1869 = vadd.f32 %v1840, %v1868
        %1870 = vmatmul.f32.gmra.mxu0 %v351
        %v1871 = vpop.f32.mrf.mxu0
        %v1872 = vadd.f32 %v1843, %v1871
        %1873 = vmatmul.f32.gmra.mxu0 %v353
        %v1874 = vpop.f32.mrf.mxu0
        %v1875 = vadd.f32 %v1846, %v1874
        %1876 = vmatmul.f32.gmra.mxu0 %v352
        %v1877 = vpop.f32.mrf.mxu0
        %v1878 = vadd.f32 %v1849, %v1877
        %1879 = vdwg.mxu0
        %1880 = vmatpush.msra.mxu0 %v706
        %1881 = vmatpush.msra.mxu0 %v700
        %1882 = vmatpush.msra.mxu0 %v694
        %1883 = vmatpush.msra.mxu0 %v688
        %1884 = vmatpush.msra.mxu0 %v682
        %1885 = vmatpush.msra.mxu0 %v676
        %1886 = vmatpush.msra.mxu0 %v670
        %1887 = vmatpush.msra.mxu0 %v664
        %1888 = vmatpush.msra.mxu0 %v658
        %1889 = vmatpush.msra.mxu0 %v652
        %1890 = vmatpush.msra.mxu0 %v646
        %1891 = vmatpush.msra.mxu0 %v640
        %1892 = vmatpush.msra.mxu0 %v634
        %1893 = vmatpush.msra.mxu0 %v628
        %1894 = vmatpush.msra.mxu0 %v622
        %1895 = vmatpush.msra.mxu0 %v616
        %1896 = vmatmul.f32.gmra.mxu0 %v361
        %v1897 = vpop.f32.mrf.mxu0
        %v1898 = vadd.f32 %v1869, %v1897
        %1899 = vmatmul.f32.gmra.mxu0 %v363
        %v1900 = vpop.f32.mrf.mxu0
        %v1901 = vadd.f32 %v1872, %v1900
        %1902 = vmatmul.f32.gmra.mxu0 %v365
        %v1903 = vpop.f32.mrf.mxu0
        %v1904 = vadd.f32 %v1875, %v1903
        %1905 = vmatmul.f32.gmra.mxu0 %v364
        %v1906 = vpop.f32.mrf.mxu0
        %v1907 = vadd.f32 %v1878, %v1906
        %1908 = vdwg.mxu0
        %1909 = vmatpush.msra.mxu0 %v802
        %1910 = vmatpush.msra.mxu0 %v796
        %1911 = vmatpush.msra.mxu0 %v790
        %1912 = vmatpush.msra.mxu0 %v784
        %1913 = vmatpush.msra.mxu0 %v778
        %1914 = vmatpush.msra.mxu0 %v772
        %1915 = vmatpush.msra.mxu0 %v766
        %1916 = vmatpush.msra.mxu0 %v760
        %1917 = vmatpush.msra.mxu0 %v754
        %1918 = vmatpush.msra.mxu0 %v748
        %1919 = vmatpush.msra.mxu0 %v742
        %1920 = vmatpush.msra.mxu0 %v736
        %1921 = vmatpush.msra.mxu0 %v730
        %1922 = vmatpush.msra.mxu0 %v724
        %1923 = vmatpush.msra.mxu0 %v718
        %1924 = vmatpush.msra.mxu0 %v712
        %1925 = vmatmul.f32.gmra.mxu0 %v334
        %v1926 = vpop.f32.mrf.mxu0
        %v1927 = vadd.f32 %v1898, %v1926
        %1928 = vmatmul.f32.gmra.mxu0 %v335
        %v1929 = vpop.f32.mrf.mxu0
        %v1930 = vadd.f32 %v1901, %v1929
        %1931 = vmatmul.f32.gmra.mxu0 %v336
        %v1932 = vpop.f32.mrf.mxu0
        %v1933 = vadd.f32 %v1904, %v1932
        %1934 = vmatmul.f32.gmra.mxu0 %v337
        %v1935 = vpop.f32.mrf.mxu0
        %v1936 = vadd.f32 %v1907, %v1935
        %1937 = vdwg.mxu0
        %1938 = vmatpush.msra.mxu0 %v898
        %1939 = vmatpush.msra.mxu0 %v892
        %1940 = vmatpush.msra.mxu0 %v886
        %1941 = vmatpush.msra.mxu0 %v880
        %1942 = vmatpush.msra.mxu0 %v874
        %1943 = vmatpush.msra.mxu0 %v868
        %1944 = vmatpush.msra.mxu0 %v862
        %1945 = vmatpush.msra.mxu0 %v856
        %1946 = vmatpush.msra.mxu0 %v850
        %1947 = vmatpush.msra.mxu0 %v844
        %1948 = vmatpush.msra.mxu0 %v838
        %1949 = vmatpush.msra.mxu0 %v832
        %1950 = vmatpush.msra.mxu0 %v826
        %1951 = vmatpush.msra.mxu0 %v820
        %1952 = vmatpush.msra.mxu0 %v814
        %1953 = vmatpush.msra.mxu0 %v808
        %1954 = vmatmul.f32.gmra.mxu0 %v376
        %v1955 = vpop.f32.mrf.mxu0
        %v1956 = vadd.f32 %v1927, %v1955
        %1957 = vmatmul.f32.gmra.mxu0 %v378
        %v1958 = vpop.f32.mrf.mxu0
        %v1959 = vadd.f32 %v1930, %v1958
        %1960 = vmatmul.f32.gmra.mxu0 %v380
        %v1961 = vpop.f32.mrf.mxu0
        %v1962 = vadd.f32 %v1933, %v1961
        %1963 = vmatmul.f32.gmra.mxu0 %v379
        %v1964 = vpop.f32.mrf.mxu0
        %v1965 = vadd.f32 %v1936, %v1964
        %1966 = vdwg.mxu0
        %1967 = vmatpush.msra.mxu0 %v994
        %1968 = vmatpush.msra.mxu0 %v988
        %1969 = vmatpush.msra.mxu0 %v982
        %1970 = vmatpush.msra.mxu0 %v976
        %1971 = vmatpush.msra.mxu0 %v970
        %1972 = vmatpush.msra.mxu0 %v964
        %1973 = vmatpush.msra.mxu0 %v958
        %1974 = vmatpush.msra.mxu0 %v952
        %1975 = vmatpush.msra.mxu0 %v946
        %1976 = vmatpush.msra.mxu0 %v940
        %1977 = vmatpush.msra.mxu0 %v934
        %1978 = vmatpush.msra.mxu0 %v928
        %1979 = vmatpush.msra.mxu0 %v922
        %1980 = vmatpush.msra.mxu0 %v916
        %1981 = vmatpush.msra.mxu0 %v910
        %1982 = vmatpush.msra.mxu0 %v904
        %1983 = vmatmul.f32.gmra.mxu0 %v387
        %v1984 = vpop.f32.mrf.mxu0
        %v1985 = vadd.f32 %v1956, %v1984
        %1986 = vmatmul.f32.gmra.mxu0 %v389
        %v1987 = vpop.f32.mrf.mxu0
        %v1988 = vadd.f32 %v1959, %v1987
        %1989 = vmatmul.f32.gmra.mxu0 %v391
        %v1990 = vpop.f32.mrf.mxu0
        %v1991 = vadd.f32 %v1962, %v1990
        %1992 = vmatmul.f32.gmra.mxu0 %v390
        %v1993 = vpop.f32.mrf.mxu0
        %v1994 = vadd.f32 %v1965, %v1993
        %1995 = vdwg.mxu0
        %1996 = vmatpush.msra.mxu0 %v1090
        %1997 = vmatpush.msra.mxu0 %v1084
        %1998 = vmatpush.msra.mxu0 %v1078
        %1999 = vmatpush.msra.mxu0 %v1072
        %2000 = vmatpush.msra.mxu0 %v1066
        %2001 = vmatpush.msra.mxu0 %v1060
        %2002 = vmatpush.msra.mxu0 %v1054
        %2003 = vmatpush.msra.mxu0 %v1048
        %2004 = vmatpush.msra.mxu0 %v1042
        %2005 = vmatpush.msra.mxu0 %v1036
        %2006 = vmatpush.msra.mxu0 %v1030
        %2007 = vmatpush.msra.mxu0 %v1024
        %2008 = vmatpush.msra.mxu0 %v1018
        %2009 = vmatpush.msra.mxu0 %v1012
        %2010 = vmatpush.msra.mxu0 %v1006
        %2011 = vmatpush.msra.mxu0 %v1000
        %2012 = vmatmul.f32.gmra.mxu0 %v338
        %v2013 = vpop.f32.mrf.mxu0
        %v2014 = vadd.f32 %v1985, %v2013
        %2015 = vmatmul.f32.gmra.mxu0 %v339
        %v2016 = vpop.f32.mrf.mxu0
        %v2017 = vadd.f32 %v1988, %v2016
        %2018 = vmatmul.f32.gmra.mxu0 %v340
        %v2019 = vpop.f32.mrf.mxu0
        %v2020 = vadd.f32 %v1991, %v2019
        %2021 = vmatmul.f32.gmra.mxu0 %v341
        %v2022 = vpop.f32.mrf.mxu0
        %v2023 = vadd.f32 %v1994, %v2022
        %2024 = vdwg.mxu0
        %2025 = vmatpush.msra.mxu0 %v1186
        %2026 = vmatpush.msra.mxu0 %v1180
        %2027 = vmatpush.msra.mxu0 %v1174
        %2028 = vmatpush.msra.mxu0 %v1168
        %2029 = vmatpush.msra.mxu0 %v1162
        %2030 = vmatpush.msra.mxu0 %v1156
        %2031 = vmatpush.msra.mxu0 %v1150
        %2032 = vmatpush.msra.mxu0 %v1144
        %2033 = vmatpush.msra.mxu0 %v1138
        %2034 = vmatpush.msra.mxu0 %v1132
        %2035 = vmatpush.msra.mxu0 %v1126
        %2036 = vmatpush.msra.mxu0 %v1120
        %2037 = vmatpush.msra.mxu0 %v1114
        %2038 = vmatpush.msra.mxu0 %v1108
        %2039 = vmatpush.msra.mxu0 %v1102
        %2040 = vmatpush.msra.mxu0 %v1096
        %2041 = vmatmul.f32.gmra.mxu0 %v402
        %v2042 = vpop.f32.mrf.mxu0
        %v2043 = vadd.f32 %v2014, %v2042
        %2044 = vmatmul.f32.gmra.mxu0 %v404
        %v2045 = vpop.f32.mrf.mxu0
        %v2046 = vadd.f32 %v2017, %v2045
        %2047 = vmatmul.f32.gmra.mxu0 %v406
        %v2048 = vpop.f32.mrf.mxu0
        %v2049 = vadd.f32 %v2020, %v2048
        %2050 = vmatmul.f32.gmra.mxu0 %v405
        %v2051 = vpop.f32.mrf.mxu0
        %v2052 = vadd.f32 %v2023, %v2051
        %2053 = vdwg.mxu0
        %2054 = vmatpush.msra.mxu0 %v1282
        %2055 = vmatpush.msra.mxu0 %v1276
        %2056 = vmatpush.msra.mxu0 %v1270
        %2057 = vmatpush.msra.mxu0 %v1264
        %2058 = vmatpush.msra.mxu0 %v1258
        %2059 = vmatpush.msra.mxu0 %v1252
        %2060 = vmatpush.msra.mxu0 %v1246
        %2061 = vmatpush.msra.mxu0 %v1240
        %2062 = vmatpush.msra.mxu0 %v1234
        %2063 = vmatpush.msra.mxu0 %v1228
        %2064 = vmatpush.msra.mxu0 %v1222
        %2065 = vmatpush.msra.mxu0 %v1216
        %2066 = vmatpush.msra.mxu0 %v1210
        %2067 = vmatpush.msra.mxu0 %v1204
        %2068 = vmatpush.msra.mxu0 %v1198
        %2069 = vmatpush.msra.mxu0 %v1192
        %2070 = vmatmul.f32.gmra.mxu0 %v413
        %v2071 = vpop.f32.mrf.mxu0
        %v2072 = vadd.f32 %v2043, %v2071
        %2073 = vmatmul.f32.gmra.mxu0 %v415
        %v2074 = vpop.f32.mrf.mxu0
        %v2075 = vadd.f32 %v2046, %v2074
        %2076 = vmatmul.f32.gmra.mxu0 %v417
        %v2077 = vpop.f32.mrf.mxu0
        %v2078 = vadd.f32 %v2049, %v2077
        %2079 = vmatmul.f32.gmra.mxu0 %v416
        %v2080 = vpop.f32.mrf.mxu0
        %v2081 = vadd.f32 %v2052, %v2080
        %2082 = vdwg.mxu0
        %2083 = vmatpush.msra.mxu0 %v515
        %2084 = vmatpush.msra.mxu0 %v509
        %2085 = vmatpush.msra.mxu0 %v503
        %2086 = vmatpush.msra.mxu0 %v497
        %2087 = vmatpush.msra.mxu0 %v491
        %2088 = vmatpush.msra.mxu0 %v485
        %2089 = vmatpush.msra.mxu0 %v479
        %2090 = vmatpush.msra.mxu0 %v473
        %2091 = vmatpush.msra.mxu0 %v467
        %2092 = vmatpush.msra.mxu0 %v461
        %2093 = vmatpush.msra.mxu0 %v455
        %2094 = vmatpush.msra.mxu0 %v449
        %2095 = vmatpush.msra.mxu0 %v443
        %2096 = vmatpush.msra.mxu0 %v437
        %2097 = vmatpush.msra.mxu0 %v431
        %2098 = vmatpush.msra.mxu0 %v425
        %2099 = vmatmul.f32.gmra.mxu0 %v330
        %v2100 = vpop.f32.mrf.mxu0
        %v2101 = vadd.f32 %v1291, %v2100
        %2102 = vmatmul.f32.gmra.mxu0 %v331
        %v2103 = vpop.f32.mrf.mxu0
        %v2104 = vadd.f32 %v1291, %v2103
        %2105 = vmatmul.f32.gmra.mxu0 %v332
        %v2106 = vpop.f32.mrf.mxu0
        %v2107 = vadd.f32 %v1291, %v2106
        %2108 = vmatmul.f32.gmra.mxu0 %v333
        %v2109 = vpop.f32.mrf.mxu0
        %v2110 = vadd.f32 %v1291, %v2109
        %2111 = vdwg.mxu0
        %2112 = vmatpush.msra.mxu0 %v611
        %2113 = vmatpush.msra.mxu0 %v605
        %2114 = vmatpush.msra.mxu0 %v599
        %2115 = vmatpush.msra.mxu0 %v593
        %2116 = vmatpush.msra.mxu0 %v587
        %2117 = vmatpush.msra.mxu0 %v581
        %2118 = vmatpush.msra.mxu0 %v575
        %2119 = vmatpush.msra.mxu0 %v569
        %2120 = vmatpush.msra.mxu0 %v563
        %2121 = vmatpush.msra.mxu0 %v557
        %2122 = vmatpush.msra.mxu0 %v551
        %2123 = vmatpush.msra.mxu0 %v545
        %2124 = vmatpush.msra.mxu0 %v539
        %2125 = vmatpush.msra.mxu0 %v533
        %2126 = vmatpush.msra.mxu0 %v527
        %2127 = vmatpush.msra.mxu0 %v521
        %2128 = vmatmul.f32.gmra.mxu0 %v349
        %v2129 = vpop.f32.mrf.mxu0
        %v2130 = vadd.f32 %v2101, %v2129
        %2131 = vmatmul.f32.gmra.mxu0 %v351
        %v2132 = vpop.f32.mrf.mxu0
        %v2133 = vadd.f32 %v2104, %v2132
        %2134 = vmatmul.f32.gmra.mxu0 %v353
        %v2135 = vpop.f32.mrf.mxu0
        %v2136 = vadd.f32 %v2107, %v2135
        %2137 = vmatmul.f32.gmra.mxu0 %v352
        %v2138 = vpop.f32.mrf.mxu0
        %v2139 = vadd.f32 %v2110, %v2138
        %2140 = vdwg.mxu0
        %2141 = vmatpush.msra.mxu0 %v707
        %2142 = vmatpush.msra.mxu0 %v701
        %2143 = vmatpush.msra.mxu0 %v695
        %2144 = vmatpush.msra.mxu0 %v689
        %2145 = vmatpush.msra.mxu0 %v683
        %2146 = vmatpush.msra.mxu0 %v677
        %2147 = vmatpush.msra.mxu0 %v671
        %2148 = vmatpush.msra.mxu0 %v665
        %2149 = vmatpush.msra.mxu0 %v659
        %2150 = vmatpush.msra.mxu0 %v653
        %2151 = vmatpush.msra.mxu0 %v647
        %2152 = vmatpush.msra.mxu0 %v641
        %2153 = vmatpush.msra.mxu0 %v635
        %2154 = vmatpush.msra.mxu0 %v629
        %2155 = vmatpush.msra.mxu0 %v623
        %2156 = vmatpush.msra.mxu0 %v617
        %2157 = vmatmul.f32.gmra.mxu0 %v361
        %v2158 = vpop.f32.mrf.mxu0
        %v2159 = vadd.f32 %v2130, %v2158
        %2160 = vmatmul.f32.gmra.mxu0 %v363
        %v2161 = vpop.f32.mrf.mxu0
        %v2162 = vadd.f32 %v2133, %v2161
        %2163 = vmatmul.f32.gmra.mxu0 %v365
        %v2164 = vpop.f32.mrf.mxu0
        %v2165 = vadd.f32 %v2136, %v2164
        %2166 = vmatmul.f32.gmra.mxu0 %v364
        %v2167 = vpop.f32.mrf.mxu0
        %v2168 = vadd.f32 %v2139, %v2167
        %2169 = vdwg.mxu0
        %2170 = vmatpush.msra.mxu0 %v803
        %2171 = vmatpush.msra.mxu0 %v797
        %2172 = vmatpush.msra.mxu0 %v791
        %2173 = vmatpush.msra.mxu0 %v785
        %2174 = vmatpush.msra.mxu0 %v779
        %2175 = vmatpush.msra.mxu0 %v773
        %2176 = vmatpush.msra.mxu0 %v767
        %2177 = vmatpush.msra.mxu0 %v761
        %2178 = vmatpush.msra.mxu0 %v755
        %2179 = vmatpush.msra.mxu0 %v749
        %2180 = vmatpush.msra.mxu0 %v743
        %2181 = vmatpush.msra.mxu0 %v737
        %2182 = vmatpush.msra.mxu0 %v731
        %2183 = vmatpush.msra.mxu0 %v725
        %2184 = vmatpush.msra.mxu0 %v719
        %2185 = vmatpush.msra.mxu0 %v713
        %2186 = vmatmul.f32.gmra.mxu0 %v334
        %v2187 = vpop.f32.mrf.mxu0
        %v2188 = vadd.f32 %v2159, %v2187
        %2189 = vmatmul.f32.gmra.mxu0 %v335
        %v2190 = vpop.f32.mrf.mxu0
        %v2191 = vadd.f32 %v2162, %v2190
        %2192 = vmatmul.f32.gmra.mxu0 %v336
        %v2193 = vpop.f32.mrf.mxu0
        %v2194 = vadd.f32 %v2165, %v2193
        %2195 = vmatmul.f32.gmra.mxu0 %v337
        %v2196 = vpop.f32.mrf.mxu0
        %v2197 = vadd.f32 %v2168, %v2196
        %2198 = vdwg.mxu0
        %2199 = vmatpush.msra.mxu0 %v899
        %2200 = vmatpush.msra.mxu0 %v893
        %2201 = vmatpush.msra.mxu0 %v887
        %2202 = vmatpush.msra.mxu0 %v881
        %2203 = vmatpush.msra.mxu0 %v875
        %2204 = vmatpush.msra.mxu0 %v869
        %2205 = vmatpush.msra.mxu0 %v863
        %2206 = vmatpush.msra.mxu0 %v857
        %2207 = vmatpush.msra.mxu0 %v851
        %2208 = vmatpush.msra.mxu0 %v845
        %2209 = vmatpush.msra.mxu0 %v839
        %2210 = vmatpush.msra.mxu0 %v833
        %2211 = vmatpush.msra.mxu0 %v827
        %2212 = vmatpush.msra.mxu0 %v821
        %2213 = vmatpush.msra.mxu0 %v815
        %2214 = vmatpush.msra.mxu0 %v809
        %2215 = vmatmul.f32.gmra.mxu0 %v376
        %v2216 = vpop.f32.mrf.mxu0
        %v2217 = vadd.f32 %v2188, %v2216
        %2218 = vmatmul.f32.gmra.mxu0 %v378
        %v2219 = vpop.f32.mrf.mxu0
        %v2220 = vadd.f32 %v2191, %v2219
        %2221 = vmatmul.f32.gmra.mxu0 %v380
        %v2222 = vpop.f32.mrf.mxu0
        %v2223 = vadd.f32 %v2194, %v2222
        %2224 = vmatmul.f32.gmra.mxu0 %v379
        %v2225 = vpop.f32.mrf.mxu0
        %v2226 = vadd.f32 %v2197, %v2225
        %2227 = vdwg.mxu0
        %2228 = vmatpush.msra.mxu0 %v995
        %2229 = vmatpush.msra.mxu0 %v989
        %2230 = vmatpush.msra.mxu0 %v983
        %2231 = vmatpush.msra.mxu0 %v977
        %2232 = vmatpush.msra.mxu0 %v971
        %2233 = vmatpush.msra.mxu0 %v965
        %2234 = vmatpush.msra.mxu0 %v959
        %2235 = vmatpush.msra.mxu0 %v953
        %2236 = vmatpush.msra.mxu0 %v947
        %2237 = vmatpush.msra.mxu0 %v941
        %2238 = vmatpush.msra.mxu0 %v935
        %2239 = vmatpush.msra.mxu0 %v929
        %2240 = vmatpush.msra.mxu0 %v923
        %2241 = vmatpush.msra.mxu0 %v917
        %2242 = vmatpush.msra.mxu0 %v911
        %2243 = vmatpush.msra.mxu0 %v905
        %2244 = vmatmul.f32.gmra.mxu0 %v387
        %v2245 = vpop.f32.mrf.mxu0
        %v2246 = vadd.f32 %v2217, %v2245
        %2247 = vmatmul.f32.gmra.mxu0 %v389
        %v2248 = vpop.f32.mrf.mxu0
        %v2249 = vadd.f32 %v2220, %v2248
        %2250 = vmatmul.f32.gmra.mxu0 %v391
        %v2251 = vpop.f32.mrf.mxu0
        %v2252 = vadd.f32 %v2223, %v2251
        %2253 = vmatmul.f32.gmra.mxu0 %v390
        %v2254 = vpop.f32.mrf.mxu0
        %v2255 = vadd.f32 %v2226, %v2254
        %2256 = vdwg.mxu0
        %2257 = vmatpush.msra.mxu0 %v1091
        %2258 = vmatpush.msra.mxu0 %v1085
        %2259 = vmatpush.msra.mxu0 %v1079
        %2260 = vmatpush.msra.mxu0 %v1073
        %2261 = vmatpush.msra.mxu0 %v1067
        %2262 = vmatpush.msra.mxu0 %v1061
        %2263 = vmatpush.msra.mxu0 %v1055
        %2264 = vmatpush.msra.mxu0 %v1049
        %2265 = vmatpush.msra.mxu0 %v1043
        %2266 = vmatpush.msra.mxu0 %v1037
        %2267 = vmatpush.msra.mxu0 %v1031
        %2268 = vmatpush.msra.mxu0 %v1025
        %2269 = vmatpush.msra.mxu0 %v1019
        %2270 = vmatpush.msra.mxu0 %v1013
        %2271 = vmatpush.msra.mxu0 %v1007
        %2272 = vmatpush.msra.mxu0 %v1001
        %2273 = vmatmul.f32.gmra.mxu0 %v338
        %v2274 = vpop.f32.mrf.mxu0
        %v2275 = vadd.f32 %v2246, %v2274
        %2276 = vmatmul.f32.gmra.mxu0 %v339
        %v2277 = vpop.f32.mrf.mxu0
        %v2278 = vadd.f32 %v2249, %v2277
        %2279 = vmatmul.f32.gmra.mxu0 %v340
        %v2280 = vpop.f32.mrf.mxu0
        %v2281 = vadd.f32 %v2252, %v2280
        %2282 = vmatmul.f32.gmra.mxu0 %v341
        %v2283 = vpop.f32.mrf.mxu0
        %v2284 = vadd.f32 %v2255, %v2283
        %2285 = vdwg.mxu0
        %2286 = vmatpush.msra.mxu0 %v1187
        %2287 = vmatpush.msra.mxu0 %v1181
        %2288 = vmatpush.msra.mxu0 %v1175
        %2289 = vmatpush.msra.mxu0 %v1169
        %2290 = vmatpush.msra.mxu0 %v1163
        %2291 = vmatpush.msra.mxu0 %v1157
        %2292 = vmatpush.msra.mxu0 %v1151
        %2293 = vmatpush.msra.mxu0 %v1145
        %2294 = vmatpush.msra.mxu0 %v1139
        %2295 = vmatpush.msra.mxu0 %v1133
        %2296 = vmatpush.msra.mxu0 %v1127
        %2297 = vmatpush.msra.mxu0 %v1121
        %2298 = vmatpush.msra.mxu0 %v1115
        %2299 = vmatpush.msra.mxu0 %v1109
        %2300 = vmatpush.msra.mxu0 %v1103
        %2301 = vmatpush.msra.mxu0 %v1097
        %2302 = vmatmul.f32.gmra.mxu0 %v402
        %v2303 = vpop.f32.mrf.mxu0
        %v2304 = vadd.f32 %v2275, %v2303
        %2305 = vmatmul.f32.gmra.mxu0 %v404
        %v2306 = vpop.f32.mrf.mxu0
        %v2307 = vadd.f32 %v2278, %v2306
        %2308 = vmatmul.f32.gmra.mxu0 %v406
        %v2309 = vpop.f32.mrf.mxu0
        %v2310 = vadd.f32 %v2281, %v2309
        %2311 = vmatmul.f32.gmra.mxu0 %v405
        %v2312 = vpop.f32.mrf.mxu0
        %v2313 = vadd.f32 %v2284, %v2312
        %2314 = vdwg.mxu0
        %2315 = vmatpush.msra.mxu0 %v1283
        %2316 = vmatpush.msra.mxu0 %v1277
        %2317 = vmatpush.msra.mxu0 %v1271
        %2318 = vmatpush.msra.mxu0 %v1265
        %2319 = vmatpush.msra.mxu0 %v1259
        %2320 = vmatpush.msra.mxu0 %v1253
        %2321 = vmatpush.msra.mxu0 %v1247
        %2322 = vmatpush.msra.mxu0 %v1241
        %2323 = vmatpush.msra.mxu0 %v1235
        %2324 = vmatpush.msra.mxu0 %v1229
        %2325 = vmatpush.msra.mxu0 %v1223
        %2326 = vmatpush.msra.mxu0 %v1217
        %2327 = vmatpush.msra.mxu0 %v1211
        %2328 = vmatpush.msra.mxu0 %v1205
        %2329 = vmatpush.msra.mxu0 %v1199
        %2330 = vmatpush.msra.mxu0 %v1193
        %2331 = vmatmul.f32.gmra.mxu0 %v413
        %v2332 = vpop.f32.mrf.mxu0
        %v2333 = vadd.f32 %v2304, %v2332
        %2334 = vmatmul.f32.gmra.mxu0 %v415
        %v2335 = vpop.f32.mrf.mxu0
        %v2336 = vadd.f32 %v2307, %v2335
        %2337 = vmatmul.f32.gmra.mxu0 %v417
        %v2338 = vpop.f32.mrf.mxu0
        %v2339 = vadd.f32 %v2310, %v2338
        %2340 = vmatmul.f32.gmra.mxu0 %v416
        %v2341 = vpop.f32.mrf.mxu0
        %v2342 = vadd.f32 %v2313, %v2341
        %2343 = vdwg.mxu0
        %2344 = vmatpush.msra.mxu0 %v516
        %2345 = vmatpush.msra.mxu0 %v510
        %2346 = vmatpush.msra.mxu0 %v504
        %2347 = vmatpush.msra.mxu0 %v498
        %2348 = vmatpush.msra.mxu0 %v492
        %2349 = vmatpush.msra.mxu0 %v486
        %2350 = vmatpush.msra.mxu0 %v480
        %2351 = vmatpush.msra.mxu0 %v474
        %2352 = vmatpush.msra.mxu0 %v468
        %2353 = vmatpush.msra.mxu0 %v462
        %2354 = vmatpush.msra.mxu0 %v456
        %2355 = vmatpush.msra.mxu0 %v450
        %2356 = vmatpush.msra.mxu0 %v444
        %2357 = vmatpush.msra.mxu0 %v438
        %2358 = vmatpush.msra.mxu0 %v432
        %2359 = vmatpush.msra.mxu0 %v426
        %2360 = vmatmul.f32.gmra.mxu0 %v330
        %v2361 = vpop.f32.mrf.mxu0
        %v2362 = vadd.f32 %v1292, %v2361
        %2363 = vmatmul.f32.gmra.mxu0 %v331
        %v2364 = vpop.f32.mrf.mxu0
        %v2365 = vadd.f32 %v1292, %v2364
        %2366 = vmatmul.f32.gmra.mxu0 %v332
        %v2367 = vpop.f32.mrf.mxu0
        %v2368 = vadd.f32 %v1292, %v2367
        %2369 = vmatmul.f32.gmra.mxu0 %v333
        %v2370 = vpop.f32.mrf.mxu0
        %v2371 = vadd.f32 %v1292, %v2370
        %2372 = vdwg.mxu0
        %2373 = vmatpush.msra.mxu0 %v612
        %2374 = vmatpush.msra.mxu0 %v606
        %2375 = vmatpush.msra.mxu0 %v600
        %2376 = vmatpush.msra.mxu0 %v594
        %2377 = vmatpush.msra.mxu0 %v588
        %2378 = vmatpush.msra.mxu0 %v582
        %2379 = vmatpush.msra.mxu0 %v576
        %2380 = vmatpush.msra.mxu0 %v570
        %2381 = vmatpush.msra.mxu0 %v564
        %2382 = vmatpush.msra.mxu0 %v558
        %2383 = vmatpush.msra.mxu0 %v552
        %2384 = vmatpush.msra.mxu0 %v546
        %2385 = vmatpush.msra.mxu0 %v540
        %2386 = vmatpush.msra.mxu0 %v534
        %2387 = vmatpush.msra.mxu0 %v528
        %2388 = vmatpush.msra.mxu0 %v522
        %2389 = vmatmul.f32.gmra.mxu0 %v349
        %v2390 = vpop.f32.mrf.mxu0
        %v2391 = vadd.f32 %v2362, %v2390
        %2392 = vmatmul.f32.gmra.mxu0 %v351
        %v2393 = vpop.f32.mrf.mxu0
        %v2394 = vadd.f32 %v2365, %v2393
        %2395 = vmatmul.f32.gmra.mxu0 %v353
        %v2396 = vpop.f32.mrf.mxu0
        %v2397 = vadd.f32 %v2368, %v2396
        %2398 = vmatmul.f32.gmra.mxu0 %v352
        %v2399 = vpop.f32.mrf.mxu0
        %v2400 = vadd.f32 %v2371, %v2399
        %2401 = vdwg.mxu0
        %2402 = vmatpush.msra.mxu0 %v708
        %2403 = vmatpush.msra.mxu0 %v702
        %2404 = vmatpush.msra.mxu0 %v696
        %2405 = vmatpush.msra.mxu0 %v690
        %2406 = vmatpush.msra.mxu0 %v684
        %2407 = vmatpush.msra.mxu0 %v678
        %2408 = vmatpush.msra.mxu0 %v672
        %2409 = vmatpush.msra.mxu0 %v666
        %2410 = vmatpush.msra.mxu0 %v660
        %2411 = vmatpush.msra.mxu0 %v654
        %2412 = vmatpush.msra.mxu0 %v648
        %2413 = vmatpush.msra.mxu0 %v642
        %2414 = vmatpush.msra.mxu0 %v636
        %2415 = vmatpush.msra.mxu0 %v630
        %2416 = vmatpush.msra.mxu0 %v624
        %2417 = vmatpush.msra.mxu0 %v618
        %2418 = vmatmul.f32.gmra.mxu0 %v361
        %v2419 = vpop.f32.mrf.mxu0
        %v2420 = vadd.f32 %v2391, %v2419
        %2421 = vmatmul.f32.gmra.mxu0 %v363
        %v2422 = vpop.f32.mrf.mxu0
        %v2423 = vadd.f32 %v2394, %v2422
        %2424 = vmatmul.f32.gmra.mxu0 %v365
        %v2425 = vpop.f32.mrf.mxu0
        %v2426 = vadd.f32 %v2397, %v2425
        %2427 = vmatmul.f32.gmra.mxu0 %v364
        %v2428 = vpop.f32.mrf.mxu0
        %v2429 = vadd.f32 %v2400, %v2428
        %2430 = vdwg.mxu0
        %2431 = vmatpush.msra.mxu0 %v804
        %2432 = vmatpush.msra.mxu0 %v798
        %2433 = vmatpush.msra.mxu0 %v792
        %2434 = vmatpush.msra.mxu0 %v786
        %2435 = vmatpush.msra.mxu0 %v780
        %2436 = vmatpush.msra.mxu0 %v774
        %2437 = vmatpush.msra.mxu0 %v768
        %2438 = vmatpush.msra.mxu0 %v762
        %2439 = vmatpush.msra.mxu0 %v756
        %2440 = vmatpush.msra.mxu0 %v750
        %2441 = vmatpush.msra.mxu0 %v744
        %2442 = vmatpush.msra.mxu0 %v738
        %2443 = vmatpush.msra.mxu0 %v732
        %2444 = vmatpush.msra.mxu0 %v726
        %2445 = vmatpush.msra.mxu0 %v720
        %2446 = vmatpush.msra.mxu0 %v714
        %2447 = vmatmul.f32.gmra.mxu0 %v334
        %v2448 = vpop.f32.mrf.mxu0
        %v2449 = vadd.f32 %v2420, %v2448
        %2450 = vmatmul.f32.gmra.mxu0 %v335
        %v2451 = vpop.f32.mrf.mxu0
        %v2452 = vadd.f32 %v2423, %v2451
        %2453 = vmatmul.f32.gmra.mxu0 %v336
        %v2454 = vpop.f32.mrf.mxu0
        %v2455 = vadd.f32 %v2426, %v2454
        %2456 = vmatmul.f32.gmra.mxu0 %v337
        %v2457 = vpop.f32.mrf.mxu0
        %v2458 = vadd.f32 %v2429, %v2457
        %2459 = vdwg.mxu0
        %2460 = vmatpush.msra.mxu0 %v900
        %2461 = vmatpush.msra.mxu0 %v894
        %2462 = vmatpush.msra.mxu0 %v888
        %2463 = vmatpush.msra.mxu0 %v882
        %2464 = vmatpush.msra.mxu0 %v876
        %2465 = vmatpush.msra.mxu0 %v870
        %2466 = vmatpush.msra.mxu0 %v864
        %2467 = vmatpush.msra.mxu0 %v858
        %2468 = vmatpush.msra.mxu0 %v852
        %2469 = vmatpush.msra.mxu0 %v846
        %2470 = vmatpush.msra.mxu0 %v840
        %2471 = vmatpush.msra.mxu0 %v834
        %2472 = vmatpush.msra.mxu0 %v828
        %2473 = vmatpush.msra.mxu0 %v822
        %2474 = vmatpush.msra.mxu0 %v816
        %2475 = vmatpush.msra.mxu0 %v810
        %2476 = vmatmul.f32.gmra.mxu0 %v376
        %v2477 = vpop.f32.mrf.mxu0
        %v2478 = vadd.f32 %v2449, %v2477
        %2479 = vmatmul.f32.gmra.mxu0 %v378
        %v2480 = vpop.f32.mrf.mxu0
        %v2481 = vadd.f32 %v2452, %v2480
        %2482 = vmatmul.f32.gmra.mxu0 %v380
        %v2483 = vpop.f32.mrf.mxu0
        %v2484 = vadd.f32 %v2455, %v2483
        %2485 = vmatmul.f32.gmra.mxu0 %v379
        %v2486 = vpop.f32.mrf.mxu0
        %v2487 = vadd.f32 %v2458, %v2486
        %2488 = vdwg.mxu0
        %2489 = vmatpush.msra.mxu0 %v996
        %2490 = vmatpush.msra.mxu0 %v990
        %2491 = vmatpush.msra.mxu0 %v984
        %2492 = vmatpush.msra.mxu0 %v978
        %2493 = vmatpush.msra.mxu0 %v972
        %2494 = vmatpush.msra.mxu0 %v966
        %2495 = vmatpush.msra.mxu0 %v960
        %2496 = vmatpush.msra.mxu0 %v954
        %2497 = vmatpush.msra.mxu0 %v948
        %2498 = vmatpush.msra.mxu0 %v942
        %2499 = vmatpush.msra.mxu0 %v936
        %2500 = vmatpush.msra.mxu0 %v930
        %2501 = vmatpush.msra.mxu0 %v924
        %2502 = vmatpush.msra.mxu0 %v918
        %2503 = vmatpush.msra.mxu0 %v912
        %2504 = vmatpush.msra.mxu0 %v906
        %2505 = vmatmul.f32.gmra.mxu0 %v387
        %v2506 = vpop.f32.mrf.mxu0
        %v2507 = vadd.f32 %v2478, %v2506
        %2508 = vmatmul.f32.gmra.mxu0 %v389
        %v2509 = vpop.f32.mrf.mxu0
        %v2510 = vadd.f32 %v2481, %v2509
        %2511 = vmatmul.f32.gmra.mxu0 %v391
        %v2512 = vpop.f32.mrf.mxu0
        %v2513 = vadd.f32 %v2484, %v2512
        %2514 = vmatmul.f32.gmra.mxu0 %v390
        %v2515 = vpop.f32.mrf.mxu0
        %v2516 = vadd.f32 %v2487, %v2515
        %2517 = vdwg.mxu0
        %2518 = vmatpush.msra.mxu0 %v1092
        %2519 = vmatpush.msra.mxu0 %v1086
        %2520 = vmatpush.msra.mxu0 %v1080
        %2521 = vmatpush.msra.mxu0 %v1074
        %2522 = vmatpush.msra.mxu0 %v1068
        %2523 = vmatpush.msra.mxu0 %v1062
        %2524 = vmatpush.msra.mxu0 %v1056
        %2525 = vmatpush.msra.mxu0 %v1050
        %2526 = vmatpush.msra.mxu0 %v1044
        %2527 = vmatpush.msra.mxu0 %v1038
        %2528 = vmatpush.msra.mxu0 %v1032
        %2529 = vmatpush.msra.mxu0 %v1026
        %2530 = vmatpush.msra.mxu0 %v1020
        %2531 = vmatpush.msra.mxu0 %v1014
        %2532 = vmatpush.msra.mxu0 %v1008
        %2533 = vmatpush.msra.mxu0 %v1002
        %2534 = vmatmul.f32.gmra.mxu0 %v338
        %v2535 = vpop.f32.mrf.mxu0
        %v2536 = vadd.f32 %v2507, %v2535
        %2537 = vmatmul.f32.gmra.mxu0 %v339
        %v2538 = vpop.f32.mrf.mxu0
        %v2539 = vadd.f32 %v2510, %v2538
        %2540 = vmatmul.f32.gmra.mxu0 %v340
        %v2541 = vpop.f32.mrf.mxu0
        %v2542 = vadd.f32 %v2513, %v2541
        %2543 = vmatmul.f32.gmra.mxu0 %v341
        %v2544 = vpop.f32.mrf.mxu0
        %v2545 = vadd.f32 %v2516, %v2544
        %2546 = vdwg.mxu0
        %2547 = vmatpush.msra.mxu0 %v1188
        %2548 = vmatpush.msra.mxu0 %v1182
        %2549 = vmatpush.msra.mxu0 %v1176
        %2550 = vmatpush.msra.mxu0 %v1170
        %2551 = vmatpush.msra.mxu0 %v1164
        %2552 = vmatpush.msra.mxu0 %v1158
        %2553 = vmatpush.msra.mxu0 %v1152
        %2554 = vmatpush.msra.mxu0 %v1146
        %2555 = vmatpush.msra.mxu0 %v1140
        %2556 = vmatpush.msra.mxu0 %v1134
        %2557 = vmatpush.msra.mxu0 %v1128
        %2558 = vmatpush.msra.mxu0 %v1122
        %2559 = vmatpush.msra.mxu0 %v1116
        %2560 = vmatpush.msra.mxu0 %v1110
        %2561 = vmatpush.msra.mxu0 %v1104
        %2562 = vmatpush.msra.mxu0 %v1098
        %2563 = vmatmul.f32.gmra.mxu0 %v402
        %v2564 = vpop.f32.mrf.mxu0
        %v2565 = vadd.f32 %v2536, %v2564
        %2566 = vmatmul.f32.gmra.mxu0 %v404
        %v2567 = vpop.f32.mrf.mxu0
        %v2568 = vadd.f32 %v2539, %v2567
        %2569 = vmatmul.f32.gmra.mxu0 %v406
        %v2570 = vpop.f32.mrf.mxu0
        %v2571 = vadd.f32 %v2542, %v2570
        %2572 = vmatmul.f32.gmra.mxu0 %v405
        %v2573 = vpop.f32.mrf.mxu0
        %v2574 = vadd.f32 %v2545, %v2573
        %2575 = vdwg.mxu0
        %2576 = vmatpush.msra.mxu0 %v1284
        %2577 = vmatpush.msra.mxu0 %v1278
        %2578 = vmatpush.msra.mxu0 %v1272
        %2579 = vmatpush.msra.mxu0 %v1266
        %2580 = vmatpush.msra.mxu0 %v1260
        %2581 = vmatpush.msra.mxu0 %v1254
        %2582 = vmatpush.msra.mxu0 %v1248
        %2583 = vmatpush.msra.mxu0 %v1242
        %2584 = vmatpush.msra.mxu0 %v1236
        %2585 = vmatpush.msra.mxu0 %v1230
        %2586 = vmatpush.msra.mxu0 %v1224
        %2587 = vmatpush.msra.mxu0 %v1218
        %2588 = vmatpush.msra.mxu0 %v1212
        %2589 = vmatpush.msra.mxu0 %v1206
        %2590 = vmatpush.msra.mxu0 %v1200
        %2591 = vmatpush.msra.mxu0 %v1194
        %2592 = vmatmul.f32.gmra.mxu0 %v413
        %v2593 = vpop.f32.mrf.mxu0
        %v2594 = vadd.f32 %v2565, %v2593
        %2595 = vmatmul.f32.gmra.mxu0 %v415
        %v2596 = vpop.f32.mrf.mxu0
        %v2597 = vadd.f32 %v2568, %v2596
        %2598 = vmatmul.f32.gmra.mxu0 %v417
        %v2599 = vpop.f32.mrf.mxu0
        %v2600 = vadd.f32 %v2571, %v2599
        %2601 = vmatmul.f32.gmra.mxu0 %v416
        %v2602 = vpop.f32.mrf.mxu0
        %v2603 = vadd.f32 %v2574, %v2602
        %2604 = vdwg.mxu0
        %2605 = vmatpush.msra.mxu0 %v517
        %2606 = vmatpush.msra.mxu0 %v511
        %2607 = vmatpush.msra.mxu0 %v505
        %2608 = vmatpush.msra.mxu0 %v499
        %2609 = vmatpush.msra.mxu0 %v493
        %2610 = vmatpush.msra.mxu0 %v487
        %2611 = vmatpush.msra.mxu0 %v481
        %2612 = vmatpush.msra.mxu0 %v475
        %2613 = vmatpush.msra.mxu0 %v469
        %2614 = vmatpush.msra.mxu0 %v463
        %2615 = vmatpush.msra.mxu0 %v457
        %2616 = vmatpush.msra.mxu0 %v451
        %2617 = vmatpush.msra.mxu0 %v445
        %2618 = vmatpush.msra.mxu0 %v439
        %2619 = vmatpush.msra.mxu0 %v433
        %2620 = vmatpush.msra.mxu0 %v427
        %2621 = vmatmul.f32.gmra.mxu0 %v330
        %v2622 = vpop.f32.mrf.mxu0
        %v2623 = vadd.f32 %v1293, %v2622
        %2624 = vmatmul.f32.gmra.mxu0 %v331
        %v2625 = vpop.f32.mrf.mxu0
        %v2626 = vadd.f32 %v1293, %v2625
        %2627 = vmatmul.f32.gmra.mxu0 %v332
        %v2628 = vpop.f32.mrf.mxu0
        %v2629 = vadd.f32 %v1293, %v2628
        %2630 = vmatmul.f32.gmra.mxu0 %v333
        %v2631 = vpop.f32.mrf.mxu0
        %v2632 = vadd.f32 %v1293, %v2631
        %2633 = vdwg.mxu0
        %2634 = vmatpush.msra.mxu0 %v613
        %2635 = vmatpush.msra.mxu0 %v607
        %2636 = vmatpush.msra.mxu0 %v601
        %2637 = vmatpush.msra.mxu0 %v595
        %2638 = vmatpush.msra.mxu0 %v589
        %2639 = vmatpush.msra.mxu0 %v583
        %2640 = vmatpush.msra.mxu0 %v577
        %2641 = vmatpush.msra.mxu0 %v571
        %2642 = vmatpush.msra.mxu0 %v565
        %2643 = vmatpush.msra.mxu0 %v559
        %2644 = vmatpush.msra.mxu0 %v553
        %2645 = vmatpush.msra.mxu0 %v547
        %2646 = vmatpush.msra.mxu0 %v541
        %2647 = vmatpush.msra.mxu0 %v535
        %2648 = vmatpush.msra.mxu0 %v529
        %2649 = vmatpush.msra.mxu0 %v523
        %2650 = vmatmul.f32.gmra.mxu0 %v349
        %v2651 = vpop.f32.mrf.mxu0
        %v2652 = vadd.f32 %v2623, %v2651
        %2653 = vmatmul.f32.gmra.mxu0 %v351
        %v2654 = vpop.f32.mrf.mxu0
        %v2655 = vadd.f32 %v2626, %v2654
        %2656 = vmatmul.f32.gmra.mxu0 %v353
        %v2657 = vpop.f32.mrf.mxu0
        %v2658 = vadd.f32 %v2629, %v2657
        %2659 = vmatmul.f32.gmra.mxu0 %v352
        %v2660 = vpop.f32.mrf.mxu0
        %v2661 = vadd.f32 %v2632, %v2660
        %2662 = vdwg.mxu0
        %2663 = vmatpush.msra.mxu0 %v709
        %2664 = vmatpush.msra.mxu0 %v703
        %2665 = vmatpush.msra.mxu0 %v697
        %2666 = vmatpush.msra.mxu0 %v691
        %2667 = vmatpush.msra.mxu0 %v685
        %2668 = vmatpush.msra.mxu0 %v679
        %2669 = vmatpush.msra.mxu0 %v673
        %2670 = vmatpush.msra.mxu0 %v667
        %2671 = vmatpush.msra.mxu0 %v661
        %2672 = vmatpush.msra.mxu0 %v655
        %2673 = vmatpush.msra.mxu0 %v649
        %2674 = vmatpush.msra.mxu0 %v643
        %2675 = vmatpush.msra.mxu0 %v637
        %2676 = vmatpush.msra.mxu0 %v631
        %2677 = vmatpush.msra.mxu0 %v625
        %2678 = vmatpush.msra.mxu0 %v619
        %2679 = vmatmul.f32.gmra.mxu0 %v361
        %v2680 = vpop.f32.mrf.mxu0
        %v2681 = vadd.f32 %v2652, %v2680
        %2682 = vmatmul.f32.gmra.mxu0 %v363
        %v2683 = vpop.f32.mrf.mxu0
        %v2684 = vadd.f32 %v2655, %v2683
        %2685 = vmatmul.f32.gmra.mxu0 %v365
        %v2686 = vpop.f32.mrf.mxu0
        %v2687 = vadd.f32 %v2658, %v2686
        %2688 = vmatmul.f32.gmra.mxu0 %v364
        %v2689 = vpop.f32.mrf.mxu0
        %v2690 = vadd.f32 %v2661, %v2689
        %2691 = vdwg.mxu0
        %2692 = vmatpush.msra.mxu0 %v805
        %2693 = vmatpush.msra.mxu0 %v799
        %2694 = vmatpush.msra.mxu0 %v793
        %2695 = vmatpush.msra.mxu0 %v787
        %2696 = vmatpush.msra.mxu0 %v781
        %2697 = vmatpush.msra.mxu0 %v775
        %2698 = vmatpush.msra.mxu0 %v769
        %2699 = vmatpush.msra.mxu0 %v763
        %2700 = vmatpush.msra.mxu0 %v757
        %2701 = vmatpush.msra.mxu0 %v751
        %2702 = vmatpush.msra.mxu0 %v745
        %2703 = vmatpush.msra.mxu0 %v739
        %2704 = vmatpush.msra.mxu0 %v733
        %2705 = vmatpush.msra.mxu0 %v727
        %2706 = vmatpush.msra.mxu0 %v721
        %2707 = vmatpush.msra.mxu0 %v715
        %2708 = vmatmul.f32.gmra.mxu0 %v334
        %v2709 = vpop.f32.mrf.mxu0
        %v2710 = vadd.f32 %v2681, %v2709
        %2711 = vmatmul.f32.gmra.mxu0 %v335
        %v2712 = vpop.f32.mrf.mxu0
        %v2713 = vadd.f32 %v2684, %v2712
        %2714 = vmatmul.f32.gmra.mxu0 %v336
        %v2715 = vpop.f32.mrf.mxu0
        %v2716 = vadd.f32 %v2687, %v2715
        %2717 = vmatmul.f32.gmra.mxu0 %v337
        %v2718 = vpop.f32.mrf.mxu0
        %v2719 = vadd.f32 %v2690, %v2718
        %2720 = vdwg.mxu0
        %2721 = vmatpush.msra.mxu0 %v901
        %2722 = vmatpush.msra.mxu0 %v895
        %2723 = vmatpush.msra.mxu0 %v889
        %2724 = vmatpush.msra.mxu0 %v883
        %2725 = vmatpush.msra.mxu0 %v877
        %2726 = vmatpush.msra.mxu0 %v871
        %2727 = vmatpush.msra.mxu0 %v865
        %2728 = vmatpush.msra.mxu0 %v859
        %2729 = vmatpush.msra.mxu0 %v853
        %2730 = vmatpush.msra.mxu0 %v847
        %2731 = vmatpush.msra.mxu0 %v841
        %2732 = vmatpush.msra.mxu0 %v835
        %2733 = vmatpush.msra.mxu0 %v829
        %2734 = vmatpush.msra.mxu0 %v823
        %2735 = vmatpush.msra.mxu0 %v817
        %2736 = vmatpush.msra.mxu0 %v811
        %2737 = vmatmul.f32.gmra.mxu0 %v376
        %v2738 = vpop.f32.mrf.mxu0
        %v2739 = vadd.f32 %v2710, %v2738
        %2740 = vmatmul.f32.gmra.mxu0 %v378
        %v2741 = vpop.f32.mrf.mxu0
        %v2742 = vadd.f32 %v2713, %v2741
        %2743 = vmatmul.f32.gmra.mxu0 %v380
        %v2744 = vpop.f32.mrf.mxu0
        %v2745 = vadd.f32 %v2716, %v2744
        %2746 = vmatmul.f32.gmra.mxu0 %v379
        %v2747 = vpop.f32.mrf.mxu0
        %v2748 = vadd.f32 %v2719, %v2747
        %2749 = vdwg.mxu0
        %2750 = vmatpush.msra.mxu0 %v997
        %2751 = vmatpush.msra.mxu0 %v991
        %2752 = vmatpush.msra.mxu0 %v985
        %2753 = vmatpush.msra.mxu0 %v979
        %2754 = vmatpush.msra.mxu0 %v973
        %2755 = vmatpush.msra.mxu0 %v967
        %2756 = vmatpush.msra.mxu0 %v961
        %2757 = vmatpush.msra.mxu0 %v955
        %2758 = vmatpush.msra.mxu0 %v949
        %2759 = vmatpush.msra.mxu0 %v943
        %2760 = vmatpush.msra.mxu0 %v937
        %2761 = vmatpush.msra.mxu0 %v931
        %2762 = vmatpush.msra.mxu0 %v925
        %2763 = vmatpush.msra.mxu0 %v919
        %2764 = vmatpush.msra.mxu0 %v913
        %2765 = vmatpush.msra.mxu0 %v907
        %2766 = vmatmul.f32.gmra.mxu0 %v387
        %v2767 = vpop.f32.mrf.mxu0
        %v2768 = vadd.f32 %v2739, %v2767
        %2769 = vmatmul.f32.gmra.mxu0 %v389
        %v2770 = vpop.f32.mrf.mxu0
        %v2771 = vadd.f32 %v2742, %v2770
        %2772 = vmatmul.f32.gmra.mxu0 %v391
        %v2773 = vpop.f32.mrf.mxu0
        %v2774 = vadd.f32 %v2745, %v2773
        %2775 = vmatmul.f32.gmra.mxu0 %v390
        %v2776 = vpop.f32.mrf.mxu0
        %v2777 = vadd.f32 %v2748, %v2776
        %2778 = vdwg.mxu0
        %2779 = vmatpush.msra.mxu0 %v1093
        %2780 = vmatpush.msra.mxu0 %v1087
        %2781 = vmatpush.msra.mxu0 %v1081
        %2782 = vmatpush.msra.mxu0 %v1075
        %2783 = vmatpush.msra.mxu0 %v1069
        %2784 = vmatpush.msra.mxu0 %v1063
        %2785 = vmatpush.msra.mxu0 %v1057
        %2786 = vmatpush.msra.mxu0 %v1051
        %2787 = vmatpush.msra.mxu0 %v1045
        %2788 = vmatpush.msra.mxu0 %v1039
        %2789 = vmatpush.msra.mxu0 %v1033
        %2790 = vmatpush.msra.mxu0 %v1027
        %2791 = vmatpush.msra.mxu0 %v1021
        %2792 = vmatpush.msra.mxu0 %v1015
        %2793 = vmatpush.msra.mxu0 %v1009
        %2794 = vmatpush.msra.mxu0 %v1003
        %2795 = vmatmul.f32.gmra.mxu0 %v338
        %v2796 = vpop.f32.mrf.mxu0
        %v2797 = vadd.f32 %v2768, %v2796
        %2798 = vmatmul.f32.gmra.mxu0 %v339
        %v2799 = vpop.f32.mrf.mxu0
        %v2800 = vadd.f32 %v2771, %v2799
        %2801 = vmatmul.f32.gmra.mxu0 %v340
        %v2802 = vpop.f32.mrf.mxu0
        %v2803 = vadd.f32 %v2774, %v2802
        %2804 = vmatmul.f32.gmra.mxu0 %v341
        %v2805 = vpop.f32.mrf.mxu0
        %v2806 = vadd.f32 %v2777, %v2805
        %2807 = vdwg.mxu0
        %2808 = vmatpush.msra.mxu0 %v1189
        %2809 = vmatpush.msra.mxu0 %v1183
        %2810 = vmatpush.msra.mxu0 %v1177
        %2811 = vmatpush.msra.mxu0 %v1171
        %2812 = vmatpush.msra.mxu0 %v1165
        %2813 = vmatpush.msra.mxu0 %v1159
        %2814 = vmatpush.msra.mxu0 %v1153
        %2815 = vmatpush.msra.mxu0 %v1147
        %2816 = vmatpush.msra.mxu0 %v1141
        %2817 = vmatpush.msra.mxu0 %v1135
        %2818 = vmatpush.msra.mxu0 %v1129
        %2819 = vmatpush.msra.mxu0 %v1123
        %2820 = vmatpush.msra.mxu0 %v1117
        %2821 = vmatpush.msra.mxu0 %v1111
        %2822 = vmatpush.msra.mxu0 %v1105
        %2823 = vmatpush.msra.mxu0 %v1099
        %2824 = vmatmul.f32.gmra.mxu0 %v402
        %v2825 = vpop.f32.mrf.mxu0
        %v2826 = vadd.f32 %v2797, %v2825
        %2827 = vmatmul.f32.gmra.mxu0 %v404
        %v2828 = vpop.f32.mrf.mxu0
        %v2829 = vadd.f32 %v2800, %v2828
        %2830 = vmatmul.f32.gmra.mxu0 %v406
        %v2831 = vpop.f32.mrf.mxu0
        %v2832 = vadd.f32 %v2803, %v2831
        %2833 = vmatmul.f32.gmra.mxu0 %v405
        %v2834 = vpop.f32.mrf.mxu0
        %v2835 = vadd.f32 %v2806, %v2834
        %2836 = vdwg.mxu0
        %2837 = vmatpush.msra.mxu0 %v1285
        %2838 = vmatpush.msra.mxu0 %v1279
        %2839 = vmatpush.msra.mxu0 %v1273
        %2840 = vmatpush.msra.mxu0 %v1267
        %2841 = vmatpush.msra.mxu0 %v1261
        %2842 = vmatpush.msra.mxu0 %v1255
        %2843 = vmatpush.msra.mxu0 %v1249
        %2844 = vmatpush.msra.mxu0 %v1243
        %2845 = vmatpush.msra.mxu0 %v1237
        %2846 = vmatpush.msra.mxu0 %v1231
        %2847 = vmatpush.msra.mxu0 %v1225
        %2848 = vmatpush.msra.mxu0 %v1219
        %2849 = vmatpush.msra.mxu0 %v1213
        %2850 = vmatpush.msra.mxu0 %v1207
        %2851 = vmatpush.msra.mxu0 %v1201
        %2852 = vmatpush.msra.mxu0 %v1195
        %2853 = vmatmul.f32.gmra.mxu0 %v413
        %v2854 = vpop.f32.mrf.mxu0
        %v2855 = vadd.f32 %v2826, %v2854
        %2856 = vmatmul.f32.gmra.mxu0 %v415
        %v2857 = vpop.f32.mrf.mxu0
        %v2858 = vadd.f32 %v2829, %v2857
        %2859 = vmatmul.f32.gmra.mxu0 %v417
        %v2860 = vpop.f32.mrf.mxu0
        %v2861 = vadd.f32 %v2832, %v2860
        %2862 = vmatmul.f32.gmra.mxu0 %v416
        %v2863 = vpop.f32.mrf.mxu0
        %v2864 = vadd.f32 %v2835, %v2863
        %2865 = vdwg.mxu0
        %v2866 = vmax.f32 %v1550, 0.0
        %v2867 = vmax.f32 %v1811, 0.0
        %v2868 = vmax.f32 %v2072, 0.0
        %v2869 = vmax.f32 %v2333, 0.0
        %v2870 = vmax.f32 %v2594, 0.0
        %v2871 = vmax.f32 %v2855, 0.0
        %v2872 = vmax.f32 %v1553, 0.0
        %v2873 = vmax.f32 %v1814, 0.0
        %v2874 = vmax.f32 %v2075, 0.0
        %v2875 = vmax.f32 %v2336, 0.0
        %v2876 = vmax.f32 %v2597, 0.0
        %v2877 = vmax.f32 %v2858, 0.0
        %v2878 = vmax.f32 %v1556, 0.0
        %v2879 = vmax.f32 %v1817, 0.0
        %v2880 = vmax.f32 %v2078, 0.0
        %v2881 = vmax.f32 %v2339, 0.0
        %v2882 = vmax.f32 %v2600, 0.0
        %v2883 = vmax.f32 %v2861, 0.0
        %v2884 = vmax.f32 %v1559, 0.0
        %v2885 = vmax.f32 %v1820, 0.0
        %v2886 = vmax.f32 %v2081, 0.0
        %v2887 = vmax.f32 %v2342, 0.0
        %v2888 = vmax.f32 %v2603, 0.0
        %v2889 = vmax.f32 %v2864, 0.0
        %2898 = vrot.lane.b32.xlu0 %v2867, 76
        %v2899 = vpop.permute.xlu0 %2898
        %2900 = vrot.lane.b32.xlu0 %v2868, 76
        %v2901 = vpop.permute.xlu0 %2900
        %2902 = vrot.lane.b32.xlu0 %v2873, 76
        %v2903 = vpop.permute.xlu0 %2902
        %2904 = vrot.lane.b32.xlu0 %v2874, 76
        %v2905 = vpop.permute.xlu0 %2904
        %2906 = vrot.lane.b32.xlu0 %v2879, 76
        %v2907 = vpop.permute.xlu0 %2906
        %2908 = vrot.lane.b32.xlu0 %v2880, 76
        %v2909 = vpop.permute.xlu0 %2908
        %2910 = vrot.lane.b32.xlu0 %v2885, 76
        %v2911 = vpop.permute.xlu0 %2910
        %2912 = vrot.lane.b32.xlu0 %v2886, 76
        %v2913 = vpop.permute.xlu0 %2912
        %vm2914 = vcmask 621568
        %v2915 = vsel %vm2914, %v2899, %v2901
        %v2916 = vsel %vm2914, %v2903, %v2905
        %v2917 = vsel %vm2914, %v2907, %v2909
        %v2918 = vsel %vm2914, %v2911, %v2913
        %v2927 = vmax.f32 %v2866, %v2915
        %v2928 = vmax.f32 %v2867, %v2901
        %v2929 = vmax.f32 %v2872, %v2916
        %v2930 = vmax.f32 %v2873, %v2905
        %v2931 = vmax.f32 %v2878, %v2917
        %v2932 = vmax.f32 %v2879, %v2909
        %v2933 = vmax.f32 %v2884, %v2918
        %v2934 = vmax.f32 %v2885, %v2913
        %2943 = vrot.lane.b32.xlu0 %v2870, 76
        %v2944 = vpop.permute.xlu0 %2943
        %2945 = vrot.lane.b32.xlu0 %v2871, 76
        %v2946 = vpop.permute.xlu0 %2945
        %2947 = vrot.lane.b32.xlu0 %v2876, 76
        %v2948 = vpop.permute.xlu0 %2947
        %2949 = vrot.lane.b32.xlu0 %v2877, 76
        %v2950 = vpop.permute.xlu0 %2949
        %2951 = vrot.lane.b32.xlu0 %v2882, 76
        %v2952 = vpop.permute.xlu0 %2951
        %2953 = vrot.lane.b32.xlu0 %v2883, 76
        %v2954 = vpop.permute.xlu0 %2953
        %2955 = vrot.lane.b32.xlu0 %v2888, 76
        %v2956 = vpop.permute.xlu0 %2955
        %2957 = vrot.lane.b32.xlu0 %v2889, 76
        %v2958 = vpop.permute.xlu0 %2957
        %v2959 = vsel %vm2914, %v2944, %v2946
        %v2960 = vsel %vm2914, %v2948, %v2950
        %v2961 = vsel %vm2914, %v2952, %v2954
        %v2962 = vsel %vm2914, %v2956, %v2958
        %v2975 = vmax.f32 %v2868, %v2944
        %v2976 = vmax.f32 %v2869, %v2959
        %v2977 = vmax.f32 %v2870, %v2946
        %v2978 = vmax.f32 %v2874, %v2948
        %v2979 = vmax.f32 %v2875, %v2960
        %v2980 = vmax.f32 %v2876, %v2950
        %v2981 = vmax.f32 %v2880, %v2952
        %v2982 = vmax.f32 %v2881, %v2961
        %v2983 = vmax.f32 %v2882, %v2954
        %v2984 = vmax.f32 %v2886, %v2956
        %v2985 = vmax.f32 %v2887, %v2962
        %v2986 = vmax.f32 %v2888, %v2958
        %2999 = vrot.lane.b32.xlu0 %v2975, 24
        %v3000 = vpop.permute.xlu0 %2999
        %3001 = vrot.lane.b32.xlu0 %v2976, 24
        %v3002 = vpop.permute.xlu0 %3001
        %3003 = vrot.lane.b32.xlu0 %v2977, 24
        %v3004 = vpop.permute.xlu0 %3003
        %3005 = vrot.lane.b32.xlu0 %v2978, 24
        %v3006 = vpop.permute.xlu0 %3005
        %3007 = vrot.lane.b32.xlu0 %v2979, 24
        %v3008 = vpop.permute.xlu0 %3007
        %3009 = vrot.lane.b32.xlu0 %v2980, 24
        %v3010 = vpop.permute.xlu0 %3009
        %3011 = vrot.lane.b32.xlu0 %v2981, 24
        %v3012 = vpop.permute.xlu0 %3011
        %3013 = vrot.lane.b32.xlu0 %v2982, 24
        %v3014 = vpop.permute.xlu0 %3013
        %3015 = vrot.lane.b32.xlu0 %v2983, 24
        %v3016 = vpop.permute.xlu0 %3015
        %3017 = vrot.lane.b32.xlu0 %v2984, 24
        %v3018 = vpop.permute.xlu0 %3017
        %3019 = vrot.lane.b32.xlu0 %v2985, 24
        %v3020 = vpop.permute.xlu0 %3019
        %3021 = vrot.lane.b32.xlu0 %v2986, 24
        %v3022 = vpop.permute.xlu0 %3021
        %vm3023 = vcmask 195584
        %v3024 = vsel %vm3023, %v3000, %v3002
        %v3025 = vsel %vm3023, %v3002, %v3004
        %v3026 = vsel %vm3023, %v3006, %v3008
        %v3027 = vsel %vm3023, %v3008, %v3010
        %v3028 = vsel %vm3023, %v3012, %v3014
        %v3029 = vsel %vm3023, %v3014, %v3016
        %v3030 = vsel %vm3023, %v3018, %v3020
        %v3031 = vsel %vm3023, %v3020, %v3022
        %v3040 = vmax.f32 %v2927, %v3024
        %v3041 = vmax.f32 %v2928, %v3025
        %v3042 = vmax.f32 %v2929, %v3026
        %v3043 = vmax.f32 %v2930, %v3027
        %v3044 = vmax.f32 %v2931, %v3028
        %v3045 = vmax.f32 %v2932, %v3029
        %v3046 = vmax.f32 %v2933, %v3030
        %v3047 = vmax.f32 %v2934, %v3031
        %v3056 = vrot.slane %v3040, 1
        %v3057 = vrot.slane %v3042, 1
        %v3058 = vsel %vm346, %v3056, %v3057
        %v3059 = vrot.slane %v3041, 1
        %v3060 = vrot.slane %v3043, 1
        %v3061 = vsel %vm346, %v3059, %v3060
        %v3062 = vrot.slane %v3044, 1
        %v3063 = vsel %vm346, %v3057, %v3062
        %v3064 = vrot.slane %v3045, 1
        %v3065 = vsel %vm346, %v3060, %v3064
        %v3066 = vrot.slane %v3046, 1
        %v3067 = vsel %vm346, %v3062, %v3066
        %v3068 = vrot.slane %v3047, 1
        %v3069 = vsel %vm346, %v3064, %v3068
        %3070 = vrot.lane.b32.xlu0 %v3058, 52
        %v3071 = vpop.permute.xlu0 %3070
        %3072 = vrot.lane.b32.xlu0 %v3061, 52
        %v3073 = vpop.permute.xlu0 %3072
        %3074 = vrot.lane.b32.xlu0 %v3063, 52
        %v3075 = vpop.permute.xlu0 %3074
        %3076 = vrot.lane.b32.xlu0 %v3065, 52
        %v3077 = vpop.permute.xlu0 %3076
        %3078 = vrot.lane.b32.xlu0 %v3067, 52
        %v3079 = vpop.permute.xlu0 %3078
        %3080 = vrot.lane.b32.xlu0 %v3069, 52
        %v3081 = vpop.permute.xlu0 %3080
        %3082 = vrot.lane.b32.xlu0 %v3066, 52
        %v3083 = vpop.permute.xlu0 %3082
        %3084 = vrot.lane.b32.xlu0 %v3068, 52
        %v3085 = vpop.permute.xlu0 %3084
        %vm3086 = vcmask 424960
        %v3087 = vsel %vm3086, %v3071, %v3073
        %v3088 = vsel %vm3086, %v3075, %v3077
        %v3089 = vsel %vm3086, %v3079, %v3081
        %v3090 = vsel %vm3086, %v3083, %v3085
        %v3099 = vrot.slane %v3040, 2
        %v3100 = vrot.slane %v3042, 2
        %v3101 = vsel %vm358, %v3099, %v3100
        %v3102 = vrot.slane %v3041, 2
        %v3103 = vrot.slane %v3043, 2
        %v3104 = vsel %vm358, %v3102, %v3103
        %v3105 = vrot.slane %v3044, 2
        %v3106 = vsel %vm358, %v3100, %v3105
        %v3107 = vrot.slane %v3045, 2
        %v3108 = vsel %vm358, %v3103, %v3107
        %v3109 = vrot.slane %v3046, 2
        %v3110 = vsel %vm358, %v3105, %v3109
        %v3111 = vrot.slane %v3047, 2
        %v3112 = vsel %vm358, %v3107, %v3111
        %3113 = vrot.lane.b32.xlu0 %v3101, 104
        %v3114 = vpop.permute.xlu0 %3113
        %3115 = vrot.lane.b32.xlu0 %v3104, 104
        %v3116 = vpop.permute.xlu0 %3115
        %3117 = vrot.lane.b32.xlu0 %v3106, 104
        %v3118 = vpop.permute.xlu0 %3117
        %3119 = vrot.lane.b32.xlu0 %v3108, 104
        %v3120 = vpop.permute.xlu0 %3119
        %3121 = vrot.lane.b32.xlu0 %v3110, 104
        %v3122 = vpop.permute.xlu0 %3121
        %3123 = vrot.lane.b32.xlu0 %v3112, 104
        %v3124 = vpop.permute.xlu0 %3123
        %3125 = vrot.lane.b32.xlu0 %v3109, 104
        %v3126 = vpop.permute.xlu0 %3125
        %3127 = vrot.lane.b32.xlu0 %v3111, 104
        %v3128 = vpop.permute.xlu0 %3127
        %vm3129 = vcmask 850944
        %v3130 = vsel %vm3129, %v3114, %v3116
        %v3131 = vsel %vm3129, %v3118, %v3120
        %v3132 = vsel %vm3129, %v3122, %v3124
        %v3133 = vsel %vm3129, %v3126, %v3128
        %vm3146 = vcmask 1044480
        %v3147 = vrot.slane %v3040, 3
        %v3148 = vrot.slane %v3042, 3
        %v3149 = vsel %vm3146, %v3147, %v3148
        %v3150 = vrot.slane %v3041, 3
        %v3151 = vrot.slane %v3043, 3
        %v3152 = vsel %vm3146, %v3150, %v3151
        %v3153 = vrot.slane %v3044, 3
        %v3154 = vsel %vm3146, %v3148, %v3153
        %v3155 = vrot.slane %v3045, 3
        %v3156 = vsel %vm3146, %v3151, %v3155
        %v3157 = vrot.slane %v3046, 3
        %v3158 = vsel %vm3146, %v3153, %v3157
        %v3159 = vrot.slane %v3047, 3
        %v3160 = vsel %vm3146, %v3155, %v3159
        %3161 = vrot.lane.b32.xlu0 %v3149, 28
        %v3162 = vpop.permute.xlu0 %3161
        %3163 = vrot.lane.b32.xlu0 %v3152, 28
        %v3164 = vpop.permute.xlu0 %3163
        %3165 = vrot.lane.b32.xlu0 %v3154, 28
        %v3166 = vpop.permute.xlu0 %3165
        %3167 = vrot.lane.b32.xlu0 %v3156, 28
        %v3168 = vpop.permute.xlu0 %3167
        %3169 = vrot.lane.b32.xlu0 %v3158, 28
        %v3170 = vpop.permute.xlu0 %3169
        %3171 = vrot.lane.b32.xlu0 %v3160, 28
        %v3172 = vpop.permute.xlu0 %3171
        %3173 = vrot.lane.b32.xlu0 %v3157, 28
        %v3174 = vpop.permute.xlu0 %3173
        %3175 = vrot.lane.b32.xlu0 %v3159, 28
        %v3176 = vpop.permute.xlu0 %3175
        %vm3177 = vcmask 228352
        %v3178 = vsel %vm3177, %v3162, %v3164
        %v3179 = vsel %vm3177, %v3166, %v3168
        %v3180 = vsel %vm3177, %v3170, %v3172
        %v3181 = vsel %vm3177, %v3174, %v3176
        %vm3190 = vcmask 1043456
        %v3191 = vrot.slane %v3040, 4
        %v3192 = vrot.slane %v3042, 4
        %v3193 = vsel %vm3190, %v3191, %v3192
        %v3194 = vrot.slane %v3041, 4
        %v3195 = vrot.slane %v3043, 4
        %v3196 = vsel %vm3190, %v3194, %v3195
        %v3197 = vrot.slane %v3044, 4
        %v3198 = vsel %vm3190, %v3192, %v3197
        %v3199 = vrot.slane %v3045, 4
        %v3200 = vsel %vm3190, %v3195, %v3199
        %v3201 = vrot.slane %v3046, 4
        %v3202 = vsel %vm3190, %v3197, %v3201
        %v3203 = vrot.slane %v3047, 4
        %v3204 = vsel %vm3190, %v3199, %v3203
        %3205 = vrot.lane.b32.xlu0 %v3193, 80
        %v3206 = vpop.permute.xlu0 %3205
        %3207 = vrot.lane.b32.xlu0 %v3196, 80
        %v3208 = vpop.permute.xlu0 %3207
        %3209 = vrot.lane.b32.xlu0 %v3198, 80
        %v3210 = vpop.permute.xlu0 %3209
        %3211 = vrot.lane.b32.xlu0 %v3200, 80
        %v3212 = vpop.permute.xlu0 %3211
        %3213 = vrot.lane.b32.xlu0 %v3202, 80
        %v3214 = vpop.permute.xlu0 %3213
        %3215 = vrot.lane.b32.xlu0 %v3204, 80
        %v3216 = vpop.permute.xlu0 %3215
        %3217 = vrot.lane.b32.xlu0 %v3201, 80
        %v3218 = vpop.permute.xlu0 %3217
        %3219 = vrot.lane.b32.xlu0 %v3203, 80
        %v3220 = vpop.permute.xlu0 %3219
        %vm3221 = vcmask 654336
        %v3222 = vsel %vm3221, %v3206, %v3208
        %v3223 = vsel %vm3221, %v3210, %v3212
        %v3224 = vsel %vm3221, %v3214, %v3216
        %v3225 = vsel %vm3221, %v3218, %v3220
        %v3234 = vsel %vm3086, %v3041, %v3071
        %v3235 = vsel %vm3086, %v3043, %v3075
        %v3236 = vsel %vm3086, %v3045, %v3079
        %v3237 = vsel %vm3086, %v3047, %v3083
        %v3238 = vsel %vm3129, %v3087, %v3114
        %v3239 = vsel %vm3129, %v3088, %v3118
        %v3240 = vsel %vm3129, %v3089, %v3122
        %v3241 = vsel %vm3129, %v3090, %v3126
        %v3242 = vsel %vm3177, %v3116, %v3162
        %v3243 = vsel %vm3177, %v3120, %v3166
        %v3244 = vsel %vm3177, %v3124, %v3170
        %v3245 = vsel %vm3177, %v3128, %v3174
        %v3246 = vsel %vm3221, %v3178, %v3206
        %v3247 = vsel %vm3221, %v3179, %v3210
        %v3248 = vsel %vm3221, %v3180, %v3214
        %v3249 = vsel %vm3221, %v3181, %v3218
        %v3250 = vld [vmem:[%s3] sm:$0xff]
        %v3251 = vld [vmem:[%s3 + $0x8] sm:$0xff]
        %v3252 = vld [vmem:[%s3 + $0x10] sm:$0xff]
        %v3253 = vld [vmem:[%s3 + $0x18] sm:$0xff]
        %v3254 = vld [vmem:[%s3 + $0x20] sm:$0xff]
        %v3255 = vld [vmem:[%s3 + $0x28] sm:$0xff]
        %v3256 = vld [vmem:[%s3 + $0x30] sm:$0xff]
        %v3257 = vld [vmem:[%s3 + $0x38] sm:$0xff]
        %v3258 = vld [vmem:[%s3 + $0x40] sm:$0xff]
        %v3259 = vld [vmem:[%s3 + $0x48] sm:$0xff]
        %v3260 = vld [vmem:[%s3 + $0x50] sm:$0xff]
        %v3261 = vld [vmem:[%s3 + $0x58] sm:$0xff]
        %v3262 = vld [vmem:[%s3 + $0x60] sm:$0xff]
        %v3263 = vld [vmem:[%s3 + $0x68] sm:$0xff]
        %v3264 = vld [vmem:[%s3 + $0x70] sm:$0xff]
        %v3265 = vld [vmem:[%s3 + $0x78] sm:$0xff]
        %v3266 = vld [vmem:[%s3 + $0x80] sm:$0xff]
        %v3267 = vld [vmem:[%s3 + $0x88] sm:$0xff]
        %v3268 = vld [vmem:[%s3 + $0x90] sm:$0xff]
        %v3269 = vld [vmem:[%s3 + $0x98] sm:$0xff]
        %v3270 = vld [vmem:[%s3 + $0xa0] sm:$0xff]
        %v3271 = vld [vmem:[%s3 + $0xa8] sm:$0xff]
        %v3272 = vld [vmem:[%s3 + $0xb0] sm:$0xff]
        %v3273 = vld [vmem:[%s3 + $0xb8] sm:$0xff]
        %v3274 = vld [vmem:[%s3 + $0xc0] sm:$0xff]
        %v3275 = vld [vmem:[%s3 + $0xc8] sm:$0xff]
        %v3276 = vld [vmem:[%s3 + $0xd0] sm:$0xff]
        %v3277 = vld [vmem:[%s3 + $0xd8] sm:$0xff]
        %v3278 = vld [vmem:[%s3 + $0xe0] sm:$0xff]
        %v3279 = vld [vmem:[%s3 + $0xe8] sm:$0xff]
        %v3280 = vld [vmem:[%s3 + $0xf0] sm:$0xff]
        %v3281 = vld [vmem:[%s3 + $0xf8] sm:$0xff]
        %v3282 = vld [vmem:[%s3 + $0x100] sm:$0xff]
        %v3283 = vld [vmem:[%s3 + $0x108] sm:$0xff]
        %v3284 = vld [vmem:[%s3 + $0x110] sm:$0xff]
        %v3285 = vld [vmem:[%s3 + $0x118] sm:$0xff]
        %v3286 = vld [vmem:[%s3 + $0x120] sm:$0xff]
        %v3287 = vld [vmem:[%s3 + $0x128] sm:$0xff]
        %v3288 = vld [vmem:[%s3 + $0x130] sm:$0xff]
        %v3289 = vld [vmem:[%s3 + $0x138] sm:$0xff]
        %v3290 = vld [vmem:[%s3 + $0x140] sm:$0xff]
        %v3291 = vld [vmem:[%s3 + $0x148] sm:$0xff]
        %v3292 = vld [vmem:[%s3 + $0x150] sm:$0xff]
        %v3293 = vld [vmem:[%s3 + $0x158] sm:$0xff]
        %v3294 = vld [vmem:[%s3 + $0x160] sm:$0xff]
        %v3295 = vld [vmem:[%s3 + $0x168] sm:$0xff]
        %v3296 = vld [vmem:[%s3 + $0x170] sm:$0xff]
        %v3297 = vld [vmem:[%s3 + $0x178] sm:$0xff]
        %v3298 = vld [vmem:[%s3 + $0x180] sm:$0xff]
        %v3299 = vld [vmem:[%s3 + $0x188] sm:$0xff]
        %v3300 = vld [vmem:[%s3 + $0x190] sm:$0xff]
        %v3301 = vld [vmem:[%s3 + $0x198] sm:$0xff]
        %v3302 = vld [vmem:[%s3 + $0x1a0] sm:$0xff]
        %v3303 = vld [vmem:[%s3 + $0x1a8] sm:$0xff]
        %v3304 = vld [vmem:[%s3 + $0x1b0] sm:$0xff]
        %v3305 = vld [vmem:[%s3 + $0x1b8] sm:$0xff]
        %v3306 = vld [vmem:[%s3 + $0x1c0] sm:$0xff]
        %v3307 = vld [vmem:[%s3 + $0x1c8] sm:$0xff]
        %v3308 = vld [vmem:[%s3 + $0x1d0] sm:$0xff]
        %v3309 = vld [vmem:[%s3 + $0x1d8] sm:$0xff]
        %v3310 = vld [vmem:[%s3 + $0x1e0] sm:$0xff]
        %v3311 = vld [vmem:[%s3 + $0x1e8] sm:$0xff]
        %v3312 = vld [vmem:[%s3 + $0x1f0] sm:$0xff]
        %v3313 = vld [vmem:[%s3 + $0x1f8] sm:$0xff]
        %v3314 = vld [vmem:[%s3 + $0x200] sm:$0xff]
        %v3315 = vld [vmem:[%s3 + $0x208] sm:$0xff]
        %v3316 = vld [vmem:[%s3 + $0x210] sm:$0xff]
        %v3317 = vld [vmem:[%s3 + $0x218] sm:$0xff]
        %v3318 = vld [vmem:[%s3 + $0x220] sm:$0xff]
        %v3319 = vld [vmem:[%s3 + $0x228] sm:$0xff]
        %v3320 = vld [vmem:[%s3 + $0x230] sm:$0xff]
        %v3321 = vld [vmem:[%s3 + $0x238] sm:$0xff]
        %v3322 = vld [vmem:[%s3 + $0x240] sm:$0xff]
        %v3323 = vld [vmem:[%s3 + $0x248] sm:$0xff]
        %v3324 = vld [vmem:[%s3 + $0x250] sm:$0xff]
        %v3325 = vld [vmem:[%s3 + $0x258] sm:$0xff]
        %v3326 = vld [vmem:[%s3 + $0x260] sm:$0xff]
        %v3327 = vld [vmem:[%s3 + $0x268] sm:$0xff]
        %v3328 = vld [vmem:[%s3 + $0x270] sm:$0xff]
        %v3329 = vld [vmem:[%s3 + $0x278] sm:$0xff]
        %v3330 = vld [vmem:[%s3 + $0x280] sm:$0xff]
        %v3331 = vld [vmem:[%s3 + $0x288] sm:$0xff]
        %v3332 = vld [vmem:[%s3 + $0x290] sm:$0xff]
        %v3333 = vld [vmem:[%s3 + $0x298] sm:$0xff]
        %v3334 = vld [vmem:[%s3 + $0x2a0] sm:$0xff]
        %v3335 = vld [vmem:[%s3 + $0x2a8] sm:$0xff]
        %v3336 = vld [vmem:[%s3 + $0x2b0] sm:$0xff]
        %v3337 = vld [vmem:[%s3 + $0x2b8] sm:$0xff]
        %v3338 = vld [vmem:[%s3 + $0x2c0] sm:$0xff]
        %v3339 = vld [vmem:[%s3 + $0x2c8] sm:$0xff]
        %v3340 = vld [vmem:[%s3 + $0x2d0] sm:$0xff]
        %v3341 = vld [vmem:[%s3 + $0x2d8] sm:$0xff]
        %v3342 = vld [vmem:[%s3 + $0x2e0] sm:$0xff]
        %v3343 = vld [vmem:[%s3 + $0x2e8] sm:$0xff]
        %v3344 = vld [vmem:[%s3 + $0x2f0] sm:$0xff]
        %v3345 = vld [vmem:[%s3 + $0x2f8] sm:$0xff]
        %v3346 = vld [vmem:[%s3 + $0x300] sm:$0xff]
        %v3347 = vld [vmem:[%s3 + $0x308] sm:$0xff]
        %v3348 = vld [vmem:[%s3 + $0x310] sm:$0xff]
        %v3349 = vld [vmem:[%s3 + $0x318] sm:$0xff]
        %v3350 = vld [vmem:[%s3 + $0x320] sm:$0xff]
        %v3351 = vld [vmem:[%s3 + $0x328] sm:$0xff]
        %v3352 = vld [vmem:[%s3 + $0x330] sm:$0xff]
        %v3353 = vld [vmem:[%s3 + $0x338] sm:$0xff]
        %v3354 = vld [vmem:[%s3 + $0x340] sm:$0xff]
        %v3355 = vld [vmem:[%s3 + $0x348] sm:$0xff]
        %v3356 = vld [vmem:[%s3 + $0x350] sm:$0xff]
        %v3357 = vld [vmem:[%s3 + $0x358] sm:$0xff]
        %v3358 = vld [vmem:[%s3 + $0x360] sm:$0xff]
        %v3359 = vld [vmem:[%s3 + $0x368] sm:$0xff]
        %v3360 = vld [vmem:[%s3 + $0x370] sm:$0xff]
        %v3361 = vld [vmem:[%s3 + $0x378] sm:$0xff]
        %v3362 = vld [vmem:[%s3 + $0x380] sm:$0xff]
        %v3363 = vld [vmem:[%s3 + $0x388] sm:$0xff]
        %v3364 = vld [vmem:[%s3 + $0x390] sm:$0xff]
        %v3365 = vld [vmem:[%s3 + $0x398] sm:$0xff]
        %v3366 = vld [vmem:[%s3 + $0x3a0] sm:$0xff]
        %v3367 = vld [vmem:[%s3 + $0x3a8] sm:$0xff]
        %v3368 = vld [vmem:[%s3 + $0x3b0] sm:$0xff]
        %v3369 = vld [vmem:[%s3 + $0x3b8] sm:$0xff]
        %v3370 = vld [vmem:[%s3 + $0x3c0] sm:$0xff]
        %v3371 = vld [vmem:[%s3 + $0x3c8] sm:$0xff]
        %v3372 = vld [vmem:[%s3 + $0x3d0] sm:$0xff]
        %v3373 = vld [vmem:[%s3 + $0x3d8] sm:$0xff]
        %v3374 = vld [vmem:[%s3 + $0x3e0] sm:$0xff]
        %v3375 = vld [vmem:[%s3 + $0x3e8] sm:$0xff]
        %v3376 = vld [vmem:[%s3 + $0x3f0] sm:$0xff]
        %v3377 = vld [vmem:[%s3 + $0x3f8] sm:$0xff]
        %v3378 = vld [vmem:[%s3 + $0x400] sm:$0xff]
        %v3379 = vld [vmem:[%s3 + $0x408] sm:$0xff]
        %v3380 = vld [vmem:[%s3 + $0x410] sm:$0xff]
        %v3381 = vld [vmem:[%s3 + $0x418] sm:$0xff]
        %v3382 = vld [vmem:[%s3 + $0x420] sm:$0xff]
        %v3383 = vld [vmem:[%s3 + $0x428] sm:$0xff]
        %v3384 = vld [vmem:[%s3 + $0x430] sm:$0xff]
        %v3385 = vld [vmem:[%s3 + $0x438] sm:$0xff]
        %v3386 = vld [vmem:[%s3 + $0x440] sm:$0xff]
        %v3387 = vld [vmem:[%s3 + $0x448] sm:$0xff]
        %v3388 = vld [vmem:[%s3 + $0x450] sm:$0xff]
        %v3389 = vld [vmem:[%s3 + $0x458] sm:$0xff]
        %v3390 = vld [vmem:[%s3 + $0x460] sm:$0xff]
        %v3391 = vld [vmem:[%s3 + $0x468] sm:$0xff]
        %v3392 = vld [vmem:[%s3 + $0x470] sm:$0xff]
        %v3393 = vld [vmem:[%s3 + $0x478] sm:$0xff]
        %v3394 = vld [vmem:[%s3 + $0x480] sm:$0xff]
        %v3395 = vld [vmem:[%s3 + $0x488] sm:$0xff]
        %v3396 = vld [vmem:[%s3 + $0x490] sm:$0xff]
        %v3397 = vld [vmem:[%s3 + $0x498] sm:$0xff]
        %v3398 = vld [vmem:[%s3 + $0x4a0] sm:$0xff]
        %v3399 = vld [vmem:[%s3 + $0x4a8] sm:$0xff]
        %v3400 = vld [vmem:[%s3 + $0x4b0] sm:$0xff]
        %v3401 = vld [vmem:[%s3 + $0x4b8] sm:$0xff]
        %v3402 = vld [vmem:[%s3 + $0x4c0] sm:$0xff]
        %v3403 = vld [vmem:[%s3 + $0x4c8] sm:$0xff]
        %v3404 = vld [vmem:[%s3 + $0x4d0] sm:$0xff]
        %v3405 = vld [vmem:[%s3 + $0x4d8] sm:$0xff]
        %v3406 = vld [vmem:[%s3 + $0x4e0] sm:$0xff]
        %v3407 = vld [vmem:[%s3 + $0x4e8] sm:$0xff]
        %v3408 = vld [vmem:[%s3 + $0x4f0] sm:$0xff]
        %v3409 = vld [vmem:[%s3 + $0x4f8] sm:$0xff]
        %v3410 = vld [vmem:[%s3 + $0x500] sm:$0xff]
        %v3411 = vld [vmem:[%s3 + $0x508] sm:$0xff]
        %v3412 = vld [vmem:[%s3 + $0x510] sm:$0xff]
        %v3413 = vld [vmem:[%s3 + $0x518] sm:$0xff]
        %v3414 = vld [vmem:[%s3 + $0x520] sm:$0xff]
        %v3415 = vld [vmem:[%s3 + $0x528] sm:$0xff]
        %v3416 = vld [vmem:[%s3 + $0x530] sm:$0xff]
        %v3417 = vld [vmem:[%s3 + $0x538] sm:$0xff]
        %v3418 = vld [vmem:[%s3 + $0x540] sm:$0xff]
        %v3419 = vld [vmem:[%s3 + $0x548] sm:$0xff]
        %v3420 = vld [vmem:[%s3 + $0x550] sm:$0xff]
        %v3421 = vld [vmem:[%s3 + $0x558] sm:$0xff]
        %v3422 = vld [vmem:[%s3 + $0x560] sm:$0xff]
        %v3423 = vld [vmem:[%s3 + $0x568] sm:$0xff]
        %v3424 = vld [vmem:[%s3 + $0x570] sm:$0xff]
        %v3425 = vld [vmem:[%s3 + $0x578] sm:$0xff]
        %v3426 = vld [vmem:[%s3 + $0x580] sm:$0xff]
        %v3427 = vld [vmem:[%s3 + $0x588] sm:$0xff]
        %v3428 = vld [vmem:[%s3 + $0x590] sm:$0xff]
        %v3429 = vld [vmem:[%s3 + $0x598] sm:$0xff]
        %v3430 = vld [vmem:[%s3 + $0x5a0] sm:$0xff]
        %v3431 = vld [vmem:[%s3 + $0x5a8] sm:$0xff]
        %v3432 = vld [vmem:[%s3 + $0x5b0] sm:$0xff]
        %v3433 = vld [vmem:[%s3 + $0x5b8] sm:$0xff]
        %v3434 = vld [vmem:[%s3 + $0x5c0] sm:$0xff]
        %v3435 = vld [vmem:[%s3 + $0x5c8] sm:$0xff]
        %v3436 = vld [vmem:[%s3 + $0x5d0] sm:$0xff]
        %v3437 = vld [vmem:[%s3 + $0x5d8] sm:$0xff]
        %v3438 = vld [vmem:[%s3 + $0x5e0] sm:$0xff]
        %v3439 = vld [vmem:[%s3 + $0x5e8] sm:$0xff]
        %v3440 = vld [vmem:[%s3 + $0x5f0] sm:$0xff]
        %v3441 = vld [vmem:[%s3 + $0x5f8] sm:$0xff]
        %v3442 = vld [vmem:[%s3 + $0x600] sm:$0xff]
        %v3443 = vld [vmem:[%s3 + $0x608] sm:$0xff]
        %v3444 = vld [vmem:[%s3 + $0x610] sm:$0xff]
        %v3445 = vld [vmem:[%s3 + $0x618] sm:$0xff]
        %v3446 = vld [vmem:[%s3 + $0x620] sm:$0xff]
        %v3447 = vld [vmem:[%s3 + $0x628] sm:$0xff]
        %v3448 = vld [vmem:[%s3 + $0x630] sm:$0xff]
        %v3449 = vld [vmem:[%s3 + $0x638] sm:$0xff]
        %v3450 = vld [vmem:[%s3 + $0x640] sm:$0xff]
        %v3451 = vld [vmem:[%s3 + $0x648] sm:$0xff]
        %v3452 = vld [vmem:[%s3 + $0x650] sm:$0xff]
        %v3453 = vld [vmem:[%s3 + $0x658] sm:$0xff]
        %v3454 = vld [vmem:[%s3 + $0x660] sm:$0xff]
        %v3455 = vld [vmem:[%s3 + $0x668] sm:$0xff]
        %v3456 = vld [vmem:[%s3 + $0x670] sm:$0xff]
        %v3457 = vld [vmem:[%s3 + $0x678] sm:$0xff]
        %v3458 = vld [vmem:[%s3 + $0x680] sm:$0xff]
        %v3459 = vld [vmem:[%s3 + $0x688] sm:$0xff]
        %v3460 = vld [vmem:[%s3 + $0x690] sm:$0xff]
        %v3461 = vld [vmem:[%s3 + $0x698] sm:$0xff]
        %v3462 = vld [vmem:[%s3 + $0x6a0] sm:$0xff]
        %v3463 = vld [vmem:[%s3 + $0x6a8] sm:$0xff]
        %v3464 = vld [vmem:[%s3 + $0x6b0] sm:$0xff]
        %v3465 = vld [vmem:[%s3 + $0x6b8] sm:$0xff]
        %v3466 = vld [vmem:[%s3 + $0x6c0] sm:$0xff]
        %v3467 = vld [vmem:[%s3 + $0x6c8] sm:$0xff]
        %v3468 = vld [vmem:[%s3 + $0x6d0] sm:$0xff]
        %v3469 = vld [vmem:[%s3 + $0x6d8] sm:$0xff]
        %v3470 = vld [vmem:[%s3 + $0x6e0] sm:$0xff]
        %v3471 = vld [vmem:[%s3 + $0x6e8] sm:$0xff]
        %v3472 = vld [vmem:[%s3 + $0x6f0] sm:$0xff]
        %v3473 = vld [vmem:[%s3 + $0x6f8] sm:$0xff]
        %v3474 = vld [vmem:[%s3 + $0x700] sm:$0xff]
        %v3475 = vld [vmem:[%s3 + $0x708] sm:$0xff]
        %v3476 = vld [vmem:[%s3 + $0x710] sm:$0xff]
        %v3477 = vld [vmem:[%s3 + $0x718] sm:$0xff]
        %v3478 = vld [vmem:[%s3 + $0x720] sm:$0xff]
        %v3479 = vld [vmem:[%s3 + $0x728] sm:$0xff]
        %v3480 = vld [vmem:[%s3 + $0x730] sm:$0xff]
        %v3481 = vld [vmem:[%s3 + $0x738] sm:$0xff]
        %v3482 = vld [vmem:[%s3 + $0x740] sm:$0xff]
        %v3483 = vld [vmem:[%s3 + $0x748] sm:$0xff]
        %v3484 = vld [vmem:[%s3 + $0x750] sm:$0xff]
        %v3485 = vld [vmem:[%s3 + $0x758] sm:$0xff]
        %v3486 = vld [vmem:[%s3 + $0x760] sm:$0xff]
        %v3487 = vld [vmem:[%s3 + $0x768] sm:$0xff]
        %v3488 = vld [vmem:[%s3 + $0x770] sm:$0xff]
        %v3489 = vld [vmem:[%s3 + $0x778] sm:$0xff]
        %v3490 = vld [vmem:[%s3 + $0x780] sm:$0xff]
        %v3491 = vld [vmem:[%s3 + $0x788] sm:$0xff]
        %v3492 = vld [vmem:[%s3 + $0x790] sm:$0xff]
        %v3493 = vld [vmem:[%s3 + $0x798] sm:$0xff]
        %v3494 = vld [vmem:[%s3 + $0x7a0] sm:$0xff]
        %v3495 = vld [vmem:[%s3 + $0x7a8] sm:$0xff]
        %v3496 = vld [vmem:[%s3 + $0x7b0] sm:$0xff]
        %v3497 = vld [vmem:[%s3 + $0x7b8] sm:$0xff]
        %v3498 = vld [vmem:[%s3 + $0x7c0] sm:$0xff]
        %v3499 = vld [vmem:[%s3 + $0x7c8] sm:$0xff]
        %v3500 = vld [vmem:[%s3 + $0x7d0] sm:$0xff]
        %v3501 = vld [vmem:[%s3 + $0x7d8] sm:$0xff]
        %v3502 = vld [vmem:[%s3 + $0x7e0] sm:$0xff]
        %v3503 = vld [vmem:[%s3 + $0x7e8] sm:$0xff]
        %v3504 = vld [vmem:[%s3 + $0x7f0] sm:$0xff]
        %v3505 = vld [vmem:[%s3 + $0x7f8] sm:$0xff]
        %v3506 = vld [vmem:[%s3 + $0x800] sm:$0xff]
        %v3507 = vld [vmem:[%s3 + $0x808] sm:$0xff]
        %v3508 = vld [vmem:[%s3 + $0x810] sm:$0xff]
        %v3509 = vld [vmem:[%s3 + $0x818] sm:$0xff]
        %v3510 = vld [vmem:[%s3 + $0x820] sm:$0xff]
        %v3511 = vld [vmem:[%s3 + $0x828] sm:$0xff]
        %v3512 = vld [vmem:[%s3 + $0x830] sm:$0xff]
        %v3513 = vld [vmem:[%s3 + $0x838] sm:$0xff]
        %v3514 = vld [vmem:[%s3 + $0x840] sm:$0xff]
        %v3515 = vld [vmem:[%s3 + $0x848] sm:$0xff]
        %v3516 = vld [vmem:[%s3 + $0x850] sm:$0xff]
        %v3517 = vld [vmem:[%s3 + $0x858] sm:$0xff]
        %v3518 = vld [vmem:[%s3 + $0x860] sm:$0xff]
        %v3519 = vld [vmem:[%s3 + $0x868] sm:$0xff]
        %v3520 = vld [vmem:[%s3 + $0x870] sm:$0xff]
        %v3521 = vld [vmem:[%s3 + $0x878] sm:$0xff]
        %v3522 = vld [vmem:[%s3 + $0x880] sm:$0xff]
        %v3523 = vld [vmem:[%s3 + $0x888] sm:$0xff]
        %v3524 = vld [vmem:[%s3 + $0x890] sm:$0xff]
        %v3525 = vld [vmem:[%s3 + $0x898] sm:$0xff]
        %v3526 = vld [vmem:[%s3 + $0x8a0] sm:$0xff]
        %v3527 = vld [vmem:[%s3 + $0x8a8] sm:$0xff]
        %v3528 = vld [vmem:[%s3 + $0x8b0] sm:$0xff]
        %v3529 = vld [vmem:[%s3 + $0x8b8] sm:$0xff]
        %v3530 = vld [vmem:[%s3 + $0x8c0] sm:$0xff]
        %v3531 = vld [vmem:[%s3 + $0x8c8] sm:$0xff]
        %v3532 = vld [vmem:[%s3 + $0x8d0] sm:$0xff]
        %v3533 = vld [vmem:[%s3 + $0x8d8] sm:$0xff]
        %v3534 = vld [vmem:[%s3 + $0x8e0] sm:$0xff]
        %v3535 = vld [vmem:[%s3 + $0x8e8] sm:$0xff]
        %v3536 = vld [vmem:[%s3 + $0x8f0] sm:$0xff]
        %v3537 = vld [vmem:[%s3 + $0x8f8] sm:$0xff]
        %v3538 = vld [vmem:[%s3 + $0x900] sm:$0xff]
        %v3539 = vld [vmem:[%s3 + $0x908] sm:$0xff]
        %v3540 = vld [vmem:[%s3 + $0x910] sm:$0xff]
        %v3541 = vld [vmem:[%s3 + $0x918] sm:$0xff]
        %v3542 = vld [vmem:[%s3 + $0x920] sm:$0xff]
        %v3543 = vld [vmem:[%s3 + $0x928] sm:$0xff]
        %v3544 = vld [vmem:[%s3 + $0x930] sm:$0xff]
        %v3545 = vld [vmem:[%s3 + $0x938] sm:$0xff]
        %v3546 = vld [vmem:[%s3 + $0x940] sm:$0xff]
        %v3547 = vld [vmem:[%s3 + $0x948] sm:$0xff]
        %v3548 = vld [vmem:[%s3 + $0x950] sm:$0xff]
        %v3549 = vld [vmem:[%s3 + $0x958] sm:$0xff]
        %v3550 = vld [vmem:[%s3 + $0x960] sm:$0xff]
        %v3551 = vld [vmem:[%s3 + $0x968] sm:$0xff]
        %v3552 = vld [vmem:[%s3 + $0x970] sm:$0xff]
        %v3553 = vld [vmem:[%s3 + $0x978] sm:$0xff]
        %v3554 = vld [vmem:[%s3 + $0x980] sm:$0xff]
        %v3555 = vld [vmem:[%s3 + $0x988] sm:$0xff]
        %v3556 = vld [vmem:[%s3 + $0x990] sm:$0xff]
        %v3557 = vld [vmem:[%s3 + $0x998] sm:$0xff]
        %v3558 = vld [vmem:[%s3 + $0x9a0] sm:$0xff]
        %v3559 = vld [vmem:[%s3 + $0x9a8] sm:$0xff]
        %v3560 = vld [vmem:[%s3 + $0x9b0] sm:$0xff]
        %v3561 = vld [vmem:[%s3 + $0x9b8] sm:$0xff]
        %v3562 = vld [vmem:[%s3 + $0x9c0] sm:$0xff]
        %v3563 = vld [vmem:[%s3 + $0x9c8] sm:$0xff]
        %v3564 = vld [vmem:[%s3 + $0x9d0] sm:$0xff]
        %v3565 = vld [vmem:[%s3 + $0x9d8] sm:$0xff]
        %v3566 = vld [vmem:[%s3 + $0x9e0] sm:$0xff]
        %v3567 = vld [vmem:[%s3 + $0x9e8] sm:$0xff]
        %v3568 = vld [vmem:[%s3 + $0x9f0] sm:$0xff]
        %v3569 = vld [vmem:[%s3 + $0x9f8] sm:$0xff]
        %v3570 = vld [vmem:[%s3 + $0xa00] sm:$0xff]
        %v3571 = vld [vmem:[%s3 + $0xa08] sm:$0xff]
        %v3572 = vld [vmem:[%s3 + $0xa10] sm:$0xff]
        %v3573 = vld [vmem:[%s3 + $0xa18] sm:$0xff]
        %v3574 = vld [vmem:[%s3 + $0xa20] sm:$0xff]
        %v3575 = vld [vmem:[%s3 + $0xa28] sm:$0xff]
        %v3576 = vld [vmem:[%s3 + $0xa30] sm:$0xff]
        %v3577 = vld [vmem:[%s3 + $0xa38] sm:$0xff]
        %v3578 = vld [vmem:[%s3 + $0xa40] sm:$0xff]
        %v3579 = vld [vmem:[%s3 + $0xa48] sm:$0xff]
        %v3580 = vld [vmem:[%s3 + $0xa50] sm:$0xff]
        %v3581 = vld [vmem:[%s3 + $0xa58] sm:$0xff]
        %v3582 = vld [vmem:[%s3 + $0xa60] sm:$0xff]
        %v3583 = vld [vmem:[%s3 + $0xa68] sm:$0xff]
        %v3584 = vld [vmem:[%s3 + $0xa70] sm:$0xff]
        %v3585 = vld [vmem:[%s3 + $0xa78] sm:$0xff]
        %v3586 = vld [vmem:[%s3 + $0xa80] sm:$0xff]
        %v3587 = vld [vmem:[%s3 + $0xa88] sm:$0xff]
        %v3588 = vld [vmem:[%s3 + $0xa90] sm:$0xff]
        %v3589 = vld [vmem:[%s3 + $0xa98] sm:$0xff]
        %v3590 = vld [vmem:[%s3 + $0xaa0] sm:$0xff]
        %v3591 = vld [vmem:[%s3 + $0xaa8] sm:$0xff]
        %v3592 = vld [vmem:[%s3 + $0xab0] sm:$0xff]
        %v3593 = vld [vmem:[%s3 + $0xab8] sm:$0xff]
        %v3594 = vld [vmem:[%s3 + $0xac0] sm:$0xff]
        %v3595 = vld [vmem:[%s3 + $0xac8] sm:$0xff]
        %v3596 = vld [vmem:[%s3 + $0xad0] sm:$0xff]
        %v3597 = vld [vmem:[%s3 + $0xad8] sm:$0xff]
        %v3598 = vld [vmem:[%s3 + $0xae0] sm:$0xff]
        %v3599 = vld [vmem:[%s3 + $0xae8] sm:$0xff]
        %v3600 = vld [vmem:[%s3 + $0xaf0] sm:$0xff]
        %v3601 = vld [vmem:[%s3 + $0xaf8] sm:$0xff]
        %v3602 = vld [vmem:[%s3 + $0xb00] sm:$0xff]
        %v3603 = vld [vmem:[%s3 + $0xb08] sm:$0xff]
        %v3604 = vld [vmem:[%s3 + $0xb10] sm:$0xff]
        %v3605 = vld [vmem:[%s3 + $0xb18] sm:$0xff]
        %v3606 = vld [vmem:[%s3 + $0xb20] sm:$0xff]
        %v3607 = vld [vmem:[%s3 + $0xb28] sm:$0xff]
        %v3608 = vld [vmem:[%s3 + $0xb30] sm:$0xff]
        %v3609 = vld [vmem:[%s3 + $0xb38] sm:$0xff]
        %v3610 = vld [vmem:[%s3 + $0xb40] sm:$0xff]
        %v3611 = vld [vmem:[%s3 + $0xb48] sm:$0xff]
        %v3612 = vld [vmem:[%s3 + $0xb50] sm:$0xff]
        %v3613 = vld [vmem:[%s3 + $0xb58] sm:$0xff]
        %v3614 = vld [vmem:[%s3 + $0xb60] sm:$0xff]
        %v3615 = vld [vmem:[%s3 + $0xb68] sm:$0xff]
        %v3616 = vld [vmem:[%s3 + $0xb70] sm:$0xff]
        %v3617 = vld [vmem:[%s3 + $0xb78] sm:$0xff]
        %v3618 = vld [vmem:[%s3 + $0xb80] sm:$0xff]
        %v3619 = vld [vmem:[%s3 + $0xb88] sm:$0xff]
        %v3620 = vld [vmem:[%s3 + $0xb90] sm:$0xff]
        %v3621 = vld [vmem:[%s3 + $0xb98] sm:$0xff]
        %v3622 = vld [vmem:[%s3 + $0xba0] sm:$0xff]
        %v3623 = vld [vmem:[%s3 + $0xba8] sm:$0xff]
        %v3624 = vld [vmem:[%s3 + $0xbb0] sm:$0xff]
        %v3625 = vld [vmem:[%s3 + $0xbb8] sm:$0xff]
        %v3626 = vld [vmem:[%s3 + $0xbc0] sm:$0xff]
        %v3627 = vld [vmem:[%s3 + $0xbc8] sm:$0xff]
        %v3628 = vld [vmem:[%s3 + $0xbd0] sm:$0xff]
        %v3629 = vld [vmem:[%s3 + $0xbd8] sm:$0xff]
        %v3630 = vld [vmem:[%s3 + $0xbe0] sm:$0xff]
        %v3631 = vld [vmem:[%s3 + $0xbe8] sm:$0xff]
        %v3632 = vld [vmem:[%s3 + $0xbf0] sm:$0xff]
        %v3633 = vld [vmem:[%s3 + $0xbf8] sm:$0xff]
        %v3634 = vld [vmem:[%s3 + $0xc00] sm:$0xff]
        %v3635 = vld [vmem:[%s3 + $0xc08] sm:$0xff]
        %v3636 = vld [vmem:[%s3 + $0xc10] sm:$0xff]
        %v3637 = vld [vmem:[%s3 + $0xc18] sm:$0xff]
        %v3638 = vld [vmem:[%s3 + $0xc20] sm:$0xff]
        %v3639 = vld [vmem:[%s3 + $0xc28] sm:$0xff]
        %v3640 = vld [vmem:[%s3 + $0xc30] sm:$0xff]
        %v3641 = vld [vmem:[%s3 + $0xc38] sm:$0xff]
        %v3642 = vld [vmem:[%s3 + $0xc40] sm:$0xff]
        %v3643 = vld [vmem:[%s3 + $0xc48] sm:$0xff]
        %v3644 = vld [vmem:[%s3 + $0xc50] sm:$0xff]
        %v3645 = vld [vmem:[%s3 + $0xc58] sm:$0xff]
        %v3646 = vld [vmem:[%s3 + $0xc60] sm:$0xff]
        %v3647 = vld [vmem:[%s3 + $0xc68] sm:$0xff]
        %v3648 = vld [vmem:[%s3 + $0xc70] sm:$0xff]
        %v3649 = vld [vmem:[%s3 + $0xc78] sm:$0xff]
        %v3650 = vld [vmem:[%s3 + $0xc80] sm:$0xff]
        %v3651 = vld [vmem:[%s3 + $0xc88] sm:$0xff]
        %v3652 = vld [vmem:[%s3 + $0xc90] sm:$0xff]
        %v3653 = vld [vmem:[%s3 + $0xc98] sm:$0xff]
        %v3654 = vld [vmem:[%s3 + $0xca0] sm:$0xff]
        %v3655 = vld [vmem:[%s3 + $0xca8] sm:$0xff]
        %v3656 = vld [vmem:[%s3 + $0xcb0] sm:$0xff]
        %v3657 = vld [vmem:[%s3 + $0xcb8] sm:$0xff]
        %v3658 = vld [vmem:[%s3 + $0xcc0] sm:$0xff]
        %v3659 = vld [vmem:[%s3 + $0xcc8] sm:$0xff]
        %v3660 = vld [vmem:[%s3 + $0xcd0] sm:$0xff]
        %v3661 = vld [vmem:[%s3 + $0xcd8] sm:$0xff]
        %v3662 = vld [vmem:[%s3 + $0xce0] sm:$0xff]
        %v3663 = vld [vmem:[%s3 + $0xce8] sm:$0xff]
        %v3664 = vld [vmem:[%s3 + $0xcf0] sm:$0xff]
        %v3665 = vld [vmem:[%s3 + $0xcf8] sm:$0xff]
        %v3666 = vld [vmem:[%s3 + $0xd00] sm:$0xff]
        %v3667 = vld [vmem:[%s3 + $0xd08] sm:$0xff]
        %v3668 = vld [vmem:[%s3 + $0xd10] sm:$0xff]
        %v3669 = vld [vmem:[%s3 + $0xd18] sm:$0xff]
        %v3670 = vld [vmem:[%s3 + $0xd20] sm:$0xff]
        %v3671 = vld [vmem:[%s3 + $0xd28] sm:$0xff]
        %v3672 = vld [vmem:[%s3 + $0xd30] sm:$0xff]
        %v3673 = vld [vmem:[%s3 + $0xd38] sm:$0xff]
        %v3674 = vld [vmem:[%s3 + $0xd40] sm:$0xff]
        %v3675 = vld [vmem:[%s3 + $0xd48] sm:$0xff]
        %v3676 = vld [vmem:[%s3 + $0xd50] sm:$0xff]
        %v3677 = vld [vmem:[%s3 + $0xd58] sm:$0xff]
        %v3678 = vld [vmem:[%s3 + $0xd60] sm:$0xff]
        %v3679 = vld [vmem:[%s3 + $0xd68] sm:$0xff]
        %v3680 = vld [vmem:[%s3 + $0xd70] sm:$0xff]
        %v3681 = vld [vmem:[%s3 + $0xd78] sm:$0xff]
        %v3682 = vld [vmem:[%s3 + $0xd80] sm:$0xff]
        %v3683 = vld [vmem:[%s3 + $0xd88] sm:$0xff]
        %v3684 = vld [vmem:[%s3 + $0xd90] sm:$0xff]
        %v3685 = vld [vmem:[%s3 + $0xd98] sm:$0xff]
        %v3686 = vld [vmem:[%s3 + $0xda0] sm:$0xff]
        %v3687 = vld [vmem:[%s3 + $0xda8] sm:$0xff]
        %v3688 = vld [vmem:[%s3 + $0xdb0] sm:$0xff]
        %v3689 = vld [vmem:[%s3 + $0xdb8] sm:$0xff]
        %v3690 = vld [vmem:[%s3 + $0xdc0] sm:$0xff]
        %v3691 = vld [vmem:[%s3 + $0xdc8] sm:$0xff]
        %v3692 = vld [vmem:[%s3 + $0xdd0] sm:$0xff]
        %v3693 = vld [vmem:[%s3 + $0xdd8] sm:$0xff]
        %v3694 = vld [vmem:[%s3 + $0xde0] sm:$0xff]
        %v3695 = vld [vmem:[%s3 + $0xde8] sm:$0xff]
        %v3696 = vld [vmem:[%s3 + $0xdf0] sm:$0xff]
        %v3697 = vld [vmem:[%s3 + $0xdf8] sm:$0xff]
        %v3698 = vld [vmem:[%s3 + $0xe00] sm:$0xf]
        %v3699 = vld [vmem:[%s3 + $0xe08] sm:$0xf]
        %v3700 = vld [vmem:[%s3 + $0xe10] sm:$0xf]
        %v3701 = vld [vmem:[%s3 + $0xe18] sm:$0xf]
        %v3702 = vld [vmem:[%s4] sm:$0xf]
        %v3704 = vperm.slane %v3702, 0
        %v3705 = vperm.slane %v3702, 1
        %v3706 = vperm.slane %v3702, 2
        %v3707 = vperm.slane %v3702, 3
        %vm3712 = vcmask 31744
        %v3713 = vsel %vm3712, %v3208, 0
        %v3715 = vsel %vm3712, %v3212, 0
        %v3717 = vsel %vm3712, %v3216, 0
        %v3719 = vsel %vm3712, %v3220, 0
        %v3722 = vsel %vm3190, %v3698, 0
        %v3725 = vsel %vm3190, %v3699, 0
        %v3728 = vsel %vm3190, %v3700, 0
        %v3731 = vsel %vm3190, %v3701, 0
        %3733 = vmatpush.msra.mxu0 %v3310
        %3734 = vmatpush.msra.mxu0 %v3306
        %3735 = vmatpush.msra.mxu0 %v3302
        %3736 = vmatpush.msra.mxu0 %v3298
        %3737 = vmatpush.msra.mxu0 %v3294
        %3738 = vmatpush.msra.mxu0 %v3290
        %3739 = vmatpush.msra.mxu0 %v3286
        %3740 = vmatpush.msra.mxu0 %v3282
        %3741 = vmatpush.msra.mxu0 %v3278
        %3742 = vmatpush.msra.mxu0 %v3274
        %3743 = vmatpush.msra.mxu0 %v3270
        %3744 = vmatpush.msra.mxu0 %v3266
        %3745 = vmatpush.msra.mxu0 %v3262
        %3746 = vmatpush.msra.mxu0 %v3258
        %3747 = vmatpush.msra.mxu0 %v3254
        %3748 = vmatpush.msra.mxu0 %v3250
        %3749 = vmatmul.f32.gmra.mxu0 %v3040
        %v3750 = vpop.f32.mrf.mxu0
        %v3751 = vadd.f32 %v3704, %v3750
        %3752 = vmatmul.f32.gmra.mxu0 %v3042
        %v3753 = vpop.f32.mrf.mxu0
        %v3754 = vadd.f32 %v3704, %v3753
        %3755 = vmatmul.f32.gmra.mxu0 %v3044
        %v3756 = vpop.f32.mrf.mxu0
        %v3757 = vadd.f32 %v3704, %v3756
        %3758 = vmatmul.f32.gmra.mxu0 %v3046
        %v3759 = vpop.f32.mrf.mxu0
        %v3760 = vadd.f32 %v3704, %v3759
        %3761 = vdwg.mxu0
        %3762 = vmatpush.msra.mxu0 %v3374
        %3763 = vmatpush.msra.mxu0 %v3370
        %3764 = vmatpush.msra.mxu0 %v3366
        %3765 = vmatpush.msra.mxu0 %v3362
        %3766 = vmatpush.msra.mxu0 %v3358
        %3767 = vmatpush.msra.mxu0 %v3354
        %3768 = vmatpush.msra.mxu0 %v3350
        %3769 = vmatpush.msra.mxu0 %v3346
        %3770 = vmatpush.msra.mxu0 %v3342
        %3771 = vmatpush.msra.mxu0 %v3338
        %3772 = vmatpush.msra.mxu0 %v3334
        %3773 = vmatpush.msra.mxu0 %v3330
        %3774 = vmatpush.msra.mxu0 %v3326
        %3775 = vmatpush.msra.mxu0 %v3322
        %3776 = vmatpush.msra.mxu0 %v3318
        %3777 = vmatpush.msra.mxu0 %v3314
        %3778 = vmatmul.f32.gmra.mxu0 %v3234
        %v3779 = vpop.f32.mrf.mxu0
        %v3780 = vadd.f32 %v3751, %v3779
        %3781 = vmatmul.f32.gmra.mxu0 %v3235
        %v3782 = vpop.f32.mrf.mxu0
        %v3783 = vadd.f32 %v3754, %v3782
        %3784 = vmatmul.f32.gmra.mxu0 %v3236
        %v3785 = vpop.f32.mrf.mxu0
        %v3786 = vadd.f32 %v3757, %v3785
        %3787 = vmatmul.f32.gmra.mxu0 %v3237
        %v3788 = vpop.f32.mrf.mxu0
        %v3789 = vadd.f32 %v3760, %v3788
        %3790 = vdwg.mxu0
        %3791 = vmatpush.msra.mxu0 %v3438
        %3792 = vmatpush.msra.mxu0 %v3434
        %3793 = vmatpush.msra.mxu0 %v3430
        %3794 = vmatpush.msra.mxu0 %v3426
        %3795 = vmatpush.msra.mxu0 %v3422
        %3796 = vmatpush.msra.mxu0 %v3418
        %3797 = vmatpush.msra.mxu0 %v3414
        %3798 = vmatpush.msra.mxu0 %v3410
        %3799 = vmatpush.msra.mxu0 %v3406
        %3800 = vmatpush.msra.mxu0 %v3402
        %3801 = vmatpush.msra.mxu0 %v3398
        %3802 = vmatpush.msra.mxu0 %v3394
        %3803 = vmatpush.msra.mxu0 %v3390
        %3804 = vmatpush.msra.mxu0 %v3386
        %3805 = vmatpush.msra.mxu0 %v3382
        %3806 = vmatpush.msra.mxu0 %v3378
        %3807 = vmatmul.f32.gmra.mxu0 %v3238
        %v3808 = vpop.f32.mrf.mxu0
        %v3809 = vadd.f32 %v3780, %v3808
        %3810 = vmatmul.f32.gmra.mxu0 %v3239
        %v3811 = vpop.f32.mrf.mxu0
        %v3812 = vadd.f32 %v3783, %v3811
        %3813 = vmatmul.f32.gmra.mxu0 %v3240
        %v3814 = vpop.f32.mrf.mxu0
        %v3815 = vadd.f32 %v3786, %v3814
        %3816 = vmatmul.f32.gmra.mxu0 %v3241
        %v3817 = vpop.f32.mrf.mxu0
        %v3818 = vadd.f32 %v3789, %v3817
        %3819 = vdwg.mxu0
        %3820 = vmatpush.msra.mxu0 %v3502
        %3821 = vmatpush.msra.mxu0 %v3498
        %3822 = vmatpush.msra.mxu0 %v3494
        %3823 = vmatpush.msra.mxu0 %v3490
        %3824 = vmatpush.msra.mxu0 %v3486
        %3825 = vmatpush.msra.mxu0 %v3482
        %3826 = vmatpush.msra.mxu0 %v3478
        %3827 = vmatpush.msra.mxu0 %v3474
        %3828 = vmatpush.msra.mxu0 %v3470
        %3829 = vmatpush.msra.mxu0 %v3466
        %3830 = vmatpush.msra.mxu0 %v3462
        %3831 = vmatpush.msra.mxu0 %v3458
        %3832 = vmatpush.msra.mxu0 %v3454
        %3833 = vmatpush.msra.mxu0 %v3450
        %3834 = vmatpush.msra.mxu0 %v3446
        %3835 = vmatpush.msra.mxu0 %v3442
        %3836 = vmatmul.f32.gmra.mxu0 %v3130
        %v3837 = vpop.f32.mrf.mxu0
        %v3838 = vadd.f32 %v3809, %v3837
        %3839 = vmatmul.f32.gmra.mxu0 %v3131
        %v3840 = vpop.f32.mrf.mxu0
        %v3841 = vadd.f32 %v3812, %v3840
        %3842 = vmatmul.f32.gmra.mxu0 %v3132
        %v3843 = vpop.f32.mrf.mxu0
        %v3844 = vadd.f32 %v3815, %v3843
        %3845 = vmatmul.f32.gmra.mxu0 %v3133
        %v3846 = vpop.f32.mrf.mxu0
        %v3847 = vadd.f32 %v3818, %v3846
        %3848 = vdwg.mxu0
        %3849 = vmatpush.msra.mxu0 %v3566
        %3850 = vmatpush.msra.mxu0 %v3562
        %3851 = vmatpush.msra.mxu0 %v3558
        %3852 = vmatpush.msra.mxu0 %v3554
        %3853 = vmatpush.msra.mxu0 %v3550
        %3854 = vmatpush.msra.mxu0 %v3546
        %3855 = vmatpush.msra.mxu0 %v3542
        %3856 = vmatpush.msra.mxu0 %v3538
        %3857 = vmatpush.msra.mxu0 %v3534
        %3858 = vmatpush.msra.mxu0 %v3530
        %3859 = vmatpush.msra.mxu0 %v3526
        %3860 = vmatpush.msra.mxu0 %v3522
        %3861 = vmatpush.msra.mxu0 %v3518
        %3862 = vmatpush.msra.mxu0 %v3514
        %3863 = vmatpush.msra.mxu0 %v3510
        %3864 = vmatpush.msra.mxu0 %v3506
        %3865 = vmatmul.f32.gmra.mxu0 %v3242
        %v3866 = vpop.f32.mrf.mxu0
        %v3867 = vadd.f32 %v3838, %v3866
        %3868 = vmatmul.f32.gmra.mxu0 %v3243
        %v3869 = vpop.f32.mrf.mxu0
        %v3870 = vadd.f32 %v3841, %v3869
        %3871 = vmatmul.f32.gmra.mxu0 %v3244
        %v3872 = vpop.f32.mrf.mxu0
        %v3873 = vadd.f32 %v3844, %v3872
        %3874 = vmatmul.f32.gmra.mxu0 %v3245
        %v3875 = vpop.f32.mrf.mxu0
        %v3876 = vadd.f32 %v3847, %v3875
        %3877 = vdwg.mxu0
        %3878 = vmatpush.msra.mxu0 %v3630
        %3879 = vmatpush.msra.mxu0 %v3626
        %3880 = vmatpush.msra.mxu0 %v3622
        %3881 = vmatpush.msra.mxu0 %v3618
        %3882 = vmatpush.msra.mxu0 %v3614
        %3883 = vmatpush.msra.mxu0 %v3610
        %3884 = vmatpush.msra.mxu0 %v3606
        %3885 = vmatpush.msra.mxu0 %v3602
        %3886 = vmatpush.msra.mxu0 %v3598
        %3887 = vmatpush.msra.mxu0 %v3594
        %3888 = vmatpush.msra.mxu0 %v3590
        %3889 = vmatpush.msra.mxu0 %v3586
        %3890 = vmatpush.msra.mxu0 %v3582
        %3891 = vmatpush.msra.mxu0 %v3578
        %3892 = vmatpush.msra.mxu0 %v3574
        %3893 = vmatpush.msra.mxu0 %v3570
        %3894 = vmatmul.f32.gmra.mxu0 %v3246
        %v3895 = vpop.f32.mrf.mxu0
        %v3896 = vadd.f32 %v3867, %v3895
        %3897 = vmatmul.f32.gmra.mxu0 %v3247
        %v3898 = vpop.f32.mrf.mxu0
        %v3899 = vadd.f32 %v3870, %v3898
        %3900 = vmatmul.f32.gmra.mxu0 %v3248
        %v3901 = vpop.f32.mrf.mxu0
        %v3902 = vadd.f32 %v3873, %v3901
        %3903 = vmatmul.f32.gmra.mxu0 %v3249
        %v3904 = vpop.f32.mrf.mxu0
        %v3905 = vadd.f32 %v3876, %v3904
        %3906 = vdwg.mxu0
        %3907 = vmatpush.msra.mxu0 %v3694
        %3908 = vmatpush.msra.mxu0 %v3690
        %3909 = vmatpush.msra.mxu0 %v3686
        %3910 = vmatpush.msra.mxu0 %v3682
        %3911 = vmatpush.msra.mxu0 %v3678
        %3912 = vmatpush.msra.mxu0 %v3674
        %3913 = vmatpush.msra.mxu0 %v3670
        %3914 = vmatpush.msra.mxu0 %v3666
        %3915 = vmatpush.msra.mxu0 %v3662
        %3916 = vmatpush.msra.mxu0 %v3658
        %3917 = vmatpush.msra.mxu0 %v3654
        %3918 = vmatpush.msra.mxu0 %v3650
        %3919 = vmatpush.msra.mxu0 %v3646
        %3920 = vmatpush.msra.mxu0 %v3642
        %3921 = vmatpush.msra.mxu0 %v3638
        %3922 = vmatpush.msra.mxu0 %v3634
        %3923 = vmatmul.f32.gmra.mxu0 %v3222
        %v3924 = vpop.f32.mrf.mxu0
        %v3925 = vadd.f32 %v3896, %v3924
        %3926 = vmatmul.f32.gmra.mxu0 %v3223
        %v3927 = vpop.f32.mrf.mxu0
        %v3928 = vadd.f32 %v3899, %v3927
        %3929 = vmatmul.f32.gmra.mxu0 %v3224
        %v3930 = vpop.f32.mrf.mxu0
        %v3931 = vadd.f32 %v3902, %v3930
        %3932 = vmatmul.f32.gmra.mxu0 %v3225
        %v3933 = vpop.f32.mrf.mxu0
        %v3934 = vadd.f32 %v3905, %v3933
        %3935 = vdwg.mxu0
        %3936 = vmatpush.msra.mxu0 0.0
        %3937 = vmatpush.msra.mxu0 0.0
        %3938 = vmatpush.msra.mxu0 0.0
        %3939 = vmatpush.msra.mxu0 0.0
        %3940 = vmatpush.msra.mxu0 0.0
        %3941 = vmatpush.msra.mxu0 0.0
        %3942 = vmatpush.msra.mxu0 0.0
        %3943 = vmatpush.msra.mxu0 0.0
        %3944 = vmatpush.msra.mxu0 0.0
        %3945 = vmatpush.msra.mxu0 0.0
        %3946 = vmatpush.msra.mxu0 0.0
        %3947 = vmatpush.msra.mxu0 0.0
        %3948 = vmatpush.msra.mxu0 0.0
        %3949 = vmatpush.msra.mxu0 0.0
        %3950 = vmatpush.msra.mxu0 0.0
        %3951 = vmatpush.msra.mxu0 %v3722
        %3952 = vmatmul.f32.gmra.mxu0 %v3713
        %v3953 = vpop.f32.mrf.mxu0
        %v3954 = vadd.f32 %v3925, %v3953
        %3955 = vmatmul.f32.gmra.mxu0 %v3715
        %v3956 = vpop.f32.mrf.mxu0
        %v3957 = vadd.f32 %v3928, %v3956
        %3958 = vmatmul.f32.gmra.mxu0 %v3717
        %v3959 = vpop.f32.mrf.mxu0
        %v3960 = vadd.f32 %v3931, %v3959
        %3961 = vmatmul.f32.gmra.mxu0 %v3719
        %v3962 = vpop.f32.mrf.mxu0
        %v3963 = vadd.f32 %v3934, %v3962
        %3964 = vdwg.mxu0
        %3965 = vmatpush.msra.mxu0 %v3311
        %3966 = vmatpush.msra.mxu0 %v3307
        %3967 = vmatpush.msra.mxu0 %v3303
        %3968 = vmatpush.msra.mxu0 %v3299
        %3969 = vmatpush.msra.mxu0 %v3295
        %3970 = vmatpush.msra.mxu0 %v3291
        %3971 = vmatpush.msra.mxu0 %v3287
        %3972 = vmatpush.msra.mxu0 %v3283
        %3973 = vmatpush.msra.mxu0 %v3279
        %3974 = vmatpush.msra.mxu0 %v3275
        %3975 = vmatpush.msra.mxu0 %v3271
        %3976 = vmatpush.msra.mxu0 %v3267
        %3977 = vmatpush.msra.mxu0 %v3263
        %3978 = vmatpush.msra.mxu0 %v3259
        %3979 = vmatpush.msra.mxu0 %v3255
        %3980 = vmatpush.msra.mxu0 %v3251
        %3981 = vmatmul.f32.gmra.mxu0 %v3040
        %v3982 = vpop.f32.mrf.mxu0
        %v3983 = vadd.f32 %v3705, %v3982
        %3984 = vmatmul.f32.gmra.mxu0 %v3042
        %v3985 = vpop.f32.mrf.mxu0
        %v3986 = vadd.f32 %v3705, %v3985
        %3987 = vmatmul.f32.gmra.mxu0 %v3044
        %v3988 = vpop.f32.mrf.mxu0
        %v3989 = vadd.f32 %v3705, %v3988
        %3990 = vmatmul.f32.gmra.mxu0 %v3046
        %v3991 = vpop.f32.mrf.mxu0
        %v3992 = vadd.f32 %v3705, %v3991
        %3993 = vdwg.mxu0
        %3994 = vmatpush.msra.mxu0 %v3375
        %3995 = vmatpush.msra.mxu0 %v3371
        %3996 = vmatpush.msra.mxu0 %v3367
        %3997 = vmatpush.msra.mxu0 %v3363
        %3998 = vmatpush.msra.mxu0 %v3359
        %3999 = vmatpush.msra.mxu0 %v3355
        %4000 = vmatpush.msra.mxu0 %v3351
        %4001 = vmatpush.msra.mxu0 %v3347
        %4002 = vmatpush.msra.mxu0 %v3343
        %4003 = vmatpush.msra.mxu0 %v3339
        %4004 = vmatpush.msra.mxu0 %v3335
        %4005 = vmatpush.msra.mxu0 %v3331
        %4006 = vmatpush.msra.mxu0 %v3327
        %4007 = vmatpush.msra.mxu0 %v3323
        %4008 = vmatpush.msra.mxu0 %v3319
        %4009 = vmatpush.msra.mxu0 %v3315
        %4010 = vmatmul.f32.gmra.mxu0 %v3234
        %v4011 = vpop.f32.mrf.mxu0
        %v4012 = vadd.f32 %v3983, %v4011
        %4013 = vmatmul.f32.gmra.mxu0 %v3235
        %v4014 = vpop.f32.mrf.mxu0
        %v4015 = vadd.f32 %v3986, %v4014
        %4016 = vmatmul.f32.gmra.mxu0 %v3236
        %v4017 = vpop.f32.mrf.mxu0
        %v4018 = vadd.f32 %v3989, %v4017
        %4019 = vmatmul.f32.gmra.mxu0 %v3237
        %v4020 = vpop.f32.mrf.mxu0
        %v4021 = vadd.f32 %v3992, %v4020
        %4022 = vdwg.mxu0
        %4023 = vmatpush.msra.mxu0 %v3439
        %4024 = vmatpush.msra.mxu0 %v3435
        %4025 = vmatpush.msra.mxu0 %v3431
        %4026 = vmatpush.msra.mxu0 %v3427
        %4027 = vmatpush.msra.mxu0 %v3423
        %4028 = vmatpush.msra.mxu0 %v3419
        %4029 = vmatpush.msra.mxu0 %v3415
        %4030 = vmatpush.msra.mxu0 %v3411
        %4031 = vmatpush.msra.mxu0 %v3407
        %4032 = vmatpush.msra.mxu0 %v3403
        %4033 = vmatpush.msra.mxu0 %v3399
        %4034 = vmatpush.msra.mxu0 %v3395
        %4035 = vmatpush.msra.mxu0 %v3391
        %4036 = vmatpush.msra.mxu0 %v3387
        %4037 = vmatpush.msra.mxu0 %v3383
        %4038 = vmatpush.msra.mxu0 %v3379
        %4039 = vmatmul.f32.gmra.mxu0 %v3238
        %v4040 = vpop.f32.mrf.mxu0
        %v4041 = vadd.f32 %v4012, %v4040
        %4042 = vmatmul.f32.gmra.mxu0 %v3239
        %v4043 = vpop.f32.mrf.mxu0
        %v4044 = vadd.f32 %v4015, %v4043
        %4045 = vmatmul.f32.gmra.mxu0 %v3240
        %v4046 = vpop.f32.mrf.mxu0
        %v4047 = vadd.f32 %v4018, %v4046
        %4048 = vmatmul.f32.gmra.mxu0 %v3241
        %v4049 = vpop.f32.mrf.mxu0
        %v4050 = vadd.f32 %v4021, %v4049
        %4051 = vdwg.mxu0
        %4052 = vmatpush.msra.mxu0 %v3503
        %4053 = vmatpush.msra.mxu0 %v3499
        %4054 = vmatpush.msra.mxu0 %v3495
        %4055 = vmatpush.msra.mxu0 %v3491
        %4056 = vmatpush.msra.mxu0 %v3487
        %4057 = vmatpush.msra.mxu0 %v3483
        %4058 = vmatpush.msra.mxu0 %v3479
        %4059 = vmatpush.msra.mxu0 %v3475
        %4060 = vmatpush.msra.mxu0 %v3471
        %4061 = vmatpush.msra.mxu0 %v3467
        %4062 = vmatpush.msra.mxu0 %v3463
        %4063 = vmatpush.msra.mxu0 %v3459
        %4064 = vmatpush.msra.mxu0 %v3455
        %4065 = vmatpush.msra.mxu0 %v3451
        %4066 = vmatpush.msra.mxu0 %v3447
        %4067 = vmatpush.msra.mxu0 %v3443
        %4068 = vmatmul.f32.gmra.mxu0 %v3130
        %v4069 = vpop.f32.mrf.mxu0
        %v4070 = vadd.f32 %v4041, %v4069
        %4071 = vmatmul.f32.gmra.mxu0 %v3131
        %v4072 = vpop.f32.mrf.mxu0
        %v4073 = vadd.f32 %v4044, %v4072
        %4074 = vmatmul.f32.gmra.mxu0 %v3132
        %v4075 = vpop.f32.mrf.mxu0
        %v4076 = vadd.f32 %v4047, %v4075
        %4077 = vmatmul.f32.gmra.mxu0 %v3133
        %v4078 = vpop.f32.mrf.mxu0
        %v4079 = vadd.f32 %v4050, %v4078
        %4080 = vdwg.mxu0
        %4081 = vmatpush.msra.mxu0 %v3567
        %4082 = vmatpush.msra.mxu0 %v3563
        %4083 = vmatpush.msra.mxu0 %v3559
        %4084 = vmatpush.msra.mxu0 %v3555
        %4085 = vmatpush.msra.mxu0 %v3551
        %4086 = vmatpush.msra.mxu0 %v3547
        %4087 = vmatpush.msra.mxu0 %v3543
        %4088 = vmatpush.msra.mxu0 %v3539
        %4089 = vmatpush.msra.mxu0 %v3535
        %4090 = vmatpush.msra.mxu0 %v3531
        %4091 = vmatpush.msra.mxu0 %v3527
        %4092 = vmatpush.msra.mxu0 %v3523
        %4093 = vmatpush.msra.mxu0 %v3519
        %4094 = vmatpush.msra.mxu0 %v3515
        %4095 = vmatpush.msra.mxu0 %v3511
        %4096 = vmatpush.msra.mxu0 %v3507
        %4097 = vmatmul.f32.gmra.mxu0 %v3242
        %v4098 = vpop.f32.mrf.mxu0
        %v4099 = vadd.f32 %v4070, %v4098
        %4100 = vmatmul.f32.gmra.mxu0 %v3243
        %v4101 = vpop.f32.mrf.mxu0
        %v4102 = vadd.f32 %v4073, %v4101
        %4103 = vmatmul.f32.gmra.mxu0 %v3244
        %v4104 = vpop.f32.mrf.mxu0
        %v4105 = vadd.f32 %v4076, %v4104
        %4106 = vmatmul.f32.gmra.mxu0 %v3245
        %v4107 = vpop.f32.mrf.mxu0
        %v4108 = vadd.f32 %v4079, %v4107
        %4109 = vdwg.mxu0
        %4110 = vmatpush.msra.mxu0 %v3631
        %4111 = vmatpush.msra.mxu0 %v3627
        %4112 = vmatpush.msra.mxu0 %v3623
        %4113 = vmatpush.msra.mxu0 %v3619
        %4114 = vmatpush.msra.mxu0 %v3615
        %4115 = vmatpush.msra.mxu0 %v3611
        %4116 = vmatpush.msra.mxu0 %v3607
        %4117 = vmatpush.msra.mxu0 %v3603
        %4118 = vmatpush.msra.mxu0 %v3599
        %4119 = vmatpush.msra.mxu0 %v3595
        %4120 = vmatpush.msra.mxu0 %v3591
        %4121 = vmatpush.msra.mxu0 %v3587
        %4122 = vmatpush.msra.mxu0 %v3583
        %4123 = vmatpush.msra.mxu0 %v3579
        %4124 = vmatpush.msra.mxu0 %v3575
        %4125 = vmatpush.msra.mxu0 %v3571
        %4126 = vmatmul.f32.gmra.mxu0 %v3246
        %v4127 = vpop.f32.mrf.mxu0
        %v4128 = vadd.f32 %v4099, %v4127
        %4129 = vmatmul.f32.gmra.mxu0 %v3247
        %v4130 = vpop.f32.mrf.mxu0
        %v4131 = vadd.f32 %v4102, %v4130
        %4132 = vmatmul.f32.gmra.mxu0 %v3248
        %v4133 = vpop.f32.mrf.mxu0
        %v4134 = vadd.f32 %v4105, %v4133
        %4135 = vmatmul.f32.gmra.mxu0 %v3249
        %v4136 = vpop.f32.mrf.mxu0
        %v4137 = vadd.f32 %v4108, %v4136
        %4138 = vdwg.mxu0
        %4139 = vmatpush.msra.mxu0 %v3695
        %4140 = vmatpush.msra.mxu0 %v3691
        %4141 = vmatpush.msra.mxu0 %v3687
        %4142 = vmatpush.msra.mxu0 %v3683
        %4143 = vmatpush.msra.mxu0 %v3679
        %4144 = vmatpush.msra.mxu0 %v3675
        %4145 = vmatpush.msra.mxu0 %v3671
        %4146 = vmatpush.msra.mxu0 %v3667
        %4147 = vmatpush.msra.mxu0 %v3663
        %4148 = vmatpush.msra.mxu0 %v3659
        %4149 = vmatpush.msra.mxu0 %v3655
        %4150 = vmatpush.msra.mxu0 %v3651
        %4151 = vmatpush.msra.mxu0 %v3647
        %4152 = vmatpush.msra.mxu0 %v3643
        %4153 = vmatpush.msra.mxu0 %v3639
        %4154 = vmatpush.msra.mxu0 %v3635
        %4155 = vmatmul.f32.gmra.mxu0 %v3222
        %v4156 = vpop.f32.mrf.mxu0
        %v4157 = vadd.f32 %v4128, %v4156
        %4158 = vmatmul.f32.gmra.mxu0 %v3223
        %v4159 = vpop.f32.mrf.mxu0
        %v4160 = vadd.f32 %v4131, %v4159
        %4161 = vmatmul.f32.gmra.mxu0 %v3224
        %v4162 = vpop.f32.mrf.mxu0
        %v4163 = vadd.f32 %v4134, %v4162
        %4164 = vmatmul.f32.gmra.mxu0 %v3225
        %v4165 = vpop.f32.mrf.mxu0
        %v4166 = vadd.f32 %v4137, %v4165
        %4167 = vdwg.mxu0
        %4168 = vmatpush.msra.mxu0 0.0
        %4169 = vmatpush.msra.mxu0 0.0
        %4170 = vmatpush.msra.mxu0 0.0
        %4171 = vmatpush.msra.mxu0 0.0
        %4172 = vmatpush.msra.mxu0 0.0
        %4173 = vmatpush.msra.mxu0 0.0
        %4174 = vmatpush.msra.mxu0 0.0
        %4175 = vmatpush.msra.mxu0 0.0
        %4176 = vmatpush.msra.mxu0 0.0
        %4177 = vmatpush.msra.mxu0 0.0
        %4178 = vmatpush.msra.mxu0 0.0
        %4179 = vmatpush.msra.mxu0 0.0
        %4180 = vmatpush.msra.mxu0 0.0
        %4181 = vmatpush.msra.mxu0 0.0
        %4182 = vmatpush.msra.mxu0 0.0
        %4183 = vmatpush.msra.mxu0 %v3725
        %4184 = vmatmul.f32.gmra.mxu0 %v3713
        %v4185 = vpop.f32.mrf.mxu0
        %v4186 = vadd.f32 %v4157, %v4185
        %4187 = vmatmul.f32.gmra.mxu0 %v3715
        %v4188 = vpop.f32.mrf.mxu0
        %v4189 = vadd.f32 %v4160, %v4188
        %4190 = vmatmul.f32.gmra.mxu0 %v3717
        %v4191 = vpop.f32.mrf.mxu0
        %v4192 = vadd.f32 %v4163, %v4191
        %4193 = vmatmul.f32.gmra.mxu0 %v3719
        %v4194 = vpop.f32.mrf.mxu0
        %v4195 = vadd.f32 %v4166, %v4194
        %4196 = vdwg.mxu0
        %4197 = vmatpush.msra.mxu0 %v3312
        %4198 = vmatpush.msra.mxu0 %v3308
        %4199 = vmatpush.msra.mxu0 %v3304
        %4200 = vmatpush.msra.mxu0 %v3300
        %4201 = vmatpush.msra.mxu0 %v3296
        %4202 = vmatpush.msra.mxu0 %v3292
        %4203 = vmatpush.msra.mxu0 %v3288
        %4204 = vmatpush.msra.mxu0 %v3284
        %4205 = vmatpush.msra.mxu0 %v3280
        %4206 = vmatpush.msra.mxu0 %v3276
        %4207 = vmatpush.msra.mxu0 %v3272
        %4208 = vmatpush.msra.mxu0 %v3268
        %4209 = vmatpush.msra.mxu0 %v3264
        %4210 = vmatpush.msra.mxu0 %v3260
        %4211 = vmatpush.msra.mxu0 %v3256
        %4212 = vmatpush.msra.mxu0 %v3252
        %4213 = vmatmul.f32.gmra.mxu0 %v3040
        %v4214 = vpop.f32.mrf.mxu0
        %v4215 = vadd.f32 %v3706, %v4214
        %4216 = vmatmul.f32.gmra.mxu0 %v3042
        %v4217 = vpop.f32.mrf.mxu0
        %v4218 = vadd.f32 %v3706, %v4217
        %4219 = vmatmul.f32.gmra.mxu0 %v3044
        %v4220 = vpop.f32.mrf.mxu0
        %v4221 = vadd.f32 %v3706, %v4220
        %4222 = vmatmul.f32.gmra.mxu0 %v3046
        %v4223 = vpop.f32.mrf.mxu0
        %v4224 = vadd.f32 %v3706, %v4223
        %4225 = vdwg.mxu0
        %4226 = vmatpush.msra.mxu0 %v3376
        %4227 = vmatpush.msra.mxu0 %v3372
        %4228 = vmatpush.msra.mxu0 %v3368
        %4229 = vmatpush.msra.mxu0 %v3364
        %4230 = vmatpush.msra.mxu0 %v3360
        %4231 = vmatpush.msra.mxu0 %v3356
        %4232 = vmatpush.msra.mxu0 %v3352
        %4233 = vmatpush.msra.mxu0 %v3348
        %4234 = vmatpush.msra.mxu0 %v3344
        %4235 = vmatpush.msra.mxu0 %v3340
        %4236 = vmatpush.msra.mxu0 %v3336
        %4237 = vmatpush.msra.mxu0 %v3332
        %4238 = vmatpush.msra.mxu0 %v3328
        %4239 = vmatpush.msra.mxu0 %v3324
        %4240 = vmatpush.msra.mxu0 %v3320
        %4241 = vmatpush.msra.mxu0 %v3316
        %4242 = vmatmul.f32.gmra.mxu0 %v3234
        %v4243 = vpop.f32.mrf.mxu0
        %v4244 = vadd.f32 %v4215, %v4243
        %4245 = vmatmul.f32.gmra.mxu0 %v3235
        %v4246 = vpop.f32.mrf.mxu0
        %v4247 = vadd.f32 %v4218, %v4246
        %4248 = vmatmul.f32.gmra.mxu0 %v3236
        %v4249 = vpop.f32.mrf.mxu0
        %v4250 = vadd.f32 %v4221, %v4249
        %4251 = vmatmul.f32.gmra.mxu0 %v3237
        %v4252 = vpop.f32.mrf.mxu0
        %v4253 = vadd.f32 %v4224, %v4252
        %4254 = vdwg.mxu0
        %4255 = vmatpush.msra.mxu0 %v3440
        %4256 = vmatpush.msra.mxu0 %v3436
        %4257 = vmatpush.msra.mxu0 %v3432
        %4258 = vmatpush.msra.mxu0 %v3428
        %4259 = vmatpush.msra.mxu0 %v3424
        %4260 = vmatpush.msra.mxu0 %v3420
        %4261 = vmatpush.msra.mxu0 %v3416
        %4262 = vmatpush.msra.mxu0 %v3412
        %4263 = vmatpush.msra.mxu0 %v3408
        %4264 = vmatpush.msra.mxu0 %v3404
        %4265 = vmatpush.msra.mxu0 %v3400
        %4266 = vmatpush.msra.mxu0 %v3396
        %4267 = vmatpush.msra.mxu0 %v3392
        %4268 = vmatpush.msra.mxu0 %v3388
        %4269 = vmatpush.msra.mxu0 %v3384
        %4270 = vmatpush.msra.mxu0 %v3380
        %4271 = vmatmul.f32.gmra.mxu0 %v3238
        %v4272 = vpop.f32.mrf.mxu0
        %v4273 = vadd.f32 %v4244, %v4272
        %4274 = vmatmul.f32.gmra.mxu0 %v3239
        %v4275 = vpop.f32.mrf.mxu0
        %v4276 = vadd.f32 %v4247, %v4275
        %4277 = vmatmul.f32.gmra.mxu0 %v3240
        %v4278 = vpop.f32.mrf.mxu0
        %v4279 = vadd.f32 %v4250, %v4278
        %4280 = vmatmul.f32.gmra.mxu0 %v3241
        %v4281 = vpop.f32.mrf.mxu0
        %v4282 = vadd.f32 %v4253, %v4281
        %4283 = vdwg.mxu0
        %4284 = vmatpush.msra.mxu0 %v3504
        %4285 = vmatpush.msra.mxu0 %v3500
        %4286 = vmatpush.msra.mxu0 %v3496
        %4287 = vmatpush.msra.mxu0 %v3492
        %4288 = vmatpush.msra.mxu0 %v3488
        %4289 = vmatpush.msra.mxu0 %v3484
        %4290 = vmatpush.msra.mxu0 %v3480
        %4291 = vmatpush.msra.mxu0 %v3476
        %4292 = vmatpush.msra.mxu0 %v3472
        %4293 = vmatpush.msra.mxu0 %v3468
        %4294 = vmatpush.msra.mxu0 %v3464
        %4295 = vmatpush.msra.mxu0 %v3460
        %4296 = vmatpush.msra.mxu0 %v3456
        %4297 = vmatpush.msra.mxu0 %v3452
        %4298 = vmatpush.msra.mxu0 %v3448
        %4299 = vmatpush.msra.mxu0 %v3444
        %4300 = vmatmul.f32.gmra.mxu0 %v3130
        %v4301 = vpop.f32.mrf.mxu0
        %v4302 = vadd.f32 %v4273, %v4301
        %4303 = vmatmul.f32.gmra.mxu0 %v3131
        %v4304 = vpop.f32.mrf.mxu0
        %v4305 = vadd.f32 %v4276, %v4304
        %4306 = vmatmul.f32.gmra.mxu0 %v3132
        %v4307 = vpop.f32.mrf.mxu0
        %v4308 = vadd.f32 %v4279, %v4307
        %4309 = vmatmul.f32.gmra.mxu0 %v3133
        %v4310 = vpop.f32.mrf.mxu0
        %v4311 = vadd.f32 %v4282, %v4310
        %4312 = vdwg.mxu0
        %4313 = vmatpush.msra.mxu0 %v3568
        %4314 = vmatpush.msra.mxu0 %v3564
        %4315 = vmatpush.msra.mxu0 %v3560
        %4316 = vmatpush.msra.mxu0 %v3556
        %4317 = vmatpush.msra.mxu0 %v3552
        %4318 = vmatpush.msra.mxu0 %v3548
        %4319 = vmatpush.msra.mxu0 %v3544
        %4320 = vmatpush.msra.mxu0 %v3540
        %4321 = vmatpush.msra.mxu0 %v3536
        %4322 = vmatpush.msra.mxu0 %v3532
        %4323 = vmatpush.msra.mxu0 %v3528
        %4324 = vmatpush.msra.mxu0 %v3524
        %4325 = vmatpush.msra.mxu0 %v3520
        %4326 = vmatpush.msra.mxu0 %v3516
        %4327 = vmatpush.msra.mxu0 %v3512
        %4328 = vmatpush.msra.mxu0 %v3508
        %4329 = vmatmul.f32.gmra.mxu0 %v3242
        %v4330 = vpop.f32.mrf.mxu0
        %v4331 = vadd.f32 %v4302, %v4330
        %4332 = vmatmul.f32.gmra.mxu0 %v3243
        %v4333 = vpop.f32.mrf.mxu0
        %v4334 = vadd.f32 %v4305, %v4333
        %4335 = vmatmul.f32.gmra.mxu0 %v3244
        %v4336 = vpop.f32.mrf.mxu0
        %v4337 = vadd.f32 %v4308, %v4336
        %4338 = vmatmul.f32.gmra.mxu0 %v3245
        %v4339 = vpop.f32.mrf.mxu0
        %v4340 = vadd.f32 %v4311, %v4339
        %4341 = vdwg.mxu0
        %4342 = vmatpush.msra.mxu0 %v3632
        %4343 = vmatpush.msra.mxu0 %v3628
        %4344 = vmatpush.msra.mxu0 %v3624
        %4345 = vmatpush.msra.mxu0 %v3620
        %4346 = vmatpush.msra.mxu0 %v3616
        %4347 = vmatpush.msra.mxu0 %v3612
        %4348 = vmatpush.msra.mxu0 %v3608
        %4349 = vmatpush.msra.mxu0 %v3604
        %4350 = vmatpush.msra.mxu0 %v3600
        %4351 = vmatpush.msra.mxu0 %v3596
        %4352 = vmatpush.msra.mxu0 %v3592
        %4353 = vmatpush.msra.mxu0 %v3588
        %4354 = vmatpush.msra.mxu0 %v3584
        %4355 = vmatpush.msra.mxu0 %v3580
        %4356 = vmatpush.msra.mxu0 %v3576
        %4357 = vmatpush.msra.mxu0 %v3572
        %4358 = vmatmul.f32.gmra.mxu0 %v3246
        %v4359 = vpop.f32.mrf.mxu0
        %v4360 = vadd.f32 %v4331, %v4359
        %4361 = vmatmul.f32.gmra.mxu0 %v3247
        %v4362 = vpop.f32.mrf.mxu0
        %v4363 = vadd.f32 %v4334, %v4362
        %4364 = vmatmul.f32.gmra.mxu0 %v3248
        %v4365 = vpop.f32.mrf.mxu0
        %v4366 = vadd.f32 %v4337, %v4365
        %4367 = vmatmul.f32.gmra.mxu0 %v3249
        %v4368 = vpop.f32.mrf.mxu0
        %v4369 = vadd.f32 %v4340, %v4368
        %4370 = vdwg.mxu0
        %4371 = vmatpush.msra.mxu0 %v3696
        %4372 = vmatpush.msra.mxu0 %v3692
        %4373 = vmatpush.msra.mxu0 %v3688
        %4374 = vmatpush.msra.mxu0 %v3684
        %4375 = vmatpush.msra.mxu0 %v3680
        %4376 = vmatpush.msra.mxu0 %v3676
        %4377 = vmatpush.msra.mxu0 %v3672
        %4378 = vmatpush.msra.mxu0 %v3668
        %4379 = vmatpush.msra.mxu0 %v3664
        %4380 = vmatpush.msra.mxu0 %v3660
        %4381 = vmatpush.msra.mxu0 %v3656
        %4382 = vmatpush.msra.mxu0 %v3652
        %4383 = vmatpush.msra.mxu0 %v3648
        %4384 = vmatpush.msra.mxu0 %v3644
        %4385 = vmatpush.msra.mxu0 %v3640
        %4386 = vmatpush.msra.mxu0 %v3636
        %4387 = vmatmul.f32.gmra.mxu0 %v3222
        %v4388 = vpop.f32.mrf.mxu0
        %v4389 = vadd.f32 %v4360, %v4388
        %4390 = vmatmul.f32.gmra.mxu0 %v3223
        %v4391 = vpop.f32.mrf.mxu0
        %v4392 = vadd.f32 %v4363, %v4391
        %4393 = vmatmul.f32.gmra.mxu0 %v3224
        %v4394 = vpop.f32.mrf.mxu0
        %v4395 = vadd.f32 %v4366, %v4394
        %4396 = vmatmul.f32.gmra.mxu0 %v3225
        %v4397 = vpop.f32.mrf.mxu0
        %v4398 = vadd.f32 %v4369, %v4397
        %4399 = vdwg.mxu0
        %4400 = vmatpush.msra.mxu0 0.0
        %4401 = vmatpush.msra.mxu0 0.0
        %4402 = vmatpush.msra.mxu0 0.0
        %4403 = vmatpush.msra.mxu0 0.0
        %4404 = vmatpush.msra.mxu0 0.0
        %4405 = vmatpush.msra.mxu0 0.0
        %4406 = vmatpush.msra.mxu0 0.0
        %4407 = vmatpush.msra.mxu0 0.0
        %4408 = vmatpush.msra.mxu0 0.0
        %4409 = vmatpush.msra.mxu0 0.0
        %4410 = vmatpush.msra.mxu0 0.0
        %4411 = vmatpush.msra.mxu0 0.0
        %4412 = vmatpush.msra.mxu0 0.0
        %4413 = vmatpush.msra.mxu0 0.0
        %4414 = vmatpush.msra.mxu0 0.0
        %4415 = vmatpush.msra.mxu0 %v3728
        %4416 = vmatmul.f32.gmra.mxu0 %v3713
        %v4417 = vpop.f32.mrf.mxu0
        %v4418 = vadd.f32 %v4389, %v4417
        %4419 = vmatmul.f32.gmra.mxu0 %v3715
        %v4420 = vpop.f32.mrf.mxu0
        %v4421 = vadd.f32 %v4392, %v4420
        %4422 = vmatmul.f32.gmra.mxu0 %v3717
        %v4423 = vpop.f32.mrf.mxu0
        %v4424 = vadd.f32 %v4395, %v4423
        %4425 = vmatmul.f32.gmra.mxu0 %v3719
        %v4426 = vpop.f32.mrf.mxu0
        %v4427 = vadd.f32 %v4398, %v4426
        %4428 = vdwg.mxu0
        %4429 = vmatpush.msra.mxu0 %v3313
        %4430 = vmatpush.msra.mxu0 %v3309
        %4431 = vmatpush.msra.mxu0 %v3305
        %4432 = vmatpush.msra.mxu0 %v3301
        %4433 = vmatpush.msra.mxu0 %v3297
        %4434 = vmatpush.msra.mxu0 %v3293
        %4435 = vmatpush.msra.mxu0 %v3289
        %4436 = vmatpush.msra.mxu0 %v3285
        %4437 = vmatpush.msra.mxu0 %v3281
        %4438 = vmatpush.msra.mxu0 %v3277
        %4439 = vmatpush.msra.mxu0 %v3273
        %4440 = vmatpush.msra.mxu0 %v3269
        %4441 = vmatpush.msra.mxu0 %v3265
        %4442 = vmatpush.msra.mxu0 %v3261
        %4443 = vmatpush.msra.mxu0 %v3257
        %4444 = vmatpush.msra.mxu0 %v3253
        %4445 = vmatmul.f32.gmra.mxu0 %v3040
        %v4446 = vpop.f32.mrf.mxu0
        %v4447 = vadd.f32 %v3707, %v4446
        %4448 = vmatmul.f32.gmra.mxu0 %v3042
        %v4449 = vpop.f32.mrf.mxu0
        %v4450 = vadd.f32 %v3707, %v4449
        %4451 = vmatmul.f32.gmra.mxu0 %v3044
        %v4452 = vpop.f32.mrf.mxu0
        %v4453 = vadd.f32 %v3707, %v4452
        %4454 = vmatmul.f32.gmra.mxu0 %v3046
        %v4455 = vpop.f32.mrf.mxu0
        %v4456 = vadd.f32 %v3707, %v4455
        %4457 = vdwg.mxu0
        %4458 = vmatpush.msra.mxu0 %v3377
        %4459 = vmatpush.msra.mxu0 %v3373
        %4460 = vmatpush.msra.mxu0 %v3369
        %4461 = vmatpush.msra.mxu0 %v3365
        %4462 = vmatpush.msra.mxu0 %v3361
        %4463 = vmatpush.msra.mxu0 %v3357
        %4464 = vmatpush.msra.mxu0 %v3353
        %4465 = vmatpush.msra.mxu0 %v3349
        %4466 = vmatpush.msra.mxu0 %v3345
        %4467 = vmatpush.msra.mxu0 %v3341
        %4468 = vmatpush.msra.mxu0 %v3337
        %4469 = vmatpush.msra.mxu0 %v3333
        %4470 = vmatpush.msra.mxu0 %v3329
        %4471 = vmatpush.msra.mxu0 %v3325
        %4472 = vmatpush.msra.mxu0 %v3321
        %4473 = vmatpush.msra.mxu0 %v3317
        %4474 = vmatmul.f32.gmra.mxu0 %v3234
        %v4475 = vpop.f32.mrf.mxu0
        %v4476 = vadd.f32 %v4447, %v4475
        %4477 = vmatmul.f32.gmra.mxu0 %v3235
        %v4478 = vpop.f32.mrf.mxu0
        %v4479 = vadd.f32 %v4450, %v4478
        %4480 = vmatmul.f32.gmra.mxu0 %v3236
        %v4481 = vpop.f32.mrf.mxu0
        %v4482 = vadd.f32 %v4453, %v4481
        %4483 = vmatmul.f32.gmra.mxu0 %v3237
        %v4484 = vpop.f32.mrf.mxu0
        %v4485 = vadd.f32 %v4456, %v4484
        %4486 = vdwg.mxu0
        %4487 = vmatpush.msra.mxu0 %v3441
        %4488 = vmatpush.msra.mxu0 %v3437
        %4489 = vmatpush.msra.mxu0 %v3433
        %4490 = vmatpush.msra.mxu0 %v3429
        %4491 = vmatpush.msra.mxu0 %v3425
        %4492 = vmatpush.msra.mxu0 %v3421
        %4493 = vmatpush.msra.mxu0 %v3417
        %4494 = vmatpush.msra.mxu0 %v3413
        %4495 = vmatpush.msra.mxu0 %v3409
        %4496 = vmatpush.msra.mxu0 %v3405
        %4497 = vmatpush.msra.mxu0 %v3401
        %4498 = vmatpush.msra.mxu0 %v3397
        %4499 = vmatpush.msra.mxu0 %v3393
        %4500 = vmatpush.msra.mxu0 %v3389
        %4501 = vmatpush.msra.mxu0 %v3385
        %4502 = vmatpush.msra.mxu0 %v3381
        %4503 = vmatmul.f32.gmra.mxu0 %v3238
        %v4504 = vpop.f32.mrf.mxu0
        %v4505 = vadd.f32 %v4476, %v4504
        %4506 = vmatmul.f32.gmra.mxu0 %v3239
        %v4507 = vpop.f32.mrf.mxu0
        %v4508 = vadd.f32 %v4479, %v4507
        %4509 = vmatmul.f32.gmra.mxu0 %v3240
        %v4510 = vpop.f32.mrf.mxu0
        %v4511 = vadd.f32 %v4482, %v4510
        %4512 = vmatmul.f32.gmra.mxu0 %v3241
        %v4513 = vpop.f32.mrf.mxu0
        %v4514 = vadd.f32 %v4485, %v4513
        %4515 = vdwg.mxu0
        %4516 = vmatpush.msra.mxu0 %v3505
        %4517 = vmatpush.msra.mxu0 %v3501
        %4518 = vmatpush.msra.mxu0 %v3497
        %4519 = vmatpush.msra.mxu0 %v3493
        %4520 = vmatpush.msra.mxu0 %v3489
        %4521 = vmatpush.msra.mxu0 %v3485
        %4522 = vmatpush.msra.mxu0 %v3481
        %4523 = vmatpush.msra.mxu0 %v3477
        %4524 = vmatpush.msra.mxu0 %v3473
        %4525 = vmatpush.msra.mxu0 %v3469
        %4526 = vmatpush.msra.mxu0 %v3465
        %4527 = vmatpush.msra.mxu0 %v3461
        %4528 = vmatpush.msra.mxu0 %v3457
        %4529 = vmatpush.msra.mxu0 %v3453
        %4530 = vmatpush.msra.mxu0 %v3449
        %4531 = vmatpush.msra.mxu0 %v3445
        %4532 = vmatmul.f32.gmra.mxu0 %v3130
        %v4533 = vpop.f32.mrf.mxu0
        %v4534 = vadd.f32 %v4505, %v4533
        %4535 = vmatmul.f32.gmra.mxu0 %v3131
        %v4536 = vpop.f32.mrf.mxu0
        %v4537 = vadd.f32 %v4508, %v4536
        %4538 = vmatmul.f32.gmra.mxu0 %v3132
        %v4539 = vpop.f32.mrf.mxu0
        %v4540 = vadd.f32 %v4511, %v4539
        %4541 = vmatmul.f32.gmra.mxu0 %v3133
        %v4542 = vpop.f32.mrf.mxu0
        %v4543 = vadd.f32 %v4514, %v4542
        %4544 = vdwg.mxu0
        %4545 = vmatpush.msra.mxu0 %v3569
        %4546 = vmatpush.msra.mxu0 %v3565
        %4547 = vmatpush.msra.mxu0 %v3561
        %4548 = vmatpush.msra.mxu0 %v3557
        %4549 = vmatpush.msra.mxu0 %v3553
        %4550 = vmatpush.msra.mxu0 %v3549
        %4551 = vmatpush.msra.mxu0 %v3545
        %4552 = vmatpush.msra.mxu0 %v3541
        %4553 = vmatpush.msra.mxu0 %v3537
        %4554 = vmatpush.msra.mxu0 %v3533
        %4555 = vmatpush.msra.mxu0 %v3529
        %4556 = vmatpush.msra.mxu0 %v3525
        %4557 = vmatpush.msra.mxu0 %v3521
        %4558 = vmatpush.msra.mxu0 %v3517
        %4559 = vmatpush.msra.mxu0 %v3513
        %4560 = vmatpush.msra.mxu0 %v3509
        %4561 = vmatmul.f32.gmra.mxu0 %v3242
        %v4562 = vpop.f32.mrf.mxu0
        %v4563 = vadd.f32 %v4534, %v4562
        %4564 = vmatmul.f32.gmra.mxu0 %v3243
        %v4565 = vpop.f32.mrf.mxu0
        %v4566 = vadd.f32 %v4537, %v4565
        %4567 = vmatmul.f32.gmra.mxu0 %v3244
        %v4568 = vpop.f32.mrf.mxu0
        %v4569 = vadd.f32 %v4540, %v4568
        %4570 = vmatmul.f32.gmra.mxu0 %v3245
        %v4571 = vpop.f32.mrf.mxu0
        %v4572 = vadd.f32 %v4543, %v4571
        %4573 = vdwg.mxu0
        %4574 = vmatpush.msra.mxu0 %v3633
        %4575 = vmatpush.msra.mxu0 %v3629
        %4576 = vmatpush.msra.mxu0 %v3625
        %4577 = vmatpush.msra.mxu0 %v3621
        %4578 = vmatpush.msra.mxu0 %v3617
        %4579 = vmatpush.msra.mxu0 %v3613
        %4580 = vmatpush.msra.mxu0 %v3609
        %4581 = vmatpush.msra.mxu0 %v3605
        %4582 = vmatpush.msra.mxu0 %v3601
        %4583 = vmatpush.msra.mxu0 %v3597
        %4584 = vmatpush.msra.mxu0 %v3593
        %4585 = vmatpush.msra.mxu0 %v3589
        %4586 = vmatpush.msra.mxu0 %v3585
        %4587 = vmatpush.msra.mxu0 %v3581
        %4588 = vmatpush.msra.mxu0 %v3577
        %4589 = vmatpush.msra.mxu0 %v3573
        %4590 = vmatmul.f32.gmra.mxu0 %v3246
        %v4591 = vpop.f32.mrf.mxu0
        %v4592 = vadd.f32 %v4563, %v4591
        %4593 = vmatmul.f32.gmra.mxu0 %v3247
        %v4594 = vpop.f32.mrf.mxu0
        %v4595 = vadd.f32 %v4566, %v4594
        %4596 = vmatmul.f32.gmra.mxu0 %v3248
        %v4597 = vpop.f32.mrf.mxu0
        %v4598 = vadd.f32 %v4569, %v4597
        %4599 = vmatmul.f32.gmra.mxu0 %v3249
        %v4600 = vpop.f32.mrf.mxu0
        %v4601 = vadd.f32 %v4572, %v4600
        %4602 = vdwg.mxu0
        %4603 = vmatpush.msra.mxu0 %v3697
        %4604 = vmatpush.msra.mxu0 %v3693
        %4605 = vmatpush.msra.mxu0 %v3689
        %4606 = vmatpush.msra.mxu0 %v3685
        %4607 = vmatpush.msra.mxu0 %v3681
        %4608 = vmatpush.msra.mxu0 %v3677
        %4609 = vmatpush.msra.mxu0 %v3673
        %4610 = vmatpush.msra.mxu0 %v3669
        %4611 = vmatpush.msra.mxu0 %v3665
        %4612 = vmatpush.msra.mxu0 %v3661
        %4613 = vmatpush.msra.mxu0 %v3657
        %4614 = vmatpush.msra.mxu0 %v3653
        %4615 = vmatpush.msra.mxu0 %v3649
        %4616 = vmatpush.msra.mxu0 %v3645
        %4617 = vmatpush.msra.mxu0 %v3641
        %4618 = vmatpush.msra.mxu0 %v3637
        %4619 = vmatmul.f32.gmra.mxu0 %v3222
        %v4620 = vpop.f32.mrf.mxu0
        %v4621 = vadd.f32 %v4592, %v4620
        %4622 = vmatmul.f32.gmra.mxu0 %v3223
        %v4623 = vpop.f32.mrf.mxu0
        %v4624 = vadd.f32 %v4595, %v4623
        %4625 = vmatmul.f32.gmra.mxu0 %v3224
        %v4626 = vpop.f32.mrf.mxu0
        %v4627 = vadd.f32 %v4598, %v4626
        %4628 = vmatmul.f32.gmra.mxu0 %v3225
        %v4629 = vpop.f32.mrf.mxu0
        %v4630 = vadd.f32 %v4601, %v4629
        %4631 = vdwg.mxu0
        %4632 = vmatpush.msra.mxu0 0.0
        %4633 = vmatpush.msra.mxu0 0.0
        %4634 = vmatpush.msra.mxu0 0.0
        %4635 = vmatpush.msra.mxu0 0.0
        %4636 = vmatpush.msra.mxu0 0.0
        %4637 = vmatpush.msra.mxu0 0.0
        %4638 = vmatpush.msra.mxu0 0.0
        %4639 = vmatpush.msra.mxu0 0.0
        %4640 = vmatpush.msra.mxu0 0.0
        %4641 = vmatpush.msra.mxu0 0.0
        %4642 = vmatpush.msra.mxu0 0.0
        %4643 = vmatpush.msra.mxu0 0.0
        %4644 = vmatpush.msra.mxu0 0.0
        %4645 = vmatpush.msra.mxu0 0.0
        %4646 = vmatpush.msra.mxu0 0.0
        %4647 = vmatpush.msra.mxu0 %v3731
        %4648 = vmatmul.f32.gmra.mxu0 %v3713
        %v4649 = vpop.f32.mrf.mxu0
        %v4650 = vadd.f32 %v4621, %v4649
        %4651 = vmatmul.f32.gmra.mxu0 %v3715
        %v4652 = vpop.f32.mrf.mxu0
        %v4653 = vadd.f32 %v4624, %v4652
        %4654 = vmatmul.f32.gmra.mxu0 %v3717
        %v4655 = vpop.f32.mrf.mxu0
        %v4656 = vadd.f32 %v4627, %v4655
        %4657 = vmatmul.f32.gmra.mxu0 %v3719
        %v4658 = vpop.f32.mrf.mxu0
        %v4659 = vadd.f32 %v4630, %v4658
        %4660 = vdwg.mxu0
        %v4661 = vmax.f32 %v3954, 0.0
        %v4662 = vmax.f32 %v4186, 0.0
        %v4663 = vmax.f32 %v4418, 0.0
        %v4664 = vmax.f32 %v4650, 0.0
        %v4665 = vmax.f32 %v3957, 0.0
        %v4666 = vmax.f32 %v4189, 0.0
        %v4667 = vmax.f32 %v4421, 0.0
        %v4668 = vmax.f32 %v4653, 0.0
        %v4669 = vmax.f32 %v3960, 0.0
        %v4670 = vmax.f32 %v4192, 0.0
        %v4671 = vmax.f32 %v4424, 0.0
        %v4672 = vmax.f32 %v4656, 0.0
        %v4673 = vmax.f32 %v3963, 0.0
        %v4674 = vmax.f32 %v4195, 0.0
        %v4675 = vmax.f32 %v4427, 0.0
        %v4676 = vmax.f32 %v4659, 0.0
        %4689 = vrot.lane.b32.xlu0 %v4662, 48
        %v4690 = vpop.permute.xlu0 %4689
        %4691 = vrot.lane.b32.xlu0 %v4663, 48
        %v4692 = vpop.permute.xlu0 %4691
        %4693 = vrot.lane.b32.xlu0 %v4664, 48
        %v4694 = vpop.permute.xlu0 %4693
        %4695 = vrot.lane.b32.xlu0 %v4666, 48
        %v4696 = vpop.permute.xlu0 %4695
        %4697 = vrot.lane.b32.xlu0 %v4667, 48
        %v4698 = vpop.permute.xlu0 %4697
        %4699 = vrot.lane.b32.xlu0 %v4668, 48
        %v4700 = vpop.permute.xlu0 %4699
        %4701 = vrot.lane.b32.xlu0 %v4670, 48
        %v4702 = vpop.permute.xlu0 %4701
        %4703 = vrot.lane.b32.xlu0 %v4671, 48
        %v4704 = vpop.permute.xlu0 %4703
        %4705 = vrot.lane.b32.xlu0 %v4672, 48
        %v4706 = vpop.permute.xlu0 %4705
        %4707 = vrot.lane.b32.xlu0 %v4674, 48
        %v4708 = vpop.permute.xlu0 %4707
        %4709 = vrot.lane.b32.xlu0 %v4675, 48
        %v4710 = vpop.permute.xlu0 %4709
        %4711 = vrot.lane.b32.xlu0 %v4676, 48
        %v4712 = vpop.permute.xlu0 %4711
        %vm4713 = vcmask 392192
        %v4714 = vsel %vm4713, %v4690, %v4692
        %v4715 = vsel %vm4713, %v4692, %v4694
        %v4716 = vsel %vm4713, %v4696, %v4698
        %v4717 = vsel %vm4713, %v4698, %v4700
        %v4718 = vsel %vm4713, %v4702, %v4704
        %v4719 = vsel %vm4713, %v4704, %v4706
        %v4720 = vsel %vm4713, %v4708, %v4710
        %v4721 = vsel %vm4713, %v4710, %v4712
        %v4730 = vmax.f32 %v4661, %v4714
        %v4731 = vmax.f32 %v4662, %v4715
        %v4732 = vmax.f32 %v4665, %v4716
        %v4733 = vmax.f32 %v4666, %v4717
        %v4734 = vmax.f32 %v4669, %v4718
        %v4735 = vmax.f32 %v4670, %v4719
        %v4736 = vmax.f32 %v4673, %v4720
        %v4737 = vmax.f32 %v4674, %v4721
        %v4738 = vlaneseq
        %v4739 = vshrl.u32 %v4738, 7
        %v4740 = vadd.s32 %v4739, 8
        %v4741 = vlaneseq
        %v4742 = vand.u32 %v4741, 127
        %v4743 = vmul.u32 %v4739, 2
        %v4744 = vmul.u32 %v4740, 2
        %vm4745 = vcmp.eq.s32.totalorder %v4742, %v4743
        %vm4746 = vcmp.eq.s32.totalorder %v4742, %v4744
        %v4747 = vsel %vm4745, 1, 0
        %v4748 = vsel %vm4746, 1, 0
        %v4749 = vcvt.s32.f32 %v4747
        %v4750 = vcvt.s32.f32 %v4748
        %v4751 = vadd.s32 %v4743, 1
        %v4752 = vadd.s32 %v4744, 1
        %vm4753 = vcmp.eq.s32.totalorder %v4742, %v4751
        %vm4754 = vcmp.eq.s32.totalorder %v4742, %v4752
        %v4755 = vsel %vm4753, 1, 0
        %v4756 = vsel %vm4754, 1, 0
        %v4757 = vcvt.s32.f32 %v4755
        %v4758 = vcvt.s32.f32 %v4756
        %vm4759 = vcmask 211968
        %v4761 = vsel %vm4759, %v4749, 0
        %v4764 = vsel %vm4759, %v4750, 0
        %vm4766 = vcmask 1041408
        %v4768 = vsel %vm4766, %v4736, 0
        %v4771 = vsel %vm4766, %v4737, 0
        %4773 = vmatpush.msra.mxu0 0.0
        %4774 = vmatpush.msra.mxu0 0.0
        %4775 = vmatpush.msra.mxu0 0.0
        %4776 = vmatpush.msra.mxu0 0.0
        %4777 = vmatpush.msra.mxu0 0.0
        %4778 = vmatpush.msra.mxu0 0.0
        %4779 = vmatpush.msra.mxu0 0.0
        %4780 = vmatpush.msra.mxu0 0.0
        %4781 = vmatpush.msra.mxu0 0.0
        %4782 = vmatpush.msra.mxu0 0.0
        %4783 = vmatpush.msra.mxu0 0.0
        %4784 = vmatpush.msra.mxu0 0.0
        %4785 = vmatpush.msra.mxu0 %v4768
        %4786 = vmatpush.msra.mxu0 %v4734
        %4787 = vmatpush.msra.mxu0 %v4732
        %4788 = vmatpush.msra.mxu0 %v4730
        %4789 = vmatmul.f32.gmra.mxu0 %v4761
        %v4790 = vpop.f32.mrf.mxu0
        %v4791 = vadd.f32 0.0, %v4790
        %4792 = vmatmul.f32.gmra.mxu0 %v4764
        %v4793 = vpop.f32.mrf.mxu0
        %v4794 = vadd.f32 0.0, %v4793
        %4795 = vdwg.mxu0
        %4796 = vmatpush.msra.mxu0 0.0
        %4797 = vmatpush.msra.mxu0 0.0
        %4798 = vmatpush.msra.mxu0 0.0
        %4799 = vmatpush.msra.mxu0 0.0
        %4800 = vmatpush.msra.mxu0 0.0
        %4801 = vmatpush.msra.mxu0 0.0
        %4802 = vmatpush.msra.mxu0 0.0
        %4803 = vmatpush.msra.mxu0 0.0
        %4804 = vmatpush.msra.mxu0 0.0
        %4805 = vmatpush.msra.mxu0 0.0
        %4806 = vmatpush.msra.mxu0 0.0
        %4807 = vmatpush.msra.mxu0 0.0
        %4808 = vmatpush.msra.mxu0 %v4771
        %4809 = vmatpush.msra.mxu0 %v4735
        %4810 = vmatpush.msra.mxu0 %v4733
        %4811 = vmatpush.msra.mxu0 %v4731
        %4812 = vmatmul.f32.gmra.mxu0 %v4761
        %v4813 = vpop.f32.mrf.mxu0
        %v4814 = vadd.f32 0.0, %v4813
        %4815 = vmatmul.f32.gmra.mxu0 %v4764
        %v4816 = vpop.f32.mrf.mxu0
        %v4817 = vadd.f32 0.0, %v4816
        %4818 = vdwg.mxu0
        %v4820 = vsel %vm4759, %v4757, 0
        %v4823 = vsel %vm4759, %v4758, 0
        %4825 = vmatpush.msra.mxu0 0.0
        %4826 = vmatpush.msra.mxu0 0.0
        %4827 = vmatpush.msra.mxu0 0.0
        %4828 = vmatpush.msra.mxu0 0.0
        %4829 = vmatpush.msra.mxu0 0.0
        %4830 = vmatpush.msra.mxu0 0.0
        %4831 = vmatpush.msra.mxu0 0.0
        %4832 = vmatpush.msra.mxu0 0.0
        %4833 = vmatpush.msra.mxu0 0.0
        %4834 = vmatpush.msra.mxu0 0.0
        %4835 = vmatpush.msra.mxu0 0.0
        %4836 = vmatpush.msra.mxu0 0.0
        %4837 = vmatpush.msra.mxu0 %v4768
        %4838 = vmatpush.msra.mxu0 %v4734
        %4839 = vmatpush.msra.mxu0 %v4732
        %4840 = vmatpush.msra.mxu0 %v4730
        %4841 = vmatmul.f32.gmra.mxu0 %v4820
        %v4842 = vpop.f32.mrf.mxu0
        %v4843 = vadd.f32 0.0, %v4842
        %4844 = vmatmul.f32.gmra.mxu0 %v4823
        %v4845 = vpop.f32.mrf.mxu0
        %v4846 = vadd.f32 0.0, %v4845
        %4847 = vdwg.mxu0
        %4848 = vmatpush.msra.mxu0 0.0
        %4849 = vmatpush.msra.mxu0 0.0
        %4850 = vmatpush.msra.mxu0 0.0
        %4851 = vmatpush.msra.mxu0 0.0
        %4852 = vmatpush.msra.mxu0 0.0
        %4853 = vmatpush.msra.mxu0 0.0
        %4854 = vmatpush.msra.mxu0 0.0
        %4855 = vmatpush.msra.mxu0 0.0
        %4856 = vmatpush.msra.mxu0 0.0
        %4857 = vmatpush.msra.mxu0 0.0
        %4858 = vmatpush.msra.mxu0 0.0
        %4859 = vmatpush.msra.mxu0 0.0
        %4860 = vmatpush.msra.mxu0 %v4771
        %4861 = vmatpush.msra.mxu0 %v4735
        %4862 = vmatpush.msra.mxu0 %v4733
        %4863 = vmatpush.msra.mxu0 %v4731
        %4864 = vmatmul.f32.gmra.mxu0 %v4820
        %v4865 = vpop.f32.mrf.mxu0
        %v4866 = vadd.f32 0.0, %v4865
        %4867 = vmatmul.f32.gmra.mxu0 %v4823
        %v4868 = vpop.f32.mrf.mxu0
        %v4869 = vadd.f32 0.0, %v4868
        %4870 = vdwg.mxu0
        %v4871 = vmax.f32 %v4791, %v4843
        %v4872 = vmax.f32 %v4814, %v4866
        %v4873 = vmax.f32 %v4794, %v4846
        %v4874 = vmax.f32 %v4817, %v4869
        %v4877 = vrot.slane %v4871, 1
        %v4878 = vrot.slane %v4872, 1
        %4879 = vrot.lane.b32.xlu0 %v4877, 80
        %v4880 = vpop.permute.xlu0 %4879
        %4881 = vrot.lane.b32.xlu0 %v4878, 80
        %v4882 = vpop.permute.xlu0 %4881
        %v4883 = vsel %vm3221, %v4880, %v4882
        %v4887 = vrot.slane %v4871, 2
        %v4888 = vrot.slane %v4872, 2
        %4889 = vrot.lane.b32.xlu0 %v4887, 32
        %v4890 = vpop.permute.xlu0 %4889
        %4891 = vrot.lane.b32.xlu0 %v4888, 32
        %v4892 = vpop.permute.xlu0 %4891
        %vm4893 = vcmask 261120
        %v4894 = vsel %vm4893, %v4890, %v4892
        %v4897 = vrot.slane %v4871, 3
        %v4898 = vrot.slane %v4872, 3
        %4899 = vrot.lane.b32.xlu0 %v4897, 112
        %v4900 = vpop.permute.xlu0 %4899
        %4901 = vrot.lane.b32.xlu0 %v4898, 112
        %v4902 = vpop.permute.xlu0 %4901
        %vm4903 = vcmask 916480
        %v4904 = vsel %vm4903, %v4900, %v4902
        %v4908 = vrot.slane %v4871, 4
        %v4909 = vrot.slane %v4872, 4
        %4910 = vrot.lane.b32.xlu0 %v4908, 64
        %v4911 = vpop.permute.xlu0 %4910
        %4912 = vrot.lane.b32.xlu0 %v4909, 64
        %v4913 = vpop.permute.xlu0 %4912
        %vm4914 = vcmask 523264
        %v4915 = vsel %vm4914, %v4911, %v4913
        %v4919 = vrot.slane %v4871, 5
        %v4920 = vrot.slane %v4872, 5
        %4921 = vrot.lane.b32.xlu0 %v4919, 16
        %v4922 = vpop.permute.xlu0 %4921
        %4923 = vrot.lane.b32.xlu0 %v4920, 16
        %v4924 = vpop.permute.xlu0 %4923
        %vm4925 = vcmask 130048
        %v4926 = vsel %vm4925, %v4922, %v4924
        %v4929 = vrot.slane %v4871, 6
        %v4930 = vrot.slane %v4872, 6
        %4931 = vrot.lane.b32.xlu0 %v4929, 96
        %v4932 = vpop.permute.xlu0 %4931
        %4933 = vrot.lane.b32.xlu0 %v4930, 96
        %v4934 = vpop.permute.xlu0 %4933
        %vm4935 = vcmask 785408
        %v4936 = vsel %vm4935, %v4932, %v4934
        %v4940 = vrot.slane %v4871, 7
        %v4941 = vrot.slane %v4872, 7
        %4942 = vrot.lane.b32.xlu0 %v4940, 48
        %v4943 = vpop.permute.xlu0 %4942
        %4944 = vrot.lane.b32.xlu0 %v4941, 48
        %v4945 = vpop.permute.xlu0 %4944
        %v4946 = vsel %vm4713, %v4943, %v4945
        %v4951 = vrot.slane %v4873, 1
        %v4952 = vrot.slane %v4874, 1
        %4953 = vrot.lane.b32.xlu0 %v4951, 80
        %v4954 = vpop.permute.xlu0 %4953
        %4955 = vrot.lane.b32.xlu0 %v4952, 80
        %v4956 = vpop.permute.xlu0 %4955
        %v4957 = vsel %vm3221, %v4954, %v4956
        %v4961 = vrot.slane %v4873, 2
        %v4962 = vrot.slane %v4874, 2
        %4963 = vrot.lane.b32.xlu0 %v4961, 32
        %v4964 = vpop.permute.xlu0 %4963
        %4965 = vrot.lane.b32.xlu0 %v4962, 32
        %v4966 = vpop.permute.xlu0 %4965
        %v4967 = vsel %vm4893, %v4964, %v4966
        %v4970 = vrot.slane %v4873, 3
        %v4971 = vrot.slane %v4874, 3
        %4972 = vrot.lane.b32.xlu0 %v4970, 112
        %v4973 = vpop.permute.xlu0 %4972
        %4974 = vrot.lane.b32.xlu0 %v4971, 112
        %v4975 = vpop.permute.xlu0 %4974
        %v4976 = vsel %vm4903, %v4973, %v4975
        %v4980 = vrot.slane %v4873, 4
        %v4981 = vrot.slane %v4874, 4
        %4982 = vrot.lane.b32.xlu0 %v4980, 64
        %v4983 = vpop.permute.xlu0 %4982
        %4984 = vrot.lane.b32.xlu0 %v4981, 64
        %v4985 = vpop.permute.xlu0 %4984
        %v4986 = vsel %vm4914, %v4983, %v4985
        %v4989 = vsel %vm3221, %v4872, %v4880
        %v4990 = vsel %vm4893, %v4882, %v4890
        %v4991 = vsel %vm4903, %v4894, %v4900
        %v4992 = vsel %vm4914, %v4902, %v4911
        %v4993 = vsel %vm4925, %v4913, %v4922
        %v4994 = vsel %vm4935, %v4926, %v4932
        %v4995 = vsel %vm4713, %v4934, %v4943
        %v4996 = vsel %vm3221, %v4874, %v4954
        %v4997 = vsel %vm4893, %v4956, %v4964
        %v4998 = vsel %vm4903, %v4967, %v4973
        %v4999 = vsel %vm4914, %v4975, %v4983
        %v5000 = vld [vmem:[%s5] sm:$0xff]
        %v5001 = vld [vmem:[%s5 + $0x8] sm:$0xff]
        %v5002 = vld [vmem:[%s5 + $0x10] sm:$0xff]
        %v5003 = vld [vmem:[%s5 + $0x18] sm:$0xff]
        %v5004 = vld [vmem:[%s5 + $0x20] sm:$0xff]
        %v5005 = vld [vmem:[%s5 + $0x28] sm:$0xff]
        %v5006 = vld [vmem:[%s5 + $0x30] sm:$0xff]
        %v5007 = vld [vmem:[%s5 + $0x38] sm:$0xff]
        %v5008 = vld [vmem:[%s5 + $0x40] sm:$0xff]
        %v5009 = vld [vmem:[%s5 + $0x48] sm:$0xff]
        %v5010 = vld [vmem:[%s5 + $0x50] sm:$0xff]
        %v5011 = vld [vmem:[%s5 + $0x58] sm:$0xff]
        %v5012 = vld [vmem:[%s5 + $0x60] sm:$0xff]
        %v5013 = vld [vmem:[%s5 + $0x68] sm:$0xff]
        %v5014 = vld [vmem:[%s5 + $0x70] sm:$0xff]
        %v5015 = vld [vmem:[%s5 + $0x78] sm:$0xff]
        %v5016 = vld [vmem:[%s5 + $0x80] sm:$0xff]
        %v5017 = vld [vmem:[%s5 + $0x88] sm:$0xff]
        %v5018 = vld [vmem:[%s5 + $0x90] sm:$0xff]
        %v5019 = vld [vmem:[%s5 + $0x98] sm:$0xff]
        %v5020 = vld [vmem:[%s5 + $0xa0] sm:$0xff]
        %v5021 = vld [vmem:[%s5 + $0xa8] sm:$0xff]
        %v5022 = vld [vmem:[%s5 + $0xb0] sm:$0xff]
        %v5023 = vld [vmem:[%s5 + $0xb8] sm:$0xff]
        %v5024 = vld [vmem:[%s5 + $0xc0] sm:$0xff]
        %v5025 = vld [vmem:[%s5 + $0xc8] sm:$0xff]
        %v5026 = vld [vmem:[%s5 + $0xd0] sm:$0xff]
        %v5027 = vld [vmem:[%s5 + $0xd8] sm:$0xff]
        %v5028 = vld [vmem:[%s5 + $0xe0] sm:$0xff]
        %v5029 = vld [vmem:[%s5 + $0xe8] sm:$0xff]
        %v5030 = vld [vmem:[%s5 + $0xf0] sm:$0xff]
        %v5031 = vld [vmem:[%s5 + $0xf8] sm:$0xff]
        %v5032 = vld [vmem:[%s5 + $0x100] sm:$0xff]
        %v5033 = vld [vmem:[%s5 + $0x108] sm:$0xff]
        %v5034 = vld [vmem:[%s5 + $0x110] sm:$0xff]
        %v5035 = vld [vmem:[%s5 + $0x118] sm:$0xff]
        %v5036 = vld [vmem:[%s5 + $0x120] sm:$0xff]
        %v5037 = vld [vmem:[%s5 + $0x128] sm:$0xff]
        %v5038 = vld [vmem:[%s5 + $0x130] sm:$0xff]
        %v5039 = vld [vmem:[%s5 + $0x138] sm:$0xff]
        %v5040 = vld [vmem:[%s5 + $0x140] sm:$0xff]
        %v5041 = vld [vmem:[%s5 + $0x148] sm:$0xff]
        %v5042 = vld [vmem:[%s5 + $0x150] sm:$0xff]
        %v5043 = vld [vmem:[%s5 + $0x158] sm:$0xff]
        %v5044 = vld [vmem:[%s5 + $0x160] sm:$0xff]
        %v5045 = vld [vmem:[%s5 + $0x168] sm:$0xff]
        %v5046 = vld [vmem:[%s5 + $0x170] sm:$0xff]
        %v5047 = vld [vmem:[%s5 + $0x178] sm:$0xff]
        %v5048 = vld [vmem:[%s5 + $0x180] sm:$0xff]
        %v5049 = vld [vmem:[%s5 + $0x188] sm:$0xff]
        %v5050 = vld [vmem:[%s5 + $0x190] sm:$0xff]
        %v5051 = vld [vmem:[%s5 + $0x198] sm:$0xff]
        %v5052 = vld [vmem:[%s5 + $0x1a0] sm:$0xff]
        %v5053 = vld [vmem:[%s5 + $0x1a8] sm:$0xff]
        %v5054 = vld [vmem:[%s5 + $0x1b0] sm:$0xff]
        %v5055 = vld [vmem:[%s5 + $0x1b8] sm:$0xff]
        %v5056 = vld [vmem:[%s5 + $0x1c0] sm:$0xff]
        %v5057 = vld [vmem:[%s5 + $0x1c8] sm:$0xff]
        %v5058 = vld [vmem:[%s5 + $0x1d0] sm:$0xff]
        %v5059 = vld [vmem:[%s5 + $0x1d8] sm:$0xff]
        %v5060 = vld [vmem:[%s5 + $0x1e0] sm:$0xff]
        %v5061 = vld [vmem:[%s5 + $0x1e8] sm:$0xff]
        %v5062 = vld [vmem:[%s5 + $0x1f0] sm:$0xff]
        %v5063 = vld [vmem:[%s5 + $0x1f8] sm:$0xff]
        %v5064 = vld [vmem:[%s5 + $0x200] sm:$0xff]
        %v5065 = vld [vmem:[%s5 + $0x208] sm:$0xff]
        %v5066 = vld [vmem:[%s5 + $0x210] sm:$0xff]
        %v5067 = vld [vmem:[%s5 + $0x218] sm:$0xff]
        %v5068 = vld [vmem:[%s5 + $0x220] sm:$0xff]
        %v5069 = vld [vmem:[%s5 + $0x228] sm:$0xff]
        %v5070 = vld [vmem:[%s5 + $0x230] sm:$0xff]
        %v5071 = vld [vmem:[%s5 + $0x238] sm:$0xff]
        %v5072 = vld [vmem:[%s5 + $0x240] sm:$0xff]
        %v5073 = vld [vmem:[%s5 + $0x248] sm:$0xff]
        %v5074 = vld [vmem:[%s5 + $0x250] sm:$0xff]
        %v5075 = vld [vmem:[%s5 + $0x258] sm:$0xff]
        %v5076 = vld [vmem:[%s5 + $0x260] sm:$0xff]
        %v5077 = vld [vmem:[%s5 + $0x268] sm:$0xff]
        %v5078 = vld [vmem:[%s5 + $0x270] sm:$0xff]
        %v5079 = vld [vmem:[%s5 + $0x278] sm:$0xff]
        %v5080 = vld [vmem:[%s5 + $0x280] sm:$0xff]
        %v5081 = vld [vmem:[%s5 + $0x288] sm:$0xff]
        %v5082 = vld [vmem:[%s5 + $0x290] sm:$0xff]
        %v5083 = vld [vmem:[%s5 + $0x298] sm:$0xff]
        %v5084 = vld [vmem:[%s5 + $0x2a0] sm:$0xff]
        %v5085 = vld [vmem:[%s5 + $0x2a8] sm:$0xff]
        %v5086 = vld [vmem:[%s5 + $0x2b0] sm:$0xff]
        %v5087 = vld [vmem:[%s5 + $0x2b8] sm:$0xff]
        %v5088 = vld [vmem:[%s5 + $0x2c0] sm:$0xff]
        %v5089 = vld [vmem:[%s5 + $0x2c8] sm:$0xff]
        %v5090 = vld [vmem:[%s5 + $0x2d0] sm:$0xff]
        %v5091 = vld [vmem:[%s5 + $0x2d8] sm:$0xff]
        %v5092 = vld [vmem:[%s5 + $0x2e0] sm:$0xff]
        %v5093 = vld [vmem:[%s5 + $0x2e8] sm:$0xff]
        %v5094 = vld [vmem:[%s5 + $0x2f0] sm:$0xff]
        %v5095 = vld [vmem:[%s5 + $0x2f8] sm:$0xff]
        %v5096 = vld [vmem:[%s5 + $0x300] sm:$0xff]
        %v5097 = vld [vmem:[%s5 + $0x308] sm:$0xff]
        %v5098 = vld [vmem:[%s5 + $0x310] sm:$0xff]
        %v5099 = vld [vmem:[%s5 + $0x318] sm:$0xff]
        %v5100 = vld [vmem:[%s5 + $0x320] sm:$0xff]
        %v5101 = vld [vmem:[%s5 + $0x328] sm:$0xff]
        %v5102 = vld [vmem:[%s5 + $0x330] sm:$0xff]
        %v5103 = vld [vmem:[%s5 + $0x338] sm:$0xff]
        %v5104 = vld [vmem:[%s5 + $0x340] sm:$0xff]
        %v5105 = vld [vmem:[%s5 + $0x348] sm:$0xff]
        %v5106 = vld [vmem:[%s5 + $0x350] sm:$0xff]
        %v5107 = vld [vmem:[%s5 + $0x358] sm:$0xff]
        %v5108 = vld [vmem:[%s5 + $0x360] sm:$0xff]
        %v5109 = vld [vmem:[%s5 + $0x368] sm:$0xff]
        %v5110 = vld [vmem:[%s5 + $0x370] sm:$0xff]
        %v5111 = vld [vmem:[%s5 + $0x378] sm:$0xff]
        %v5112 = vld [vmem:[%s5 + $0x380] sm:$0xff]
        %v5113 = vld [vmem:[%s5 + $0x388] sm:$0xff]
        %v5114 = vld [vmem:[%s5 + $0x390] sm:$0xff]
        %v5115 = vld [vmem:[%s5 + $0x398] sm:$0xff]
        %v5116 = vld [vmem:[%s5 + $0x3a0] sm:$0xff]
        %v5117 = vld [vmem:[%s5 + $0x3a8] sm:$0xff]
        %v5118 = vld [vmem:[%s5 + $0x3b0] sm:$0xff]
        %v5119 = vld [vmem:[%s5 + $0x3b8] sm:$0xff]
        %v5120 = vld [vmem:[%s5 + $0x3c0] sm:$0xff]
        %v5121 = vld [vmem:[%s5 + $0x3c8] sm:$0xff]
        %v5122 = vld [vmem:[%s5 + $0x3d0] sm:$0xff]
        %v5123 = vld [vmem:[%s5 + $0x3d8] sm:$0xff]
        %v5124 = vld [vmem:[%s5 + $0x3e0] sm:$0xff]
        %v5125 = vld [vmem:[%s5 + $0x3e8] sm:$0xff]
        %v5126 = vld [vmem:[%s5 + $0x3f0] sm:$0xff]
        %v5127 = vld [vmem:[%s5 + $0x3f8] sm:$0xff]
        %v5128 = vld [vmem:[%s5 + $0x400] sm:$0xff]
        %v5129 = vld [vmem:[%s5 + $0x408] sm:$0xff]
        %v5130 = vld [vmem:[%s5 + $0x410] sm:$0xff]
        %v5131 = vld [vmem:[%s5 + $0x418] sm:$0xff]
        %v5132 = vld [vmem:[%s5 + $0x420] sm:$0xff]
        %v5133 = vld [vmem:[%s5 + $0x428] sm:$0xff]
        %v5134 = vld [vmem:[%s5 + $0x430] sm:$0xff]
        %v5135 = vld [vmem:[%s5 + $0x438] sm:$0xff]
        %v5136 = vld [vmem:[%s5 + $0x440] sm:$0xff]
        %v5137 = vld [vmem:[%s5 + $0x448] sm:$0xff]
        %v5138 = vld [vmem:[%s5 + $0x450] sm:$0xff]
        %v5139 = vld [vmem:[%s5 + $0x458] sm:$0xff]
        %v5140 = vld [vmem:[%s5 + $0x460] sm:$0xff]
        %v5141 = vld [vmem:[%s5 + $0x468] sm:$0xff]
        %v5142 = vld [vmem:[%s5 + $0x470] sm:$0xff]
        %v5143 = vld [vmem:[%s5 + $0x478] sm:$0xff]
        %v5144 = vld [vmem:[%s5 + $0x480] sm:$0xff]
        %v5145 = vld [vmem:[%s5 + $0x488] sm:$0xff]
        %v5146 = vld [vmem:[%s5 + $0x490] sm:$0xff]
        %v5147 = vld [vmem:[%s5 + $0x498] sm:$0xff]
        %v5148 = vld [vmem:[%s5 + $0x4a0] sm:$0xff]
        %v5149 = vld [vmem:[%s5 + $0x4a8] sm:$0xff]
        %v5150 = vld [vmem:[%s5 + $0x4b0] sm:$0xff]
        %v5151 = vld [vmem:[%s5 + $0x4b8] sm:$0xff]
        %v5152 = vld [vmem:[%s5 + $0x4c0] sm:$0xff]
        %v5153 = vld [vmem:[%s5 + $0x4c8] sm:$0xff]
        %v5154 = vld [vmem:[%s5 + $0x4d0] sm:$0xff]
        %v5155 = vld [vmem:[%s5 + $0x4d8] sm:$0xff]
        %v5156 = vld [vmem:[%s5 + $0x4e0] sm:$0xff]
        %v5157 = vld [vmem:[%s5 + $0x4e8] sm:$0xff]
        %v5158 = vld [vmem:[%s5 + $0x4f0] sm:$0xff]
        %v5159 = vld [vmem:[%s5 + $0x4f8] sm:$0xff]
        %v5160 = vld [vmem:[%s5 + $0x500] sm:$0xff]
        %v5161 = vld [vmem:[%s5 + $0x508] sm:$0xff]
        %v5162 = vld [vmem:[%s5 + $0x510] sm:$0xff]
        %v5163 = vld [vmem:[%s5 + $0x518] sm:$0xff]
        %v5164 = vld [vmem:[%s5 + $0x520] sm:$0xff]
        %v5165 = vld [vmem:[%s5 + $0x528] sm:$0xff]
        %v5166 = vld [vmem:[%s5 + $0x530] sm:$0xff]
        %v5167 = vld [vmem:[%s5 + $0x538] sm:$0xff]
        %v5168 = vld [vmem:[%s5 + $0x540] sm:$0xff]
        %v5169 = vld [vmem:[%s5 + $0x548] sm:$0xff]
        %v5170 = vld [vmem:[%s5 + $0x550] sm:$0xff]
        %v5171 = vld [vmem:[%s5 + $0x558] sm:$0xff]
        %v5172 = vld [vmem:[%s5 + $0x560] sm:$0xff]
        %v5173 = vld [vmem:[%s5 + $0x568] sm:$0xff]
        %v5174 = vld [vmem:[%s5 + $0x570] sm:$0xff]
        %v5175 = vld [vmem:[%s5 + $0x578] sm:$0xff]
        %v5176 = vld [vmem:[%s5 + $0x580] sm:$0xff]
        %v5177 = vld [vmem:[%s5 + $0x588] sm:$0xff]
        %v5178 = vld [vmem:[%s5 + $0x590] sm:$0xff]
        %v5179 = vld [vmem:[%s5 + $0x598] sm:$0xff]
        %v5180 = vld [vmem:[%s5 + $0x5a0] sm:$0xff]
        %v5181 = vld [vmem:[%s5 + $0x5a8] sm:$0xff]
        %v5182 = vld [vmem:[%s5 + $0x5b0] sm:$0xff]
        %v5183 = vld [vmem:[%s5 + $0x5b8] sm:$0xff]
        %v5184 = vld [vmem:[%s5 + $0x5c0] sm:$0xff]
        %v5185 = vld [vmem:[%s5 + $0x5c8] sm:$0xff]
        %v5186 = vld [vmem:[%s5 + $0x5d0] sm:$0xff]
        %v5187 = vld [vmem:[%s5 + $0x5d8] sm:$0xff]
        %v5188 = vld [vmem:[%s5 + $0x5e0] sm:$0xff]
        %v5189 = vld [vmem:[%s5 + $0x5e8] sm:$0xff]
        %v5190 = vld [vmem:[%s5 + $0x5f0] sm:$0xff]
        %v5191 = vld [vmem:[%s5 + $0x5f8] sm:$0xff]
        %v5192 = vld [vmem:[%s5 + $0x600] sm:$0xff]
        %v5193 = vld [vmem:[%s5 + $0x608] sm:$0xff]
        %v5194 = vld [vmem:[%s5 + $0x610] sm:$0xff]
        %v5195 = vld [vmem:[%s5 + $0x618] sm:$0xff]
        %v5196 = vld [vmem:[%s5 + $0x620] sm:$0xff]
        %v5197 = vld [vmem:[%s5 + $0x628] sm:$0xff]
        %v5198 = vld [vmem:[%s5 + $0x630] sm:$0xff]
        %v5199 = vld [vmem:[%s5 + $0x638] sm:$0xff]
        %v5200 = vld [vmem:[%s5 + $0x640] sm:$0xff]
        %v5201 = vld [vmem:[%s5 + $0x648] sm:$0xff]
        %v5202 = vld [vmem:[%s5 + $0x650] sm:$0xff]
        %v5203 = vld [vmem:[%s5 + $0x658] sm:$0xff]
        %v5204 = vld [vmem:[%s5 + $0x660] sm:$0xff]
        %v5205 = vld [vmem:[%s5 + $0x668] sm:$0xff]
        %v5206 = vld [vmem:[%s5 + $0x670] sm:$0xff]
        %v5207 = vld [vmem:[%s5 + $0x678] sm:$0xff]
        %v5208 = vld [vmem:[%s5 + $0x680] sm:$0xff]
        %v5209 = vld [vmem:[%s5 + $0x688] sm:$0xff]
        %v5210 = vld [vmem:[%s5 + $0x690] sm:$0xff]
        %v5211 = vld [vmem:[%s5 + $0x698] sm:$0xff]
        %v5212 = vld [vmem:[%s5 + $0x6a0] sm:$0xff]
        %v5213 = vld [vmem:[%s5 + $0x6a8] sm:$0xff]
        %v5214 = vld [vmem:[%s5 + $0x6b0] sm:$0xff]
        %v5215 = vld [vmem:[%s5 + $0x6b8] sm:$0xff]
        %v5216 = vld [vmem:[%s5 + $0x6c0] sm:$0xff]
        %v5217 = vld [vmem:[%s5 + $0x6c8] sm:$0xff]
        %v5218 = vld [vmem:[%s5 + $0x6d0] sm:$0xff]
        %v5219 = vld [vmem:[%s5 + $0x6d8] sm:$0xff]
        %v5220 = vld [vmem:[%s5 + $0x6e0] sm:$0xff]
        %v5221 = vld [vmem:[%s5 + $0x6e8] sm:$0xff]
        %v5222 = vld [vmem:[%s5 + $0x6f0] sm:$0xff]
        %v5223 = vld [vmem:[%s5 + $0x6f8] sm:$0xff]
        %v5224 = vld [vmem:[%s5 + $0x700] sm:$0xff]
        %v5225 = vld [vmem:[%s5 + $0x708] sm:$0xff]
        %v5226 = vld [vmem:[%s5 + $0x710] sm:$0xff]
        %v5227 = vld [vmem:[%s5 + $0x718] sm:$0xff]
        %v5228 = vld [vmem:[%s5 + $0x720] sm:$0xff]
        %v5229 = vld [vmem:[%s5 + $0x728] sm:$0xff]
        %v5230 = vld [vmem:[%s5 + $0x730] sm:$0xff]
        %v5231 = vld [vmem:[%s5 + $0x738] sm:$0xff]
        %v5232 = vld [vmem:[%s5 + $0x740] sm:$0xff]
        %v5233 = vld [vmem:[%s5 + $0x748] sm:$0xff]
        %v5234 = vld [vmem:[%s5 + $0x750] sm:$0xff]
        %v5235 = vld [vmem:[%s5 + $0x758] sm:$0xff]
        %v5236 = vld [vmem:[%s5 + $0x760] sm:$0xff]
        %v5237 = vld [vmem:[%s5 + $0x768] sm:$0xff]
        %v5238 = vld [vmem:[%s5 + $0x770] sm:$0xff]
        %v5239 = vld [vmem:[%s5 + $0x778] sm:$0xff]
        %v5240 = vld [vmem:[%s5 + $0x780] sm:$0xff]
        %v5241 = vld [vmem:[%s5 + $0x788] sm:$0xff]
        %v5242 = vld [vmem:[%s5 + $0x790] sm:$0xff]
        %v5243 = vld [vmem:[%s5 + $0x798] sm:$0xff]
        %v5244 = vld [vmem:[%s5 + $0x7a0] sm:$0xff]
        %v5245 = vld [vmem:[%s5 + $0x7a8] sm:$0xff]
        %v5246 = vld [vmem:[%s5 + $0x7b0] sm:$0xff]
        %v5247 = vld [vmem:[%s5 + $0x7b8] sm:$0xff]
        %v5248 = vld [vmem:[%s5 + $0x7c0] sm:$0xff]
        %v5249 = vld [vmem:[%s5 + $0x7c8] sm:$0xff]
        %v5250 = vld [vmem:[%s5 + $0x7d0] sm:$0xff]
        %v5251 = vld [vmem:[%s5 + $0x7d8] sm:$0xff]
        %v5252 = vld [vmem:[%s5 + $0x7e0] sm:$0xff]
        %v5253 = vld [vmem:[%s5 + $0x7e8] sm:$0xff]
        %v5254 = vld [vmem:[%s5 + $0x7f0] sm:$0xff]
        %v5255 = vld [vmem:[%s5 + $0x7f8] sm:$0xff]
        %v5256 = vld [vmem:[%s5 + $0x800] sm:$0xff]
        %v5257 = vld [vmem:[%s5 + $0x808] sm:$0xff]
        %v5258 = vld [vmem:[%s5 + $0x810] sm:$0xff]
        %v5259 = vld [vmem:[%s5 + $0x818] sm:$0xff]
        %v5260 = vld [vmem:[%s5 + $0x820] sm:$0xff]
        %v5261 = vld [vmem:[%s5 + $0x828] sm:$0xff]
        %v5262 = vld [vmem:[%s5 + $0x830] sm:$0xff]
        %v5263 = vld [vmem:[%s5 + $0x838] sm:$0xff]
        %v5264 = vld [vmem:[%s5 + $0x840] sm:$0xff]
        %v5265 = vld [vmem:[%s5 + $0x848] sm:$0xff]
        %v5266 = vld [vmem:[%s5 + $0x850] sm:$0xff]
        %v5267 = vld [vmem:[%s5 + $0x858] sm:$0xff]
        %v5268 = vld [vmem:[%s5 + $0x860] sm:$0xff]
        %v5269 = vld [vmem:[%s5 + $0x868] sm:$0xff]
        %v5270 = vld [vmem:[%s5 + $0x870] sm:$0xff]
        %v5271 = vld [vmem:[%s5 + $0x878] sm:$0xff]
        %v5272 = vld [vmem:[%s5 + $0x880] sm:$0xff]
        %v5273 = vld [vmem:[%s5 + $0x888] sm:$0xff]
        %v5274 = vld [vmem:[%s5 + $0x890] sm:$0xff]
        %v5275 = vld [vmem:[%s5 + $0x898] sm:$0xff]
        %v5276 = vld [vmem:[%s5 + $0x8a0] sm:$0xff]
        %v5277 = vld [vmem:[%s5 + $0x8a8] sm:$0xff]
        %v5278 = vld [vmem:[%s5 + $0x8b0] sm:$0xff]
        %v5279 = vld [vmem:[%s5 + $0x8b8] sm:$0xff]
        %v5280 = vld [vmem:[%s5 + $0x8c0] sm:$0xff]
        %v5281 = vld [vmem:[%s5 + $0x8c8] sm:$0xff]
        %v5282 = vld [vmem:[%s5 + $0x8d0] sm:$0xff]
        %v5283 = vld [vmem:[%s5 + $0x8d8] sm:$0xff]
        %v5284 = vld [vmem:[%s5 + $0x8e0] sm:$0xff]
        %v5285 = vld [vmem:[%s5 + $0x8e8] sm:$0xff]
        %v5286 = vld [vmem:[%s5 + $0x8f0] sm:$0xff]
        %v5287 = vld [vmem:[%s5 + $0x8f8] sm:$0xff]
        %v5288 = vld [vmem:[%s5 + $0x900] sm:$0xff]
        %v5289 = vld [vmem:[%s5 + $0x908] sm:$0xff]
        %v5290 = vld [vmem:[%s5 + $0x910] sm:$0xff]
        %v5291 = vld [vmem:[%s5 + $0x918] sm:$0xff]
        %v5292 = vld [vmem:[%s5 + $0x920] sm:$0xff]
        %v5293 = vld [vmem:[%s5 + $0x928] sm:$0xff]
        %v5294 = vld [vmem:[%s5 + $0x930] sm:$0xff]
        %v5295 = vld [vmem:[%s5 + $0x938] sm:$0xff]
        %v5296 = vld [vmem:[%s5 + $0x940] sm:$0xff]
        %v5297 = vld [vmem:[%s5 + $0x948] sm:$0xff]
        %v5298 = vld [vmem:[%s5 + $0x950] sm:$0xff]
        %v5299 = vld [vmem:[%s5 + $0x958] sm:$0xff]
        %v5300 = vld [vmem:[%s5 + $0x960] sm:$0xff]
        %v5301 = vld [vmem:[%s5 + $0x968] sm:$0xff]
        %v5302 = vld [vmem:[%s5 + $0x970] sm:$0xff]
        %v5303 = vld [vmem:[%s5 + $0x978] sm:$0xff]
        %v5304 = vld [vmem:[%s5 + $0x980] sm:$0xff]
        %v5305 = vld [vmem:[%s5 + $0x988] sm:$0xff]
        %v5306 = vld [vmem:[%s5 + $0x990] sm:$0xff]
        %v5307 = vld [vmem:[%s5 + $0x998] sm:$0xff]
        %v5308 = vld [vmem:[%s5 + $0x9a0] sm:$0xff]
        %v5309 = vld [vmem:[%s5 + $0x9a8] sm:$0xff]
        %v5310 = vld [vmem:[%s5 + $0x9b0] sm:$0xff]
        %v5311 = vld [vmem:[%s5 + $0x9b8] sm:$0xff]
        %v5312 = vld [vmem:[%s5 + $0x9c0] sm:$0xff]
        %v5313 = vld [vmem:[%s5 + $0x9c8] sm:$0xff]
        %v5314 = vld [vmem:[%s5 + $0x9d0] sm:$0xff]
        %v5315 = vld [vmem:[%s5 + $0x9d8] sm:$0xff]
        %v5316 = vld [vmem:[%s5 + $0x9e0] sm:$0xff]
        %v5317 = vld [vmem:[%s5 + $0x9e8] sm:$0xff]
        %v5318 = vld [vmem:[%s5 + $0x9f0] sm:$0xff]
        %v5319 = vld [vmem:[%s5 + $0x9f8] sm:$0xff]
        %v5320 = vld [vmem:[%s5 + $0xa00] sm:$0xff]
        %v5321 = vld [vmem:[%s5 + $0xa08] sm:$0xff]
        %v5322 = vld [vmem:[%s5 + $0xa10] sm:$0xff]
        %v5323 = vld [vmem:[%s5 + $0xa18] sm:$0xff]
        %v5324 = vld [vmem:[%s5 + $0xa20] sm:$0xff]
        %v5325 = vld [vmem:[%s5 + $0xa28] sm:$0xff]
        %v5326 = vld [vmem:[%s5 + $0xa30] sm:$0xff]
        %v5327 = vld [vmem:[%s5 + $0xa38] sm:$0xff]
        %v5328 = vld [vmem:[%s5 + $0xa40] sm:$0xff]
        %v5329 = vld [vmem:[%s5 + $0xa48] sm:$0xff]
        %v5330 = vld [vmem:[%s5 + $0xa50] sm:$0xff]
        %v5331 = vld [vmem:[%s5 + $0xa58] sm:$0xff]
        %v5332 = vld [vmem:[%s5 + $0xa60] sm:$0xff]
        %v5333 = vld [vmem:[%s5 + $0xa68] sm:$0xff]
        %v5334 = vld [vmem:[%s5 + $0xa70] sm:$0xff]
        %v5335 = vld [vmem:[%s5 + $0xa78] sm:$0xff]
        %v5336 = vld [vmem:[%s5 + $0xa80] sm:$0xff]
        %v5337 = vld [vmem:[%s5 + $0xa88] sm:$0xff]
        %v5338 = vld [vmem:[%s6] sm:$0x1]
        %v5339 = vsel %vm4925, %v4985, 0
        %5341 = vmatpush.msra.mxu0 %v5015
        %5342 = vmatpush.msra.mxu0 %v5014
        %5343 = vmatpush.msra.mxu0 %v5013
        %5344 = vmatpush.msra.mxu0 %v5012
        %5345 = vmatpush.msra.mxu0 %v5011
        %5346 = vmatpush.msra.mxu0 %v5010
        %5347 = vmatpush.msra.mxu0 %v5009
        %5348 = vmatpush.msra.mxu0 %v5008
        %5349 = vmatpush.msra.mxu0 %v5007
        %5350 = vmatpush.msra.mxu0 %v5006
        %5351 = vmatpush.msra.mxu0 %v5005
        %5352 = vmatpush.msra.mxu0 %v5004
        %5353 = vmatpush.msra.mxu0 %v5003
        %5354 = vmatpush.msra.mxu0 %v5002
        %5355 = vmatpush.msra.mxu0 %v5001
        %5356 = vmatpush.msra.mxu0 %v5000
        %5357 = vmatmul.f32.gmra.mxu0 %v4871
        %v5358 = vpop.f32.mrf.mxu0
        %v5359 = vadd.f32 %v5338, %v5358
        %5360 = vdwg.mxu0
        %5361 = vmatpush.msra.mxu0 %v5031
        %5362 = vmatpush.msra.mxu0 %v5030
        %5363 = vmatpush.msra.mxu0 %v5029
        %5364 = vmatpush.msra.mxu0 %v5028
        %5365 = vmatpush.msra.mxu0 %v5027
        %5366 = vmatpush.msra.mxu0 %v5026
        %5367 = vmatpush.msra.mxu0 %v5025
        %5368 = vmatpush.msra.mxu0 %v5024
        %5369 = vmatpush.msra.mxu0 %v5023
        %5370 = vmatpush.msra.mxu0 %v5022
        %5371 = vmatpush.msra.mxu0 %v5021
        %5372 = vmatpush.msra.mxu0 %v5020
        %5373 = vmatpush.msra.mxu0 %v5019
        %5374 = vmatpush.msra.mxu0 %v5018
        %5375 = vmatpush.msra.mxu0 %v5017
        %5376 = vmatpush.msra.mxu0 %v5016
        %5377 = vmatmul.f32.gmra.mxu0 %v4989
        %v5378 = vpop.f32.mrf.mxu0
        %v5379 = vadd.f32 %v5359, %v5378
        %5380 = vdwg.mxu0
        %5381 = vmatpush.msra.mxu0 %v5047
        %5382 = vmatpush.msra.mxu0 %v5046
        %5383 = vmatpush.msra.mxu0 %v5045
        %5384 = vmatpush.msra.mxu0 %v5044
        %5385 = vmatpush.msra.mxu0 %v5043
        %5386 = vmatpush.msra.mxu0 %v5042
        %5387 = vmatpush.msra.mxu0 %v5041
        %5388 = vmatpush.msra.mxu0 %v5040
        %5389 = vmatpush.msra.mxu0 %v5039
        %5390 = vmatpush.msra.mxu0 %v5038
        %5391 = vmatpush.msra.mxu0 %v5037
        %5392 = vmatpush.msra.mxu0 %v5036
        %5393 = vmatpush.msra.mxu0 %v5035
        %5394 = vmatpush.msra.mxu0 %v5034
        %5395 = vmatpush.msra.mxu0 %v5033
        %5396 = vmatpush.msra.mxu0 %v5032
        %5397 = vmatmul.f32.gmra.mxu0 %v4883
        %v5398 = vpop.f32.mrf.mxu0
        %v5399 = vadd.f32 %v5379, %v5398
        %5400 = vdwg.mxu0
        %5401 = vmatpush.msra.mxu0 %v5063
        %5402 = vmatpush.msra.mxu0 %v5062
        %5403 = vmatpush.msra.mxu0 %v5061
        %5404 = vmatpush.msra.mxu0 %v5060
        %5405 = vmatpush.msra.mxu0 %v5059
        %5406 = vmatpush.msra.mxu0 %v5058
        %5407 = vmatpush.msra.mxu0 %v5057
        %5408 = vmatpush.msra.mxu0 %v5056
        %5409 = vmatpush.msra.mxu0 %v5055
        %5410 = vmatpush.msra.mxu0 %v5054
        %5411 = vmatpush.msra.mxu0 %v5053
        %5412 = vmatpush.msra.mxu0 %v5052
        %5413 = vmatpush.msra.mxu0 %v5051
        %5414 = vmatpush.msra.mxu0 %v5050
        %5415 = vmatpush.msra.mxu0 %v5049
        %5416 = vmatpush.msra.mxu0 %v5048
        %5417 = vmatmul.f32.gmra.mxu0 %v4990
        %v5418 = vpop.f32.mrf.mxu0
        %v5419 = vadd.f32 %v5399, %v5418
        %5420 = vdwg.mxu0
        %5421 = vmatpush.msra.mxu0 %v5079
        %5422 = vmatpush.msra.mxu0 %v5078
        %5423 = vmatpush.msra.mxu0 %v5077
        %5424 = vmatpush.msra.mxu0 %v5076
        %5425 = vmatpush.msra.mxu0 %v5075
        %5426 = vmatpush.msra.mxu0 %v5074
        %5427 = vmatpush.msra.mxu0 %v5073
        %5428 = vmatpush.msra.mxu0 %v5072
        %5429 = vmatpush.msra.mxu0 %v5071
        %5430 = vmatpush.msra.mxu0 %v5070
        %5431 = vmatpush.msra.mxu0 %v5069
        %5432 = vmatpush.msra.mxu0 %v5068
        %5433 = vmatpush.msra.mxu0 %v5067
        %5434 = vmatpush.msra.mxu0 %v5066
        %5435 = vmatpush.msra.mxu0 %v5065
        %5436 = vmatpush.msra.mxu0 %v5064
        %5437 = vmatmul.f32.gmra.mxu0 %v4991
        %v5438 = vpop.f32.mrf.mxu0
        %v5439 = vadd.f32 %v5419, %v5438
        %5440 = vdwg.mxu0
        %5441 = vmatpush.msra.mxu0 %v5095
        %5442 = vmatpush.msra.mxu0 %v5094
        %5443 = vmatpush.msra.mxu0 %v5093
        %5444 = vmatpush.msra.mxu0 %v5092
        %5445 = vmatpush.msra.mxu0 %v5091
        %5446 = vmatpush.msra.mxu0 %v5090
        %5447 = vmatpush.msra.mxu0 %v5089
        %5448 = vmatpush.msra.mxu0 %v5088
        %5449 = vmatpush.msra.mxu0 %v5087
        %5450 = vmatpush.msra.mxu0 %v5086
        %5451 = vmatpush.msra.mxu0 %v5085
        %5452 = vmatpush.msra.mxu0 %v5084
        %5453 = vmatpush.msra.mxu0 %v5083
        %5454 = vmatpush.msra.mxu0 %v5082
        %5455 = vmatpush.msra.mxu0 %v5081
        %5456 = vmatpush.msra.mxu0 %v5080
        %5457 = vmatmul.f32.gmra.mxu0 %v4904
        %v5458 = vpop.f32.mrf.mxu0
        %v5459 = vadd.f32 %v5439, %v5458
        %5460 = vdwg.mxu0
        %5461 = vmatpush.msra.mxu0 %v5111
        %5462 = vmatpush.msra.mxu0 %v5110
        %5463 = vmatpush.msra.mxu0 %v5109
        %5464 = vmatpush.msra.mxu0 %v5108
        %5465 = vmatpush.msra.mxu0 %v5107
        %5466 = vmatpush.msra.mxu0 %v5106
        %5467 = vmatpush.msra.mxu0 %v5105
        %5468 = vmatpush.msra.mxu0 %v5104
        %5469 = vmatpush.msra.mxu0 %v5103
        %5470 = vmatpush.msra.mxu0 %v5102
        %5471 = vmatpush.msra.mxu0 %v5101
        %5472 = vmatpush.msra.mxu0 %v5100
        %5473 = vmatpush.msra.mxu0 %v5099
        %5474 = vmatpush.msra.mxu0 %v5098
        %5475 = vmatpush.msra.mxu0 %v5097
        %5476 = vmatpush.msra.mxu0 %v5096
        %5477 = vmatmul.f32.gmra.mxu0 %v4992
        %v5478 = vpop.f32.mrf.mxu0
        %v5479 = vadd.f32 %v5459, %v5478
        %5480 = vdwg.mxu0
        %5481 = vmatpush.msra.mxu0 %v5127
        %5482 = vmatpush.msra.mxu0 %v5126
        %5483 = vmatpush.msra.mxu0 %v5125
        %5484 = vmatpush.msra.mxu0 %v5124
        %5485 = vmatpush.msra.mxu0 %v5123
        %5486 = vmatpush.msra.mxu0 %v5122
        %5487 = vmatpush.msra.mxu0 %v5121
        %5488 = vmatpush.msra.mxu0 %v5120
        %5489 = vmatpush.msra.mxu0 %v5119
        %5490 = vmatpush.msra.mxu0 %v5118
        %5491 = vmatpush.msra.mxu0 %v5117
        %5492 = vmatpush.msra.mxu0 %v5116
        %5493 = vmatpush.msra.mxu0 %v5115
        %5494 = vmatpush.msra.mxu0 %v5114
        %5495 = vmatpush.msra.mxu0 %v5113
        %5496 = vmatpush.msra.mxu0 %v5112
        %5497 = vmatmul.f32.gmra.mxu0 %v4915
        %v5498 = vpop.f32.mrf.mxu0
        %v5499 = vadd.f32 %v5479, %v5498
        %5500 = vdwg.mxu0
        %5501 = vmatpush.msra.mxu0 %v5143
        %5502 = vmatpush.msra.mxu0 %v5142
        %5503 = vmatpush.msra.mxu0 %v5141
        %5504 = vmatpush.msra.mxu0 %v5140
        %5505 = vmatpush.msra.mxu0 %v5139
        %5506 = vmatpush.msra.mxu0 %v5138
        %5507 = vmatpush.msra.mxu0 %v5137
        %5508 = vmatpush.msra.mxu0 %v5136
        %5509 = vmatpush.msra.mxu0 %v5135
        %5510 = vmatpush.msra.mxu0 %v5134
        %5511 = vmatpush.msra.mxu0 %v5133
        %5512 = vmatpush.msra.mxu0 %v5132
        %5513 = vmatpush.msra.mxu0 %v5131
        %5514 = vmatpush.msra.mxu0 %v5130
        %5515 = vmatpush.msra.mxu0 %v5129
        %5516 = vmatpush.msra.mxu0 %v5128
        %5517 = vmatmul.f32.gmra.mxu0 %v4993
        %v5518 = vpop.f32.mrf.mxu0
        %v5519 = vadd.f32 %v5499, %v5518
        %5520 = vdwg.mxu0
        %5521 = vmatpush.msra.mxu0 %v5159
        %5522 = vmatpush.msra.mxu0 %v5158
        %5523 = vmatpush.msra.mxu0 %v5157
        %5524 = vmatpush.msra.mxu0 %v5156
        %5525 = vmatpush.msra.mxu0 %v5155
        %5526 = vmatpush.msra.mxu0 %v5154
        %5527 = vmatpush.msra.mxu0 %v5153
        %5528 = vmatpush.msra.mxu0 %v5152
        %5529 = vmatpush.msra.mxu0 %v5151
        %5530 = vmatpush.msra.mxu0 %v5150
        %5531 = vmatpush.msra.mxu0 %v5149
        %5532 = vmatpush.msra.mxu0 %v5148
        %5533 = vmatpush.msra.mxu0 %v5147
        %5534 = vmatpush.msra.mxu0 %v5146
        %5535 = vmatpush.msra.mxu0 %v5145
        %5536 = vmatpush.msra.mxu0 %v5144
        %5537 = vmatmul.f32.gmra.mxu0 %v4994
        %v5538 = vpop.f32.mrf.mxu0
        %v5539 = vadd.f32 %v5519, %v5538
        %5540 = vdwg.mxu0
        %5541 = vmatpush.msra.mxu0 %v5175
        %5542 = vmatpush.msra.mxu0 %v5174
        %5543 = vmatpush.msra.mxu0 %v5173
        %5544 = vmatpush.msra.mxu0 %v5172
        %5545 = vmatpush.msra.mxu0 %v5171
        %5546 = vmatpush.msra.mxu0 %v5170
        %5547 = vmatpush.msra.mxu0 %v5169
        %5548 = vmatpush.msra.mxu0 %v5168
        %5549 = vmatpush.msra.mxu0 %v5167
        %5550 = vmatpush.msra.mxu0 %v5166
        %5551 = vmatpush.msra.mxu0 %v5165
        %5552 = vmatpush.msra.mxu0 %v5164
        %5553 = vmatpush.msra.mxu0 %v5163
        %5554 = vmatpush.msra.mxu0 %v5162
        %5555 = vmatpush.msra.mxu0 %v5161
        %5556 = vmatpush.msra.mxu0 %v5160
        %5557 = vmatmul.f32.gmra.mxu0 %v4936
        %v5558 = vpop.f32.mrf.mxu0
        %v5559 = vadd.f32 %v5539, %v5558
        %5560 = vdwg.mxu0
        %5561 = vmatpush.msra.mxu0 %v5191
        %5562 = vmatpush.msra.mxu0 %v5190
        %5563 = vmatpush.msra.mxu0 %v5189
        %5564 = vmatpush.msra.mxu0 %v5188
        %5565 = vmatpush.msra.mxu0 %v5187
        %5566 = vmatpush.msra.mxu0 %v5186
        %5567 = vmatpush.msra.mxu0 %v5185
        %5568 = vmatpush.msra.mxu0 %v5184
        %5569 = vmatpush.msra.mxu0 %v5183
        %5570 = vmatpush.msra.mxu0 %v5182
        %5571 = vmatpush.msra.mxu0 %v5181
        %5572 = vmatpush.msra.mxu0 %v5180
        %5573 = vmatpush.msra.mxu0 %v5179
        %5574 = vmatpush.msra.mxu0 %v5178
        %5575 = vmatpush.msra.mxu0 %v5177
        %5576 = vmatpush.msra.mxu0 %v5176
        %5577 = vmatmul.f32.gmra.mxu0 %v4995
        %v5578 = vpop.f32.mrf.mxu0
        %v5579 = vadd.f32 %v5559, %v5578
        %5580 = vdwg.mxu0
        %5581 = vmatpush.msra.mxu0 %v5207
        %5582 = vmatpush.msra.mxu0 %v5206
        %5583 = vmatpush.msra.mxu0 %v5205
        %5584 = vmatpush.msra.mxu0 %v5204
        %5585 = vmatpush.msra.mxu0 %v5203
        %5586 = vmatpush.msra.mxu0 %v5202
        %5587 = vmatpush.msra.mxu0 %v5201
        %5588 = vmatpush.msra.mxu0 %v5200
        %5589 = vmatpush.msra.mxu0 %v5199
        %5590 = vmatpush.msra.mxu0 %v5198
        %5591 = vmatpush.msra.mxu0 %v5197
        %5592 = vmatpush.msra.mxu0 %v5196
        %5593 = vmatpush.msra.mxu0 %v5195
        %5594 = vmatpush.msra.mxu0 %v5194
        %5595 = vmatpush.msra.mxu0 %v5193
        %5596 = vmatpush.msra.mxu0 %v5192
        %5597 = vmatmul.f32.gmra.mxu0 %v4946
        %v5598 = vpop.f32.mrf.mxu0
        %v5599 = vadd.f32 %v5579, %v5598
        %5600 = vdwg.mxu0
        %5601 = vmatpush.msra.mxu0 %v5223
        %5602 = vmatpush.msra.mxu0 %v5222
        %5603 = vmatpush.msra.mxu0 %v5221
        %5604 = vmatpush.msra.mxu0 %v5220
        %5605 = vmatpush.msra.mxu0 %v5219
        %5606 = vmatpush.msra.mxu0 %v5218
        %5607 = vmatpush.msra.mxu0 %v5217
        %5608 = vmatpush.msra.mxu0 %v5216
        %5609 = vmatpush.msra.mxu0 %v5215
        %5610 = vmatpush.msra.mxu0 %v5214
        %5611 = vmatpush.msra.mxu0 %v5213
        %5612 = vmatpush.msra.mxu0 %v5212
        %5613 = vmatpush.msra.mxu0 %v5211
        %5614 = vmatpush.msra.mxu0 %v5210
        %5615 = vmatpush.msra.mxu0 %v5209
        %5616 = vmatpush.msra.mxu0 %v5208
        %5617 = vmatmul.f32.gmra.mxu0 %v4873
        %v5618 = vpop.f32.mrf.mxu0
        %v5619 = vadd.f32 %v5599, %v5618
        %5620 = vdwg.mxu0
        %5621 = vmatpush.msra.mxu0 %v5239
        %5622 = vmatpush.msra.mxu0 %v5238
        %5623 = vmatpush.msra.mxu0 %v5237
        %5624 = vmatpush.msra.mxu0 %v5236
        %5625 = vmatpush.msra.mxu0 %v5235
        %5626 = vmatpush.msra.mxu0 %v5234
        %5627 = vmatpush.msra.mxu0 %v5233
        %5628 = vmatpush.msra.mxu0 %v5232
        %5629 = vmatpush.msra.mxu0 %v5231
        %5630 = vmatpush.msra.mxu0 %v5230
        %5631 = vmatpush.msra.mxu0 %v5229
        %5632 = vmatpush.msra.mxu0 %v5228
        %5633 = vmatpush.msra.mxu0 %v5227
        %5634 = vmatpush.msra.mxu0 %v5226
        %5635 = vmatpush.msra.mxu0 %v5225
        %5636 = vmatpush.msra.mxu0 %v5224
        %5637 = vmatmul.f32.gmra.mxu0 %v4996
        %v5638 = vpop.f32.mrf.mxu0
        %v5639 = vadd.f32 %v5619, %v5638
        %5640 = vdwg.mxu0
        %5641 = vmatpush.msra.mxu0 %v5255
        %5642 = vmatpush.msra.mxu0 %v5254
        %5643 = vmatpush.msra.mxu0 %v5253
        %5644 = vmatpush.msra.mxu0 %v5252
        %5645 = vmatpush.msra.mxu0 %v5251
        %5646 = vmatpush.msra.mxu0 %v5250
        %5647 = vmatpush.msra.mxu0 %v5249
        %5648 = vmatpush.msra.mxu0 %v5248
        %5649 = vmatpush.msra.mxu0 %v5247
        %5650 = vmatpush.msra.mxu0 %v5246
        %5651 = vmatpush.msra.mxu0 %v5245
        %5652 = vmatpush.msra.mxu0 %v5244
        %5653 = vmatpush.msra.mxu0 %v5243
        %5654 = vmatpush.msra.mxu0 %v5242
        %5655 = vmatpush.msra.mxu0 %v5241
        %5656 = vmatpush.msra.mxu0 %v5240
        %5657 = vmatmul.f32.gmra.mxu0 %v4957
        %v5658 = vpop.f32.mrf.mxu0
        %v5659 = vadd.f32 %v5639, %v5658
        %5660 = vdwg.mxu0
        %5661 = vmatpush.msra.mxu0 %v5271
        %5662 = vmatpush.msra.mxu0 %v5270
        %5663 = vmatpush.msra.mxu0 %v5269
        %5664 = vmatpush.msra.mxu0 %v5268
        %5665 = vmatpush.msra.mxu0 %v5267
        %5666 = vmatpush.msra.mxu0 %v5266
        %5667 = vmatpush.msra.mxu0 %v5265
        %5668 = vmatpush.msra.mxu0 %v5264
        %5669 = vmatpush.msra.mxu0 %v5263
        %5670 = vmatpush.msra.mxu0 %v5262
        %5671 = vmatpush.msra.mxu0 %v5261
        %5672 = vmatpush.msra.mxu0 %v5260
        %5673 = vmatpush.msra.mxu0 %v5259
        %5674 = vmatpush.msra.mxu0 %v5258
        %5675 = vmatpush.msra.mxu0 %v5257
        %5676 = vmatpush.msra.mxu0 %v5256
        %5677 = vmatmul.f32.gmra.mxu0 %v4997
        %v5678 = vpop.f32.mrf.mxu0
        %v5679 = vadd.f32 %v5659, %v5678
        %5680 = vdwg.mxu0
        %5681 = vmatpush.msra.mxu0 %v5287
        %5682 = vmatpush.msra.mxu0 %v5286
        %5683 = vmatpush.msra.mxu0 %v5285
        %5684 = vmatpush.msra.mxu0 %v5284
        %5685 = vmatpush.msra.mxu0 %v5283
        %5686 = vmatpush.msra.mxu0 %v5282
        %5687 = vmatpush.msra.mxu0 %v5281
        %5688 = vmatpush.msra.mxu0 %v5280
        %5689 = vmatpush.msra.mxu0 %v5279
        %5690 = vmatpush.msra.mxu0 %v5278
        %5691 = vmatpush.msra.mxu0 %v5277
        %5692 = vmatpush.msra.mxu0 %v5276
        %5693 = vmatpush.msra.mxu0 %v5275
        %5694 = vmatpush.msra.mxu0 %v5274
        %5695 = vmatpush.msra.mxu0 %v5273
        %5696 = vmatpush.msra.mxu0 %v5272
        %5697 = vmatmul.f32.gmra.mxu0 %v4998
        %v5698 = vpop.f32.mrf.mxu0
        %v5699 = vadd.f32 %v5679, %v5698
        %5700 = vdwg.mxu0
        %5701 = vmatpush.msra.mxu0 %v5303
        %5702 = vmatpush.msra.mxu0 %v5302
        %5703 = vmatpush.msra.mxu0 %v5301
        %5704 = vmatpush.msra.mxu0 %v5300
        %5705 = vmatpush.msra.mxu0 %v5299
        %5706 = vmatpush.msra.mxu0 %v5298
        %5707 = vmatpush.msra.mxu0 %v5297
        %5708 = vmatpush.msra.mxu0 %v5296
        %5709 = vmatpush.msra.mxu0 %v5295
        %5710 = vmatpush.msra.mxu0 %v5294
        %5711 = vmatpush.msra.mxu0 %v5293
        %5712 = vmatpush.msra.mxu0 %v5292
        %5713 = vmatpush.msra.mxu0 %v5291
        %5714 = vmatpush.msra.mxu0 %v5290
        %5715 = vmatpush.msra.mxu0 %v5289
        %5716 = vmatpush.msra.mxu0 %v5288
        %5717 = vmatmul.f32.gmra.mxu0 %v4976
        %v5718 = vpop.f32.mrf.mxu0
        %v5719 = vadd.f32 %v5699, %v5718
        %5720 = vdwg.mxu0
        %5721 = vmatpush.msra.mxu0 %v5319
        %5722 = vmatpush.msra.mxu0 %v5318
        %5723 = vmatpush.msra.mxu0 %v5317
        %5724 = vmatpush.msra.mxu0 %v5316
        %5725 = vmatpush.msra.mxu0 %v5315
        %5726 = vmatpush.msra.mxu0 %v5314
        %5727 = vmatpush.msra.mxu0 %v5313
        %5728 = vmatpush.msra.mxu0 %v5312
        %5729 = vmatpush.msra.mxu0 %v5311
        %5730 = vmatpush.msra.mxu0 %v5310
        %5731 = vmatpush.msra.mxu0 %v5309
        %5732 = vmatpush.msra.mxu0 %v5308
        %5733 = vmatpush.msra.mxu0 %v5307
        %5734 = vmatpush.msra.mxu0 %v5306
        %5735 = vmatpush.msra.mxu0 %v5305
        %5736 = vmatpush.msra.mxu0 %v5304
        %5737 = vmatmul.f32.gmra.mxu0 %v4999
        %v5738 = vpop.f32.mrf.mxu0
        %v5739 = vadd.f32 %v5719, %v5738
        %5740 = vdwg.mxu0
        %5741 = vmatpush.msra.mxu0 %v5335
        %5742 = vmatpush.msra.mxu0 %v5334
        %5743 = vmatpush.msra.mxu0 %v5333
        %5744 = vmatpush.msra.mxu0 %v5332
        %5745 = vmatpush.msra.mxu0 %v5331
        %5746 = vmatpush.msra.mxu0 %v5330
        %5747 = vmatpush.msra.mxu0 %v5329
        %5748 = vmatpush.msra.mxu0 %v5328
        %5749 = vmatpush.msra.mxu0 %v5327
        %5750 = vmatpush.msra.mxu0 %v5326
        %5751 = vmatpush.msra.mxu0 %v5325
        %5752 = vmatpush.msra.mxu0 %v5324
        %5753 = vmatpush.msra.mxu0 %v5323
        %5754 = vmatpush.msra.mxu0 %v5322
        %5755 = vmatpush.msra.mxu0 %v5321
        %5756 = vmatpush.msra.mxu0 %v5320
        %5757 = vmatmul.f32.gmra.mxu0 %v4986
        %v5758 = vpop.f32.mrf.mxu0
        %v5759 = vadd.f32 %v5739, %v5758
        %5760 = vdwg.mxu0
        %5761 = vmatpush.msra.mxu0 0.0
        %5762 = vmatpush.msra.mxu0 0.0
        %5763 = vmatpush.msra.mxu0 0.0
        %5764 = vmatpush.msra.mxu0 0.0
        %5765 = vmatpush.msra.mxu0 0.0
        %5766 = vmatpush.msra.mxu0 0.0
        %5767 = vmatpush.msra.mxu0 0.0
        %5768 = vmatpush.msra.mxu0 0.0
        %5769 = vmatpush.msra.mxu0 0.0
        %5770 = vmatpush.msra.mxu0 0.0
        %5771 = vmatpush.msra.mxu0 0.0
        %5772 = vmatpush.msra.mxu0 0.0
        %5773 = vmatpush.msra.mxu0 0.0
        %5774 = vmatpush.msra.mxu0 0.0
        %5775 = vmatpush.msra.mxu0 %v5337
        %5776 = vmatpush.msra.mxu0 %v5336
        %5777 = vmatmul.f32.gmra.mxu0 %v5339
        %v5778 = vpop.f32.mrf.mxu0
        %v5779 = vadd.f32 %v5759, %v5778
        %5780 = vdwg.mxu0
        %v5781 = vmax.f32 %v5779, 0.0
        %v5782 = vld [vmem:[%s7] sm:$0xff]
        %v5783 = vld [vmem:[%s7 + $0x8] sm:$0xff]
        %v5784 = vld [vmem:[%s7 + $0x10] sm:$0xff]
        %v5785 = vld [vmem:[%s7 + $0x18] sm:$0xff]
        %v5786 = vld [vmem:[%s7 + $0x20] sm:$0xff]
        %v5787 = vld [vmem:[%s7 + $0x28] sm:$0xff]
        %v5788 = vld [vmem:[%s7 + $0x30] sm:$0xff]
        %v5789 = vld [vmem:[%s7 + $0x38] sm:$0xf]
        %v5790 = vld [vmem:[%s8] sm:$0x1]
        %vm5791 = vcmask 490496
        %v5793 = vsel %vm5791, %v5781, 0
        %v5796 = vsel %vm3190, %v5789, 0
        %5798 = vmatpush.msra.mxu0 0.0
        %5799 = vmatpush.msra.mxu0 0.0
        %5800 = vmatpush.msra.mxu0 0.0
        %5801 = vmatpush.msra.mxu0 0.0
        %5802 = vmatpush.msra.mxu0 0.0
        %5803 = vmatpush.msra.mxu0 0.0
        %5804 = vmatpush.msra.mxu0 0.0
        %5805 = vmatpush.msra.mxu0 0.0
        %5806 = vmatpush.msra.mxu0 %v5796
        %5807 = vmatpush.msra.mxu0 %v5788
        %5808 = vmatpush.msra.mxu0 %v5787
        %5809 = vmatpush.msra.mxu0 %v5786
        %5810 = vmatpush.msra.mxu0 %v5785
        %5811 = vmatpush.msra.mxu0 %v5784
        %5812 = vmatpush.msra.mxu0 %v5783
        %5813 = vmatpush.msra.mxu0 %v5782
        %5814 = vmatmul.f32.gmra.mxu0 %v5793
        %v5815 = vpop.f32.mrf.mxu0
        %v5816 = vadd.f32 %v5790, %v5815
        %5817 = vdwg.mxu0
        %vm5818 = vcmask 73728
        %5819 = vst.msk [vmem:[%s324] sm:$0x1] %vm5818, %v5816
        %s5820 = sand.u32 %s225, 1
        %s5821 = scalar_lea.sflag [#allocation3], %s5820
        %s5822 = sand.u32 %s225, 1
        %s5823 = scalar_lea.vmem [#allocation2], %s5822
        // Predicated region
        $region57: #{net_forward.1} parent=55 // pred_check
          %p5824 = pneg %p235
        $region58: #{net_forward.1} parent=55 // pred_check_branch
          %5826 = sbr.rel (%p5824) target = $region60
        $region59: #{net_forward.1} parent=55 // pred_region
          %5828 = vsyncadd %s5821, 0
          %s5829 = scalar_lea.hbm %s9, %s23
          %s5831 = sshll.u32 %s5823, 4
          %s5832 = int_to_ptr.vmem [resolvable:$true] %s5831
          %s5833 = sshll.u32 %s5829, 4
          %s5834 = int_to_ptr.hbm [resolvable:$true] %s5833
          %5836 = dma.vmem_to_hbm [thread:$0]  %s5832, 16, %s5834, %s5821
        $region60: #{net_forward.1} parent=55 // pred_fallthru
          _
      $region56: #{net_forward.1} parent=5 // pred_fallthru
        _
      %p5837 = scmp.le.s32.totalorder 2, %s18
      // Predicated region
      $region61: #{net_forward.1} parent=5 // pred_check
        %p5838 = pneg %p5837
      $region62: #{net_forward.1} parent=5 // pred_check_branch
        %5840 = sbr.rel (%p5838) target = $region64
      $region63: #{net_forward.1} parent=5 // pred_region
        %s5841 = ssub.s32 %s18, 2
        // Predicated region
        $region65: #{net_forward.1} parent=63 // pred_check
          %p5842 = pneg %p241
        $region66: #{net_forward.1} parent=63 // pred_check_branch
          %5844 = sbr.rel (%p5842) target = $region68
        $region67: #{net_forward.1} parent=63 // pred_region
          %s5845 = sand.u32 %s226, 1
          %s5846 = scalar_lea.sflag [#allocation3], %s5845
          %s5847 = sand.u32 %s226, 1
          %s5848 = scalar_lea.vmem [#allocation2], %s5847
          %5850 = dma.done %s5846, 16
        $region68: #{net_forward.1} parent=63 // pred_fallthru
          _
      $region64: #{net_forward.1} parent=5 // pred_fallthru
        _
    $region6: #{net_forward.1} parent=1 // loop_footer
      %s22 = sadd.s32 1, %s18
    $region7: #{net_forward.1} parent=1 // loop_footer_branch
      %17 = sbr.rel target = $region3
    $region8: #{net_forward.1} parent=1 // loop_exit
      _
    %5851 = vsyncpa [#allocation3], 1
    %s5852 = scalar_lea.sflag [#allocation3], 1
    %5853 = vsyncpa %s5852, 1

</llo_original>
